<compile_context>
chip_gen: v7x
topology: tpu7x:2x2x1
jax: 0.10.0
libtpu: 0.0.40
codegen_flags: <defaults>
</compile_context>

<pallas_src>
import math

import jax
import jax.numpy as jnp
from jax.experimental import pallas as pl
from jax.experimental import pallas as _pl_unused  # keep namespace tidy
from jax.experimental.pallas import tpu as pltpu  # noqa: F401  (TPU backend)

# ----------------------------- configuration --------------------------------
NCLASSES = 20       # final classifier width (nn.Linear(20, 20))
HEAD_OUT = 20       # replaced ViT head:  Linear(hidden -> 20)
OUT_PAD = 128       # lane-dense padding of the 20-wide head/fc1 outputs
IMG = 32            # small image size
PATCH = 16          # patch size (vit_*_16 style)
CIN = 3             # RGB
HIDDEN = 32         # small hidden dim (real vitb16 = 768)
HEADS = 4
DH = HIDDEN // HEADS
MLP = 64
LAYERS = 2
EPS = 1e-6          # torchvision ViT LayerNorm eps

N_PATCH = (IMG // PATCH) ** 2          # number of patches
SEQ = N_PATCH + 1                      # + class token
PDIM = CIN * PATCH * PATCH             # flattened patch dim

# layout of the packed "small parameter" buffer (rows of a (32, 128) f32 array)
SMALL_ROWS = 32
_PER_LAYER_ROWS = 8                    # ln1_w, ln1_b, b_qkv, b_o, ln2_w, ln2_b, b1, b2
_FINAL_BASE = SEQ + LAYERS * _PER_LAYER_ROWS   # lnf_w, lnf_b, b_head, b_fc1
assert _FINAL_BASE + 4 <= SMALL_ROWS


# ------------------------------ in-kernel helpers ----------------------------
def _layernorm(x, w, b):
    mu = jnp.mean(x, axis=-1, keepdims=True)
    var = jnp.mean((x - mu) ** 2, axis=-1, keepdims=True)
    return (x - mu) * jax.lax.rsqrt(var + EPS) * w + b


def _gelu_exact(x):
    # torchvision MLP uses nn.GELU() (exact erf form)
    return 0.5 * x * (1.0 + jax.lax.erf(x / math.sqrt(2.0)))


# --------------------------------- fused kernel ------------------------------
def vitnet_kernel(patches_ref, w_patch_ref, wqkv_ref, wo_ref, w1_ref, w2_ref,
                  wh_ref, wf_ref, small_ref, out_ref):
    B = out_ref.shape[0]
    S, D, H, dh = SEQ, HIDDEN, HEADS, DH

    small = small_ref[...]                                        # (32, 128)
    pos_bias = small[0:S, 0:D]                                    # (S, D)

    # ---- patch embed + cls token + pos emb: ONE 2-D matmul + add -----------
    # patches_ref: (B*S, PDIM) with each batch's row 0 all-zero (cls slot);
    # pos_bias:    (S, D) = pos + (cls on row 0, conv bias on rows 1..).
    x = jnp.dot(patches_ref[...], w_patch_ref[...],
                preferred_element_type=jnp.float32)               # (B*S, D)
    x = (x.reshape(B, S, D) + pos_bias).reshape(B * S, D)

    # ---- encoder layers (unrolled at trace time, weights resident in VMEM) -
    for li in range(LAYERS):
        base = SEQ + li * _PER_LAYER_ROWS
        ln1w = small[base + 0:base + 1, 0:D]
        ln1b = small[base + 1:base + 2, 0:D]
        bqkv = small[base + 2:base + 3, 0:3 * D]
        bo = small[base + 3:base + 4, 0:D]
        ln2w = small[base + 4:base + 5, 0:D]
        ln2b = small[base + 5:base + 6, 0:D]
        b1 = small[base + 6:base + 7, 0:MLP]
        b2 = small[base + 7:base + 8, 0:D]

        # --- multi-head self-attention (pre-LN), fused QKV projection -------
        h = _layernorm(x, ln1w, ln1b)                             # (B*S, D)
        # 1/sqrt(dh) is folded into the Q columns of wqkv / bqkv at pack time.
        qkv = jnp.dot(h, wqkv_ref[li],
                      preferred_element_type=jnp.float32) + bqkv  # (B*S, 3D)
        qkv3 = qkv.reshape(B, S, 3 * D)

        ctx_heads = []
        for hh in range(H):
            qh = qkv3[:, :, hh * dh:(hh + 1) * dh]                # (B, S, dh)
            kh = qkv3[:, :, D + hh * dh:D + (hh + 1) * dh]
            vh = qkv3[:, :, 2 * D + hh * dh:2 * D + (hh + 1) * dh]
            s = jnp.einsum('bse,bte->bst', qh, kh,
                           preferred_element_type=jnp.float32)    # (B, S, S)
            s = s - jnp.max(s, axis=-1, keepdims=True)
            p = jnp.exp(s)
            p = p * pl.reciprocal(jnp.sum(p, axis=-1, keepdims=True),
                                  approx=True)
            ctx_heads.append(jnp.einsum('bst,bte->bse', p, vh,
                                        preferred_element_type=jnp.float32))
        ctx = jnp.concatenate(ctx_heads, axis=-1)                 # (B, S, D)
        ctx = ctx.reshape(B * S, D)
        # single output projection against the unsplit W_o
        x = x + jnp.dot(ctx, wo_ref[li],
                        preferred_element_type=jnp.float32) + bo
        # attention / projection dropout p=0.0 in torchvision ViT

        # --- MLP block (pre-LN), plain 2-D matmuls ---------------------------
        h2 = _layernorm(x, ln2w, ln2b)
        m = jnp.dot(h2, w1_ref[li], preferred_element_type=jnp.float32) + b1
        m = _gelu_exact(m)
        m = jnp.dot(m, w2_ref[li], preferred_element_type=jnp.float32) + b2
        x = x + m

    # ---- final LN -> head Linear -> Dropout(eval id) -> fc1 -> ReLU --------
    lnfw = small[_FINAL_BASE + 0:_FINAL_BASE + 1, 0:D]
    lnfb = small[_FINAL_BASE + 1:_FINAL_BASE + 2, 0:D]
    bh = small[_FINAL_BASE + 2:_FINAL_BASE + 3, :]                # (1, 128)
    bf = small[_FINAL_BASE + 3:_FINAL_BASE + 4, :]                # (1, 128)

    cls = x.reshape(B, S, D)[:, 0, :]                             # (B, D)
    c = _layernorm(cls, lnfw, lnfb)
    c = jnp.dot(c, wh_ref[...], preferred_element_type=jnp.float32) + bh
    # nn.Dropout(p=0.5) is identity in eval mode (no RNG drawn here)
    c = jnp.dot(c, wf_ref[...], preferred_element_type=jnp.float32) + bf
    out_ref[...] = jnp.maximum(c, 0.0)                            # (B, 128)


# ------------------------------- pallas wrapper -------------------------------
def _full_spec(shape):
    return pl.BlockSpec(shape, lambda *_: tuple(0 for _ in shape))


def extract_patches(x):
    # x: (B, C, H, W) NCHW -> (B*N, C*p*p), patch order row-major over (H/p, W/p),
    # inner order (C, p, p) to match torch conv_proj weight flattening.
    B, C, H, W = x.shape
    nh, nw = H // PATCH, W // PATCH
    x = x.reshape(B, C, nh, PATCH, nw, PATCH)
    x = x.transpose(0, 2, 4, 1, 3, 5)              # (B, nh, nw, C, p, p)
    return x.reshape(B * nh * nw, C * PATCH * PATCH)


def pack_params(params):
    """One-time preprocessing of logical params into the fused-kernel layout."""
    D, dh = HIDDEN, DH
    scale = 1.0 / math.sqrt(dh)

    # cls token, positional embedding and conv bias folded into one (S, D) bias.
    pos = params["pos_emb"][0]                                     # (S, D)
    row0 = (pos[0] + params["cls_token"][0, 0])[None, :]           # cls gets no conv bias
    rows = pos[1:] + params["b_patch"]                             # patches get conv bias
    pos_bias = jnp.concatenate([row0, rows], axis=0)               # (S, D)

    layers = params["layers"]

    def scaled_wqkv(lp):   # fold 1/sqrt(dh) into the Q columns
        w = lp["w_qkv"]
        return jnp.concatenate([w[:, :D] * scale, w[:, D:]], axis=1)

    def scaled_bqkv(lp):
        b = lp["b_qkv"][0]
        return jnp.concatenate([b[:D] * scale, b[D:]], axis=0)

    wqkv = jnp.stack([scaled_wqkv(lp) for lp in layers])           # (L, D, 3D)
    wo = jnp.stack([lp["w_o"] for lp in layers])                   # (L, D, D)
    w1 = jnp.stack([lp["w_mlp1"] for lp in layers])                # (L, D, MLP)
    w2 = jnp.stack([lp["w_mlp2"] for lp in layers])                # (L, MLP, D)

    # pack every tiny vector parameter into one lane-dense (32, 128) buffer
    small = jnp.zeros((SMALL_ROWS, OUT_PAD), jnp.float32)
    small = small.at[0:SEQ, 0:D].set(pos_bias)
    for li, lp in enumerate(layers):
        base = SEQ + li * _PER_LAYER_ROWS
        small = small.at[base + 0, 0:D].set(lp["ln1_w"][0])
        small = small.at[base + 1, 0:D].set(lp["ln1_b"][0])
        small = small.at[base + 2, 0:3 * D].set(scaled_bqkv(lp))
        small = small.at[base + 3, 0:D].set(lp["b_o"][0])
        small = small.at[base + 4, 0:D].set(lp["ln2_w"][0])
        small = small.at[base + 5, 0:D].set(lp["ln2_b"][0])
        small = small.at[base + 6, 0:MLP].set(lp["b_mlp1"][0])
        small = small.at[base + 7, 0:D].set(lp["b_mlp2"][0])
    small = small.at[_FINAL_BASE + 0, 0:D].set(params["ln_f_w"][0])
    small = small.at[_FINAL_BASE + 1, 0:D].set(params["ln_f_b"][0])
    small = small.at[_FINAL_BASE + 2, 0:HEAD_OUT].set(params["b_head"][0])
    small = small.at[_FINAL_BASE + 3, 0:NCLASSES].set(params["b_fc1"][0])

    # zero-pad head/fc1 to a lane-dense 128-wide output block.
    w_head = jnp.zeros((D, OUT_PAD), jnp.float32).at[:, :HEAD_OUT].set(params["w_head"])
    w_fc1 = jnp.zeros((OUT_PAD, OUT_PAD), jnp.float32).at[:HEAD_OUT, :NCLASSES].set(params["w_fc1"])

    return dict(w_patch=params["w_patch"], wqkv=wqkv, wo=wo, w1=w1, w2=w2,
                w_head=w_head, w_fc1=w_fc1, small=small)


def vitnet_forward(x, packed):
    B = x.shape[0]
    # wrapper glue (pure XLA): patch extraction + zero "cls slot" row, then
    # flattened to (B*S, PDIM) so the kernel works on plain 2-D matrices.
    patches = extract_patches(x).reshape(B, N_PATCH, PDIM)
    patches_aug = jnp.concatenate(
        [jnp.zeros((B, 1, PDIM), jnp.float32), patches], axis=1)   # (B, S, PDIM)
    patches_flat = patches_aug.reshape(B * SEQ, PDIM)

    args = [patches_flat, packed["w_patch"], packed["wqkv"], packed["wo"],
            packed["w1"], packed["w2"], packed["w_head"], packed["w_fc1"],
            packed["small"]]

    out = pl.pallas_call(
        vitnet_kernel,
        out_shape=jax.ShapeDtypeStruct((B, OUT_PAD), jnp.float32),
        in_specs=[_full_spec(a.shape) for a in args],
        out_specs=_full_spec((B, OUT_PAD)),
    )(*args)
    return out[:, :NCLASSES]


# --------------------------- pure-JAX reference -------------------------------
def vitnet_reference(x, params):
    B = x.shape[0]
    tok = extract_patches(x) @ params["w_patch"] + params["b_patch"]
    tok = tok.reshape(B, N_PATCH, HIDDEN)
    cls = jnp.broadcast_to(params["cls_token"], (B, 1, HIDDEN))
    s = jnp.concatenate([cls, tok], axis=1) + params["pos_emb"]
    for lp in params["layers"]:
        h = _layernorm(s, lp["ln1_w"], lp["ln1_b"])
        qkv = h @ lp["w_qkv"] + lp["b_qkv"]
        q, k, v = jnp.split(qkv, 3, axis=-1)
        dh = HIDDEN // HEADS
        q = q.reshape(B, SEQ, HEADS, dh).transpose(0, 2, 1, 3)
        k = k.reshape(B, SEQ, HEADS, dh).transpose(0, 2, 1, 3)
        v = v.reshape(B, SEQ, HEADS, dh).transpose(0, 2, 1, 3)
        att = jax.nn.softmax(q @ k.transpose(0, 1, 3, 2) / math.sqrt(dh), axis=-1)
        o = (att @ v).transpose(0, 2, 1, 3).reshape(B, SEQ, HIDDEN)
        s = s + o @ lp["w_o"] + lp["b_o"]
        h2 = _layernorm(s, lp["ln2_w"], lp["ln2_b"])
        m = _gelu_exact(h2 @ lp["w_mlp1"] + lp["b_mlp1"]) @ lp["w_mlp2"] + lp["b_mlp2"]
        s = s + m
    c = _layernorm(s[:, 0, :], params["ln_f_w"], params["ln_f_b"])
    c = c @ params["w_head"] + params["b_head"]
    c = c @ params["w_fc1"] + params["b_fc1"]
    return jnp.maximum(c, 0.0)


# ------------------------------ deterministic init ----------------------------
def init_params(key):
    def nrm(k, shape, std=0.02):
        return (std * jax.random.normal(k, shape)).astype(jnp.float32)

    keys = jax.random.split(key, 8 + LAYERS)
    params = {
        "w_patch": nrm(keys[0], (PDIM, HIDDEN)),
        "b_patch": jnp.zeros((1, HIDDEN), jnp.float32),
        "cls_token": nrm(keys[1], (1, 1, HIDDEN)),
        "pos_emb": nrm(keys[2], (1, SEQ, HIDDEN)),
        "ln_f_w": jnp.ones((1, HIDDEN), jnp.float32),
        "ln_f_b": jnp.zeros((1, HIDDEN), jnp.float32),
        "w_head": nrm(keys[3], (HIDDEN, HEAD_OUT)),
        "b_head": nrm(keys[4], (1, HEAD_OUT)),
        "w_fc1": nrm(keys[5], (HEAD_OUT, NCLASSES)),
        "b_fc1": nrm(keys[6], (1, NCLASSES)),
        "layers": [],
    }
    for li in range(LAYERS):
        ks = jax.random.split(keys[8 + li], 6)
        params["layers"].append({
            "ln1_w": jnp.ones((1, HIDDEN), jnp.float32),
            "ln1_b": jnp.zeros((1, HIDDEN), jnp.float32),
            "w_qkv": nrm(ks[0], (HIDDEN, 3 * HIDDEN)),
            "b_qkv": nrm(ks[1], (1, 3 * HIDDEN)),
            "w_o": nrm(ks[2], (HIDDEN, HIDDEN)),
            "b_o": jnp.zeros((1, HIDDEN), jnp.float32),
            "ln2_w": jnp.ones((1, HIDDEN), jnp.float32),
            "ln2_b": jnp.zeros((1, HIDDEN), jnp.float32),
            "w_mlp1": nrm(ks[3], (HIDDEN, MLP)),
            "b_mlp1": nrm(ks[4], (1, MLP)),
            "w_mlp2": nrm(ks[5], (MLP, HIDDEN)),
            "b_mlp2": jnp.zeros((1, HIDDEN), jnp.float32),
        })
    return params


# ------------------------------------ main ------------------------------------
if __name__ == "__main__":
    key = jax.random.PRNGKey(0)
    kx, kp = jax.random.split(key)
    x = jax.random.normal(kx, (2, CIN, IMG, IMG), dtype=jnp.float32)  # NCHW like torch
    params = init_params(kp)
    packed = pack_params(params)          # one-time weight repacking (XLA glue)

    fwd = jax.jit(vitnet_forward)
    out = jax.block_until_ready(fwd(x, packed))
    ref = jax.block_until_ready(vitnet_reference(x, params))

    assert out.shape == (2, NCLASSES), out.shape
    assert jnp.allclose(out, ref, rtol=1e-3, atol=1e-3), "mismatch vs reference"
    # TODO(synk): nn.Dropout(p=0.5) is treated as eval-mode identity (no RNG);
    # pretrained SWAG torchvision weights are replaced by deterministic synthetic init.
    print("KERNEL_OK")
</pallas_src>

<mosaic_0001>
module attributes {stable_mosaic.version = 11 : i64} {
  func.func @vitnet_kernel(%arg0: memref<10x768xf32, #tpu.memory_space<vmem>>, %arg1: memref<768x32xf32, #tpu.memory_space<vmem>>, %arg2: memref<2x32x96xf32, #tpu.memory_space<vmem>>, %arg3: memref<2x32x32xf32, #tpu.memory_space<vmem>>, %arg4: memref<2x32x64xf32, #tpu.memory_space<vmem>>, %arg5: memref<2x64x32xf32, #tpu.memory_space<vmem>>, %arg6: memref<32x128xf32, #tpu.memory_space<vmem>>, %arg7: memref<128x128xf32, #tpu.memory_space<vmem>>, %arg8: memref<32x128xf32, #tpu.memory_space<vmem>>, %arg9: memref<2x128xf32, #tpu.memory_space<vmem>>) attributes {dimension_semantics = [], scalar_prefetch = 0 : i64, scratch_operands = 0 : i64, tpu.core_type = #tpu.core_type<tc>} {
    %c0 = arith.constant 0 : index
    %c0_0 = arith.constant 0 : index
    %0 = vector.load %arg8[%c0, %c0_0] : memref<32x128xf32, #tpu.memory_space<vmem>>, vector<32x128xf32>
    %1 = vector.extract_strided_slice %0 {offsets = [0, 0], sizes = [5, 32], strides = [1, 1]} : vector<32x128xf32> to vector<5x32xf32>
    %c0_1 = arith.constant 0 : index
    %c0_2 = arith.constant 0 : index
    %2 = vector.load %arg0[%c0_1, %c0_2] : memref<10x768xf32, #tpu.memory_space<vmem>>, vector<10x768xf32>
    %c0_3 = arith.constant 0 : index
    %c0_4 = arith.constant 0 : index
    %3 = vector.load %arg1[%c0_3, %c0_4] : memref<768x32xf32, #tpu.memory_space<vmem>>, vector<768x32xf32>
    %cst = arith.constant dense<0.000000e+00> : vector<10x32xf32>
    %4 = tpu.matmul %2, %3, %cst {dimension_numbers = #tpu.dot_dimension_numbers<[1], [0], [0], [1], [0, 0, 1, 1], [], []>} : vector<10x768xf32>, vector<768x32xf32>, vector<10x32xf32> -> vector<10x32xf32>
    %5 = vector.shape_cast %4 : vector<10x32xf32> to vector<2x5x32xf32>
    %6 = vector.shape_cast %1 : vector<5x32xf32> to vector<1x5x32xf32>
    %7 = vector.broadcast %6 : vector<1x5x32xf32> to vector<2x5x32xf32>
    %8 = arith.addf %5, %7 : vector<2x5x32xf32>
    %9 = vector.shape_cast %8 : vector<2x5x32xf32> to vector<10x32xf32>
    %10 = vector.extract_strided_slice %0 {offsets = [5, 0], sizes = [1, 32], strides = [1, 1]} : vector<32x128xf32> to vector<1x32xf32>
    %11 = vector.extract_strided_slice %0 {offsets = [6, 0], sizes = [1, 32], strides = [1, 1]} : vector<32x128xf32> to vector<1x32xf32>
    %12 = vector.extract_strided_slice %0 {offsets = [7, 0], sizes = [1, 96], strides = [1, 1]} : vector<32x128xf32> to vector<1x96xf32>
    %13 = vector.extract_strided_slice %0 {offsets = [8, 0], sizes = [1, 32], strides = [1, 1]} : vector<32x128xf32> to vector<1x32xf32>
    %14 = vector.extract_strided_slice %0 {offsets = [9, 0], sizes = [1, 32], strides = [1, 1]} : vector<32x128xf32> to vector<1x32xf32>
    %15 = vector.extract_strided_slice %0 {offsets = [10, 0], sizes = [1, 32], strides = [1, 1]} : vector<32x128xf32> to vector<1x32xf32>
    %16 = vector.extract_strided_slice %0 {offsets = [11, 0], sizes = [1, 64], strides = [1, 1]} : vector<32x128xf32> to vector<1x64xf32>
    %17 = vector.extract_strided_slice %0 {offsets = [12, 0], sizes = [1, 32], strides = [1, 1]} : vector<32x128xf32> to vector<1x32xf32>
    %cst_5 = arith.constant dense<0.000000e+00> : vector<10xf32>
    %18 = vector.multi_reduction <add>, %9, %cst_5 [1] : vector<10x32xf32> to vector<10xf32>
    %19 = vector.shape_cast %18 : vector<10xf32> to vector<10x1xf32>
    %cst_6 = arith.constant 3.200000e+01 : f32
    %20 = vector.broadcast %cst_6 : f32 to vector<10x1xf32>
    %21 = arith.divf %19, %20 : vector<10x1xf32>
    %22 = vector.broadcast %21 : vector<10x1xf32> to vector<10x32xf32>
    %23 = arith.subf %9, %22 : vector<10x32xf32>
    %24 = arith.mulf %23, %23 : vector<10x32xf32>
    %cst_7 = arith.constant dense<0.000000e+00> : vector<10xf32>
    %25 = vector.multi_reduction <add>, %24, %cst_7 [1] : vector<10x32xf32> to vector<10xf32>
    %26 = vector.shape_cast %25 : vector<10xf32> to vector<10x1xf32>
    %cst_8 = arith.constant 3.200000e+01 : f32
    %27 = vector.broadcast %cst_8 : f32 to vector<10x1xf32>
    %28 = arith.divf %26, %27 : vector<10x1xf32>
    %29 = vector.broadcast %21 : vector<10x1xf32> to vector<10x32xf32>
    %30 = arith.subf %9, %29 : vector<10x32xf32>
    %cst_9 = arith.constant 9.99999997E-7 : f32
    %31 = vector.broadcast %cst_9 : f32 to vector<10x1xf32>
    %32 = arith.addf %28, %31 : vector<10x1xf32>
    %33 = math.rsqrt %32 : vector<10x1xf32>
    %34 = vector.broadcast %33 : vector<10x1xf32> to vector<10x32xf32>
    %35 = arith.mulf %30, %34 : vector<10x32xf32>
    %36 = vector.broadcast %10 : vector<1x32xf32> to vector<10x32xf32>
    %37 = arith.mulf %35, %36 : vector<10x32xf32>
    %38 = vector.broadcast %11 : vector<1x32xf32> to vector<10x32xf32>
    %39 = arith.addf %37, %38 : vector<10x32xf32>
    %c0_10 = arith.constant 0 : index
    %c0_11 = arith.constant 0 : index
    %c0_12 = arith.constant 0 : index
    %40 = vector.load %arg2[%c0_10, %c0_11, %c0_12] : memref<2x32x96xf32, #tpu.memory_space<vmem>>, vector<1x32x96xf32>
    %41 = vector.shape_cast %40 : vector<1x32x96xf32> to vector<32x96xf32>
    %cst_13 = arith.constant dense<0.000000e+00> : vector<10x96xf32>
    %42 = tpu.matmul %39, %41, %cst_13 {dimension_numbers = #tpu.dot_dimension_numbers<[1], [0], [0], [1], [0, 0, 1, 1], [], []>} : vector<10x32xf32>, vector<32x96xf32>, vector<10x96xf32> -> vector<10x96xf32>
    %43 = vector.broadcast %12 : vector<1x96xf32> to vector<10x96xf32>
    %44 = arith.addf %42, %43 : vector<10x96xf32>
    %45 = vector.shape_cast %44 : vector<10x96xf32> to vector<2x5x96xf32>
    %46 = vector.extract_strided_slice %45 {offsets = [0, 0, 0], sizes = [2, 5, 8], strides = [1, 1, 1]} : vector<2x5x96xf32> to vector<2x5x8xf32>
    %47 = vector.extract_strided_slice %45 {offsets = [0, 0, 32], sizes = [2, 5, 8], strides = [1, 1, 1]} : vector<2x5x96xf32> to vector<2x5x8xf32>
    %48 = vector.extract_strided_slice %45 {offsets = [0, 0, 64], sizes = [2, 5, 8], strides = [1, 1, 1]} : vector<2x5x96xf32> to vector<2x5x8xf32>
    "tpu.trace_start"() <{level = 10 : i32, message = "bse,bte->bst"}> : () -> ()
    %cst_14 = arith.constant dense<0.000000e+00> : vector<2x5x5xf32>
    %49 = tpu.matmul %46, %47, %cst_14 {dimension_numbers = #tpu.dot_dimension_numbers<[2], [2], [1], [1], [0, 0, 0, 1, 1, 1], [0], [0]>} : vector<2x5x8xf32>, vector<2x5x8xf32>, vector<2x5x5xf32> -> vector<2x5x5xf32>
    "tpu.trace_stop"() : () -> ()
    %cst_15 = arith.constant dense<0xFF800000> : vector<2x5xf32>
    %50 = vector.multi_reduction <maximumf>, %49, %cst_15 [2] : vector<2x5x5xf32> to vector<2x5xf32>
    %51 = vector.shape_cast %50 : vector<2x5xf32> to vector<2x5x1xf32>
    %52 = vector.broadcast %51 : vector<2x5x1xf32> to vector<2x5x5xf32>
    %53 = arith.subf %49, %52 : vector<2x5x5xf32>
    %54 = math.exp %53 : vector<2x5x5xf32>
    %cst_16 = arith.constant dense<0.000000e+00> : vector<2x5xf32>
    %55 = vector.multi_reduction <add>, %54, %cst_16 [2] : vector<2x5x5xf32> to vector<2x5xf32>
    %56 = vector.shape_cast %55 : vector<2x5xf32> to vector<2x5x1xf32>
    %57 = tpu.reciprocal %56 {approx = true} : vector<2x5x1xf32> -> vector<2x5x1xf32>
    %58 = vector.broadcast %57 : vector<2x5x1xf32> to vector<2x5x5xf32>
    %59 = arith.mulf %54, %58 : vector<2x5x5xf32>
    "tpu.trace_start"() <{level = 10 : i32, message = "bst,bte->bse"}> : () -> ()
    %cst_17 = arith.constant dense<0.000000e+00> : vector<2x5x8xf32>
    %60 = tpu.matmul %59, %48, %cst_17 {dimension_numbers = #tpu.dot_dimension_numbers<[2], [1], [1], [2], [0, 0, 0, 1, 1, 2], [0], [0]>} : vector<2x5x5xf32>, vector<2x5x8xf32>, vector<2x5x8xf32> -> vector<2x5x8xf32>
    "tpu.trace_stop"() : () -> ()
    %61 = vector.extract_strided_slice %45 {offsets = [0, 0, 8], sizes = [2, 5, 8], strides = [1, 1, 1]} : vector<2x5x96xf32> to vector<2x5x8xf32>
    %62 = vector.extract_strided_slice %45 {offsets = [0, 0, 40], sizes = [2, 5, 8], strides = [1, 1, 1]} : vector<2x5x96xf32> to vector<2x5x8xf32>
    %63 = vector.extract_strided_slice %45 {offsets = [0, 0, 72], sizes = [2, 5, 8], strides = [1, 1, 1]} : vector<2x5x96xf32> to vector<2x5x8xf32>
    "tpu.trace_start"() <{level = 10 : i32, message = "bse,bte->bst"}> : () -> ()
    %cst_18 = arith.constant dense<0.000000e+00> : vector<2x5x5xf32>
    %64 = tpu.matmul %61, %62, %cst_18 {dimension_numbers = #tpu.dot_dimension_numbers<[2], [2], [1], [1], [0, 0, 0, 1, 1, 1], [0], [0]>} : vector<2x5x8xf32>, vector<2x5x8xf32>, vector<2x5x5xf32> -> vector<2x5x5xf32>
    "tpu.trace_stop"() : () -> ()
    %cst_19 = arith.constant dense<0xFF800000> : vector<2x5xf32>
    %65 = vector.multi_reduction <maximumf>, %64, %cst_19 [2] : vector<2x5x5xf32> to vector<2x5xf32>
    %66 = vector.shape_cast %65 : vector<2x5xf32> to vector<2x5x1xf32>
    %67 = vector.broadcast %66 : vector<2x5x1xf32> to vector<2x5x5xf32>
    %68 = arith.subf %64, %67 : vector<2x5x5xf32>
    %69 = math.exp %68 : vector<2x5x5xf32>
    %cst_20 = arith.constant dense<0.000000e+00> : vector<2x5xf32>
    %70 = vector.multi_reduction <add>, %69, %cst_20 [2] : vector<2x5x5xf32> to vector<2x5xf32>
    %71 = vector.shape_cast %70 : vector<2x5xf32> to vector<2x5x1xf32>
    %72 = tpu.reciprocal %71 {approx = true} : vector<2x5x1xf32> -> vector<2x5x1xf32>
    %73 = vector.broadcast %72 : vector<2x5x1xf32> to vector<2x5x5xf32>
    %74 = arith.mulf %69, %73 : vector<2x5x5xf32>
    "tpu.trace_start"() <{level = 10 : i32, message = "bst,bte->bse"}> : () -> ()
    %cst_21 = arith.constant dense<0.000000e+00> : vector<2x5x8xf32>
    %75 = tpu.matmul %74, %63, %cst_21 {dimension_numbers = #tpu.dot_dimension_numbers<[2], [1], [1], [2], [0, 0, 0, 1, 1, 2], [0], [0]>} : vector<2x5x5xf32>, vector<2x5x8xf32>, vector<2x5x8xf32> -> vector<2x5x8xf32>
    "tpu.trace_stop"() : () -> ()
    %76 = vector.extract_strided_slice %45 {offsets = [0, 0, 16], sizes = [2, 5, 8], strides = [1, 1, 1]} : vector<2x5x96xf32> to vector<2x5x8xf32>
    %77 = vector.extract_strided_slice %45 {offsets = [0, 0, 48], sizes = [2, 5, 8], strides = [1, 1, 1]} : vector<2x5x96xf32> to vector<2x5x8xf32>
    %78 = vector.extract_strided_slice %45 {offsets = [0, 0, 80], sizes = [2, 5, 8], strides = [1, 1, 1]} : vector<2x5x96xf32> to vector<2x5x8xf32>
    "tpu.trace_start"() <{level = 10 : i32, message = "bse,bte->bst"}> : () -> ()
    %cst_22 = arith.constant dense<0.000000e+00> : vector<2x5x5xf32>
    %79 = tpu.matmul %76, %77, %cst_22 {dimension_numbers = #tpu.dot_dimension_numbers<[2], [2], [1], [1], [0, 0, 0, 1, 1, 1], [0], [0]>} : vector<2x5x8xf32>, vector<2x5x8xf32>, vector<2x5x5xf32> -> vector<2x5x5xf32>
    "tpu.trace_stop"() : () -> ()
    %cst_23 = arith.constant dense<0xFF800000> : vector<2x5xf32>
    %80 = vector.multi_reduction <maximumf>, %79, %cst_23 [2] : vector<2x5x5xf32> to vector<2x5xf32>
    %81 = vector.shape_cast %80 : vector<2x5xf32> to vector<2x5x1xf32>
    %82 = vector.broadcast %81 : vector<2x5x1xf32> to vector<2x5x5xf32>
    %83 = arith.subf %79, %82 : vector<2x5x5xf32>
    %84 = math.exp %83 : vector<2x5x5xf32>
    %cst_24 = arith.constant dense<0.000000e+00> : vector<2x5xf32>
    %85 = vector.multi_reduction <add>, %84, %cst_24 [2] : vector<2x5x5xf32> to vector<2x5xf32>
    %86 = vector.shape_cast %85 : vector<2x5xf32> to vector<2x5x1xf32>
    %87 = tpu.reciprocal %86 {approx = true} : vector<2x5x1xf32> -> vector<2x5x1xf32>
    %88 = vector.broadcast %87 : vector<2x5x1xf32> to vector<2x5x5xf32>
    %89 = arith.mulf %84, %88 : vector<2x5x5xf32>
    "tpu.trace_start"() <{level = 10 : i32, message = "bst,bte->bse"}> : () -> ()
    %cst_25 = arith.constant dense<0.000000e+00> : vector<2x5x8xf32>
    %90 = tpu.matmul %89, %78, %cst_25 {dimension_numbers = #tpu.dot_dimension_numbers<[2], [1], [1], [2], [0, 0, 0, 1, 1, 2], [0], [0]>} : vector<2x5x5xf32>, vector<2x5x8xf32>, vector<2x5x8xf32> -> vector<2x5x8xf32>
    "tpu.trace_stop"() : () -> ()
    %91 = vector.extract_strided_slice %45 {offsets = [0, 0, 24], sizes = [2, 5, 8], strides = [1, 1, 1]} : vector<2x5x96xf32> to vector<2x5x8xf32>
    %92 = vector.extract_strided_slice %45 {offsets = [0, 0, 56], sizes = [2, 5, 8], strides = [1, 1, 1]} : vector<2x5x96xf32> to vector<2x5x8xf32>
    %93 = vector.extract_strided_slice %45 {offsets = [0, 0, 88], sizes = [2, 5, 8], strides = [1, 1, 1]} : vector<2x5x96xf32> to vector<2x5x8xf32>
    "tpu.trace_start"() <{level = 10 : i32, message = "bse,bte->bst"}> : () -> ()
    %cst_26 = arith.constant dense<0.000000e+00> : vector<2x5x5xf32>
    %94 = tpu.matmul %91, %92, %cst_26 {dimension_numbers = #tpu.dot_dimension_numbers<[2], [2], [1], [1], [0, 0, 0, 1, 1, 1], [0], [0]>} : vector<2x5x8xf32>, vector<2x5x8xf32>, vector<2x5x5xf32> -> vector<2x5x5xf32>
    "tpu.trace_stop"() : () -> ()
    %cst_27 = arith.constant dense<0xFF800000> : vector<2x5xf32>
    %95 = vector.multi_reduction <maximumf>, %94, %cst_27 [2] : vector<2x5x5xf32> to vector<2x5xf32>
    %96 = vector.shape_cast %95 : vector<2x5xf32> to vector<2x5x1xf32>
    %97 = vector.broadcast %96 : vector<2x5x1xf32> to vector<2x5x5xf32>
    %98 = arith.subf %94, %97 : vector<2x5x5xf32>
    %99 = math.exp %98 : vector<2x5x5xf32>
    %cst_28 = arith.constant dense<0.000000e+00> : vector<2x5xf32>
    %100 = vector.multi_reduction <add>, %99, %cst_28 [2] : vector<2x5x5xf32> to vector<2x5xf32>
    %101 = vector.shape_cast %100 : vector<2x5xf32> to vector<2x5x1xf32>
    %102 = tpu.reciprocal %101 {approx = true} : vector<2x5x1xf32> -> vector<2x5x1xf32>
    %103 = vector.broadcast %102 : vector<2x5x1xf32> to vector<2x5x5xf32>
    %104 = arith.mulf %99, %103 : vector<2x5x5xf32>
    "tpu.trace_start"() <{level = 10 : i32, message = "bst,bte->bse"}> : () -> ()
    %cst_29 = arith.constant dense<0.000000e+00> : vector<2x5x8xf32>
    %105 = tpu.matmul %104, %93, %cst_29 {dimension_numbers = #tpu.dot_dimension_numbers<[2], [1], [1], [2], [0, 0, 0, 1, 1, 2], [0], [0]>} : vector<2x5x5xf32>, vector<2x5x8xf32>, vector<2x5x8xf32> -> vector<2x5x8xf32>
    "tpu.trace_stop"() : () -> ()
    %106 = tpu.concatenate %60, %75, %90, %105 in 2 : vector<2x5x8xf32>, vector<2x5x8xf32>, vector<2x5x8xf32>, vector<2x5x8xf32> -> vector<2x5x32xf32>
    %107 = vector.shape_cast %106 : vector<2x5x32xf32> to vector<10x32xf32>
    %c0_30 = arith.constant 0 : index
    %c0_31 = arith.constant 0 : index
    %c0_32 = arith.constant 0 : index
    %108 = vector.load %arg3[%c0_30, %c0_31, %c0_32] : memref<2x32x32xf32, #tpu.memory_space<vmem>>, vector<1x32x32xf32>
    %109 = vector.shape_cast %108 : vector<1x32x32xf32> to vector<32x32xf32>
    %cst_33 = arith.constant dense<0.000000e+00> : vector<10x32xf32>
    %110 = tpu.matmul %107, %109, %cst_33 {dimension_numbers = #tpu.dot_dimension_numbers<[1], [0], [0], [1], [0, 0, 1, 1], [], []>} : vector<10x32xf32>, vector<32x32xf32>, vector<10x32xf32> -> vector<10x32xf32>
    %111 = arith.addf %9, %110 : vector<10x32xf32>
    %112 = vector.broadcast %13 : vector<1x32xf32> to vector<10x32xf32>
    %113 = arith.addf %111, %112 : vector<10x32xf32>
    %cst_34 = arith.constant dense<0.000000e+00> : vector<10xf32>
    %114 = vector.multi_reduction <add>, %113, %cst_34 [1] : vector<10x32xf32> to vector<10xf32>
    %115 = vector.shape_cast %114 : vector<10xf32> to vector<10x1xf32>
    %cst_35 = arith.constant 3.200000e+01 : f32
    %116 = vector.broadcast %cst_35 : f32 to vector<10x1xf32>
    %117 = arith.divf %115, %116 : vector<10x1xf32>
    %118 = vector.broadcast %117 : vector<10x1xf32> to vector<10x32xf32>
    %119 = arith.subf %113, %118 : vector<10x32xf32>
    %120 = arith.mulf %119, %119 : vector<10x32xf32>
    %cst_36 = arith.constant dense<0.000000e+00> : vector<10xf32>
    %121 = vector.multi_reduction <add>, %120, %cst_36 [1] : vector<10x32xf32> to vector<10xf32>
    %122 = vector.shape_cast %121 : vector<10xf32> to vector<10x1xf32>
    %cst_37 = arith.constant 3.200000e+01 : f32
    %123 = vector.broadcast %cst_37 : f32 to vector<10x1xf32>
    %124 = arith.divf %122, %123 : vector<10x1xf32>
    %125 = vector.broadcast %117 : vector<10x1xf32> to vector<10x32xf32>
    %126 = arith.subf %113, %125 : vector<10x32xf32>
    %cst_38 = arith.constant 9.99999997E-7 : f32
    %127 = vector.broadcast %cst_38 : f32 to vector<10x1xf32>
    %128 = arith.addf %124, %127 : vector<10x1xf32>
    %129 = math.rsqrt %128 : vector<10x1xf32>
    %130 = vector.broadcast %129 : vector<10x1xf32> to vector<10x32xf32>
    %131 = arith.mulf %126, %130 : vector<10x32xf32>
    %132 = vector.broadcast %14 : vector<1x32xf32> to vector<10x32xf32>
    %133 = arith.mulf %131, %132 : vector<10x32xf32>
    %134 = vector.broadcast %15 : vector<1x32xf32> to vector<10x32xf32>
    %135 = arith.addf %133, %134 : vector<10x32xf32>
    %c0_39 = arith.constant 0 : index
    %c0_40 = arith.constant 0 : index
    %c0_41 = arith.constant 0 : index
    %136 = vector.load %arg4[%c0_39, %c0_40, %c0_41] : memref<2x32x64xf32, #tpu.memory_space<vmem>>, vector<1x32x64xf32>
    %137 = vector.shape_cast %136 : vector<1x32x64xf32> to vector<32x64xf32>
    %cst_42 = arith.constant dense<0.000000e+00> : vector<10x64xf32>
    %138 = tpu.matmul %135, %137, %cst_42 {dimension_numbers = #tpu.dot_dimension_numbers<[1], [0], [0], [1], [0, 0, 1, 1], [], []>} : vector<10x32xf32>, vector<32x64xf32>, vector<10x64xf32> -> vector<10x64xf32>
    %139 = vector.broadcast %16 : vector<1x64xf32> to vector<10x64xf32>
    %140 = arith.addf %138, %139 : vector<10x64xf32>
    %cst_43 = arith.constant 5.000000e-01 : f32
    %141 = vector.broadcast %cst_43 : f32 to vector<10x64xf32>
    %142 = arith.mulf %141, %140 : vector<10x64xf32>
    %cst_44 = arith.constant 1.41421354 : f32
    %143 = vector.broadcast %cst_44 : f32 to vector<10x64xf32>
    %144 = arith.divf %140, %143 : vector<10x64xf32>
    %145 = math.erf %144 : vector<10x64xf32>
    %cst_45 = arith.constant 1.000000e+00 : f32
    %146 = vector.broadcast %cst_45 : f32 to vector<10x64xf32>
    %147 = arith.addf %146, %145 : vector<10x64xf32>
    %148 = arith.mulf %142, %147 : vector<10x64xf32>
    %c0_46 = arith.constant 0 : index
    %c0_47 = arith.constant 0 : index
    %c0_48 = arith.constant 0 : index
    %149 = vector.load %arg5[%c0_46, %c0_47, %c0_48] : memref<2x64x32xf32, #tpu.memory_space<vmem>>, vector<1x64x32xf32>
    %150 = vector.shape_cast %149 : vector<1x64x32xf32> to vector<64x32xf32>
    %cst_49 = arith.constant dense<0.000000e+00> : vector<10x32xf32>
    %151 = tpu.matmul %148, %150, %cst_49 {dimension_numbers = #tpu.dot_dimension_numbers<[1], [0], [0], [1], [0, 0, 1, 1], [], []>} : vector<10x64xf32>, vector<64x32xf32>, vector<10x32xf32> -> vector<10x32xf32>
    %152 = vector.broadcast %17 : vector<1x32xf32> to vector<10x32xf32>
    %153 = arith.addf %151, %152 : vector<10x32xf32>
    %154 = arith.addf %113, %153 : vector<10x32xf32>
    %155 = vector.extract_strided_slice %0 {offsets = [13, 0], sizes = [1, 32], strides = [1, 1]} : vector<32x128xf32> to vector<1x32xf32>
    %156 = vector.extract_strided_slice %0 {offsets = [14, 0], sizes = [1, 32], strides = [1, 1]} : vector<32x128xf32> to vector<1x32xf32>
    %157 = vector.extract_strided_slice %0 {offsets = [15, 0], sizes = [1, 96], strides = [1, 1]} : vector<32x128xf32> to vector<1x96xf32>
    %158 = vector.extract_strided_slice %0 {offsets = [16, 0], sizes = [1, 32], strides = [1, 1]} : vector<32x128xf32> to vector<1x32xf32>
    %159 = vector.extract_strided_slice %0 {offsets = [17, 0], sizes = [1, 32], strides = [1, 1]} : vector<32x128xf32> to vector<1x32xf32>
    %160 = vector.extract_strided_slice %0 {offsets = [18, 0], sizes = [1, 32], strides = [1, 1]} : vector<32x128xf32> to vector<1x32xf32>
    %161 = vector.extract_strided_slice %0 {offsets = [19, 0], sizes = [1, 64], strides = [1, 1]} : vector<32x128xf32> to vector<1x64xf32>
    %162 = vector.extract_strided_slice %0 {offsets = [20, 0], sizes = [1, 32], strides = [1, 1]} : vector<32x128xf32> to vector<1x32xf32>
    %cst_50 = arith.constant dense<0.000000e+00> : vector<10xf32>
    %163 = vector.multi_reduction <add>, %154, %cst_50 [1] : vector<10x32xf32> to vector<10xf32>
    %164 = vector.shape_cast %163 : vector<10xf32> to vector<10x1xf32>
    %cst_51 = arith.constant 3.200000e+01 : f32
    %165 = vector.broadcast %cst_51 : f32 to vector<10x1xf32>
    %166 = arith.divf %164, %165 : vector<10x1xf32>
    %167 = vector.broadcast %166 : vector<10x1xf32> to vector<10x32xf32>
    %168 = arith.subf %154, %167 : vector<10x32xf32>
    %169 = arith.mulf %168, %168 : vector<10x32xf32>
    %cst_52 = arith.constant dense<0.000000e+00> : vector<10xf32>
    %170 = vector.multi_reduction <add>, %169, %cst_52 [1] : vector<10x32xf32> to vector<10xf32>
    %171 = vector.shape_cast %170 : vector<10xf32> to vector<10x1xf32>
    %cst_53 = arith.constant 3.200000e+01 : f32
    %172 = vector.broadcast %cst_53 : f32 to vector<10x1xf32>
    %173 = arith.divf %171, %172 : vector<10x1xf32>
    %174 = vector.broadcast %166 : vector<10x1xf32> to vector<10x32xf32>
    %175 = arith.subf %154, %174 : vector<10x32xf32>
    %cst_54 = arith.constant 9.99999997E-7 : f32
    %176 = vector.broadcast %cst_54 : f32 to vector<10x1xf32>
    %177 = arith.addf %173, %176 : vector<10x1xf32>
    %178 = math.rsqrt %177 : vector<10x1xf32>
    %179 = vector.broadcast %178 : vector<10x1xf32> to vector<10x32xf32>
    %180 = arith.mulf %175, %179 : vector<10x32xf32>
    %181 = vector.broadcast %155 : vector<1x32xf32> to vector<10x32xf32>
    %182 = arith.mulf %180, %181 : vector<10x32xf32>
    %183 = vector.broadcast %156 : vector<1x32xf32> to vector<10x32xf32>
    %184 = arith.addf %182, %183 : vector<10x32xf32>
    %c1 = arith.constant 1 : index
    %c0_55 = arith.constant 0 : index
    %c0_56 = arith.constant 0 : index
    %185 = vector.load %arg2[%c1, %c0_55, %c0_56] : memref<2x32x96xf32, #tpu.memory_space<vmem>>, vector<1x32x96xf32>
    %186 = vector.shape_cast %185 : vector<1x32x96xf32> to vector<32x96xf32>
    %cst_57 = arith.constant dense<0.000000e+00> : vector<10x96xf32>
    %187 = tpu.matmul %184, %186, %cst_57 {dimension_numbers = #tpu.dot_dimension_numbers<[1], [0], [0], [1], [0, 0, 1, 1], [], []>} : vector<10x32xf32>, vector<32x96xf32>, vector<10x96xf32> -> vector<10x96xf32>
    %188 = vector.broadcast %157 : vector<1x96xf32> to vector<10x96xf32>
    %189 = arith.addf %187, %188 : vector<10x96xf32>
    %190 = vector.shape_cast %189 : vector<10x96xf32> to vector<2x5x96xf32>
    %191 = vector.extract_strided_slice %190 {offsets = [0, 0, 0], sizes = [2, 5, 8], strides = [1, 1, 1]} : vector<2x5x96xf32> to vector<2x5x8xf32>
    %192 = vector.extract_strided_slice %190 {offsets = [0, 0, 32], sizes = [2, 5, 8], strides = [1, 1, 1]} : vector<2x5x96xf32> to vector<2x5x8xf32>
    %193 = vector.extract_strided_slice %190 {offsets = [0, 0, 64], sizes = [2, 5, 8], strides = [1, 1, 1]} : vector<2x5x96xf32> to vector<2x5x8xf32>
    "tpu.trace_start"() <{level = 10 : i32, message = "bse,bte->bst"}> : () -> ()
    %cst_58 = arith.constant dense<0.000000e+00> : vector<2x5x5xf32>
    %194 = tpu.matmul %191, %192, %cst_58 {dimension_numbers = #tpu.dot_dimension_numbers<[2], [2], [1], [1], [0, 0, 0, 1, 1, 1], [0], [0]>} : vector<2x5x8xf32>, vector<2x5x8xf32>, vector<2x5x5xf32> -> vector<2x5x5xf32>
    "tpu.trace_stop"() : () -> ()
    %cst_59 = arith.constant dense<0xFF800000> : vector<2x5xf32>
    %195 = vector.multi_reduction <maximumf>, %194, %cst_59 [2] : vector<2x5x5xf32> to vector<2x5xf32>
    %196 = vector.shape_cast %195 : vector<2x5xf32> to vector<2x5x1xf32>
    %197 = vector.broadcast %196 : vector<2x5x1xf32> to vector<2x5x5xf32>
    %198 = arith.subf %194, %197 : vector<2x5x5xf32>
    %199 = math.exp %198 : vector<2x5x5xf32>
    %cst_60 = arith.constant dense<0.000000e+00> : vector<2x5xf32>
    %200 = vector.multi_reduction <add>, %199, %cst_60 [2] : vector<2x5x5xf32> to vector<2x5xf32>
    %201 = vector.shape_cast %200 : vector<2x5xf32> to vector<2x5x1xf32>
    %202 = tpu.reciprocal %201 {approx = true} : vector<2x5x1xf32> -> vector<2x5x1xf32>
    %203 = vector.broadcast %202 : vector<2x5x1xf32> to vector<2x5x5xf32>
    %204 = arith.mulf %199, %203 : vector<2x5x5xf32>
    "tpu.trace_start"() <{level = 10 : i32, message = "bst,bte->bse"}> : () -> ()
    %cst_61 = arith.constant dense<0.000000e+00> : vector<2x5x8xf32>
    %205 = tpu.matmul %204, %193, %cst_61 {dimension_numbers = #tpu.dot_dimension_numbers<[2], [1], [1], [2], [0, 0, 0, 1, 1, 2], [0], [0]>} : vector<2x5x5xf32>, vector<2x5x8xf32>, vector<2x5x8xf32> -> vector<2x5x8xf32>
    "tpu.trace_stop"() : () -> ()
    %206 = vector.extract_strided_slice %190 {offsets = [0, 0, 8], sizes = [2, 5, 8], strides = [1, 1, 1]} : vector<2x5x96xf32> to vector<2x5x8xf32>
    %207 = vector.extract_strided_slice %190 {offsets = [0, 0, 40], sizes = [2, 5, 8], strides = [1, 1, 1]} : vector<2x5x96xf32> to vector<2x5x8xf32>
    %208 = vector.extract_strided_slice %190 {offsets = [0, 0, 72], sizes = [2, 5, 8], strides = [1, 1, 1]} : vector<2x5x96xf32> to vector<2x5x8xf32>
    "tpu.trace_start"() <{level = 10 : i32, message = "bse,bte->bst"}> : () -> ()
    %cst_62 = arith.constant dense<0.000000e+00> : vector<2x5x5xf32>
    %209 = tpu.matmul %206, %207, %cst_62 {dimension_numbers = #tpu.dot_dimension_numbers<[2], [2], [1], [1], [0, 0, 0, 1, 1, 1], [0], [0]>} : vector<2x5x8xf32>, vector<2x5x8xf32>, vector<2x5x5xf32> -> vector<2x5x5xf32>
    "tpu.trace_stop"() : () -> ()
    %cst_63 = arith.constant dense<0xFF800000> : vector<2x5xf32>
    %210 = vector.multi_reduction <maximumf>, %209, %cst_63 [2] : vector<2x5x5xf32> to vector<2x5xf32>
    %211 = vector.shape_cast %210 : vector<2x5xf32> to vector<2x5x1xf32>
    %212 = vector.broadcast %211 : vector<2x5x1xf32> to vector<2x5x5xf32>
    %213 = arith.subf %209, %212 : vector<2x5x5xf32>
    %214 = math.exp %213 : vector<2x5x5xf32>
    %cst_64 = arith.constant dense<0.000000e+00> : vector<2x5xf32>
    %215 = vector.multi_reduction <add>, %214, %cst_64 [2] : vector<2x5x5xf32> to vector<2x5xf32>
    %216 = vector.shape_cast %215 : vector<2x5xf32> to vector<2x5x1xf32>
    %217 = tpu.reciprocal %216 {approx = true} : vector<2x5x1xf32> -> vector<2x5x1xf32>
    %218 = vector.broadcast %217 : vector<2x5x1xf32> to vector<2x5x5xf32>
    %219 = arith.mulf %214, %218 : vector<2x5x5xf32>
    "tpu.trace_start"() <{level = 10 : i32, message = "bst,bte->bse"}> : () -> ()
    %cst_65 = arith.constant dense<0.000000e+00> : vector<2x5x8xf32>
    %220 = tpu.matmul %219, %208, %cst_65 {dimension_numbers = #tpu.dot_dimension_numbers<[2], [1], [1], [2], [0, 0, 0, 1, 1, 2], [0], [0]>} : vector<2x5x5xf32>, vector<2x5x8xf32>, vector<2x5x8xf32> -> vector<2x5x8xf32>
    "tpu.trace_stop"() : () -> ()
    %221 = vector.extract_strided_slice %190 {offsets = [0, 0, 16], sizes = [2, 5, 8], strides = [1, 1, 1]} : vector<2x5x96xf32> to vector<2x5x8xf32>
    %222 = vector.extract_strided_slice %190 {offsets = [0, 0, 48], sizes = [2, 5, 8], strides = [1, 1, 1]} : vector<2x5x96xf32> to vector<2x5x8xf32>
    %223 = vector.extract_strided_slice %190 {offsets = [0, 0, 80], sizes = [2, 5, 8], strides = [1, 1, 1]} : vector<2x5x96xf32> to vector<2x5x8xf32>
    "tpu.trace_start"() <{level = 10 : i32, message = "bse,bte->bst"}> : () -> ()
    %cst_66 = arith.constant dense<0.000000e+00> : vector<2x5x5xf32>
    %224 = tpu.matmul %221, %222, %cst_66 {dimension_numbers = #tpu.dot_dimension_numbers<[2], [2], [1], [1], [0, 0, 0, 1, 1, 1], [0], [0]>} : vector<2x5x8xf32>, vector<2x5x8xf32>, vector<2x5x5xf32> -> vector<2x5x5xf32>
    "tpu.trace_stop"() : () -> ()
    %cst_67 = arith.constant dense<0xFF800000> : vector<2x5xf32>
    %225 = vector.multi_reduction <maximumf>, %224, %cst_67 [2] : vector<2x5x5xf32> to vector<2x5xf32>
    %226 = vector.shape_cast %225 : vector<2x5xf32> to vector<2x5x1xf32>
    %227 = vector.broadcast %226 : vector<2x5x1xf32> to vector<2x5x5xf32>
    %228 = arith.subf %224, %227 : vector<2x5x5xf32>
    %229 = math.exp %228 : vector<2x5x5xf32>
    %cst_68 = arith.constant dense<0.000000e+00> : vector<2x5xf32>
    %230 = vector.multi_reduction <add>, %229, %cst_68 [2] : vector<2x5x5xf32> to vector<2x5xf32>
    %231 = vector.shape_cast %230 : vector<2x5xf32> to vector<2x5x1xf32>
    %232 = tpu.reciprocal %231 {approx = true} : vector<2x5x1xf32> -> vector<2x5x1xf32>
    %233 = vector.broadcast %232 : vector<2x5x1xf32> to vector<2x5x5xf32>
    %234 = arith.mulf %229, %233 : vector<2x5x5xf32>
    "tpu.trace_start"() <{level = 10 : i32, message = "bst,bte->bse"}> : () -> ()
    %cst_69 = arith.constant dense<0.000000e+00> : vector<2x5x8xf32>
    %235 = tpu.matmul %234, %223, %cst_69 {dimension_numbers = #tpu.dot_dimension_numbers<[2], [1], [1], [2], [0, 0, 0, 1, 1, 2], [0], [0]>} : vector<2x5x5xf32>, vector<2x5x8xf32>, vector<2x5x8xf32> -> vector<2x5x8xf32>
    "tpu.trace_stop"() : () -> ()
    %236 = vector.extract_strided_slice %190 {offsets = [0, 0, 24], sizes = [2, 5, 8], strides = [1, 1, 1]} : vector<2x5x96xf32> to vector<2x5x8xf32>
    %237 = vector.extract_strided_slice %190 {offsets = [0, 0, 56], sizes = [2, 5, 8], strides = [1, 1, 1]} : vector<2x5x96xf32> to vector<2x5x8xf32>
    %238 = vector.extract_strided_slice %190 {offsets = [0, 0, 88], sizes = [2, 5, 8], strides = [1, 1, 1]} : vector<2x5x96xf32> to vector<2x5x8xf32>
    "tpu.trace_start"() <{level = 10 : i32, message = "bse,bte->bst"}> : () -> ()
    %cst_70 = arith.constant dense<0.000000e+00> : vector<2x5x5xf32>
    %239 = tpu.matmul %236, %237, %cst_70 {dimension_numbers = #tpu.dot_dimension_numbers<[2], [2], [1], [1], [0, 0, 0, 1, 1, 1], [0], [0]>} : vector<2x5x8xf32>, vector<2x5x8xf32>, vector<2x5x5xf32> -> vector<2x5x5xf32>
    "tpu.trace_stop"() : () -> ()
    %cst_71 = arith.constant dense<0xFF800000> : vector<2x5xf32>
    %240 = vector.multi_reduction <maximumf>, %239, %cst_71 [2] : vector<2x5x5xf32> to vector<2x5xf32>
    %241 = vector.shape_cast %240 : vector<2x5xf32> to vector<2x5x1xf32>
    %242 = vector.broadcast %241 : vector<2x5x1xf32> to vector<2x5x5xf32>
    %243 = arith.subf %239, %242 : vector<2x5x5xf32>
    %244 = math.exp %243 : vector<2x5x5xf32>
    %cst_72 = arith.constant dense<0.000000e+00> : vector<2x5xf32>
    %245 = vector.multi_reduction <add>, %244, %cst_72 [2] : vector<2x5x5xf32> to vector<2x5xf32>
    %246 = vector.shape_cast %245 : vector<2x5xf32> to vector<2x5x1xf32>
    %247 = tpu.reciprocal %246 {approx = true} : vector<2x5x1xf32> -> vector<2x5x1xf32>
    %248 = vector.broadcast %247 : vector<2x5x1xf32> to vector<2x5x5xf32>
    %249 = arith.mulf %244, %248 : vector<2x5x5xf32>
    "tpu.trace_start"() <{level = 10 : i32, message = "bst,bte->bse"}> : () -> ()
    %cst_73 = arith.constant dense<0.000000e+00> : vector<2x5x8xf32>
    %250 = tpu.matmul %249, %238, %cst_73 {dimension_numbers = #tpu.dot_dimension_numbers<[2], [1], [1], [2], [0, 0, 0, 1, 1, 2], [0], [0]>} : vector<2x5x5xf32>, vector<2x5x8xf32>, vector<2x5x8xf32> -> vector<2x5x8xf32>
    "tpu.trace_stop"() : () -> ()
    %251 = tpu.concatenate %205, %220, %235, %250 in 2 : vector<2x5x8xf32>, vector<2x5x8xf32>, vector<2x5x8xf32>, vector<2x5x8xf32> -> vector<2x5x32xf32>
    %252 = vector.shape_cast %251 : vector<2x5x32xf32> to vector<10x32xf32>
    %c1_74 = arith.constant 1 : index
    %c0_75 = arith.constant 0 : index
    %c0_76 = arith.constant 0 : index
    %253 = vector.load %arg3[%c1_74, %c0_75, %c0_76] : memref<2x32x32xf32, #tpu.memory_space<vmem>>, vector<1x32x32xf32>
    %254 = vector.shape_cast %253 : vector<1x32x32xf32> to vector<32x32xf32>
    %cst_77 = arith.constant dense<0.000000e+00> : vector<10x32xf32>
    %255 = tpu.matmul %252, %254, %cst_77 {dimension_numbers = #tpu.dot_dimension_numbers<[1], [0], [0], [1], [0, 0, 1, 1], [], []>} : vector<10x32xf32>, vector<32x32xf32>, vector<10x32xf32> -> vector<10x32xf32>
    %256 = arith.addf %154, %255 : vector<10x32xf32>
    %257 = vector.broadcast %158 : vector<1x32xf32> to vector<10x32xf32>
    %258 = arith.addf %256, %257 : vector<10x32xf32>
    %cst_78 = arith.constant dense<0.000000e+00> : vector<10xf32>
    %259 = vector.multi_reduction <add>, %258, %cst_78 [1] : vector<10x32xf32> to vector<10xf32>
    %260 = vector.shape_cast %259 : vector<10xf32> to vector<10x1xf32>
    %cst_79 = arith.constant 3.200000e+01 : f32
    %261 = vector.broadcast %cst_79 : f32 to vector<10x1xf32>
    %262 = arith.divf %260, %261 : vector<10x1xf32>
    %263 = vector.broadcast %262 : vector<10x1xf32> to vector<10x32xf32>
    %264 = arith.subf %258, %263 : vector<10x32xf32>
    %265 = arith.mulf %264, %264 : vector<10x32xf32>
    %cst_80 = arith.constant dense<0.000000e+00> : vector<10xf32>
    %266 = vector.multi_reduction <add>, %265, %cst_80 [1] : vector<10x32xf32> to vector<10xf32>
    %267 = vector.shape_cast %266 : vector<10xf32> to vector<10x1xf32>
    %cst_81 = arith.constant 3.200000e+01 : f32
    %268 = vector.broadcast %cst_81 : f32 to vector<10x1xf32>
    %269 = arith.divf %267, %268 : vector<10x1xf32>
    %270 = vector.broadcast %262 : vector<10x1xf32> to vector<10x32xf32>
    %271 = arith.subf %258, %270 : vector<10x32xf32>
    %cst_82 = arith.constant 9.99999997E-7 : f32
    %272 = vector.broadcast %cst_82 : f32 to vector<10x1xf32>
    %273 = arith.addf %269, %272 : vector<10x1xf32>
    %274 = math.rsqrt %273 : vector<10x1xf32>
    %275 = vector.broadcast %274 : vector<10x1xf32> to vector<10x32xf32>
    %276 = arith.mulf %271, %275 : vector<10x32xf32>
    %277 = vector.broadcast %159 : vector<1x32xf32> to vector<10x32xf32>
    %278 = arith.mulf %276, %277 : vector<10x32xf32>
    %279 = vector.broadcast %160 : vector<1x32xf32> to vector<10x32xf32>
    %280 = arith.addf %278, %279 : vector<10x32xf32>
    %c1_83 = arith.constant 1 : index
    %c0_84 = arith.constant 0 : index
    %c0_85 = arith.constant 0 : index
    %281 = vector.load %arg4[%c1_83, %c0_84, %c0_85] : memref<2x32x64xf32, #tpu.memory_space<vmem>>, vector<1x32x64xf32>
    %282 = vector.shape_cast %281 : vector<1x32x64xf32> to vector<32x64xf32>
    %cst_86 = arith.constant dense<0.000000e+00> : vector<10x64xf32>
    %283 = tpu.matmul %280, %282, %cst_86 {dimension_numbers = #tpu.dot_dimension_numbers<[1], [0], [0], [1], [0, 0, 1, 1], [], []>} : vector<10x32xf32>, vector<32x64xf32>, vector<10x64xf32> -> vector<10x64xf32>
    %284 = vector.broadcast %161 : vector<1x64xf32> to vector<10x64xf32>
    %285 = arith.addf %283, %284 : vector<10x64xf32>
    %cst_87 = arith.constant 5.000000e-01 : f32
    %286 = vector.broadcast %cst_87 : f32 to vector<10x64xf32>
    %287 = arith.mulf %286, %285 : vector<10x64xf32>
    %cst_88 = arith.constant 1.41421354 : f32
    %288 = vector.broadcast %cst_88 : f32 to vector<10x64xf32>
    %289 = arith.divf %285, %288 : vector<10x64xf32>
    %290 = math.erf %289 : vector<10x64xf32>
    %cst_89 = arith.constant 1.000000e+00 : f32
    %291 = vector.broadcast %cst_89 : f32 to vector<10x64xf32>
    %292 = arith.addf %291, %290 : vector<10x64xf32>
    %293 = arith.mulf %287, %292 : vector<10x64xf32>
    %c1_90 = arith.constant 1 : index
    %c0_91 = arith.constant 0 : index
    %c0_92 = arith.constant 0 : index
    %294 = vector.load %arg5[%c1_90, %c0_91, %c0_92] : memref<2x64x32xf32, #tpu.memory_space<vmem>>, vector<1x64x32xf32>
    %295 = vector.shape_cast %294 : vector<1x64x32xf32> to vector<64x32xf32>
    %cst_93 = arith.constant dense<0.000000e+00> : vector<10x32xf32>
    %296 = tpu.matmul %293, %295, %cst_93 {dimension_numbers = #tpu.dot_dimension_numbers<[1], [0], [0], [1], [0, 0, 1, 1], [], []>} : vector<10x64xf32>, vector<64x32xf32>, vector<10x32xf32> -> vector<10x32xf32>
    %297 = vector.broadcast %162 : vector<1x32xf32> to vector<10x32xf32>
    %298 = arith.addf %296, %297 : vector<10x32xf32>
    %299 = arith.addf %258, %298 : vector<10x32xf32>
    %300 = vector.extract_strided_slice %0 {offsets = [21, 0], sizes = [1, 32], strides = [1, 1]} : vector<32x128xf32> to vector<1x32xf32>
    %301 = vector.extract_strided_slice %0 {offsets = [22, 0], sizes = [1, 32], strides = [1, 1]} : vector<32x128xf32> to vector<1x32xf32>
    %302 = vector.extract_strided_slice %0 {offsets = [23, 0], sizes = [1, 128], strides = [1, 1]} : vector<32x128xf32> to vector<1x128xf32>
    %303 = vector.extract_strided_slice %0 {offsets = [24, 0], sizes = [1, 128], strides = [1, 1]} : vector<32x128xf32> to vector<1x128xf32>
    %304 = vector.shape_cast %299 : vector<10x32xf32> to vector<2x5x32xf32>
    %305 = vector.extract_strided_slice %304 {offsets = [0, 0, 0], sizes = [2, 1, 32], strides = [1, 1, 1]} : vector<2x5x32xf32> to vector<2x1x32xf32>
    %306 = vector.shape_cast %305 : vector<2x1x32xf32> to vector<2x32xf32>
    %cst_94 = arith.constant dense<0.000000e+00> : vector<2xf32>
    %307 = vector.multi_reduction <add>, %306, %cst_94 [1] : vector<2x32xf32> to vector<2xf32>
    %308 = vector.shape_cast %307 : vector<2xf32> to vector<2x1xf32>
    %cst_95 = arith.constant 3.200000e+01 : f32
    %309 = vector.broadcast %cst_95 : f32 to vector<2x1xf32>
    %310 = arith.divf %308, %309 : vector<2x1xf32>
    %311 = vector.broadcast %310 : vector<2x1xf32> to vector<2x32xf32>
    %312 = arith.subf %306, %311 : vector<2x32xf32>
    %313 = arith.mulf %312, %312 : vector<2x32xf32>
    %cst_96 = arith.constant dense<0.000000e+00> : vector<2xf32>
    %314 = vector.multi_reduction <add>, %313, %cst_96 [1] : vector<2x32xf32> to vector<2xf32>
    %315 = vector.shape_cast %314 : vector<2xf32> to vector<2x1xf32>
    %cst_97 = arith.constant 3.200000e+01 : f32
    %316 = vector.broadcast %cst_97 : f32 to vector<2x1xf32>
    %317 = arith.divf %315, %316 : vector<2x1xf32>
    %318 = vector.broadcast %310 : vector<2x1xf32> to vector<2x32xf32>
    %319 = arith.subf %306, %318 : vector<2x32xf32>
    %cst_98 = arith.constant 9.99999997E-7 : f32
    %320 = vector.broadcast %cst_98 : f32 to vector<2x1xf32>
    %321 = arith.addf %317, %320 : vector<2x1xf32>
    %322 = math.rsqrt %321 : vector<2x1xf32>
    %323 = vector.broadcast %322 : vector<2x1xf32> to vector<2x32xf32>
    %324 = arith.mulf %319, %323 : vector<2x32xf32>
    %325 = vector.broadcast %300 : vector<1x32xf32> to vector<2x32xf32>
    %326 = arith.mulf %324, %325 : vector<2x32xf32>
    %327 = vector.broadcast %301 : vector<1x32xf32> to vector<2x32xf32>
    %328 = arith.addf %326, %327 : vector<2x32xf32>
    %c0_99 = arith.constant 0 : index
    %c0_100 = arith.constant 0 : index
    %329 = vector.load %arg6[%c0_99, %c0_100] : memref<32x128xf32, #tpu.memory_space<vmem>>, vector<32x128xf32>
    %cst_101 = arith.constant dense<0.000000e+00> : vector<2x128xf32>
    %330 = tpu.matmul %328, %329, %cst_101 {dimension_numbers = #tpu.dot_dimension_numbers<[1], [0], [0], [1], [0, 0, 1, 1], [], []>} : vector<2x32xf32>, vector<32x128xf32>, vector<2x128xf32> -> vector<2x128xf32>
    %331 = vector.broadcast %302 : vector<1x128xf32> to vector<2x128xf32>
    %332 = arith.addf %330, %331 : vector<2x128xf32>
    %c0_102 = arith.constant 0 : index
    %c0_103 = arith.constant 0 : index
    %333 = vector.load %arg7[%c0_102, %c0_103] : memref<128x128xf32, #tpu.memory_space<vmem>>, vector<128x128xf32>
    %cst_104 = arith.constant dense<0.000000e+00> : vector<2x128xf32>
    %334 = tpu.matmul %332, %333, %cst_104 {dimension_numbers = #tpu.dot_dimension_numbers<[1], [0], [0], [1], [0, 0, 1, 1], [], []>} : vector<2x128xf32>, vector<128x128xf32>, vector<2x128xf32> -> vector<2x128xf32>
    %335 = vector.broadcast %303 : vector<1x128xf32> to vector<2x128xf32>
    %336 = arith.addf %334, %335 : vector<2x128xf32>
    %cst_105 = arith.constant 0.000000e+00 : f32
    %337 = vector.broadcast %cst_105 : f32 to vector<2x128xf32>
    %338 = arith.maximumf %336, %337 : vector<2x128xf32>
    %c0_106 = arith.constant 0 : index
    %c0_107 = arith.constant 0 : index
    %339 = vector.load %arg9[%c0_106, %c0_107] : memref<2x128xf32, #tpu.memory_space<vmem>>, vector<2x128xf32>
    tpu.vector_store %arg9[%c0_106, %c0_107], %338 {strides = array<i32>} : memref<2x128xf32, #tpu.memory_space<vmem>>, vector<2x128xf32>,
    return
  }
}

</mosaic_0001>

<llo_original>
// kernel: vitnet_forward.1
$region0: #{vitnet_forward.1}
  #allocation0 [shape = 'u32[]', space=smem, size = 0x4, offset = 0x4, fixed_abs, tag = 'smem constant byte address 0x4 - core index']
  #allocation1 [shape = 'u32[144,128]{1,0:T(1,128)}', space=vmem, size = 0x12000, scoped, tag = 'internal scratch']
  %s0 = inlined_call_operand.vmem [shape: f32[10,768], index: 0, kind: input, shape index: {}]
  %s1 = inlined_call_operand.vmem [shape: f32[768,32], index: 1, kind: input, shape index: {}]
  %s2 = inlined_call_operand.vmem [shape: f32[2,32,96], index: 2, kind: input, shape index: {}]
  %s3 = inlined_call_operand.vmem [shape: f32[2,32,32], index: 3, kind: input, shape index: {}]
  %s4 = inlined_call_operand.vmem [shape: f32[2,32,64], index: 4, kind: input, shape index: {}]
  %s5 = inlined_call_operand.vmem [shape: f32[2,64,32], index: 5, kind: input, shape index: {}]
  %s6 = inlined_call_operand.vmem [shape: f32[32,128], index: 6, kind: input, shape index: {}]
  %s7 = inlined_call_operand.vmem [shape: f32[128,128], index: 7, kind: input, shape index: {}]
  %s8 = inlined_call_operand.vmem [shape: f32[32,128], index: 8, kind: input, shape index: {}]
  %s9 = inlined_call_operand.hbm [shape: f32[2,128], index: 9, kind: output, shape index: {}]
  %s10 = sld [smem:[#allocation0]]
  $region46: #{vitnet_forward.1} parent=0
    _
  %s12 = ssub.s32 1, %s10
  %s13 = scalar_select 0, %s12, %s10
  $region1: #{vitnet_forward.1} parent=0
    #allocation2 [shape = 'u8[1024]{0}', space=vmem, size = 0x400, scoped, tag = 'output window, operand 0, single buffered']
    #allocation3 [shape = 's32[1]{0}', space=sflag, size = 0x4, scoped, tag = 'scoped memory for vitnet_forward.1']
    %14 = vsyncpa [#allocation3], 0
    // Predicated region
    $region2: #{vitnet_forward.1} parent=1 // pred_check
      _
    $region3: #{vitnet_forward.1} parent=1 // pred_check_branch
      %16 = sbr.rel (0) target = $region5
    $region4: #{vitnet_forward.1} parent=1 // pred_region
      _
    $region5: #{vitnet_forward.1} parent=1 // pred_fallthru
      _
    // Predicated region
    $region6: #{vitnet_forward.1} parent=1 // pred_check
      _
    $region7: #{vitnet_forward.1} parent=1 // pred_check_branch
      %18 = sbr.rel (0) target = $region9
    $region8: #{vitnet_forward.1} parent=1 // pred_region
      _
    $region9: #{vitnet_forward.1} parent=1 // pred_fallthru
      _
    // Predicated region
    $region10: #{vitnet_forward.1} parent=1 // pred_check
      _
    $region11: #{vitnet_forward.1} parent=1 // pred_check_branch
      %20 = sbr.rel (0) target = $region13
    $region12: #{vitnet_forward.1} parent=1 // pred_region
      _
    $region13: #{vitnet_forward.1} parent=1 // pred_fallthru
      _
    // Predicated region
    $region14: #{vitnet_forward.1} parent=1 // pred_check
      _
    $region15: #{vitnet_forward.1} parent=1 // pred_check_branch
      %22 = sbr.rel (0) target = $region17
    $region16: #{vitnet_forward.1} parent=1 // pred_region
      _
    $region17: #{vitnet_forward.1} parent=1 // pred_fallthru
      _
    // Predicated region
    $region18: #{vitnet_forward.1} parent=1 // pred_check
      _
    $region19: #{vitnet_forward.1} parent=1 // pred_check_branch
      %24 = sbr.rel (0) target = $region21
    $region20: #{vitnet_forward.1} parent=1 // pred_region
      _
    $region21: #{vitnet_forward.1} parent=1 // pred_fallthru
      _
    // Predicated region
    $region22: #{vitnet_forward.1} parent=1 // pred_check
      _
    $region23: #{vitnet_forward.1} parent=1 // pred_check_branch
      %26 = sbr.rel (0) target = $region25
    $region24: #{vitnet_forward.1} parent=1 // pred_region
      _
    $region25: #{vitnet_forward.1} parent=1 // pred_fallthru
      _
    // Predicated region
    $region26: #{vitnet_forward.1} parent=1 // pred_check
      _
    $region27: #{vitnet_forward.1} parent=1 // pred_check_branch
      %28 = sbr.rel (0) target = $region29
    $region28: #{vitnet_forward.1} parent=1 // pred_region
      _
    $region29: #{vitnet_forward.1} parent=1 // pred_fallthru
      _
    // Predicated region
    $region30: #{vitnet_forward.1} parent=1 // pred_check
      _
    $region31: #{vitnet_forward.1} parent=1 // pred_check_branch
      %30 = sbr.rel (0) target = $region33
    $region32: #{vitnet_forward.1} parent=1 // pred_region
      _
    $region33: #{vitnet_forward.1} parent=1 // pred_fallthru
      _
    // Predicated region
    $region34: #{vitnet_forward.1} parent=1 // pred_check
      _
    $region35: #{vitnet_forward.1} parent=1 // pred_check_branch
      %32 = sbr.rel (0) target = $region37
    $region36: #{vitnet_forward.1} parent=1 // pred_region
      _
    $region37: #{vitnet_forward.1} parent=1 // pred_fallthru
      _
    %v33 = vld [vmem:[%s8] sm:$0xff]
    %v34 = vld [vmem:[%s8 + $0x8] sm:$0xff]
    %v35 = vld [vmem:[%s8 + $0x10] sm:$0xff]
    %v36 = vld [vmem:[%s8 + $0x18] sm:$0xff]
    %v37 = vld [vmem:[%s0] sm:$0xff]
    %v38 = vld [vmem:[%s0 + $0x8] sm:$0xff]
    %v39 = vld [vmem:[%s0 + $0x10] sm:$0xff]
    %v40 = vld [vmem:[%s0 + $0x18] sm:$0xff]
    %v41 = vld [vmem:[%s0 + $0x20] sm:$0xff]
    %v42 = vld [vmem:[%s0 + $0x28] sm:$0xff]
    %v43 = vld [vmem:[%s0 + $0x30] sm:$0x3]
    %v44 = vld [vmem:[%s0 + $0x38] sm:$0x3]
    %v45 = vld [vmem:[%s0 + $0x40] sm:$0x3]
    %v46 = vld [vmem:[%s0 + $0x48] sm:$0x3]
    %v47 = vld [vmem:[%s0 + $0x50] sm:$0x3]
    %v48 = vld [vmem:[%s0 + $0x58] sm:$0x3]
    %v49 = vld [vmem:[%s1] sm:$0xff]
    %v50 = vld [vmem:[%s1 + $0x8] sm:$0xff]
    %v51 = vld [vmem:[%s1 + $0x10] sm:$0xff]
    %v52 = vld [vmem:[%s1 + $0x18] sm:$0xff]
    %v53 = vld [vmem:[%s1 + $0x20] sm:$0xff]
    %v54 = vld [vmem:[%s1 + $0x28] sm:$0xff]
    %v55 = vld [vmem:[%s1 + $0x30] sm:$0xff]
    %v56 = vld [vmem:[%s1 + $0x38] sm:$0xff]
    %v57 = vld [vmem:[%s1 + $0x40] sm:$0xff]
    %v58 = vld [vmem:[%s1 + $0x48] sm:$0xff]
    %v59 = vld [vmem:[%s1 + $0x50] sm:$0xff]
    %v60 = vld [vmem:[%s1 + $0x58] sm:$0xff]
    %v61 = vld [vmem:[%s1 + $0x60] sm:$0xff]
    %v62 = vld [vmem:[%s1 + $0x68] sm:$0xff]
    %v63 = vld [vmem:[%s1 + $0x70] sm:$0xff]
    %v64 = vld [vmem:[%s1 + $0x78] sm:$0xff]
    %v65 = vld [vmem:[%s1 + $0x80] sm:$0xff]
    %v66 = vld [vmem:[%s1 + $0x88] sm:$0xff]
    %v67 = vld [vmem:[%s1 + $0x90] sm:$0xff]
    %v68 = vld [vmem:[%s1 + $0x98] sm:$0xff]
    %v69 = vld [vmem:[%s1 + $0xa0] sm:$0xff]
    %v70 = vld [vmem:[%s1 + $0xa8] sm:$0xff]
    %v71 = vld [vmem:[%s1 + $0xb0] sm:$0xff]
    %v72 = vld [vmem:[%s1 + $0xb8] sm:$0xff]
    %v73 = vld [vmem:[%s1 + $0xc0] sm:$0xff]
    %v74 = vld [vmem:[%s1 + $0xc8] sm:$0xff]
    %v75 = vld [vmem:[%s1 + $0xd0] sm:$0xff]
    %v76 = vld [vmem:[%s1 + $0xd8] sm:$0xff]
    %v77 = vld [vmem:[%s1 + $0xe0] sm:$0xff]
    %v78 = vld [vmem:[%s1 + $0xe8] sm:$0xff]
    %v79 = vld [vmem:[%s1 + $0xf0] sm:$0xff]
    %v80 = vld [vmem:[%s1 + $0xf8] sm:$0xff]
    %v81 = vld [vmem:[%s1 + $0x100] sm:$0xff]
    %v82 = vld [vmem:[%s1 + $0x108] sm:$0xff]
    %v83 = vld [vmem:[%s1 + $0x110] sm:$0xff]
    %v84 = vld [vmem:[%s1 + $0x118] sm:$0xff]
    %v85 = vld [vmem:[%s1 + $0x120] sm:$0xff]
    %v86 = vld [vmem:[%s1 + $0x128] sm:$0xff]
    %v87 = vld [vmem:[%s1 + $0x130] sm:$0xff]
    %v88 = vld [vmem:[%s1 + $0x138] sm:$0xff]
    %v89 = vld [vmem:[%s1 + $0x140] sm:$0xff]
    %v90 = vld [vmem:[%s1 + $0x148] sm:$0xff]
    %v91 = vld [vmem:[%s1 + $0x150] sm:$0xff]
    %v92 = vld [vmem:[%s1 + $0x158] sm:$0xff]
    %v93 = vld [vmem:[%s1 + $0x160] sm:$0xff]
    %v94 = vld [vmem:[%s1 + $0x168] sm:$0xff]
    %v95 = vld [vmem:[%s1 + $0x170] sm:$0xff]
    %v96 = vld [vmem:[%s1 + $0x178] sm:$0xff]
    %v97 = vld [vmem:[%s1 + $0x180] sm:$0xff]
    %v98 = vld [vmem:[%s1 + $0x188] sm:$0xff]
    %v99 = vld [vmem:[%s1 + $0x190] sm:$0xff]
    %v100 = vld [vmem:[%s1 + $0x198] sm:$0xff]
    %v101 = vld [vmem:[%s1 + $0x1a0] sm:$0xff]
    %v102 = vld [vmem:[%s1 + $0x1a8] sm:$0xff]
    %v103 = vld [vmem:[%s1 + $0x1b0] sm:$0xff]
    %v104 = vld [vmem:[%s1 + $0x1b8] sm:$0xff]
    %v105 = vld [vmem:[%s1 + $0x1c0] sm:$0xff]
    %v106 = vld [vmem:[%s1 + $0x1c8] sm:$0xff]
    %v107 = vld [vmem:[%s1 + $0x1d0] sm:$0xff]
    %v108 = vld [vmem:[%s1 + $0x1d8] sm:$0xff]
    %v109 = vld [vmem:[%s1 + $0x1e0] sm:$0xff]
    %v110 = vld [vmem:[%s1 + $0x1e8] sm:$0xff]
    %v111 = vld [vmem:[%s1 + $0x1f0] sm:$0xff]
    %v112 = vld [vmem:[%s1 + $0x1f8] sm:$0xff]
    %v113 = vld [vmem:[%s1 + $0x200] sm:$0xff]
    %v114 = vld [vmem:[%s1 + $0x208] sm:$0xff]
    %v115 = vld [vmem:[%s1 + $0x210] sm:$0xff]
    %v116 = vld [vmem:[%s1 + $0x218] sm:$0xff]
    %v117 = vld [vmem:[%s1 + $0x220] sm:$0xff]
    %v118 = vld [vmem:[%s1 + $0x228] sm:$0xff]
    %v119 = vld [vmem:[%s1 + $0x230] sm:$0xff]
    %v120 = vld [vmem:[%s1 + $0x238] sm:$0xff]
    %v121 = vld [vmem:[%s1 + $0x240] sm:$0xff]
    %v122 = vld [vmem:[%s1 + $0x248] sm:$0xff]
    %v123 = vld [vmem:[%s1 + $0x250] sm:$0xff]
    %v124 = vld [vmem:[%s1 + $0x258] sm:$0xff]
    %v125 = vld [vmem:[%s1 + $0x260] sm:$0xff]
    %v126 = vld [vmem:[%s1 + $0x268] sm:$0xff]
    %v127 = vld [vmem:[%s1 + $0x270] sm:$0xff]
    %v128 = vld [vmem:[%s1 + $0x278] sm:$0xff]
    %v129 = vld [vmem:[%s1 + $0x280] sm:$0xff]
    %v130 = vld [vmem:[%s1 + $0x288] sm:$0xff]
    %v131 = vld [vmem:[%s1 + $0x290] sm:$0xff]
    %v132 = vld [vmem:[%s1 + $0x298] sm:$0xff]
    %v133 = vld [vmem:[%s1 + $0x2a0] sm:$0xff]
    %v134 = vld [vmem:[%s1 + $0x2a8] sm:$0xff]
    %v135 = vld [vmem:[%s1 + $0x2b0] sm:$0xff]
    %v136 = vld [vmem:[%s1 + $0x2b8] sm:$0xff]
    %v137 = vld [vmem:[%s1 + $0x2c0] sm:$0xff]
    %v138 = vld [vmem:[%s1 + $0x2c8] sm:$0xff]
    %v139 = vld [vmem:[%s1 + $0x2d0] sm:$0xff]
    %v140 = vld [vmem:[%s1 + $0x2d8] sm:$0xff]
    %v141 = vld [vmem:[%s1 + $0x2e0] sm:$0xff]
    %v142 = vld [vmem:[%s1 + $0x2e8] sm:$0xff]
    %v143 = vld [vmem:[%s1 + $0x2f0] sm:$0xff]
    %v144 = vld [vmem:[%s1 + $0x2f8] sm:$0xff]
    %145 = vmatprep.subr.mxu0 0.0
    %146 = vmatpush1.msra.mxu0 %v49
    %147 = vmatprep.subr.mxu0 0.0
    %148 = vmatpush1.msra.mxu0 %v50
    %149 = vmatprep.subr.mxu0 0.0
    %150 = vmatpush1.msra.mxu0 %v51
    %151 = vmatprep.subr.mxu0 0.0
    %152 = vmatpush1.msra.mxu0 %v52
    %153 = vmatprep.subr.mxu0 0.0
    %154 = vmatpush1.msra.mxu0 %v53
    %155 = vmatprep.subr.mxu0 0.0
    %156 = vmatpush1.msra.mxu0 %v54
    %157 = vmatprep.subr.mxu0 0.0
    %158 = vmatpush1.msra.mxu0 %v55
    %159 = vmatprep.subr.mxu0 0.0
    %160 = vmatpush1.msra.mxu0 %v56
    %161 = vmatprep.subr.mxu0 0.0
    %162 = vmatpush1.msra.mxu0 %v57
    %163 = vmatprep.subr.mxu0 0.0
    %164 = vmatpush1.msra.mxu0 %v58
    %165 = vmatprep.subr.mxu0 0.0
    %166 = vmatpush1.msra.mxu0 %v59
    %167 = vmatprep.subr.mxu0 0.0
    %168 = vmatpush1.msra.mxu0 %v60
    %169 = vmatprep.subr.mxu0 0.0
    %170 = vmatpush1.msra.mxu0 %v61
    %171 = vmatprep.subr.mxu0 0.0
    %172 = vmatpush1.msra.mxu0 %v62
    %173 = vmatprep.subr.mxu0 0.0
    %174 = vmatpush1.msra.mxu0 %v63
    %175 = vmatprep.subr.mxu0 0.0
    %176 = vmatpush1.msra.mxu0 %v64
    %177 = vmatprep.subr.mxu0 0.0
    %178 = vmatpush1.msra.mxu0 %v65
    %179 = vmatprep.subr.mxu0 0.0
    %180 = vmatpush1.msra.mxu0 %v66
    %181 = vmatprep.subr.mxu0 0.0
    %182 = vmatpush1.msra.mxu0 %v67
    %183 = vmatprep.subr.mxu0 0.0
    %184 = vmatpush1.msra.mxu0 %v68
    %185 = vmatprep.subr.mxu0 0.0
    %186 = vmatpush1.msra.mxu0 %v69
    %187 = vmatprep.subr.mxu0 0.0
    %188 = vmatpush1.msra.mxu0 %v70
    %189 = vmatprep.subr.mxu0 0.0
    %190 = vmatpush1.msra.mxu0 %v71
    %191 = vmatprep.subr.mxu0 0.0
    %192 = vmatpush1.msra.mxu0 %v72
    %193 = vmatprep.subr.mxu0 0.0
    %194 = vmatpush1.msra.mxu0 %v73
    %195 = vmatprep.subr.mxu0 0.0
    %196 = vmatpush1.msra.mxu0 %v74
    %197 = vmatprep.subr.mxu0 0.0
    %198 = vmatpush1.msra.mxu0 %v75
    %199 = vmatprep.subr.mxu0 0.0
    %200 = vmatpush1.msra.mxu0 %v76
    %201 = vmatprep.subr.mxu0 0.0
    %202 = vmatpush1.msra.mxu0 %v77
    %203 = vmatprep.subr.mxu0 0.0
    %204 = vmatpush1.msra.mxu0 %v78
    %205 = vmatprep.subr.mxu0 0.0
    %206 = vmatpush1.msra.mxu0 %v79
    %207 = vmatprep.subr.mxu0 0.0
    %208 = vmatpush1.msra.mxu0 %v80
    %209 = vmatprep.mubr.f32.mxu0 %v38
    %210 = vmatmul.mubr.f32.gmra.mrb[0].mxu0 %v37
    %v211 = vpop.f32.mrb[0].mxu0
    %v212 = vadd.f32 0.0, %v211
    %v213 = vpop.f32.mrb[0].mxu0
    %214 = vmatprep.mubr.f32.mxu0 %v44
    %215 = vmatmul.mubr.f32.gmra.mrb[0].mxu0 %v43
    %v216 = vpop.f32.mrb[0].mxu0
    %v217 = vadd.f32 0.0, %v216
    %v218 = vpop.f32.mrb[0].mxu0
    %219 = vdwg.mxu0
    %220 = vmatprep.subr.mxu0 0.0
    %221 = vmatpush1.msra.mxu0 %v81
    %222 = vmatprep.subr.mxu0 0.0
    %223 = vmatpush1.msra.mxu0 %v82
    %224 = vmatprep.subr.mxu0 0.0
    %225 = vmatpush1.msra.mxu0 %v83
    %226 = vmatprep.subr.mxu0 0.0
    %227 = vmatpush1.msra.mxu0 %v84
    %228 = vmatprep.subr.mxu0 0.0
    %229 = vmatpush1.msra.mxu0 %v85
    %230 = vmatprep.subr.mxu0 0.0
    %231 = vmatpush1.msra.mxu0 %v86
    %232 = vmatprep.subr.mxu0 0.0
    %233 = vmatpush1.msra.mxu0 %v87
    %234 = vmatprep.subr.mxu0 0.0
    %235 = vmatpush1.msra.mxu0 %v88
    %236 = vmatprep.subr.mxu0 0.0
    %237 = vmatpush1.msra.mxu0 %v89
    %238 = vmatprep.subr.mxu0 0.0
    %239 = vmatpush1.msra.mxu0 %v90
    %240 = vmatprep.subr.mxu0 0.0
    %241 = vmatpush1.msra.mxu0 %v91
    %242 = vmatprep.subr.mxu0 0.0
    %243 = vmatpush1.msra.mxu0 %v92
    %244 = vmatprep.subr.mxu0 0.0
    %245 = vmatpush1.msra.mxu0 %v93
    %246 = vmatprep.subr.mxu0 0.0
    %247 = vmatpush1.msra.mxu0 %v94
    %248 = vmatprep.subr.mxu0 0.0
    %249 = vmatpush1.msra.mxu0 %v95
    %250 = vmatprep.subr.mxu0 0.0
    %251 = vmatpush1.msra.mxu0 %v96
    %252 = vmatprep.subr.mxu0 0.0
    %253 = vmatpush1.msra.mxu0 %v97
    %254 = vmatprep.subr.mxu0 0.0
    %255 = vmatpush1.msra.mxu0 %v98
    %256 = vmatprep.subr.mxu0 0.0
    %257 = vmatpush1.msra.mxu0 %v99
    %258 = vmatprep.subr.mxu0 0.0
    %259 = vmatpush1.msra.mxu0 %v100
    %260 = vmatprep.subr.mxu0 0.0
    %261 = vmatpush1.msra.mxu0 %v101
    %262 = vmatprep.subr.mxu0 0.0
    %263 = vmatpush1.msra.mxu0 %v102
    %264 = vmatprep.subr.mxu0 0.0
    %265 = vmatpush1.msra.mxu0 %v103
    %266 = vmatprep.subr.mxu0 0.0
    %267 = vmatpush1.msra.mxu0 %v104
    %268 = vmatprep.subr.mxu0 0.0
    %269 = vmatpush1.msra.mxu0 %v105
    %270 = vmatprep.subr.mxu0 0.0
    %271 = vmatpush1.msra.mxu0 %v106
    %272 = vmatprep.subr.mxu0 0.0
    %273 = vmatpush1.msra.mxu0 %v107
    %274 = vmatprep.subr.mxu0 0.0
    %275 = vmatpush1.msra.mxu0 %v108
    %276 = vmatprep.subr.mxu0 0.0
    %277 = vmatpush1.msra.mxu0 %v109
    %278 = vmatprep.subr.mxu0 0.0
    %279 = vmatpush1.msra.mxu0 %v110
    %280 = vmatprep.subr.mxu0 0.0
    %281 = vmatpush1.msra.mxu0 %v111
    %282 = vmatprep.subr.mxu0 0.0
    %283 = vmatpush1.msra.mxu0 %v112
    %284 = vmatprep.mubr.f32.mxu0 %v40
    %285 = vmatmul.mubr.f32.gmra.mrb[0].mxu0 %v39
    %v286 = vpop.f32.mrb[0].mxu0
    %v287 = vadd.f32 %v212, %v286
    %v288 = vpop.f32.mrb[0].mxu0
    %289 = vmatprep.mubr.f32.mxu0 %v46
    %290 = vmatmul.mubr.f32.gmra.mrb[0].mxu0 %v45
    %v291 = vpop.f32.mrb[0].mxu0
    %v292 = vadd.f32 %v217, %v291
    %v293 = vpop.f32.mrb[0].mxu0
    %294 = vdwg.mxu0
    %295 = vmatprep.subr.mxu0 0.0
    %296 = vmatpush1.msra.mxu0 %v113
    %297 = vmatprep.subr.mxu0 0.0
    %298 = vmatpush1.msra.mxu0 %v114
    %299 = vmatprep.subr.mxu0 0.0
    %300 = vmatpush1.msra.mxu0 %v115
    %301 = vmatprep.subr.mxu0 0.0
    %302 = vmatpush1.msra.mxu0 %v116
    %303 = vmatprep.subr.mxu0 0.0
    %304 = vmatpush1.msra.mxu0 %v117
    %305 = vmatprep.subr.mxu0 0.0
    %306 = vmatpush1.msra.mxu0 %v118
    %307 = vmatprep.subr.mxu0 0.0
    %308 = vmatpush1.msra.mxu0 %v119
    %309 = vmatprep.subr.mxu0 0.0
    %310 = vmatpush1.msra.mxu0 %v120
    %311 = vmatprep.subr.mxu0 0.0
    %312 = vmatpush1.msra.mxu0 %v121
    %313 = vmatprep.subr.mxu0 0.0
    %314 = vmatpush1.msra.mxu0 %v122
    %315 = vmatprep.subr.mxu0 0.0
    %316 = vmatpush1.msra.mxu0 %v123
    %317 = vmatprep.subr.mxu0 0.0
    %318 = vmatpush1.msra.mxu0 %v124
    %319 = vmatprep.subr.mxu0 0.0
    %320 = vmatpush1.msra.mxu0 %v125
    %321 = vmatprep.subr.mxu0 0.0
    %322 = vmatpush1.msra.mxu0 %v126
    %323 = vmatprep.subr.mxu0 0.0
    %324 = vmatpush1.msra.mxu0 %v127
    %325 = vmatprep.subr.mxu0 0.0
    %326 = vmatpush1.msra.mxu0 %v128
    %327 = vmatprep.subr.mxu0 0.0
    %328 = vmatpush1.msra.mxu0 %v129
    %329 = vmatprep.subr.mxu0 0.0
    %330 = vmatpush1.msra.mxu0 %v130
    %331 = vmatprep.subr.mxu0 0.0
    %332 = vmatpush1.msra.mxu0 %v131
    %333 = vmatprep.subr.mxu0 0.0
    %334 = vmatpush1.msra.mxu0 %v132
    %335 = vmatprep.subr.mxu0 0.0
    %336 = vmatpush1.msra.mxu0 %v133
    %337 = vmatprep.subr.mxu0 0.0
    %338 = vmatpush1.msra.mxu0 %v134
    %339 = vmatprep.subr.mxu0 0.0
    %340 = vmatpush1.msra.mxu0 %v135
    %341 = vmatprep.subr.mxu0 0.0
    %342 = vmatpush1.msra.mxu0 %v136
    %343 = vmatprep.subr.mxu0 0.0
    %344 = vmatpush1.msra.mxu0 %v137
    %345 = vmatprep.subr.mxu0 0.0
    %346 = vmatpush1.msra.mxu0 %v138
    %347 = vmatprep.subr.mxu0 0.0
    %348 = vmatpush1.msra.mxu0 %v139
    %349 = vmatprep.subr.mxu0 0.0
    %350 = vmatpush1.msra.mxu0 %v140
    %351 = vmatprep.subr.mxu0 0.0
    %352 = vmatpush1.msra.mxu0 %v141
    %353 = vmatprep.subr.mxu0 0.0
    %354 = vmatpush1.msra.mxu0 %v142
    %355 = vmatprep.subr.mxu0 0.0
    %356 = vmatpush1.msra.mxu0 %v143
    %357 = vmatprep.subr.mxu0 0.0
    %358 = vmatpush1.msra.mxu0 %v144
    %359 = vmatprep.mubr.f32.mxu0 %v42
    %360 = vmatmul.mubr.f32.gmra.mrb[0].mxu0 %v41
    %v361 = vpop.f32.mrb[0].mxu0
    %v362 = vadd.f32 %v287, %v361
    %v363 = vpop.f32.mrb[0].mxu0
    %364 = vmatprep.mubr.f32.mxu0 %v48
    %365 = vmatmul.mubr.f32.gmra.mrb[0].mxu0 %v47
    %v366 = vpop.f32.mrb[0].mxu0
    %v367 = vadd.f32 %v292, %v366
    %v368 = vpop.f32.mrb[0].mxu0
    %369 = vdwg.mxu0
    %v372 = vcombine.high %v362, %v362
    %v374 = vunpack.c.l.s4 1966171168
    %v375 = vunpack.c.0.s8 %v374
    %v376 = vlaneseq
    %v377 = vshrl.u32 %v376, 7
    %v378 = vsub.s32 %v375, %v377
    %v379 = vrot.slane %v362, %v378
    %v381 = vunpack.c.l.s4 1966171168
    %v382 = vunpack.c.0.s8 %v381
    %v383 = vlaneseq
    %v384 = vshrl.u32 %v383, 7
    %v385 = vsub.s32 %v382, %v384
    %v386 = vrot.slane %v372, %v385
    %v387 = vcombine.high %v379, %v379
    %v388 = vcombine.high %v386, %v386
    %v390 = vunpack.c.l.s4 1966171168
    %v391 = vunpack.c.0.s8 %v390
    %v392 = vlaneseq
    %v393 = vshrl.u32 %v392, 7
    %v394 = vsub.s32 %v391, %v393
    %v395 = vrot.slane %v379, %v394
    %v397 = vunpack.c.l.s4 1966171168
    %v398 = vunpack.c.0.s8 %v397
    %v399 = vlaneseq
    %v400 = vshrl.u32 %v399, 7
    %v401 = vsub.s32 %v398, %v400
    %v402 = vrot.slane %v386, %v401
    %v404 = vunpack.c.l.s4 1966171168
    %v405 = vunpack.c.0.s8 %v404
    %v406 = vlaneseq
    %v407 = vshrl.u32 %v406, 7
    %v408 = vsub.s32 %v405, %v407
    %v409 = vrot.slane %v387, %v408
    %v411 = vunpack.c.l.s4 1966171168
    %v412 = vunpack.c.0.s8 %v411
    %v413 = vlaneseq
    %v414 = vshrl.u32 %v413, 7
    %v415 = vsub.s32 %v412, %v414
    %v416 = vrot.slane %v388, %v415
    %v417 = vcombine.high %v395, %v395
    %v418 = vcombine.high %v402, %v402
    %v419 = vcombine.high %v409, %v409
    %v420 = vcombine.high %v416, %v416
    %v422 = vunpack.c.l.s4 1966171168
    %v423 = vunpack.c.0.s8 %v422
    %v424 = vlaneseq
    %v425 = vshrl.u32 %v424, 7
    %v426 = vsub.s32 %v423, %v425
    %v427 = vrot.slane %v367, %v426
    %v428 = vcombine.high %v427, %v427
    %v430 = vunpack.c.l.s4 1966171168
    %v431 = vunpack.c.0.s8 %v430
    %v432 = vlaneseq
    %v433 = vshrl.u32 %v432, 7
    %v434 = vsub.s32 %v431, %v433
    %v435 = vrot.slane %v427, %v434
    %v437 = vunpack.c.l.s4 1966171168
    %v438 = vunpack.c.0.s8 %v437
    %v439 = vlaneseq
    %v440 = vshrl.u32 %v439, 7
    %v441 = vsub.s32 %v438, %v440
    %v442 = vrot.slane %v428, %v441
    %v454 = vcombine.high %v33, %v33
    %v456 = vunpack.c.l.s4 1966171168
    %v457 = vunpack.c.0.s8 %v456
    %v458 = vlaneseq
    %v459 = vshrl.u32 %v458, 7
    %v460 = vsub.s32 %v457, %v459
    %v461 = vrot.slane %v33, %v460
    %v463 = vunpack.c.l.s4 1966171168
    %v464 = vunpack.c.0.s8 %v463
    %v465 = vlaneseq
    %v466 = vshrl.u32 %v465, 7
    %v467 = vsub.s32 %v464, %v466
    %v468 = vrot.slane %v454, %v467
    %v469 = vcombine.high %v461, %v461
    %v471 = vunpack.c.l.s4 1966171168
    %v472 = vunpack.c.0.s8 %v471
    %v473 = vlaneseq
    %v474 = vshrl.u32 %v473, 7
    %v475 = vsub.s32 %v472, %v474
    %v476 = vrot.slane %v461, %v475
    %v478 = vunpack.c.l.s4 1966171168
    %v479 = vunpack.c.0.s8 %v478
    %v480 = vlaneseq
    %v481 = vshrl.u32 %v480, 7
    %v482 = vsub.s32 %v479, %v481
    %v483 = vrot.slane %v468, %v482
    %v485 = vunpack.c.l.s4 1966171168
    %v486 = vunpack.c.0.s8 %v485
    %v487 = vlaneseq
    %v488 = vshrl.u32 %v487, 7
    %v489 = vsub.s32 %v486, %v488
    %v490 = vrot.slane %v469, %v489
    %v491 = vcombine.high %v476, %v476
    %v492 = vcombine.high %v490, %v490
    %v498 = vadd.f32 %v395, %v476
    %v499 = vadd.f32 %v409, %v490
    %v500 = vadd.f32 %v417, %v491
    %v501 = vadd.f32 %v419, %v492
    %v502 = vadd.f32 %v402, %v483
    %v503 = vadd.f32 %v416, %v476
    %v504 = vadd.f32 %v418, %v490
    %v505 = vadd.f32 %v420, %v491
    %v506 = vadd.f32 %v435, %v492
    %v507 = vadd.f32 %v442, %v483
    %v518 = vcombine.low %v498, %v499
    %v519 = vcombine.low %v500, %v501
    %v520 = vcombine.low %v502, %v503
    %v521 = vcombine.low %v504, %v505
    %v523 = vunpack.c.l.s4 1966171168
    %v524 = vunpack.c.0.s8 %v523
    %v525 = vlaneseq
    %v526 = vshrl.u32 %v525, 7
    %v527 = vsub.s32 %v524, %v526
    %v528 = vrot.slane %v518, %v527
    %v530 = vunpack.c.l.s4 1966171168
    %v531 = vunpack.c.0.s8 %v530
    %v532 = vlaneseq
    %v533 = vshrl.u32 %v532, 7
    %v534 = vsub.s32 %v531, %v533
    %v535 = vrot.slane %v519, %v534
    %v537 = vunpack.c.l.s4 1966171168
    %v538 = vunpack.c.0.s8 %v537
    %v539 = vlaneseq
    %v540 = vshrl.u32 %v539, 7
    %v541 = vsub.s32 %v538, %v540
    %v542 = vrot.slane %v520, %v541
    %v544 = vunpack.c.l.s4 1966171168
    %v545 = vunpack.c.0.s8 %v544
    %v546 = vlaneseq
    %v547 = vshrl.u32 %v546, 7
    %v548 = vsub.s32 %v545, %v547
    %v549 = vrot.slane %v521, %v548
    %v550 = vcombine.low %v528, %v535
    %v551 = vcombine.low %v542, %v549
    %v553 = vunpack.c.l.s4 1966171168
    %v554 = vunpack.c.0.s8 %v553
    %v555 = vlaneseq
    %v556 = vshrl.u32 %v555, 7
    %v557 = vsub.s32 %v554, %v556
    %v558 = vrot.slane %v550, %v557
    %v560 = vunpack.c.l.s4 1966171168
    %v561 = vunpack.c.0.s8 %v560
    %v562 = vlaneseq
    %v563 = vshrl.u32 %v562, 7
    %v564 = vsub.s32 %v561, %v563
    %v565 = vrot.slane %v551, %v564
    %v566 = vcombine.low %v558, %v565
    %v567 = vcombine.low %v506, %v507
    %v569 = vunpack.c.l.s4 1966171168
    %v570 = vunpack.c.0.s8 %v569
    %v571 = vlaneseq
    %v572 = vshrl.u32 %v571, 7
    %v573 = vsub.s32 %v570, %v572
    %v574 = vrot.slane %v567, %v573
    %v576 = vunpack.c.l.s4 1966171168
    %v577 = vunpack.c.0.s8 %v576
    %v578 = vlaneseq
    %v579 = vshrl.u32 %v578, 7
    %v580 = vsub.s32 %v577, %v579
    %v581 = vrot.slane %v574, %v580
    %vm584 = vcmask 261120
    %v585 = vsel %vm584, %v566, 0.0
    %586 = vadd.xlane.f32.xlu0 %v585
    %v587 = vpop.xlane.xlu0 %586
    %vm588 = vcmask 254976
    %v589 = vsel %vm588, %v581, 0.0
    %590 = vadd.xlane.f32.xlu0 %v589
    %v591 = vpop.xlane.xlu0 %590
    %v592 = vrcp.pop 32.0
    %v593 = vmul.f32 %v587, %v592
    %v594 = vmul.f32 %v591, %v592
    %v597 = vlaneseq
    %v598 = vshrl.u32 %v597, 7
    %v599 = vsub.s32 0, %v598
    %v600 = vrot.slane %v593, %v599
    %v601 = vlaneseq
    %v602 = vshrl.u32 %v601, 7
    %v603 = vsub.s32 1, %v602
    %v604 = vrot.slane %v593, %v603
    %v605 = vlaneseq
    %v606 = vshrl.u32 %v605, 7
    %v607 = vsub.s32 2, %v606
    %v608 = vrot.slane %v593, %v607
    %v609 = vlaneseq
    %v610 = vshrl.u32 %v609, 7
    %v611 = vsub.s32 3, %v610
    %v612 = vrot.slane %v593, %v611
    %v613 = vlaneseq
    %v614 = vshrl.u32 %v613, 7
    %v615 = vsub.s32 4, %v614
    %v616 = vrot.slane %v593, %v615
    %v617 = vlaneseq
    %v618 = vshrl.u32 %v617, 7
    %v619 = vsub.s32 5, %v618
    %v620 = vrot.slane %v593, %v619
    %v621 = vlaneseq
    %v622 = vshrl.u32 %v621, 7
    %v623 = vsub.s32 6, %v622
    %v624 = vrot.slane %v593, %v623
    %v625 = vlaneseq
    %v626 = vshrl.u32 %v625, 7
    %v627 = vsub.s32 7, %v626
    %v628 = vrot.slane %v593, %v627
    %v629 = vlaneseq
    %v630 = vshrl.u32 %v629, 7
    %v631 = vsub.s32 0, %v630
    %v632 = vrot.slane %v594, %v631
    %v633 = vlaneseq
    %v634 = vshrl.u32 %v633, 7
    %v635 = vsub.s32 1, %v634
    %v636 = vrot.slane %v594, %v635
    %v647 = vsub.f32 %v498, %v600
    %v648 = vsub.f32 %v499, %v604
    %v649 = vsub.f32 %v500, %v608
    %v650 = vsub.f32 %v501, %v612
    %v651 = vsub.f32 %v502, %v616
    %v652 = vsub.f32 %v503, %v620
    %v653 = vsub.f32 %v504, %v624
    %v654 = vsub.f32 %v505, %v628
    %v655 = vsub.f32 %v506, %v632
    %v656 = vsub.f32 %v507, %v636
    %v657 = vmul.f32 %v647, %v647
    %v658 = vmul.f32 %v648, %v648
    %v659 = vmul.f32 %v649, %v649
    %v660 = vmul.f32 %v650, %v650
    %v661 = vmul.f32 %v651, %v651
    %v662 = vmul.f32 %v652, %v652
    %v663 = vmul.f32 %v653, %v653
    %v664 = vmul.f32 %v654, %v654
    %v665 = vmul.f32 %v655, %v655
    %v666 = vmul.f32 %v656, %v656
    %v677 = vcombine.low %v657, %v658
    %v678 = vcombine.low %v659, %v660
    %v679 = vcombine.low %v661, %v662
    %v680 = vcombine.low %v663, %v664
    %v682 = vunpack.c.l.s4 1966171168
    %v683 = vunpack.c.0.s8 %v682
    %v684 = vlaneseq
    %v685 = vshrl.u32 %v684, 7
    %v686 = vsub.s32 %v683, %v685
    %v687 = vrot.slane %v677, %v686
    %v689 = vunpack.c.l.s4 1966171168
    %v690 = vunpack.c.0.s8 %v689
    %v691 = vlaneseq
    %v692 = vshrl.u32 %v691, 7
    %v693 = vsub.s32 %v690, %v692
    %v694 = vrot.slane %v678, %v693
    %v696 = vunpack.c.l.s4 1966171168
    %v697 = vunpack.c.0.s8 %v696
    %v698 = vlaneseq
    %v699 = vshrl.u32 %v698, 7
    %v700 = vsub.s32 %v697, %v699
    %v701 = vrot.slane %v679, %v700
    %v703 = vunpack.c.l.s4 1966171168
    %v704 = vunpack.c.0.s8 %v703
    %v705 = vlaneseq
    %v706 = vshrl.u32 %v705, 7
    %v707 = vsub.s32 %v704, %v706
    %v708 = vrot.slane %v680, %v707
    %v709 = vcombine.low %v687, %v694
    %v710 = vcombine.low %v701, %v708
    %v712 = vunpack.c.l.s4 1966171168
    %v713 = vunpack.c.0.s8 %v712
    %v714 = vlaneseq
    %v715 = vshrl.u32 %v714, 7
    %v716 = vsub.s32 %v713, %v715
    %v717 = vrot.slane %v709, %v716
    %v719 = vunpack.c.l.s4 1966171168
    %v720 = vunpack.c.0.s8 %v719
    %v721 = vlaneseq
    %v722 = vshrl.u32 %v721, 7
    %v723 = vsub.s32 %v720, %v722
    %v724 = vrot.slane %v710, %v723
    %v725 = vcombine.low %v717, %v724
    %v726 = vcombine.low %v665, %v666
    %v728 = vunpack.c.l.s4 1966171168
    %v729 = vunpack.c.0.s8 %v728
    %v730 = vlaneseq
    %v731 = vshrl.u32 %v730, 7
    %v732 = vsub.s32 %v729, %v731
    %v733 = vrot.slane %v726, %v732
    %v735 = vunpack.c.l.s4 1966171168
    %v736 = vunpack.c.0.s8 %v735
    %v737 = vlaneseq
    %v738 = vshrl.u32 %v737, 7
    %v739 = vsub.s32 %v736, %v738
    %v740 = vrot.slane %v733, %v739
    %v743 = vsel %vm584, %v725, 0.0
    %744 = vadd.xlane.f32.xlu0 %v743
    %v745 = vpop.xlane.xlu0 %744
    %v746 = vsel %vm588, %v740, 0.0
    %747 = vadd.xlane.f32.xlu0 %v746
    %v748 = vpop.xlane.xlu0 %747
    %v749 = vmul.f32 %v745, %v592
    %v750 = vmul.f32 %v748, %v592
    %v751 = vadd.f32 %v749, 1e-06
    %v752 = vadd.f32 %v750, 1e-06
    %v753 = vrsqrt.pop %v751
    %v754 = vrsqrt.pop %v752
    %v757 = vlaneseq
    %v758 = vshrl.u32 %v757, 7
    %v759 = vsub.s32 0, %v758
    %v760 = vrot.slane %v753, %v759
    %v761 = vlaneseq
    %v762 = vshrl.u32 %v761, 7
    %v763 = vsub.s32 1, %v762
    %v764 = vrot.slane %v753, %v763
    %v765 = vlaneseq
    %v766 = vshrl.u32 %v765, 7
    %v767 = vsub.s32 2, %v766
    %v768 = vrot.slane %v753, %v767
    %v769 = vlaneseq
    %v770 = vshrl.u32 %v769, 7
    %v771 = vsub.s32 3, %v770
    %v772 = vrot.slane %v753, %v771
    %v773 = vlaneseq
    %v774 = vshrl.u32 %v773, 7
    %v775 = vsub.s32 4, %v774
    %v776 = vrot.slane %v753, %v775
    %v777 = vlaneseq
    %v778 = vshrl.u32 %v777, 7
    %v779 = vsub.s32 5, %v778
    %v780 = vrot.slane %v753, %v779
    %v781 = vlaneseq
    %v782 = vshrl.u32 %v781, 7
    %v783 = vsub.s32 6, %v782
    %v784 = vrot.slane %v753, %v783
    %v785 = vlaneseq
    %v786 = vshrl.u32 %v785, 7
    %v787 = vsub.s32 7, %v786
    %v788 = vrot.slane %v753, %v787
    %v789 = vlaneseq
    %v790 = vshrl.u32 %v789, 7
    %v791 = vsub.s32 0, %v790
    %v792 = vrot.slane %v754, %v791
    %v793 = vlaneseq
    %v794 = vshrl.u32 %v793, 7
    %v795 = vsub.s32 1, %v794
    %v796 = vrot.slane %v754, %v795
    %v807 = vmul.f32 %v647, %v760
    %v808 = vmul.f32 %v648, %v764
    %v809 = vmul.f32 %v649, %v768
    %v810 = vmul.f32 %v650, %v772
    %v811 = vmul.f32 %v651, %v776
    %v812 = vmul.f32 %v652, %v780
    %v813 = vmul.f32 %v653, %v784
    %v814 = vmul.f32 %v654, %v788
    %v815 = vmul.f32 %v655, %v792
    %v816 = vmul.f32 %v656, %v796
    %v817 = vlaneseq
    %v818 = vshrl.u32 %v817, 7
    %v819 = vsub.s32 5, %v818
    %v820 = vrot.slane %v33, %v819
    %v822 = vcombine.high %v820, %v820
    %v824 = vunpack.c.l.s4 1966171168
    %v825 = vunpack.c.0.s8 %v824
    %v826 = vlaneseq
    %v827 = vshrl.u32 %v826, 7
    %v828 = vsub.s32 %v825, %v827
    %v829 = vrot.slane %v820, %v828
    %v831 = vunpack.c.l.s4 1966171168
    %v832 = vunpack.c.0.s8 %v831
    %v833 = vlaneseq
    %v834 = vshrl.u32 %v833, 7
    %v835 = vsub.s32 %v832, %v834
    %v836 = vrot.slane %v822, %v835
    %v837 = vcombine.high %v829, %v829
    %v838 = vcombine.high %v836, %v836
    %v840 = vunpack.c.l.s4 1966171168
    %v841 = vunpack.c.0.s8 %v840
    %v842 = vlaneseq
    %v843 = vshrl.u32 %v842, 7
    %v844 = vsub.s32 %v841, %v843
    %v845 = vrot.slane %v829, %v844
    %v847 = vunpack.c.l.s4 1966171168
    %v848 = vunpack.c.0.s8 %v847
    %v849 = vlaneseq
    %v850 = vshrl.u32 %v849, 7
    %v851 = vsub.s32 %v848, %v850
    %v852 = vrot.slane %v836, %v851
    %v854 = vunpack.c.l.s4 1966171168
    %v855 = vunpack.c.0.s8 %v854
    %v856 = vlaneseq
    %v857 = vshrl.u32 %v856, 7
    %v858 = vsub.s32 %v855, %v857
    %v859 = vrot.slane %v837, %v858
    %v861 = vunpack.c.l.s4 1966171168
    %v862 = vunpack.c.0.s8 %v861
    %v863 = vlaneseq
    %v864 = vshrl.u32 %v863, 7
    %v865 = vsub.s32 %v862, %v864
    %v866 = vrot.slane %v838, %v865
    %v867 = vcombine.high %v845, %v845
    %v868 = vcombine.high %v852, %v852
    %v869 = vcombine.high %v859, %v859
    %v870 = vcombine.high %v866, %v866
    %v879 = vmul.f32 %v807, %v845
    %v880 = vmul.f32 %v808, %v859
    %v881 = vmul.f32 %v809, %v867
    %v882 = vmul.f32 %v810, %v869
    %v883 = vmul.f32 %v811, %v852
    %v884 = vmul.f32 %v812, %v866
    %v885 = vmul.f32 %v813, %v868
    %v886 = vmul.f32 %v814, %v870
    %v887 = vmul.f32 %v815, %v845
    %v888 = vmul.f32 %v816, %v859
    %v889 = vlaneseq
    %v890 = vshrl.u32 %v889, 7
    %v891 = vsub.s32 6, %v890
    %v892 = vrot.slane %v33, %v891
    %v894 = vcombine.high %v892, %v892
    %v896 = vunpack.c.l.s4 1966171168
    %v897 = vunpack.c.0.s8 %v896
    %v898 = vlaneseq
    %v899 = vshrl.u32 %v898, 7
    %v900 = vsub.s32 %v897, %v899
    %v901 = vrot.slane %v892, %v900
    %v903 = vunpack.c.l.s4 1966171168
    %v904 = vunpack.c.0.s8 %v903
    %v905 = vlaneseq
    %v906 = vshrl.u32 %v905, 7
    %v907 = vsub.s32 %v904, %v906
    %v908 = vrot.slane %v894, %v907
    %v909 = vcombine.high %v901, %v901
    %v910 = vcombine.high %v908, %v908
    %v912 = vunpack.c.l.s4 1966171168
    %v913 = vunpack.c.0.s8 %v912
    %v914 = vlaneseq
    %v915 = vshrl.u32 %v914, 7
    %v916 = vsub.s32 %v913, %v915
    %v917 = vrot.slane %v901, %v916
    %v919 = vunpack.c.l.s4 1966171168
    %v920 = vunpack.c.0.s8 %v919
    %v921 = vlaneseq
    %v922 = vshrl.u32 %v921, 7
    %v923 = vsub.s32 %v920, %v922
    %v924 = vrot.slane %v908, %v923
    %v926 = vunpack.c.l.s4 1966171168
    %v927 = vunpack.c.0.s8 %v926
    %v928 = vlaneseq
    %v929 = vshrl.u32 %v928, 7
    %v930 = vsub.s32 %v927, %v929
    %v931 = vrot.slane %v909, %v930
    %v933 = vunpack.c.l.s4 1966171168
    %v934 = vunpack.c.0.s8 %v933
    %v935 = vlaneseq
    %v936 = vshrl.u32 %v935, 7
    %v937 = vsub.s32 %v934, %v936
    %v938 = vrot.slane %v910, %v937
    %v939 = vcombine.high %v917, %v917
    %v940 = vcombine.high %v924, %v924
    %v941 = vcombine.high %v931, %v931
    %v942 = vcombine.high %v938, %v938
    %v951 = vadd.f32 %v879, %v917
    %v952 = vadd.f32 %v880, %v931
    %v953 = vadd.f32 %v881, %v939
    %v954 = vadd.f32 %v882, %v941
    %v955 = vadd.f32 %v883, %v924
    %v956 = vadd.f32 %v884, %v938
    %v957 = vadd.f32 %v885, %v940
    %v958 = vadd.f32 %v886, %v942
    %v959 = vadd.f32 %v887, %v917
    %v960 = vadd.f32 %v888, %v931
    %v961 = vld [vmem:[%s2] sm:$0xff]
    %v962 = vld [vmem:[%s2 + $0x8] sm:$0xff]
    %v963 = vld [vmem:[%s2 + $0x10] sm:$0xff]
    %v964 = vld [vmem:[%s2 + $0x18] sm:$0xff]
    %v965 = vlaneseq
    %v966 = vshrl.u32 %v965, 7
    %v967 = vsub.s32 7, %v966
    %v968 = vrot.slane %v33, %v967
    %v979 = vcombine.low %v951, %v952
    %v980 = vcombine.low %v953, %v954
    %v981 = vcombine.low %v955, %v956
    %v982 = vcombine.low %v957, %v958
    %v984 = vunpack.c.l.s4 1966171168
    %v985 = vunpack.c.0.s8 %v984
    %v986 = vlaneseq
    %v987 = vshrl.u32 %v986, 7
    %v988 = vsub.s32 %v985, %v987
    %v989 = vrot.slane %v979, %v988
    %v991 = vunpack.c.l.s4 1966171168
    %v992 = vunpack.c.0.s8 %v991
    %v993 = vlaneseq
    %v994 = vshrl.u32 %v993, 7
    %v995 = vsub.s32 %v992, %v994
    %v996 = vrot.slane %v980, %v995
    %v998 = vunpack.c.l.s4 1966171168
    %v999 = vunpack.c.0.s8 %v998
    %v1000 = vlaneseq
    %v1001 = vshrl.u32 %v1000, 7
    %v1002 = vsub.s32 %v999, %v1001
    %v1003 = vrot.slane %v981, %v1002
    %v1005 = vunpack.c.l.s4 1966171168
    %v1006 = vunpack.c.0.s8 %v1005
    %v1007 = vlaneseq
    %v1008 = vshrl.u32 %v1007, 7
    %v1009 = vsub.s32 %v1006, %v1008
    %v1010 = vrot.slane %v982, %v1009
    %v1011 = vcombine.low %v989, %v996
    %v1012 = vcombine.low %v1003, %v1010
    %v1014 = vunpack.c.l.s4 1966171168
    %v1015 = vunpack.c.0.s8 %v1014
    %v1016 = vlaneseq
    %v1017 = vshrl.u32 %v1016, 7
    %v1018 = vsub.s32 %v1015, %v1017
    %v1019 = vrot.slane %v1011, %v1018
    %v1021 = vunpack.c.l.s4 1966171168
    %v1022 = vunpack.c.0.s8 %v1021
    %v1023 = vlaneseq
    %v1024 = vshrl.u32 %v1023, 7
    %v1025 = vsub.s32 %v1022, %v1024
    %v1026 = vrot.slane %v1012, %v1025
    %v1027 = vcombine.low %v1019, %v1026
    %v1028 = vcombine.low %v959, %v960
    %v1030 = vunpack.c.l.s4 1966171168
    %v1031 = vunpack.c.0.s8 %v1030
    %v1032 = vlaneseq
    %v1033 = vshrl.u32 %v1032, 7
    %v1034 = vsub.s32 %v1031, %v1033
    %v1035 = vrot.slane %v1028, %v1034
    %v1037 = vunpack.c.l.s4 1966171168
    %v1038 = vunpack.c.0.s8 %v1037
    %v1039 = vlaneseq
    %v1040 = vshrl.u32 %v1039, 7
    %v1041 = vsub.s32 %v1038, %v1040
    %v1042 = vrot.slane %v1035, %v1041
    %v1043 = vsel %vm584, %v1027, 0
    %v1045 = vsel %vm584, %v1042, 0
    %1047 = vmatprep.subr.mxu0 0.0
    %1048 = vmatpush1.msra.mxu0 %v961
    %1049 = vmatprep.subr.mxu0 0.0
    %1050 = vmatpush1.msra.mxu0 %v962
    %1051 = vmatprep.subr.mxu0 0.0
    %1052 = vmatpush1.msra.mxu0 %v963
    %1053 = vmatprep.subr.mxu0 0.0
    %1054 = vmatpush1.msra.mxu0 %v964
    %1055 = vmatprep.subr.mxu0 0.0
    %1056 = vmatpush1.msra.mxu0 0.0
    %1057 = vmatprep.subr.mxu0 0.0
    %1058 = vmatpush1.msra.mxu0 0.0
    %1059 = vmatprep.subr.mxu0 0.0
    %1060 = vmatpush1.msra.mxu0 0.0
    %1061 = vmatprep.subr.mxu0 0.0
    %1062 = vmatpush1.msra.mxu0 0.0
    %1063 = vmatprep.subr.mxu0 0.0
    %1064 = vmatpush1.msra.mxu0 0.0
    %1065 = vmatprep.subr.mxu0 0.0
    %1066 = vmatpush1.msra.mxu0 0.0
    %1067 = vmatprep.subr.mxu0 0.0
    %1068 = vmatpush1.msra.mxu0 0.0
    %1069 = vmatprep.subr.mxu0 0.0
    %1070 = vmatpush1.msra.mxu0 0.0
    %1071 = vmatprep.subr.mxu0 0.0
    %1072 = vmatpush1.msra.mxu0 0.0
    %1073 = vmatprep.subr.mxu0 0.0
    %1074 = vmatpush1.msra.mxu0 0.0
    %1075 = vmatprep.subr.mxu0 0.0
    %1076 = vmatpush1.msra.mxu0 0.0
    %1077 = vmatprep.subr.mxu0 0.0
    %1078 = vmatpush1.msra.mxu0 0.0
    %1079 = vmatprep.subr.mxu0 0.0
    %1080 = vmatpush1.msra.mxu0 0.0
    %1081 = vmatprep.subr.mxu0 0.0
    %1082 = vmatpush1.msra.mxu0 0.0
    %1083 = vmatprep.subr.mxu0 0.0
    %1084 = vmatpush1.msra.mxu0 0.0
    %1085 = vmatprep.subr.mxu0 0.0
    %1086 = vmatpush1.msra.mxu0 0.0
    %1087 = vmatprep.subr.mxu0 0.0
    %1088 = vmatpush1.msra.mxu0 0.0
    %1089 = vmatprep.subr.mxu0 0.0
    %1090 = vmatpush1.msra.mxu0 0.0
    %1091 = vmatprep.subr.mxu0 0.0
    %1092 = vmatpush1.msra.mxu0 0.0
    %1093 = vmatprep.subr.mxu0 0.0
    %1094 = vmatpush1.msra.mxu0 0.0
    %1095 = vmatprep.subr.mxu0 0.0
    %1096 = vmatpush1.msra.mxu0 0.0
    %1097 = vmatprep.subr.mxu0 0.0
    %1098 = vmatpush1.msra.mxu0 0.0
    %1099 = vmatprep.subr.mxu0 0.0
    %1100 = vmatpush1.msra.mxu0 0.0
    %1101 = vmatprep.subr.mxu0 0.0
    %1102 = vmatpush1.msra.mxu0 0.0
    %1103 = vmatprep.subr.mxu0 0.0
    %1104 = vmatpush1.msra.mxu0 0.0
    %1105 = vmatprep.subr.mxu0 0.0
    %1106 = vmatpush1.msra.mxu0 0.0
    %1107 = vmatprep.subr.mxu0 0.0
    %1108 = vmatpush1.msra.mxu0 0.0
    %1109 = vmatprep.subr.mxu0 0.0
    %1110 = vmatpush1.msra.mxu0 0.0
    %1111 = vmatprep.mubr.f32.mxu0 0.0
    %1112 = vmatmul.mubr.f32.gmra.mrb[0].mxu0 %v1043
    %v1113 = vpop.f32.mrb[0].mxu0
    %v1114 = vadd.f32 %v968, %v1113
    %v1115 = vpop.f32.mrb[0].mxu0
    %1116 = vmatprep.mubr.f32.mxu0 0.0
    %1117 = vmatmul.mubr.f32.gmra.mrb[0].mxu0 %v1045
    %v1118 = vpop.f32.mrb[0].mxu0
    %v1119 = vadd.f32 %v968, %v1118
    %v1120 = vpop.f32.mrb[0].mxu0
    %1121 = vdwg.mxu0
    %v1124 = vcombine.high %v1114, %v1114
    %v1126 = vunpack.c.l.s4 1966171168
    %v1127 = vunpack.c.0.s8 %v1126
    %v1128 = vlaneseq
    %v1129 = vshrl.u32 %v1128, 7
    %v1130 = vsub.s32 %v1127, %v1129
    %v1131 = vrot.slane %v1114, %v1130
    %v1133 = vunpack.c.l.s4 1966171168
    %v1134 = vunpack.c.0.s8 %v1133
    %v1135 = vlaneseq
    %v1136 = vshrl.u32 %v1135, 7
    %v1137 = vsub.s32 %v1134, %v1136
    %v1138 = vrot.slane %v1124, %v1137
    %v1139 = vcombine.high %v1131, %v1131
    %v1140 = vcombine.high %v1138, %v1138
    %v1142 = vunpack.c.l.s4 1966171168
    %v1143 = vunpack.c.0.s8 %v1142
    %v1144 = vlaneseq
    %v1145 = vshrl.u32 %v1144, 7
    %v1146 = vsub.s32 %v1143, %v1145
    %v1147 = vrot.slane %v1131, %v1146
    %v1149 = vunpack.c.l.s4 1966171168
    %v1150 = vunpack.c.0.s8 %v1149
    %v1151 = vlaneseq
    %v1152 = vshrl.u32 %v1151, 7
    %v1153 = vsub.s32 %v1150, %v1152
    %v1154 = vrot.slane %v1138, %v1153
    %v1156 = vunpack.c.l.s4 1966171168
    %v1157 = vunpack.c.0.s8 %v1156
    %v1158 = vlaneseq
    %v1159 = vshrl.u32 %v1158, 7
    %v1160 = vsub.s32 %v1157, %v1159
    %v1161 = vrot.slane %v1139, %v1160
    %v1163 = vunpack.c.l.s4 1966171168
    %v1164 = vunpack.c.0.s8 %v1163
    %v1165 = vlaneseq
    %v1166 = vshrl.u32 %v1165, 7
    %v1167 = vsub.s32 %v1164, %v1166
    %v1168 = vrot.slane %v1140, %v1167
    %v1169 = vcombine.high %v1147, %v1147
    %v1170 = vcombine.high %v1154, %v1154
    %v1171 = vcombine.high %v1161, %v1161
    %v1172 = vcombine.high %v1168, %v1168
    %v1174 = vunpack.c.l.s4 1966171168
    %v1175 = vunpack.c.0.s8 %v1174
    %v1176 = vlaneseq
    %v1177 = vshrl.u32 %v1176, 7
    %v1178 = vsub.s32 %v1175, %v1177
    %v1179 = vrot.slane %v1119, %v1178
    %v1180 = vcombine.high %v1179, %v1179
    %v1182 = vunpack.c.l.s4 1966171168
    %v1183 = vunpack.c.0.s8 %v1182
    %v1184 = vlaneseq
    %v1185 = vshrl.u32 %v1184, 7
    %v1186 = vsub.s32 %v1183, %v1185
    %v1187 = vrot.slane %v1179, %v1186
    %v1189 = vunpack.c.l.s4 1966171168
    %v1190 = vunpack.c.0.s8 %v1189
    %v1191 = vlaneseq
    %v1192 = vshrl.u32 %v1191, 7
    %v1193 = vsub.s32 %v1190, %v1192
    %v1194 = vrot.slane %v1180, %v1193
    %v1195 = vcombine.low %v1147, %v1161
    %v1196 = vcombine.low %v1169, %v1171
    %v1198 = vunpack.c.l.s4 1966171168
    %v1199 = vunpack.c.0.s8 %v1198
    %v1200 = vlaneseq
    %v1201 = vshrl.u32 %v1200, 7
    %v1202 = vsub.s32 %v1199, %v1201
    %v1203 = vrot.slane %v1195, %v1202
    %v1205 = vunpack.c.l.s4 1966171168
    %v1206 = vunpack.c.0.s8 %v1205
    %v1207 = vlaneseq
    %v1208 = vshrl.u32 %v1207, 7
    %v1209 = vsub.s32 %v1206, %v1208
    %v1210 = vrot.slane %v1196, %v1209
    %v1212 = vunpack.c.l.s4 1966171168
    %v1213 = vunpack.c.0.s8 %v1212
    %v1214 = vlaneseq
    %v1215 = vshrl.u32 %v1214, 7
    %v1216 = vsub.s32 %v1213, %v1215
    %v1217 = vrot.slane %v1154, %v1216
    %v1218 = vcombine.low %v1203, %v1210
    %v1220 = vunpack.c.l.s4 1966171168
    %v1221 = vunpack.c.0.s8 %v1220
    %v1222 = vlaneseq
    %v1223 = vshrl.u32 %v1222, 7
    %v1224 = vsub.s32 %v1221, %v1223
    %v1225 = vrot.slane %v1218, %v1224
    %v1227 = vunpack.c.l.s4 1966171168
    %v1228 = vunpack.c.0.s8 %v1227
    %v1229 = vlaneseq
    %v1230 = vshrl.u32 %v1229, 7
    %v1231 = vsub.s32 %v1228, %v1230
    %v1232 = vrot.slane %v1217, %v1231
    %v1233 = vcombine.low %v1225, %v1232
    %1234 = vrot.lane.b32.xlu0 %v1233, 96
    %v1235 = vpop.permute.xlu0 %1234
    %vm1236 = vcmask 64512
    %v1237 = vsel %vm1236, %v1233, 0
    %v1239 = vsel %vm1236, %v1235, 0
    %1241 = vmatprep.subr.mxu0 0.0
    %1242 = vmatpush1.xpose.msra.mxu0 %v1239
    %1243 = vmatprep.subr.mxu0 0.0
    %1244 = vmatpush1.xpose.msra.mxu0 0.0
    %1245 = vmatprep.subr.mxu0 0.0
    %1246 = vmatpush1.xpose.msra.mxu0 0.0
    %1247 = vmatprep.subr.mxu0 0.0
    %1248 = vmatpush1.xpose.msra.mxu0 0.0
    %1249 = vmatprep.subr.mxu0 0.0
    %1250 = vmatpush1.xpose.msra.mxu0 0.0
    %1251 = vmatprep.subr.mxu0 0.0
    %1252 = vmatpush1.xpose.msra.mxu0 0.0
    %1253 = vmatprep.subr.mxu0 0.0
    %1254 = vmatpush1.xpose.msra.mxu0 0.0
    %1255 = vmatprep.subr.mxu0 0.0
    %1256 = vmatpush1.xpose.msra.mxu0 0.0
    %1257 = vmatprep.subr.mxu0 0.0
    %1258 = vmatpush1.xpose.msra.mxu0 0.0
    %1259 = vmatprep.subr.mxu0 0.0
    %1260 = vmatpush1.xpose.msra.mxu0 0.0
    %1261 = vmatprep.subr.mxu0 0.0
    %1262 = vmatpush1.xpose.msra.mxu0 0.0
    %1263 = vmatprep.subr.mxu0 0.0
    %1264 = vmatpush1.xpose.msra.mxu0 0.0
    %1265 = vmatprep.subr.mxu0 0.0
    %1266 = vmatpush1.xpose.msra.mxu0 0.0
    %1267 = vmatprep.subr.mxu0 0.0
    %1268 = vmatpush1.xpose.msra.mxu0 0.0
    %1269 = vmatprep.subr.mxu0 0.0
    %1270 = vmatpush1.xpose.msra.mxu0 0.0
    %1271 = vmatprep.subr.mxu0 0.0
    %1272 = vmatpush1.xpose.msra.mxu0 0.0
    %1273 = vmatprep.subr.mxu0 0.0
    %1274 = vmatpush1.xpose.msra.mxu0 0.0
    %1275 = vmatprep.subr.mxu0 0.0
    %1276 = vmatpush1.xpose.msra.mxu0 0.0
    %1277 = vmatprep.subr.mxu0 0.0
    %1278 = vmatpush1.xpose.msra.mxu0 0.0
    %1279 = vmatprep.subr.mxu0 0.0
    %1280 = vmatpush1.xpose.msra.mxu0 0.0
    %1281 = vmatprep.subr.mxu0 0.0
    %1282 = vmatpush1.xpose.msra.mxu0 0.0
    %1283 = vmatprep.subr.mxu0 0.0
    %1284 = vmatpush1.xpose.msra.mxu0 0.0
    %1285 = vmatprep.subr.mxu0 0.0
    %1286 = vmatpush1.xpose.msra.mxu0 0.0
    %1287 = vmatprep.subr.mxu0 0.0
    %1288 = vmatpush1.xpose.msra.mxu0 0.0
    %1289 = vmatprep.subr.mxu0 0.0
    %1290 = vmatpush1.xpose.msra.mxu0 0.0
    %1291 = vmatprep.subr.mxu0 0.0
    %1292 = vmatpush1.xpose.msra.mxu0 0.0
    %1293 = vmatprep.subr.mxu0 0.0
    %1294 = vmatpush1.xpose.msra.mxu0 0.0
    %1295 = vmatprep.subr.mxu0 0.0
    %1296 = vmatpush1.xpose.msra.mxu0 0.0
    %1297 = vmatprep.subr.mxu0 0.0
    %1298 = vmatpush1.xpose.msra.mxu0 0.0
    %1299 = vmatprep.subr.mxu0 0.0
    %1300 = vmatpush1.xpose.msra.mxu0 0.0
    %1301 = vmatprep.subr.mxu0 0.0
    %1302 = vmatpush1.xpose.msra.mxu0 0.0
    %1303 = vmatprep.subr.mxu0 0.0
    %1304 = vmatpush1.xpose.msra.mxu0 0.0
    %1305 = vmatprep.mubr.f32.mxu0 0.0
    %1306 = vmatmul.mubr.f32.gmra.mrb[0].mxu0 %v1237
    %v1307 = vpop.f32.mrb[0].mxu0
    %v1308 = vadd.f32 0.0, %v1307
    %v1309 = vpop.f32.mrb[0].mxu0
    %1310 = vdwg.mxu0
    %v1311 = vcombine.low %v1168, %v1170
    %v1312 = vcombine.low %v1172, %v1187
    %v1314 = vunpack.c.l.s4 1966171168
    %v1315 = vunpack.c.0.s8 %v1314
    %v1316 = vlaneseq
    %v1317 = vshrl.u32 %v1316, 7
    %v1318 = vsub.s32 %v1315, %v1317
    %v1319 = vrot.slane %v1311, %v1318
    %v1321 = vunpack.c.l.s4 1966171168
    %v1322 = vunpack.c.0.s8 %v1321
    %v1323 = vlaneseq
    %v1324 = vshrl.u32 %v1323, 7
    %v1325 = vsub.s32 %v1322, %v1324
    %v1326 = vrot.slane %v1312, %v1325
    %v1328 = vunpack.c.l.s4 1966171168
    %v1329 = vunpack.c.0.s8 %v1328
    %v1330 = vlaneseq
    %v1331 = vshrl.u32 %v1330, 7
    %v1332 = vsub.s32 %v1329, %v1331
    %v1333 = vrot.slane %v1194, %v1332
    %v1334 = vcombine.low %v1319, %v1326
    %v1336 = vunpack.c.l.s4 1966171168
    %v1337 = vunpack.c.0.s8 %v1336
    %v1338 = vlaneseq
    %v1339 = vshrl.u32 %v1338, 7
    %v1340 = vsub.s32 %v1337, %v1339
    %v1341 = vrot.slane %v1334, %v1340
    %v1343 = vunpack.c.l.s4 1966171168
    %v1344 = vunpack.c.0.s8 %v1343
    %v1345 = vlaneseq
    %v1346 = vshrl.u32 %v1345, 7
    %v1347 = vsub.s32 %v1344, %v1346
    %v1348 = vrot.slane %v1333, %v1347
    %v1349 = vcombine.low %v1341, %v1348
    %1350 = vrot.lane.b32.xlu0 %v1349, 96
    %v1351 = vpop.permute.xlu0 %1350
    %v1352 = vsel %vm1236, %v1349, 0
    %v1354 = vsel %vm1236, %v1351, 0
    %1356 = vmatprep.subr.mxu0 0.0
    %1357 = vmatpush1.xpose.msra.mxu0 %v1354
    %1358 = vmatprep.subr.mxu0 0.0
    %1359 = vmatpush1.xpose.msra.mxu0 0.0
    %1360 = vmatprep.subr.mxu0 0.0
    %1361 = vmatpush1.xpose.msra.mxu0 0.0
    %1362 = vmatprep.subr.mxu0 0.0
    %1363 = vmatpush1.xpose.msra.mxu0 0.0
    %1364 = vmatprep.subr.mxu0 0.0
    %1365 = vmatpush1.xpose.msra.mxu0 0.0
    %1366 = vmatprep.subr.mxu0 0.0
    %1367 = vmatpush1.xpose.msra.mxu0 0.0
    %1368 = vmatprep.subr.mxu0 0.0
    %1369 = vmatpush1.xpose.msra.mxu0 0.0
    %1370 = vmatprep.subr.mxu0 0.0
    %1371 = vmatpush1.xpose.msra.mxu0 0.0
    %1372 = vmatprep.subr.mxu0 0.0
    %1373 = vmatpush1.xpose.msra.mxu0 0.0
    %1374 = vmatprep.subr.mxu0 0.0
    %1375 = vmatpush1.xpose.msra.mxu0 0.0
    %1376 = vmatprep.subr.mxu0 0.0
    %1377 = vmatpush1.xpose.msra.mxu0 0.0
    %1378 = vmatprep.subr.mxu0 0.0
    %1379 = vmatpush1.xpose.msra.mxu0 0.0
    %1380 = vmatprep.subr.mxu0 0.0
    %1381 = vmatpush1.xpose.msra.mxu0 0.0
    %1382 = vmatprep.subr.mxu0 0.0
    %1383 = vmatpush1.xpose.msra.mxu0 0.0
    %1384 = vmatprep.subr.mxu0 0.0
    %1385 = vmatpush1.xpose.msra.mxu0 0.0
    %1386 = vmatprep.subr.mxu0 0.0
    %1387 = vmatpush1.xpose.msra.mxu0 0.0
    %1388 = vmatprep.subr.mxu0 0.0
    %1389 = vmatpush1.xpose.msra.mxu0 0.0
    %1390 = vmatprep.subr.mxu0 0.0
    %1391 = vmatpush1.xpose.msra.mxu0 0.0
    %1392 = vmatprep.subr.mxu0 0.0
    %1393 = vmatpush1.xpose.msra.mxu0 0.0
    %1394 = vmatprep.subr.mxu0 0.0
    %1395 = vmatpush1.xpose.msra.mxu0 0.0
    %1396 = vmatprep.subr.mxu0 0.0
    %1397 = vmatpush1.xpose.msra.mxu0 0.0
    %1398 = vmatprep.subr.mxu0 0.0
    %1399 = vmatpush1.xpose.msra.mxu0 0.0
    %1400 = vmatprep.subr.mxu0 0.0
    %1401 = vmatpush1.xpose.msra.mxu0 0.0
    %1402 = vmatprep.subr.mxu0 0.0
    %1403 = vmatpush1.xpose.msra.mxu0 0.0
    %1404 = vmatprep.subr.mxu0 0.0
    %1405 = vmatpush1.xpose.msra.mxu0 0.0
    %1406 = vmatprep.subr.mxu0 0.0
    %1407 = vmatpush1.xpose.msra.mxu0 0.0
    %1408 = vmatprep.subr.mxu0 0.0
    %1409 = vmatpush1.xpose.msra.mxu0 0.0
    %1410 = vmatprep.subr.mxu0 0.0
    %1411 = vmatpush1.xpose.msra.mxu0 0.0
    %1412 = vmatprep.subr.mxu0 0.0
    %1413 = vmatpush1.xpose.msra.mxu0 0.0
    %1414 = vmatprep.subr.mxu0 0.0
    %1415 = vmatpush1.xpose.msra.mxu0 0.0
    %1416 = vmatprep.subr.mxu0 0.0
    %1417 = vmatpush1.xpose.msra.mxu0 0.0
    %1418 = vmatprep.subr.mxu0 0.0
    %1419 = vmatpush1.xpose.msra.mxu0 0.0
    %1420 = vmatprep.mubr.f32.mxu0 0.0
    %1421 = vmatmul.mubr.f32.gmra.mrb[0].mxu0 %v1352
    %v1422 = vpop.f32.mrb[0].mxu0
    %v1423 = vadd.f32 0.0, %v1422
    %v1424 = vpop.f32.mrb[0].mxu0
    %1425 = vdwg.mxu0
    %vm1426 = vcmask 36864
    %v1427 = vsel %vm1426, %v1308, -inf
    %1428 = vmax.xlane.f32.xlu0 %v1427
    %v1429 = vpop.xlane.xlu0 %1428
    %v1430 = vsel %vm1426, %v1423, -inf
    %1431 = vmax.xlane.f32.xlu0 %v1430
    %v1432 = vpop.xlane.xlu0 %1431
    %v1433 = vsub.f32 %v1308, %v1429
    %v1434 = vsub.f32 %v1423, %v1432
    %v1435 = vmul.f32 %v1433, 1.442695
    %v1436 = vpow.pop %v1435
    %v1437 = vmul.f32 %v1434, 1.442695
    %v1438 = vpow.pop %v1437
    %v1439 = vsel %vm1426, %v1436, 0.0
    %1440 = vadd.xlane.f32.xlu0 %v1439
    %v1441 = vpop.xlane.xlu0 %1440
    %v1442 = vsel %vm1426, %v1438, 0.0
    %1443 = vadd.xlane.f32.xlu0 %v1442
    %v1444 = vpop.xlane.xlu0 %1443
    %v1445 = vrcp.pop %v1441
    %v1446 = vrcp.pop %v1444
    %v1447 = vmul.f32 %v1436, %v1445
    %v1448 = vmul.f32 %v1438, %v1446
    %1449 = vrot.lane.b32.xlu0 %v1233, 64
    %v1450 = vpop.permute.xlu0 %1449
    %vm1451 = vcmask 39936
    %v1453 = vsel %vm1451, %v1447, 0
    %vm1455 = vcmask 1044480
    %v1456 = vsel %vm1455, %v1450, 0
    %1458 = vmatprep.subr.mxu0 0.0
    %1459 = vmatpush1.msra.mxu0 %v1456
    %1460 = vmatprep.subr.mxu0 0.0
    %1461 = vmatpush1.msra.mxu0 0.0
    %1462 = vmatprep.subr.mxu0 0.0
    %1463 = vmatpush1.msra.mxu0 0.0
    %1464 = vmatprep.subr.mxu0 0.0
    %1465 = vmatpush1.msra.mxu0 0.0
    %1466 = vmatprep.subr.mxu0 0.0
    %1467 = vmatpush1.msra.mxu0 0.0
    %1468 = vmatprep.subr.mxu0 0.0
    %1469 = vmatpush1.msra.mxu0 0.0
    %1470 = vmatprep.subr.mxu0 0.0
    %1471 = vmatpush1.msra.mxu0 0.0
    %1472 = vmatprep.subr.mxu0 0.0
    %1473 = vmatpush1.msra.mxu0 0.0
    %1474 = vmatprep.subr.mxu0 0.0
    %1475 = vmatpush1.msra.mxu0 0.0
    %1476 = vmatprep.subr.mxu0 0.0
    %1477 = vmatpush1.msra.mxu0 0.0
    %1478 = vmatprep.subr.mxu0 0.0
    %1479 = vmatpush1.msra.mxu0 0.0
    %1480 = vmatprep.subr.mxu0 0.0
    %1481 = vmatpush1.msra.mxu0 0.0
    %1482 = vmatprep.subr.mxu0 0.0
    %1483 = vmatpush1.msra.mxu0 0.0
    %1484 = vmatprep.subr.mxu0 0.0
    %1485 = vmatpush1.msra.mxu0 0.0
    %1486 = vmatprep.subr.mxu0 0.0
    %1487 = vmatpush1.msra.mxu0 0.0
    %1488 = vmatprep.subr.mxu0 0.0
    %1489 = vmatpush1.msra.mxu0 0.0
    %1490 = vmatprep.subr.mxu0 0.0
    %1491 = vmatpush1.msra.mxu0 0.0
    %1492 = vmatprep.subr.mxu0 0.0
    %1493 = vmatpush1.msra.mxu0 0.0
    %1494 = vmatprep.subr.mxu0 0.0
    %1495 = vmatpush1.msra.mxu0 0.0
    %1496 = vmatprep.subr.mxu0 0.0
    %1497 = vmatpush1.msra.mxu0 0.0
    %1498 = vmatprep.subr.mxu0 0.0
    %1499 = vmatpush1.msra.mxu0 0.0
    %1500 = vmatprep.subr.mxu0 0.0
    %1501 = vmatpush1.msra.mxu0 0.0
    %1502 = vmatprep.subr.mxu0 0.0
    %1503 = vmatpush1.msra.mxu0 0.0
    %1504 = vmatprep.subr.mxu0 0.0
    %1505 = vmatpush1.msra.mxu0 0.0
    %1506 = vmatprep.subr.mxu0 0.0
    %1507 = vmatpush1.msra.mxu0 0.0
    %1508 = vmatprep.subr.mxu0 0.0
    %1509 = vmatpush1.msra.mxu0 0.0
    %1510 = vmatprep.subr.mxu0 0.0
    %1511 = vmatpush1.msra.mxu0 0.0
    %1512 = vmatprep.subr.mxu0 0.0
    %1513 = vmatpush1.msra.mxu0 0.0
    %1514 = vmatprep.subr.mxu0 0.0
    %1515 = vmatpush1.msra.mxu0 0.0
    %1516 = vmatprep.subr.mxu0 0.0
    %1517 = vmatpush1.msra.mxu0 0.0
    %1518 = vmatprep.subr.mxu0 0.0
    %1519 = vmatpush1.msra.mxu0 0.0
    %1520 = vmatprep.subr.mxu0 0.0
    %1521 = vmatpush1.msra.mxu0 0.0
    %1522 = vmatprep.mubr.f32.mxu0 0.0
    %1523 = vmatmul.mubr.f32.gmra.mrb[0].mxu0 %v1453
    %v1524 = vpop.f32.mrb[0].mxu0
    %v1525 = vadd.f32 0.0, %v1524
    %v1526 = vpop.f32.mrb[0].mxu0
    %1527 = vdwg.mxu0
    %1528 = vrot.lane.b32.xlu0 %v1349, 64
    %v1529 = vpop.permute.xlu0 %1528
    %v1531 = vsel %vm1451, %v1448, 0
    %v1533 = vsel %vm1455, %v1529, 0
    %1535 = vmatprep.subr.mxu0 0.0
    %1536 = vmatpush1.msra.mxu0 %v1533
    %1537 = vmatprep.subr.mxu0 0.0
    %1538 = vmatpush1.msra.mxu0 0.0
    %1539 = vmatprep.subr.mxu0 0.0
    %1540 = vmatpush1.msra.mxu0 0.0
    %1541 = vmatprep.subr.mxu0 0.0
    %1542 = vmatpush1.msra.mxu0 0.0
    %1543 = vmatprep.subr.mxu0 0.0
    %1544 = vmatpush1.msra.mxu0 0.0
    %1545 = vmatprep.subr.mxu0 0.0
    %1546 = vmatpush1.msra.mxu0 0.0
    %1547 = vmatprep.subr.mxu0 0.0
    %1548 = vmatpush1.msra.mxu0 0.0
    %1549 = vmatprep.subr.mxu0 0.0
    %1550 = vmatpush1.msra.mxu0 0.0
    %1551 = vmatprep.subr.mxu0 0.0
    %1552 = vmatpush1.msra.mxu0 0.0
    %1553 = vmatprep.subr.mxu0 0.0
    %1554 = vmatpush1.msra.mxu0 0.0
    %1555 = vmatprep.subr.mxu0 0.0
    %1556 = vmatpush1.msra.mxu0 0.0
    %1557 = vmatprep.subr.mxu0 0.0
    %1558 = vmatpush1.msra.mxu0 0.0
    %1559 = vmatprep.subr.mxu0 0.0
    %1560 = vmatpush1.msra.mxu0 0.0
    %1561 = vmatprep.subr.mxu0 0.0
    %1562 = vmatpush1.msra.mxu0 0.0
    %1563 = vmatprep.subr.mxu0 0.0
    %1564 = vmatpush1.msra.mxu0 0.0
    %1565 = vmatprep.subr.mxu0 0.0
    %1566 = vmatpush1.msra.mxu0 0.0
    %1567 = vmatprep.subr.mxu0 0.0
    %1568 = vmatpush1.msra.mxu0 0.0
    %1569 = vmatprep.subr.mxu0 0.0
    %1570 = vmatpush1.msra.mxu0 0.0
    %1571 = vmatprep.subr.mxu0 0.0
    %1572 = vmatpush1.msra.mxu0 0.0
    %1573 = vmatprep.subr.mxu0 0.0
    %1574 = vmatpush1.msra.mxu0 0.0
    %1575 = vmatprep.subr.mxu0 0.0
    %1576 = vmatpush1.msra.mxu0 0.0
    %1577 = vmatprep.subr.mxu0 0.0
    %1578 = vmatpush1.msra.mxu0 0.0
    %1579 = vmatprep.subr.mxu0 0.0
    %1580 = vmatpush1.msra.mxu0 0.0
    %1581 = vmatprep.subr.mxu0 0.0
    %1582 = vmatpush1.msra.mxu0 0.0
    %1583 = vmatprep.subr.mxu0 0.0
    %1584 = vmatpush1.msra.mxu0 0.0
    %1585 = vmatprep.subr.mxu0 0.0
    %1586 = vmatpush1.msra.mxu0 0.0
    %1587 = vmatprep.subr.mxu0 0.0
    %1588 = vmatpush1.msra.mxu0 0.0
    %1589 = vmatprep.subr.mxu0 0.0
    %1590 = vmatpush1.msra.mxu0 0.0
    %1591 = vmatprep.subr.mxu0 0.0
    %1592 = vmatpush1.msra.mxu0 0.0
    %1593 = vmatprep.subr.mxu0 0.0
    %1594 = vmatpush1.msra.mxu0 0.0
    %1595 = vmatprep.subr.mxu0 0.0
    %1596 = vmatpush1.msra.mxu0 0.0
    %1597 = vmatprep.subr.mxu0 0.0
    %1598 = vmatpush1.msra.mxu0 0.0
    %1599 = vmatprep.mubr.f32.mxu0 0.0
    %1600 = vmatmul.mubr.f32.gmra.mrb[0].mxu0 %v1531
    %v1601 = vpop.f32.mrb[0].mxu0
    %v1602 = vadd.f32 0.0, %v1601
    %v1603 = vpop.f32.mrb[0].mxu0
    %1604 = vdwg.mxu0
    %1605 = vrot.lane.b32.xlu0 %v1233, 120
    %v1606 = vpop.permute.xlu0 %1605
    %1607 = vrot.lane.b32.xlu0 %v1233, 88
    %v1608 = vpop.permute.xlu0 %1607
    %v1609 = vsel %vm1236, %v1606, 0
    %v1611 = vsel %vm1236, %v1608, 0
    %1613 = vmatprep.subr.mxu0 0.0
    %1614 = vmatpush1.xpose.msra.mxu0 %v1611
    %1615 = vmatprep.subr.mxu0 0.0
    %1616 = vmatpush1.xpose.msra.mxu0 0.0
    %1617 = vmatprep.subr.mxu0 0.0
    %1618 = vmatpush1.xpose.msra.mxu0 0.0
    %1619 = vmatprep.subr.mxu0 0.0
    %1620 = vmatpush1.xpose.msra.mxu0 0.0
    %1621 = vmatprep.subr.mxu0 0.0
    %1622 = vmatpush1.xpose.msra.mxu0 0.0
    %1623 = vmatprep.subr.mxu0 0.0
    %1624 = vmatpush1.xpose.msra.mxu0 0.0
    %1625 = vmatprep.subr.mxu0 0.0
    %1626 = vmatpush1.xpose.msra.mxu0 0.0
    %1627 = vmatprep.subr.mxu0 0.0
    %1628 = vmatpush1.xpose.msra.mxu0 0.0
    %1629 = vmatprep.subr.mxu0 0.0
    %1630 = vmatpush1.xpose.msra.mxu0 0.0
    %1631 = vmatprep.subr.mxu0 0.0
    %1632 = vmatpush1.xpose.msra.mxu0 0.0
    %1633 = vmatprep.subr.mxu0 0.0
    %1634 = vmatpush1.xpose.msra.mxu0 0.0
    %1635 = vmatprep.subr.mxu0 0.0
    %1636 = vmatpush1.xpose.msra.mxu0 0.0
    %1637 = vmatprep.subr.mxu0 0.0
    %1638 = vmatpush1.xpose.msra.mxu0 0.0
    %1639 = vmatprep.subr.mxu0 0.0
    %1640 = vmatpush1.xpose.msra.mxu0 0.0
    %1641 = vmatprep.subr.mxu0 0.0
    %1642 = vmatpush1.xpose.msra.mxu0 0.0
    %1643 = vmatprep.subr.mxu0 0.0
    %1644 = vmatpush1.xpose.msra.mxu0 0.0
    %1645 = vmatprep.subr.mxu0 0.0
    %1646 = vmatpush1.xpose.msra.mxu0 0.0
    %1647 = vmatprep.subr.mxu0 0.0
    %1648 = vmatpush1.xpose.msra.mxu0 0.0
    %1649 = vmatprep.subr.mxu0 0.0
    %1650 = vmatpush1.xpose.msra.mxu0 0.0
    %1651 = vmatprep.subr.mxu0 0.0
    %1652 = vmatpush1.xpose.msra.mxu0 0.0
    %1653 = vmatprep.subr.mxu0 0.0
    %1654 = vmatpush1.xpose.msra.mxu0 0.0
    %1655 = vmatprep.subr.mxu0 0.0
    %1656 = vmatpush1.xpose.msra.mxu0 0.0
    %1657 = vmatprep.subr.mxu0 0.0
    %1658 = vmatpush1.xpose.msra.mxu0 0.0
    %1659 = vmatprep.subr.mxu0 0.0
    %1660 = vmatpush1.xpose.msra.mxu0 0.0
    %1661 = vmatprep.subr.mxu0 0.0
    %1662 = vmatpush1.xpose.msra.mxu0 0.0
    %1663 = vmatprep.subr.mxu0 0.0
    %1664 = vmatpush1.xpose.msra.mxu0 0.0
    %1665 = vmatprep.subr.mxu0 0.0
    %1666 = vmatpush1.xpose.msra.mxu0 0.0
    %1667 = vmatprep.subr.mxu0 0.0
    %1668 = vmatpush1.xpose.msra.mxu0 0.0
    %1669 = vmatprep.subr.mxu0 0.0
    %1670 = vmatpush1.xpose.msra.mxu0 0.0
    %1671 = vmatprep.subr.mxu0 0.0
    %1672 = vmatpush1.xpose.msra.mxu0 0.0
    %1673 = vmatprep.subr.mxu0 0.0
    %1674 = vmatpush1.xpose.msra.mxu0 0.0
    %1675 = vmatprep.subr.mxu0 0.0
    %1676 = vmatpush1.xpose.msra.mxu0 0.0
    %1677 = vmatprep.mubr.f32.mxu0 0.0
    %1678 = vmatmul.mubr.f32.gmra.mrb[0].mxu0 %v1609
    %v1679 = vpop.f32.mrb[0].mxu0
    %v1680 = vadd.f32 0.0, %v1679
    %v1681 = vpop.f32.mrb[0].mxu0
    %1682 = vdwg.mxu0
    %1683 = vrot.lane.b32.xlu0 %v1349, 120
    %v1684 = vpop.permute.xlu0 %1683
    %1685 = vrot.lane.b32.xlu0 %v1349, 88
    %v1686 = vpop.permute.xlu0 %1685
    %v1687 = vsel %vm1236, %v1684, 0
    %v1689 = vsel %vm1236, %v1686, 0
    %1691 = vmatprep.subr.mxu0 0.0
    %1692 = vmatpush1.xpose.msra.mxu0 %v1689
    %1693 = vmatprep.subr.mxu0 0.0
    %1694 = vmatpush1.xpose.msra.mxu0 0.0
    %1695 = vmatprep.subr.mxu0 0.0
    %1696 = vmatpush1.xpose.msra.mxu0 0.0
    %1697 = vmatprep.subr.mxu0 0.0
    %1698 = vmatpush1.xpose.msra.mxu0 0.0
    %1699 = vmatprep.subr.mxu0 0.0
    %1700 = vmatpush1.xpose.msra.mxu0 0.0
    %1701 = vmatprep.subr.mxu0 0.0
    %1702 = vmatpush1.xpose.msra.mxu0 0.0
    %1703 = vmatprep.subr.mxu0 0.0
    %1704 = vmatpush1.xpose.msra.mxu0 0.0
    %1705 = vmatprep.subr.mxu0 0.0
    %1706 = vmatpush1.xpose.msra.mxu0 0.0
    %1707 = vmatprep.subr.mxu0 0.0
    %1708 = vmatpush1.xpose.msra.mxu0 0.0
    %1709 = vmatprep.subr.mxu0 0.0
    %1710 = vmatpush1.xpose.msra.mxu0 0.0
    %1711 = vmatprep.subr.mxu0 0.0
    %1712 = vmatpush1.xpose.msra.mxu0 0.0
    %1713 = vmatprep.subr.mxu0 0.0
    %1714 = vmatpush1.xpose.msra.mxu0 0.0
    %1715 = vmatprep.subr.mxu0 0.0
    %1716 = vmatpush1.xpose.msra.mxu0 0.0
    %1717 = vmatprep.subr.mxu0 0.0
    %1718 = vmatpush1.xpose.msra.mxu0 0.0
    %1719 = vmatprep.subr.mxu0 0.0
    %1720 = vmatpush1.xpose.msra.mxu0 0.0
    %1721 = vmatprep.subr.mxu0 0.0
    %1722 = vmatpush1.xpose.msra.mxu0 0.0
    %1723 = vmatprep.subr.mxu0 0.0
    %1724 = vmatpush1.xpose.msra.mxu0 0.0
    %1725 = vmatprep.subr.mxu0 0.0
    %1726 = vmatpush1.xpose.msra.mxu0 0.0
    %1727 = vmatprep.subr.mxu0 0.0
    %1728 = vmatpush1.xpose.msra.mxu0 0.0
    %1729 = vmatprep.subr.mxu0 0.0
    %1730 = vmatpush1.xpose.msra.mxu0 0.0
    %1731 = vmatprep.subr.mxu0 0.0
    %1732 = vmatpush1.xpose.msra.mxu0 0.0
    %1733 = vmatprep.subr.mxu0 0.0
    %1734 = vmatpush1.xpose.msra.mxu0 0.0
    %1735 = vmatprep.subr.mxu0 0.0
    %1736 = vmatpush1.xpose.msra.mxu0 0.0
    %1737 = vmatprep.subr.mxu0 0.0
    %1738 = vmatpush1.xpose.msra.mxu0 0.0
    %1739 = vmatprep.subr.mxu0 0.0
    %1740 = vmatpush1.xpose.msra.mxu0 0.0
    %1741 = vmatprep.subr.mxu0 0.0
    %1742 = vmatpush1.xpose.msra.mxu0 0.0
    %1743 = vmatprep.subr.mxu0 0.0
    %1744 = vmatpush1.xpose.msra.mxu0 0.0
    %1745 = vmatprep.subr.mxu0 0.0
    %1746 = vmatpush1.xpose.msra.mxu0 0.0
    %1747 = vmatprep.subr.mxu0 0.0
    %1748 = vmatpush1.xpose.msra.mxu0 0.0
    %1749 = vmatprep.subr.mxu0 0.0
    %1750 = vmatpush1.xpose.msra.mxu0 0.0
    %1751 = vmatprep.subr.mxu0 0.0
    %1752 = vmatpush1.xpose.msra.mxu0 0.0
    %1753 = vmatprep.subr.mxu0 0.0
    %1754 = vmatpush1.xpose.msra.mxu0 0.0
    %1755 = vmatprep.mubr.f32.mxu0 0.0
    %1756 = vmatmul.mubr.f32.gmra.mrb[0].mxu0 %v1687
    %v1757 = vpop.f32.mrb[0].mxu0
    %v1758 = vadd.f32 0.0, %v1757
    %v1759 = vpop.f32.mrb[0].mxu0
    %1760 = vdwg.mxu0
    %v1761 = vsel %vm1426, %v1680, -inf
    %1762 = vmax.xlane.f32.xlu0 %v1761
    %v1763 = vpop.xlane.xlu0 %1762
    %v1764 = vsel %vm1426, %v1758, -inf
    %1765 = vmax.xlane.f32.xlu0 %v1764
    %v1766 = vpop.xlane.xlu0 %1765
    %v1767 = vsub.f32 %v1680, %v1763
    %v1768 = vsub.f32 %v1758, %v1766
    %v1769 = vmul.f32 %v1767, 1.442695
    %v1770 = vpow.pop %v1769
    %v1771 = vmul.f32 %v1768, 1.442695
    %v1772 = vpow.pop %v1771
    %v1773 = vsel %vm1426, %v1770, 0.0
    %1774 = vadd.xlane.f32.xlu0 %v1773
    %v1775 = vpop.xlane.xlu0 %1774
    %v1776 = vsel %vm1426, %v1772, 0.0
    %1777 = vadd.xlane.f32.xlu0 %v1776
    %v1778 = vpop.xlane.xlu0 %1777
    %v1779 = vrcp.pop %v1775
    %v1780 = vrcp.pop %v1778
    %v1781 = vmul.f32 %v1770, %v1779
    %v1782 = vmul.f32 %v1772, %v1780
    %1783 = vrot.lane.b32.xlu0 %v1233, 56
    %v1784 = vpop.permute.xlu0 %1783
    %v1786 = vsel %vm1451, %v1781, 0
    %v1788 = vsel %vm1455, %v1784, 0
    %1790 = vmatprep.subr.mxu0 0.0
    %1791 = vmatpush1.msra.mxu0 %v1788
    %1792 = vmatprep.subr.mxu0 0.0
    %1793 = vmatpush1.msra.mxu0 0.0
    %1794 = vmatprep.subr.mxu0 0.0
    %1795 = vmatpush1.msra.mxu0 0.0
    %1796 = vmatprep.subr.mxu0 0.0
    %1797 = vmatpush1.msra.mxu0 0.0
    %1798 = vmatprep.subr.mxu0 0.0
    %1799 = vmatpush1.msra.mxu0 0.0
    %1800 = vmatprep.subr.mxu0 0.0
    %1801 = vmatpush1.msra.mxu0 0.0
    %1802 = vmatprep.subr.mxu0 0.0
    %1803 = vmatpush1.msra.mxu0 0.0
    %1804 = vmatprep.subr.mxu0 0.0
    %1805 = vmatpush1.msra.mxu0 0.0
    %1806 = vmatprep.subr.mxu0 0.0
    %1807 = vmatpush1.msra.mxu0 0.0
    %1808 = vmatprep.subr.mxu0 0.0
    %1809 = vmatpush1.msra.mxu0 0.0
    %1810 = vmatprep.subr.mxu0 0.0
    %1811 = vmatpush1.msra.mxu0 0.0
    %1812 = vmatprep.subr.mxu0 0.0
    %1813 = vmatpush1.msra.mxu0 0.0
    %1814 = vmatprep.subr.mxu0 0.0
    %1815 = vmatpush1.msra.mxu0 0.0
    %1816 = vmatprep.subr.mxu0 0.0
    %1817 = vmatpush1.msra.mxu0 0.0
    %1818 = vmatprep.subr.mxu0 0.0
    %1819 = vmatpush1.msra.mxu0 0.0
    %1820 = vmatprep.subr.mxu0 0.0
    %1821 = vmatpush1.msra.mxu0 0.0
    %1822 = vmatprep.subr.mxu0 0.0
    %1823 = vmatpush1.msra.mxu0 0.0
    %1824 = vmatprep.subr.mxu0 0.0
    %1825 = vmatpush1.msra.mxu0 0.0
    %1826 = vmatprep.subr.mxu0 0.0
    %1827 = vmatpush1.msra.mxu0 0.0
    %1828 = vmatprep.subr.mxu0 0.0
    %1829 = vmatpush1.msra.mxu0 0.0
    %1830 = vmatprep.subr.mxu0 0.0
    %1831 = vmatpush1.msra.mxu0 0.0
    %1832 = vmatprep.subr.mxu0 0.0
    %1833 = vmatpush1.msra.mxu0 0.0
    %1834 = vmatprep.subr.mxu0 0.0
    %1835 = vmatpush1.msra.mxu0 0.0
    %1836 = vmatprep.subr.mxu0 0.0
    %1837 = vmatpush1.msra.mxu0 0.0
    %1838 = vmatprep.subr.mxu0 0.0
    %1839 = vmatpush1.msra.mxu0 0.0
    %1840 = vmatprep.subr.mxu0 0.0
    %1841 = vmatpush1.msra.mxu0 0.0
    %1842 = vmatprep.subr.mxu0 0.0
    %1843 = vmatpush1.msra.mxu0 0.0
    %1844 = vmatprep.subr.mxu0 0.0
    %1845 = vmatpush1.msra.mxu0 0.0
    %1846 = vmatprep.subr.mxu0 0.0
    %1847 = vmatpush1.msra.mxu0 0.0
    %1848 = vmatprep.subr.mxu0 0.0
    %1849 = vmatpush1.msra.mxu0 0.0
    %1850 = vmatprep.subr.mxu0 0.0
    %1851 = vmatpush1.msra.mxu0 0.0
    %1852 = vmatprep.subr.mxu0 0.0
    %1853 = vmatpush1.msra.mxu0 0.0
    %1854 = vmatprep.mubr.f32.mxu0 0.0
    %1855 = vmatmul.mubr.f32.gmra.mrb[0].mxu0 %v1786
    %v1856 = vpop.f32.mrb[0].mxu0
    %v1857 = vadd.f32 0.0, %v1856
    %v1858 = vpop.f32.mrb[0].mxu0
    %1859 = vdwg.mxu0
    %1860 = vrot.lane.b32.xlu0 %v1349, 56
    %v1861 = vpop.permute.xlu0 %1860
    %v1863 = vsel %vm1451, %v1782, 0
    %v1865 = vsel %vm1455, %v1861, 0
    %1867 = vmatprep.subr.mxu0 0.0
    %1868 = vmatpush1.msra.mxu0 %v1865
    %1869 = vmatprep.subr.mxu0 0.0
    %1870 = vmatpush1.msra.mxu0 0.0
    %1871 = vmatprep.subr.mxu0 0.0
    %1872 = vmatpush1.msra.mxu0 0.0
    %1873 = vmatprep.subr.mxu0 0.0
    %1874 = vmatpush1.msra.mxu0 0.0
    %1875 = vmatprep.subr.mxu0 0.0
    %1876 = vmatpush1.msra.mxu0 0.0
    %1877 = vmatprep.subr.mxu0 0.0
    %1878 = vmatpush1.msra.mxu0 0.0
    %1879 = vmatprep.subr.mxu0 0.0
    %1880 = vmatpush1.msra.mxu0 0.0
    %1881 = vmatprep.subr.mxu0 0.0
    %1882 = vmatpush1.msra.mxu0 0.0
    %1883 = vmatprep.subr.mxu0 0.0
    %1884 = vmatpush1.msra.mxu0 0.0
    %1885 = vmatprep.subr.mxu0 0.0
    %1886 = vmatpush1.msra.mxu0 0.0
    %1887 = vmatprep.subr.mxu0 0.0
    %1888 = vmatpush1.msra.mxu0 0.0
    %1889 = vmatprep.subr.mxu0 0.0
    %1890 = vmatpush1.msra.mxu0 0.0
    %1891 = vmatprep.subr.mxu0 0.0
    %1892 = vmatpush1.msra.mxu0 0.0
    %1893 = vmatprep.subr.mxu0 0.0
    %1894 = vmatpush1.msra.mxu0 0.0
    %1895 = vmatprep.subr.mxu0 0.0
    %1896 = vmatpush1.msra.mxu0 0.0
    %1897 = vmatprep.subr.mxu0 0.0
    %1898 = vmatpush1.msra.mxu0 0.0
    %1899 = vmatprep.subr.mxu0 0.0
    %1900 = vmatpush1.msra.mxu0 0.0
    %1901 = vmatprep.subr.mxu0 0.0
    %1902 = vmatpush1.msra.mxu0 0.0
    %1903 = vmatprep.subr.mxu0 0.0
    %1904 = vmatpush1.msra.mxu0 0.0
    %1905 = vmatprep.subr.mxu0 0.0
    %1906 = vmatpush1.msra.mxu0 0.0
    %1907 = vmatprep.subr.mxu0 0.0
    %1908 = vmatpush1.msra.mxu0 0.0
    %1909 = vmatprep.subr.mxu0 0.0
    %1910 = vmatpush1.msra.mxu0 0.0
    %1911 = vmatprep.subr.mxu0 0.0
    %1912 = vmatpush1.msra.mxu0 0.0
    %1913 = vmatprep.subr.mxu0 0.0
    %1914 = vmatpush1.msra.mxu0 0.0
    %1915 = vmatprep.subr.mxu0 0.0
    %1916 = vmatpush1.msra.mxu0 0.0
    %1917 = vmatprep.subr.mxu0 0.0
    %1918 = vmatpush1.msra.mxu0 0.0
    %1919 = vmatprep.subr.mxu0 0.0
    %1920 = vmatpush1.msra.mxu0 0.0
    %1921 = vmatprep.subr.mxu0 0.0
    %1922 = vmatpush1.msra.mxu0 0.0
    %1923 = vmatprep.subr.mxu0 0.0
    %1924 = vmatpush1.msra.mxu0 0.0
    %1925 = vmatprep.subr.mxu0 0.0
    %1926 = vmatpush1.msra.mxu0 0.0
    %1927 = vmatprep.subr.mxu0 0.0
    %1928 = vmatpush1.msra.mxu0 0.0
    %1929 = vmatprep.subr.mxu0 0.0
    %1930 = vmatpush1.msra.mxu0 0.0
    %1931 = vmatprep.mubr.f32.mxu0 0.0
    %1932 = vmatmul.mubr.f32.gmra.mrb[0].mxu0 %v1863
    %v1933 = vpop.f32.mrb[0].mxu0
    %v1934 = vadd.f32 0.0, %v1933
    %v1935 = vpop.f32.mrb[0].mxu0
    %1936 = vdwg.mxu0
    %1937 = vrot.lane.b32.xlu0 %v1233, 112
    %v1938 = vpop.permute.xlu0 %1937
    %1939 = vrot.lane.b32.xlu0 %v1233, 80
    %v1940 = vpop.permute.xlu0 %1939
    %v1941 = vsel %vm1236, %v1938, 0
    %v1943 = vsel %vm1236, %v1940, 0
    %1945 = vmatprep.subr.mxu0 0.0
    %1946 = vmatpush1.xpose.msra.mxu0 %v1943
    %1947 = vmatprep.subr.mxu0 0.0
    %1948 = vmatpush1.xpose.msra.mxu0 0.0
    %1949 = vmatprep.subr.mxu0 0.0
    %1950 = vmatpush1.xpose.msra.mxu0 0.0
    %1951 = vmatprep.subr.mxu0 0.0
    %1952 = vmatpush1.xpose.msra.mxu0 0.0
    %1953 = vmatprep.subr.mxu0 0.0
    %1954 = vmatpush1.xpose.msra.mxu0 0.0
    %1955 = vmatprep.subr.mxu0 0.0
    %1956 = vmatpush1.xpose.msra.mxu0 0.0
    %1957 = vmatprep.subr.mxu0 0.0
    %1958 = vmatpush1.xpose.msra.mxu0 0.0
    %1959 = vmatprep.subr.mxu0 0.0
    %1960 = vmatpush1.xpose.msra.mxu0 0.0
    %1961 = vmatprep.subr.mxu0 0.0
    %1962 = vmatpush1.xpose.msra.mxu0 0.0
    %1963 = vmatprep.subr.mxu0 0.0
    %1964 = vmatpush1.xpose.msra.mxu0 0.0
    %1965 = vmatprep.subr.mxu0 0.0
    %1966 = vmatpush1.xpose.msra.mxu0 0.0
    %1967 = vmatprep.subr.mxu0 0.0
    %1968 = vmatpush1.xpose.msra.mxu0 0.0
    %1969 = vmatprep.subr.mxu0 0.0
    %1970 = vmatpush1.xpose.msra.mxu0 0.0
    %1971 = vmatprep.subr.mxu0 0.0
    %1972 = vmatpush1.xpose.msra.mxu0 0.0
    %1973 = vmatprep.subr.mxu0 0.0
    %1974 = vmatpush1.xpose.msra.mxu0 0.0
    %1975 = vmatprep.subr.mxu0 0.0
    %1976 = vmatpush1.xpose.msra.mxu0 0.0
    %1977 = vmatprep.subr.mxu0 0.0
    %1978 = vmatpush1.xpose.msra.mxu0 0.0
    %1979 = vmatprep.subr.mxu0 0.0
    %1980 = vmatpush1.xpose.msra.mxu0 0.0
    %1981 = vmatprep.subr.mxu0 0.0
    %1982 = vmatpush1.xpose.msra.mxu0 0.0
    %1983 = vmatprep.subr.mxu0 0.0
    %1984 = vmatpush1.xpose.msra.mxu0 0.0
    %1985 = vmatprep.subr.mxu0 0.0
    %1986 = vmatpush1.xpose.msra.mxu0 0.0
    %1987 = vmatprep.subr.mxu0 0.0
    %1988 = vmatpush1.xpose.msra.mxu0 0.0
    %1989 = vmatprep.subr.mxu0 0.0
    %1990 = vmatpush1.xpose.msra.mxu0 0.0
    %1991 = vmatprep.subr.mxu0 0.0
    %1992 = vmatpush1.xpose.msra.mxu0 0.0
    %1993 = vmatprep.subr.mxu0 0.0
    %1994 = vmatpush1.xpose.msra.mxu0 0.0
    %1995 = vmatprep.subr.mxu0 0.0
    %1996 = vmatpush1.xpose.msra.mxu0 0.0
    %1997 = vmatprep.subr.mxu0 0.0
    %1998 = vmatpush1.xpose.msra.mxu0 0.0
    %1999 = vmatprep.subr.mxu0 0.0
    %2000 = vmatpush1.xpose.msra.mxu0 0.0
    %2001 = vmatprep.subr.mxu0 0.0
    %2002 = vmatpush1.xpose.msra.mxu0 0.0
    %2003 = vmatprep.subr.mxu0 0.0
    %2004 = vmatpush1.xpose.msra.mxu0 0.0
    %2005 = vmatprep.subr.mxu0 0.0
    %2006 = vmatpush1.xpose.msra.mxu0 0.0
    %2007 = vmatprep.subr.mxu0 0.0
    %2008 = vmatpush1.xpose.msra.mxu0 0.0
    %2009 = vmatprep.mubr.f32.mxu0 0.0
    %2010 = vmatmul.mubr.f32.gmra.mrb[0].mxu0 %v1941
    %v2011 = vpop.f32.mrb[0].mxu0
    %v2012 = vadd.f32 0.0, %v2011
    %v2013 = vpop.f32.mrb[0].mxu0
    %2014 = vdwg.mxu0
    %2015 = vrot.lane.b32.xlu0 %v1349, 112
    %v2016 = vpop.permute.xlu0 %2015
    %2017 = vrot.lane.b32.xlu0 %v1349, 80
    %v2018 = vpop.permute.xlu0 %2017
    %v2019 = vsel %vm1236, %v2016, 0
    %v2021 = vsel %vm1236, %v2018, 0
    %2023 = vmatprep.subr.mxu0 0.0
    %2024 = vmatpush1.xpose.msra.mxu0 %v2021
    %2025 = vmatprep.subr.mxu0 0.0
    %2026 = vmatpush1.xpose.msra.mxu0 0.0
    %2027 = vmatprep.subr.mxu0 0.0
    %2028 = vmatpush1.xpose.msra.mxu0 0.0
    %2029 = vmatprep.subr.mxu0 0.0
    %2030 = vmatpush1.xpose.msra.mxu0 0.0
    %2031 = vmatprep.subr.mxu0 0.0
    %2032 = vmatpush1.xpose.msra.mxu0 0.0
    %2033 = vmatprep.subr.mxu0 0.0
    %2034 = vmatpush1.xpose.msra.mxu0 0.0
    %2035 = vmatprep.subr.mxu0 0.0
    %2036 = vmatpush1.xpose.msra.mxu0 0.0
    %2037 = vmatprep.subr.mxu0 0.0
    %2038 = vmatpush1.xpose.msra.mxu0 0.0
    %2039 = vmatprep.subr.mxu0 0.0
    %2040 = vmatpush1.xpose.msra.mxu0 0.0
    %2041 = vmatprep.subr.mxu0 0.0
    %2042 = vmatpush1.xpose.msra.mxu0 0.0
    %2043 = vmatprep.subr.mxu0 0.0
    %2044 = vmatpush1.xpose.msra.mxu0 0.0
    %2045 = vmatprep.subr.mxu0 0.0
    %2046 = vmatpush1.xpose.msra.mxu0 0.0
    %2047 = vmatprep.subr.mxu0 0.0
    %2048 = vmatpush1.xpose.msra.mxu0 0.0
    %2049 = vmatprep.subr.mxu0 0.0
    %2050 = vmatpush1.xpose.msra.mxu0 0.0
    %2051 = vmatprep.subr.mxu0 0.0
    %2052 = vmatpush1.xpose.msra.mxu0 0.0
    %2053 = vmatprep.subr.mxu0 0.0
    %2054 = vmatpush1.xpose.msra.mxu0 0.0
    %2055 = vmatprep.subr.mxu0 0.0
    %2056 = vmatpush1.xpose.msra.mxu0 0.0
    %2057 = vmatprep.subr.mxu0 0.0
    %2058 = vmatpush1.xpose.msra.mxu0 0.0
    %2059 = vmatprep.subr.mxu0 0.0
    %2060 = vmatpush1.xpose.msra.mxu0 0.0
    %2061 = vmatprep.subr.mxu0 0.0
    %2062 = vmatpush1.xpose.msra.mxu0 0.0
    %2063 = vmatprep.subr.mxu0 0.0
    %2064 = vmatpush1.xpose.msra.mxu0 0.0
    %2065 = vmatprep.subr.mxu0 0.0
    %2066 = vmatpush1.xpose.msra.mxu0 0.0
    %2067 = vmatprep.subr.mxu0 0.0
    %2068 = vmatpush1.xpose.msra.mxu0 0.0
    %2069 = vmatprep.subr.mxu0 0.0
    %2070 = vmatpush1.xpose.msra.mxu0 0.0
    %2071 = vmatprep.subr.mxu0 0.0
    %2072 = vmatpush1.xpose.msra.mxu0 0.0
    %2073 = vmatprep.subr.mxu0 0.0
    %2074 = vmatpush1.xpose.msra.mxu0 0.0
    %2075 = vmatprep.subr.mxu0 0.0
    %2076 = vmatpush1.xpose.msra.mxu0 0.0
    %2077 = vmatprep.subr.mxu0 0.0
    %2078 = vmatpush1.xpose.msra.mxu0 0.0
    %2079 = vmatprep.subr.mxu0 0.0
    %2080 = vmatpush1.xpose.msra.mxu0 0.0
    %2081 = vmatprep.subr.mxu0 0.0
    %2082 = vmatpush1.xpose.msra.mxu0 0.0
    %2083 = vmatprep.subr.mxu0 0.0
    %2084 = vmatpush1.xpose.msra.mxu0 0.0
    %2085 = vmatprep.subr.mxu0 0.0
    %2086 = vmatpush1.xpose.msra.mxu0 0.0
    %2087 = vmatprep.mubr.f32.mxu0 0.0
    %2088 = vmatmul.mubr.f32.gmra.mrb[0].mxu0 %v2019
    %v2089 = vpop.f32.mrb[0].mxu0
    %v2090 = vadd.f32 0.0, %v2089
    %v2091 = vpop.f32.mrb[0].mxu0
    %2092 = vdwg.mxu0
    %v2093 = vsel %vm1426, %v2012, -inf
    %2094 = vmax.xlane.f32.xlu0 %v2093
    %v2095 = vpop.xlane.xlu0 %2094
    %v2096 = vsel %vm1426, %v2090, -inf
    %2097 = vmax.xlane.f32.xlu0 %v2096
    %v2098 = vpop.xlane.xlu0 %2097
    %v2099 = vsub.f32 %v2012, %v2095
    %v2100 = vsub.f32 %v2090, %v2098
    %v2101 = vmul.f32 %v2099, 1.442695
    %v2102 = vpow.pop %v2101
    %v2103 = vmul.f32 %v2100, 1.442695
    %v2104 = vpow.pop %v2103
    %v2105 = vsel %vm1426, %v2102, 0.0
    %2106 = vadd.xlane.f32.xlu0 %v2105
    %v2107 = vpop.xlane.xlu0 %2106
    %v2108 = vsel %vm1426, %v2104, 0.0
    %2109 = vadd.xlane.f32.xlu0 %v2108
    %v2110 = vpop.xlane.xlu0 %2109
    %v2111 = vrcp.pop %v2107
    %v2112 = vrcp.pop %v2110
    %v2113 = vmul.f32 %v2102, %v2111
    %v2114 = vmul.f32 %v2104, %v2112
    %2115 = vrot.lane.b32.xlu0 %v1233, 48
    %v2116 = vpop.permute.xlu0 %2115
    %v2118 = vsel %vm1451, %v2113, 0
    %v2120 = vsel %vm1455, %v2116, 0
    %2122 = vmatprep.subr.mxu0 0.0
    %2123 = vmatpush1.msra.mxu0 %v2120
    %2124 = vmatprep.subr.mxu0 0.0
    %2125 = vmatpush1.msra.mxu0 0.0
    %2126 = vmatprep.subr.mxu0 0.0
    %2127 = vmatpush1.msra.mxu0 0.0
    %2128 = vmatprep.subr.mxu0 0.0
    %2129 = vmatpush1.msra.mxu0 0.0
    %2130 = vmatprep.subr.mxu0 0.0
    %2131 = vmatpush1.msra.mxu0 0.0
    %2132 = vmatprep.subr.mxu0 0.0
    %2133 = vmatpush1.msra.mxu0 0.0
    %2134 = vmatprep.subr.mxu0 0.0
    %2135 = vmatpush1.msra.mxu0 0.0
    %2136 = vmatprep.subr.mxu0 0.0
    %2137 = vmatpush1.msra.mxu0 0.0
    %2138 = vmatprep.subr.mxu0 0.0
    %2139 = vmatpush1.msra.mxu0 0.0
    %2140 = vmatprep.subr.mxu0 0.0
    %2141 = vmatpush1.msra.mxu0 0.0
    %2142 = vmatprep.subr.mxu0 0.0
    %2143 = vmatpush1.msra.mxu0 0.0
    %2144 = vmatprep.subr.mxu0 0.0
    %2145 = vmatpush1.msra.mxu0 0.0
    %2146 = vmatprep.subr.mxu0 0.0
    %2147 = vmatpush1.msra.mxu0 0.0
    %2148 = vmatprep.subr.mxu0 0.0
    %2149 = vmatpush1.msra.mxu0 0.0
    %2150 = vmatprep.subr.mxu0 0.0
    %2151 = vmatpush1.msra.mxu0 0.0
    %2152 = vmatprep.subr.mxu0 0.0
    %2153 = vmatpush1.msra.mxu0 0.0
    %2154 = vmatprep.subr.mxu0 0.0
    %2155 = vmatpush1.msra.mxu0 0.0
    %2156 = vmatprep.subr.mxu0 0.0
    %2157 = vmatpush1.msra.mxu0 0.0
    %2158 = vmatprep.subr.mxu0 0.0
    %2159 = vmatpush1.msra.mxu0 0.0
    %2160 = vmatprep.subr.mxu0 0.0
    %2161 = vmatpush1.msra.mxu0 0.0
    %2162 = vmatprep.subr.mxu0 0.0
    %2163 = vmatpush1.msra.mxu0 0.0
    %2164 = vmatprep.subr.mxu0 0.0
    %2165 = vmatpush1.msra.mxu0 0.0
    %2166 = vmatprep.subr.mxu0 0.0
    %2167 = vmatpush1.msra.mxu0 0.0
    %2168 = vmatprep.subr.mxu0 0.0
    %2169 = vmatpush1.msra.mxu0 0.0
    %2170 = vmatprep.subr.mxu0 0.0
    %2171 = vmatpush1.msra.mxu0 0.0
    %2172 = vmatprep.subr.mxu0 0.0
    %2173 = vmatpush1.msra.mxu0 0.0
    %2174 = vmatprep.subr.mxu0 0.0
    %2175 = vmatpush1.msra.mxu0 0.0
    %2176 = vmatprep.subr.mxu0 0.0
    %2177 = vmatpush1.msra.mxu0 0.0
    %2178 = vmatprep.subr.mxu0 0.0
    %2179 = vmatpush1.msra.mxu0 0.0
    %2180 = vmatprep.subr.mxu0 0.0
    %2181 = vmatpush1.msra.mxu0 0.0
    %2182 = vmatprep.subr.mxu0 0.0
    %2183 = vmatpush1.msra.mxu0 0.0
    %2184 = vmatprep.subr.mxu0 0.0
    %2185 = vmatpush1.msra.mxu0 0.0
    %2186 = vmatprep.mubr.f32.mxu0 0.0
    %2187 = vmatmul.mubr.f32.gmra.mrb[0].mxu0 %v2118
    %v2188 = vpop.f32.mrb[0].mxu0
    %v2189 = vadd.f32 0.0, %v2188
    %v2190 = vpop.f32.mrb[0].mxu0
    %2191 = vdwg.mxu0
    %2192 = vrot.lane.b32.xlu0 %v1349, 48
    %v2193 = vpop.permute.xlu0 %2192
    %v2195 = vsel %vm1451, %v2114, 0
    %v2197 = vsel %vm1455, %v2193, 0
    %2199 = vmatprep.subr.mxu0 0.0
    %2200 = vmatpush1.msra.mxu0 %v2197
    %2201 = vmatprep.subr.mxu0 0.0
    %2202 = vmatpush1.msra.mxu0 0.0
    %2203 = vmatprep.subr.mxu0 0.0
    %2204 = vmatpush1.msra.mxu0 0.0
    %2205 = vmatprep.subr.mxu0 0.0
    %2206 = vmatpush1.msra.mxu0 0.0
    %2207 = vmatprep.subr.mxu0 0.0
    %2208 = vmatpush1.msra.mxu0 0.0
    %2209 = vmatprep.subr.mxu0 0.0
    %2210 = vmatpush1.msra.mxu0 0.0
    %2211 = vmatprep.subr.mxu0 0.0
    %2212 = vmatpush1.msra.mxu0 0.0
    %2213 = vmatprep.subr.mxu0 0.0
    %2214 = vmatpush1.msra.mxu0 0.0
    %2215 = vmatprep.subr.mxu0 0.0
    %2216 = vmatpush1.msra.mxu0 0.0
    %2217 = vmatprep.subr.mxu0 0.0
    %2218 = vmatpush1.msra.mxu0 0.0
    %2219 = vmatprep.subr.mxu0 0.0
    %2220 = vmatpush1.msra.mxu0 0.0
    %2221 = vmatprep.subr.mxu0 0.0
    %2222 = vmatpush1.msra.mxu0 0.0
    %2223 = vmatprep.subr.mxu0 0.0
    %2224 = vmatpush1.msra.mxu0 0.0
    %2225 = vmatprep.subr.mxu0 0.0
    %2226 = vmatpush1.msra.mxu0 0.0
    %2227 = vmatprep.subr.mxu0 0.0
    %2228 = vmatpush1.msra.mxu0 0.0
    %2229 = vmatprep.subr.mxu0 0.0
    %2230 = vmatpush1.msra.mxu0 0.0
    %2231 = vmatprep.subr.mxu0 0.0
    %2232 = vmatpush1.msra.mxu0 0.0
    %2233 = vmatprep.subr.mxu0 0.0
    %2234 = vmatpush1.msra.mxu0 0.0
    %2235 = vmatprep.subr.mxu0 0.0
    %2236 = vmatpush1.msra.mxu0 0.0
    %2237 = vmatprep.subr.mxu0 0.0
    %2238 = vmatpush1.msra.mxu0 0.0
    %2239 = vmatprep.subr.mxu0 0.0
    %2240 = vmatpush1.msra.mxu0 0.0
    %2241 = vmatprep.subr.mxu0 0.0
    %2242 = vmatpush1.msra.mxu0 0.0
    %2243 = vmatprep.subr.mxu0 0.0
    %2244 = vmatpush1.msra.mxu0 0.0
    %2245 = vmatprep.subr.mxu0 0.0
    %2246 = vmatpush1.msra.mxu0 0.0
    %2247 = vmatprep.subr.mxu0 0.0
    %2248 = vmatpush1.msra.mxu0 0.0
    %2249 = vmatprep.subr.mxu0 0.0
    %2250 = vmatpush1.msra.mxu0 0.0
    %2251 = vmatprep.subr.mxu0 0.0
    %2252 = vmatpush1.msra.mxu0 0.0
    %2253 = vmatprep.subr.mxu0 0.0
    %2254 = vmatpush1.msra.mxu0 0.0
    %2255 = vmatprep.subr.mxu0 0.0
    %2256 = vmatpush1.msra.mxu0 0.0
    %2257 = vmatprep.subr.mxu0 0.0
    %2258 = vmatpush1.msra.mxu0 0.0
    %2259 = vmatprep.subr.mxu0 0.0
    %2260 = vmatpush1.msra.mxu0 0.0
    %2261 = vmatprep.subr.mxu0 0.0
    %2262 = vmatpush1.msra.mxu0 0.0
    %2263 = vmatprep.mubr.f32.mxu0 0.0
    %2264 = vmatmul.mubr.f32.gmra.mrb[0].mxu0 %v2195
    %v2265 = vpop.f32.mrb[0].mxu0
    %v2266 = vadd.f32 0.0, %v2265
    %v2267 = vpop.f32.mrb[0].mxu0
    %2268 = vdwg.mxu0
    %2269 = vrot.lane.b32.xlu0 %v1233, 104
    %v2270 = vpop.permute.xlu0 %2269
    %2271 = vrot.lane.b32.xlu0 %v1233, 72
    %v2272 = vpop.permute.xlu0 %2271
    %v2273 = vsel %vm1236, %v2270, 0
    %v2275 = vsel %vm1236, %v2272, 0
    %2277 = vmatprep.subr.mxu0 0.0
    %2278 = vmatpush1.xpose.msra.mxu0 %v2275
    %2279 = vmatprep.subr.mxu0 0.0
    %2280 = vmatpush1.xpose.msra.mxu0 0.0
    %2281 = vmatprep.subr.mxu0 0.0
    %2282 = vmatpush1.xpose.msra.mxu0 0.0
    %2283 = vmatprep.subr.mxu0 0.0
    %2284 = vmatpush1.xpose.msra.mxu0 0.0
    %2285 = vmatprep.subr.mxu0 0.0
    %2286 = vmatpush1.xpose.msra.mxu0 0.0
    %2287 = vmatprep.subr.mxu0 0.0
    %2288 = vmatpush1.xpose.msra.mxu0 0.0
    %2289 = vmatprep.subr.mxu0 0.0
    %2290 = vmatpush1.xpose.msra.mxu0 0.0
    %2291 = vmatprep.subr.mxu0 0.0
    %2292 = vmatpush1.xpose.msra.mxu0 0.0
    %2293 = vmatprep.subr.mxu0 0.0
    %2294 = vmatpush1.xpose.msra.mxu0 0.0
    %2295 = vmatprep.subr.mxu0 0.0
    %2296 = vmatpush1.xpose.msra.mxu0 0.0
    %2297 = vmatprep.subr.mxu0 0.0
    %2298 = vmatpush1.xpose.msra.mxu0 0.0
    %2299 = vmatprep.subr.mxu0 0.0
    %2300 = vmatpush1.xpose.msra.mxu0 0.0
    %2301 = vmatprep.subr.mxu0 0.0
    %2302 = vmatpush1.xpose.msra.mxu0 0.0
    %2303 = vmatprep.subr.mxu0 0.0
    %2304 = vmatpush1.xpose.msra.mxu0 0.0
    %2305 = vmatprep.subr.mxu0 0.0
    %2306 = vmatpush1.xpose.msra.mxu0 0.0
    %2307 = vmatprep.subr.mxu0 0.0
    %2308 = vmatpush1.xpose.msra.mxu0 0.0
    %2309 = vmatprep.subr.mxu0 0.0
    %2310 = vmatpush1.xpose.msra.mxu0 0.0
    %2311 = vmatprep.subr.mxu0 0.0
    %2312 = vmatpush1.xpose.msra.mxu0 0.0
    %2313 = vmatprep.subr.mxu0 0.0
    %2314 = vmatpush1.xpose.msra.mxu0 0.0
    %2315 = vmatprep.subr.mxu0 0.0
    %2316 = vmatpush1.xpose.msra.mxu0 0.0
    %2317 = vmatprep.subr.mxu0 0.0
    %2318 = vmatpush1.xpose.msra.mxu0 0.0
    %2319 = vmatprep.subr.mxu0 0.0
    %2320 = vmatpush1.xpose.msra.mxu0 0.0
    %2321 = vmatprep.subr.mxu0 0.0
    %2322 = vmatpush1.xpose.msra.mxu0 0.0
    %2323 = vmatprep.subr.mxu0 0.0
    %2324 = vmatpush1.xpose.msra.mxu0 0.0
    %2325 = vmatprep.subr.mxu0 0.0
    %2326 = vmatpush1.xpose.msra.mxu0 0.0
    %2327 = vmatprep.subr.mxu0 0.0
    %2328 = vmatpush1.xpose.msra.mxu0 0.0
    %2329 = vmatprep.subr.mxu0 0.0
    %2330 = vmatpush1.xpose.msra.mxu0 0.0
    %2331 = vmatprep.subr.mxu0 0.0
    %2332 = vmatpush1.xpose.msra.mxu0 0.0
    %2333 = vmatprep.subr.mxu0 0.0
    %2334 = vmatpush1.xpose.msra.mxu0 0.0
    %2335 = vmatprep.subr.mxu0 0.0
    %2336 = vmatpush1.xpose.msra.mxu0 0.0
    %2337 = vmatprep.subr.mxu0 0.0
    %2338 = vmatpush1.xpose.msra.mxu0 0.0
    %2339 = vmatprep.subr.mxu0 0.0
    %2340 = vmatpush1.xpose.msra.mxu0 0.0
    %2341 = vmatprep.mubr.f32.mxu0 0.0
    %2342 = vmatmul.mubr.f32.gmra.mrb[0].mxu0 %v2273
    %v2343 = vpop.f32.mrb[0].mxu0
    %v2344 = vadd.f32 0.0, %v2343
    %v2345 = vpop.f32.mrb[0].mxu0
    %2346 = vdwg.mxu0
    %2347 = vrot.lane.b32.xlu0 %v1349, 104
    %v2348 = vpop.permute.xlu0 %2347
    %2349 = vrot.lane.b32.xlu0 %v1349, 72
    %v2350 = vpop.permute.xlu0 %2349
    %v2351 = vsel %vm1236, %v2348, 0
    %v2353 = vsel %vm1236, %v2350, 0
    %2355 = vmatprep.subr.mxu0 0.0
    %2356 = vmatpush1.xpose.msra.mxu0 %v2353
    %2357 = vmatprep.subr.mxu0 0.0
    %2358 = vmatpush1.xpose.msra.mxu0 0.0
    %2359 = vmatprep.subr.mxu0 0.0
    %2360 = vmatpush1.xpose.msra.mxu0 0.0
    %2361 = vmatprep.subr.mxu0 0.0
    %2362 = vmatpush1.xpose.msra.mxu0 0.0
    %2363 = vmatprep.subr.mxu0 0.0
    %2364 = vmatpush1.xpose.msra.mxu0 0.0
    %2365 = vmatprep.subr.mxu0 0.0
    %2366 = vmatpush1.xpose.msra.mxu0 0.0
    %2367 = vmatprep.subr.mxu0 0.0
    %2368 = vmatpush1.xpose.msra.mxu0 0.0
    %2369 = vmatprep.subr.mxu0 0.0
    %2370 = vmatpush1.xpose.msra.mxu0 0.0
    %2371 = vmatprep.subr.mxu0 0.0
    %2372 = vmatpush1.xpose.msra.mxu0 0.0
    %2373 = vmatprep.subr.mxu0 0.0
    %2374 = vmatpush1.xpose.msra.mxu0 0.0
    %2375 = vmatprep.subr.mxu0 0.0
    %2376 = vmatpush1.xpose.msra.mxu0 0.0
    %2377 = vmatprep.subr.mxu0 0.0
    %2378 = vmatpush1.xpose.msra.mxu0 0.0
    %2379 = vmatprep.subr.mxu0 0.0
    %2380 = vmatpush1.xpose.msra.mxu0 0.0
    %2381 = vmatprep.subr.mxu0 0.0
    %2382 = vmatpush1.xpose.msra.mxu0 0.0
    %2383 = vmatprep.subr.mxu0 0.0
    %2384 = vmatpush1.xpose.msra.mxu0 0.0
    %2385 = vmatprep.subr.mxu0 0.0
    %2386 = vmatpush1.xpose.msra.mxu0 0.0
    %2387 = vmatprep.subr.mxu0 0.0
    %2388 = vmatpush1.xpose.msra.mxu0 0.0
    %2389 = vmatprep.subr.mxu0 0.0
    %2390 = vmatpush1.xpose.msra.mxu0 0.0
    %2391 = vmatprep.subr.mxu0 0.0
    %2392 = vmatpush1.xpose.msra.mxu0 0.0
    %2393 = vmatprep.subr.mxu0 0.0
    %2394 = vmatpush1.xpose.msra.mxu0 0.0
    %2395 = vmatprep.subr.mxu0 0.0
    %2396 = vmatpush1.xpose.msra.mxu0 0.0
    %2397 = vmatprep.subr.mxu0 0.0
    %2398 = vmatpush1.xpose.msra.mxu0 0.0
    %2399 = vmatprep.subr.mxu0 0.0
    %2400 = vmatpush1.xpose.msra.mxu0 0.0
    %2401 = vmatprep.subr.mxu0 0.0
    %2402 = vmatpush1.xpose.msra.mxu0 0.0
    %2403 = vmatprep.subr.mxu0 0.0
    %2404 = vmatpush1.xpose.msra.mxu0 0.0
    %2405 = vmatprep.subr.mxu0 0.0
    %2406 = vmatpush1.xpose.msra.mxu0 0.0
    %2407 = vmatprep.subr.mxu0 0.0
    %2408 = vmatpush1.xpose.msra.mxu0 0.0
    %2409 = vmatprep.subr.mxu0 0.0
    %2410 = vmatpush1.xpose.msra.mxu0 0.0
    %2411 = vmatprep.subr.mxu0 0.0
    %2412 = vmatpush1.xpose.msra.mxu0 0.0
    %2413 = vmatprep.subr.mxu0 0.0
    %2414 = vmatpush1.xpose.msra.mxu0 0.0
    %2415 = vmatprep.subr.mxu0 0.0
    %2416 = vmatpush1.xpose.msra.mxu0 0.0
    %2417 = vmatprep.subr.mxu0 0.0
    %2418 = vmatpush1.xpose.msra.mxu0 0.0
    %2419 = vmatprep.mubr.f32.mxu0 0.0
    %2420 = vmatmul.mubr.f32.gmra.mrb[0].mxu0 %v2351
    %v2421 = vpop.f32.mrb[0].mxu0
    %v2422 = vadd.f32 0.0, %v2421
    %v2423 = vpop.f32.mrb[0].mxu0
    %2424 = vdwg.mxu0
    %v2425 = vsel %vm1426, %v2344, -inf
    %2426 = vmax.xlane.f32.xlu0 %v2425
    %v2427 = vpop.xlane.xlu0 %2426
    %v2428 = vsel %vm1426, %v2422, -inf
    %2429 = vmax.xlane.f32.xlu0 %v2428
    %v2430 = vpop.xlane.xlu0 %2429
    %v2431 = vsub.f32 %v2344, %v2427
    %v2432 = vsub.f32 %v2422, %v2430
    %v2433 = vmul.f32 %v2431, 1.442695
    %v2434 = vpow.pop %v2433
    %v2435 = vmul.f32 %v2432, 1.442695
    %v2436 = vpow.pop %v2435
    %v2437 = vsel %vm1426, %v2434, 0.0
    %2438 = vadd.xlane.f32.xlu0 %v2437
    %v2439 = vpop.xlane.xlu0 %2438
    %v2440 = vsel %vm1426, %v2436, 0.0
    %2441 = vadd.xlane.f32.xlu0 %v2440
    %v2442 = vpop.xlane.xlu0 %2441
    %v2443 = vrcp.pop %v2439
    %v2444 = vrcp.pop %v2442
    %v2445 = vmul.f32 %v2434, %v2443
    %v2446 = vmul.f32 %v2436, %v2444
    %2447 = vrot.lane.b32.xlu0 %v1233, 40
    %v2448 = vpop.permute.xlu0 %2447
    %v2450 = vsel %vm1451, %v2445, 0
    %v2452 = vsel %vm1455, %v2448, 0
    %2454 = vmatprep.subr.mxu0 0.0
    %2455 = vmatpush1.msra.mxu0 %v2452
    %2456 = vmatprep.subr.mxu0 0.0
    %2457 = vmatpush1.msra.mxu0 0.0
    %2458 = vmatprep.subr.mxu0 0.0
    %2459 = vmatpush1.msra.mxu0 0.0
    %2460 = vmatprep.subr.mxu0 0.0
    %2461 = vmatpush1.msra.mxu0 0.0
    %2462 = vmatprep.subr.mxu0 0.0
    %2463 = vmatpush1.msra.mxu0 0.0
    %2464 = vmatprep.subr.mxu0 0.0
    %2465 = vmatpush1.msra.mxu0 0.0
    %2466 = vmatprep.subr.mxu0 0.0
    %2467 = vmatpush1.msra.mxu0 0.0
    %2468 = vmatprep.subr.mxu0 0.0
    %2469 = vmatpush1.msra.mxu0 0.0
    %2470 = vmatprep.subr.mxu0 0.0
    %2471 = vmatpush1.msra.mxu0 0.0
    %2472 = vmatprep.subr.mxu0 0.0
    %2473 = vmatpush1.msra.mxu0 0.0
    %2474 = vmatprep.subr.mxu0 0.0
    %2475 = vmatpush1.msra.mxu0 0.0
    %2476 = vmatprep.subr.mxu0 0.0
    %2477 = vmatpush1.msra.mxu0 0.0
    %2478 = vmatprep.subr.mxu0 0.0
    %2479 = vmatpush1.msra.mxu0 0.0
    %2480 = vmatprep.subr.mxu0 0.0
    %2481 = vmatpush1.msra.mxu0 0.0
    %2482 = vmatprep.subr.mxu0 0.0
    %2483 = vmatpush1.msra.mxu0 0.0
    %2484 = vmatprep.subr.mxu0 0.0
    %2485 = vmatpush1.msra.mxu0 0.0
    %2486 = vmatprep.subr.mxu0 0.0
    %2487 = vmatpush1.msra.mxu0 0.0
    %2488 = vmatprep.subr.mxu0 0.0
    %2489 = vmatpush1.msra.mxu0 0.0
    %2490 = vmatprep.subr.mxu0 0.0
    %2491 = vmatpush1.msra.mxu0 0.0
    %2492 = vmatprep.subr.mxu0 0.0
    %2493 = vmatpush1.msra.mxu0 0.0
    %2494 = vmatprep.subr.mxu0 0.0
    %2495 = vmatpush1.msra.mxu0 0.0
    %2496 = vmatprep.subr.mxu0 0.0
    %2497 = vmatpush1.msra.mxu0 0.0
    %2498 = vmatprep.subr.mxu0 0.0
    %2499 = vmatpush1.msra.mxu0 0.0
    %2500 = vmatprep.subr.mxu0 0.0
    %2501 = vmatpush1.msra.mxu0 0.0
    %2502 = vmatprep.subr.mxu0 0.0
    %2503 = vmatpush1.msra.mxu0 0.0
    %2504 = vmatprep.subr.mxu0 0.0
    %2505 = vmatpush1.msra.mxu0 0.0
    %2506 = vmatprep.subr.mxu0 0.0
    %2507 = vmatpush1.msra.mxu0 0.0
    %2508 = vmatprep.subr.mxu0 0.0
    %2509 = vmatpush1.msra.mxu0 0.0
    %2510 = vmatprep.subr.mxu0 0.0
    %2511 = vmatpush1.msra.mxu0 0.0
    %2512 = vmatprep.subr.mxu0 0.0
    %2513 = vmatpush1.msra.mxu0 0.0
    %2514 = vmatprep.subr.mxu0 0.0
    %2515 = vmatpush1.msra.mxu0 0.0
    %2516 = vmatprep.subr.mxu0 0.0
    %2517 = vmatpush1.msra.mxu0 0.0
    %2518 = vmatprep.mubr.f32.mxu0 0.0
    %2519 = vmatmul.mubr.f32.gmra.mrb[0].mxu0 %v2450
    %v2520 = vpop.f32.mrb[0].mxu0
    %v2521 = vadd.f32 0.0, %v2520
    %v2522 = vpop.f32.mrb[0].mxu0
    %2523 = vdwg.mxu0
    %2524 = vrot.lane.b32.xlu0 %v1349, 40
    %v2525 = vpop.permute.xlu0 %2524
    %v2527 = vsel %vm1451, %v2446, 0
    %v2529 = vsel %vm1455, %v2525, 0
    %2531 = vmatprep.subr.mxu0 0.0
    %2532 = vmatpush1.msra.mxu0 %v2529
    %2533 = vmatprep.subr.mxu0 0.0
    %2534 = vmatpush1.msra.mxu0 0.0
    %2535 = vmatprep.subr.mxu0 0.0
    %2536 = vmatpush1.msra.mxu0 0.0
    %2537 = vmatprep.subr.mxu0 0.0
    %2538 = vmatpush1.msra.mxu0 0.0
    %2539 = vmatprep.subr.mxu0 0.0
    %2540 = vmatpush1.msra.mxu0 0.0
    %2541 = vmatprep.subr.mxu0 0.0
    %2542 = vmatpush1.msra.mxu0 0.0
    %2543 = vmatprep.subr.mxu0 0.0
    %2544 = vmatpush1.msra.mxu0 0.0
    %2545 = vmatprep.subr.mxu0 0.0
    %2546 = vmatpush1.msra.mxu0 0.0
    %2547 = vmatprep.subr.mxu0 0.0
    %2548 = vmatpush1.msra.mxu0 0.0
    %2549 = vmatprep.subr.mxu0 0.0
    %2550 = vmatpush1.msra.mxu0 0.0
    %2551 = vmatprep.subr.mxu0 0.0
    %2552 = vmatpush1.msra.mxu0 0.0
    %2553 = vmatprep.subr.mxu0 0.0
    %2554 = vmatpush1.msra.mxu0 0.0
    %2555 = vmatprep.subr.mxu0 0.0
    %2556 = vmatpush1.msra.mxu0 0.0
    %2557 = vmatprep.subr.mxu0 0.0
    %2558 = vmatpush1.msra.mxu0 0.0
    %2559 = vmatprep.subr.mxu0 0.0
    %2560 = vmatpush1.msra.mxu0 0.0
    %2561 = vmatprep.subr.mxu0 0.0
    %2562 = vmatpush1.msra.mxu0 0.0
    %2563 = vmatprep.subr.mxu0 0.0
    %2564 = vmatpush1.msra.mxu0 0.0
    %2565 = vmatprep.subr.mxu0 0.0
    %2566 = vmatpush1.msra.mxu0 0.0
    %2567 = vmatprep.subr.mxu0 0.0
    %2568 = vmatpush1.msra.mxu0 0.0
    %2569 = vmatprep.subr.mxu0 0.0
    %2570 = vmatpush1.msra.mxu0 0.0
    %2571 = vmatprep.subr.mxu0 0.0
    %2572 = vmatpush1.msra.mxu0 0.0
    %2573 = vmatprep.subr.mxu0 0.0
    %2574 = vmatpush1.msra.mxu0 0.0
    %2575 = vmatprep.subr.mxu0 0.0
    %2576 = vmatpush1.msra.mxu0 0.0
    %2577 = vmatprep.subr.mxu0 0.0
    %2578 = vmatpush1.msra.mxu0 0.0
    %2579 = vmatprep.subr.mxu0 0.0
    %2580 = vmatpush1.msra.mxu0 0.0
    %2581 = vmatprep.subr.mxu0 0.0
    %2582 = vmatpush1.msra.mxu0 0.0
    %2583 = vmatprep.subr.mxu0 0.0
    %2584 = vmatpush1.msra.mxu0 0.0
    %2585 = vmatprep.subr.mxu0 0.0
    %2586 = vmatpush1.msra.mxu0 0.0
    %2587 = vmatprep.subr.mxu0 0.0
    %2588 = vmatpush1.msra.mxu0 0.0
    %2589 = vmatprep.subr.mxu0 0.0
    %2590 = vmatpush1.msra.mxu0 0.0
    %2591 = vmatprep.subr.mxu0 0.0
    %2592 = vmatpush1.msra.mxu0 0.0
    %2593 = vmatprep.subr.mxu0 0.0
    %2594 = vmatpush1.msra.mxu0 0.0
    %2595 = vmatprep.mubr.f32.mxu0 0.0
    %2596 = vmatmul.mubr.f32.gmra.mrb[0].mxu0 %v2527
    %v2597 = vpop.f32.mrb[0].mxu0
    %v2598 = vadd.f32 0.0, %v2597
    %v2599 = vpop.f32.mrb[0].mxu0
    %2600 = vdwg.mxu0
    %2603 = vrot.lane.b32.xlu0 %v1857, 8
    %v2604 = vpop.permute.xlu0 %2603
    %2605 = vrot.lane.b32.xlu0 %v1934, 8
    %v2606 = vpop.permute.xlu0 %2605
    %2611 = vrot.lane.b32.xlu0 %v2189, 16
    %v2612 = vpop.permute.xlu0 %2611
    %2613 = vrot.lane.b32.xlu0 %v2266, 16
    %v2614 = vpop.permute.xlu0 %2613
    %2619 = vrot.lane.b32.xlu0 %v2521, 24
    %v2620 = vpop.permute.xlu0 %2619
    %2621 = vrot.lane.b32.xlu0 %v2598, 24
    %v2622 = vpop.permute.xlu0 %2621
    %v2625 = vsel %vm1236, %v1525, %v2604
    %v2626 = vsel %vm1236, %v1602, %v2606
    %vm2627 = vcmask 130048
    %v2628 = vsel %vm2627, %v2625, %v2612
    %v2629 = vsel %vm2627, %v2626, %v2614
    %vm2630 = vcmask 195584
    %v2631 = vsel %vm2630, %v2628, %v2620
    %v2632 = vsel %vm2630, %v2629, %v2622
    %v2635 = vcombine.high %v2631, %v2631
    %v2637 = vunpack.c.l.s4 1966171168
    %v2638 = vunpack.c.0.s8 %v2637
    %v2639 = vlaneseq
    %v2640 = vshrl.u32 %v2639, 7
    %v2641 = vsub.s32 %v2638, %v2640
    %v2642 = vrot.slane %v2631, %v2641
    %v2644 = vunpack.c.l.s4 1966171168
    %v2645 = vunpack.c.0.s8 %v2644
    %v2646 = vlaneseq
    %v2647 = vshrl.u32 %v2646, 7
    %v2648 = vsub.s32 %v2645, %v2647
    %v2649 = vrot.slane %v2635, %v2648
    %v2650 = vcombine.high %v2642, %v2642
    %v2652 = vunpack.c.l.s4 1966171168
    %v2653 = vunpack.c.0.s8 %v2652
    %v2654 = vlaneseq
    %v2655 = vshrl.u32 %v2654, 7
    %v2656 = vsub.s32 %v2653, %v2655
    %v2657 = vrot.slane %v2642, %v2656
    %v2659 = vunpack.c.l.s4 1966171168
    %v2660 = vunpack.c.0.s8 %v2659
    %v2661 = vlaneseq
    %v2662 = vshrl.u32 %v2661, 7
    %v2663 = vsub.s32 %v2660, %v2662
    %v2664 = vrot.slane %v2649, %v2663
    %v2666 = vunpack.c.l.s4 1966171168
    %v2667 = vunpack.c.0.s8 %v2666
    %v2668 = vlaneseq
    %v2669 = vshrl.u32 %v2668, 7
    %v2670 = vsub.s32 %v2667, %v2669
    %v2671 = vrot.slane %v2650, %v2670
    %v2672 = vcombine.high %v2657, %v2657
    %v2673 = vcombine.high %v2671, %v2671
    %v2674 = vcombine.high %v2632, %v2632
    %v2676 = vunpack.c.l.s4 1966171168
    %v2677 = vunpack.c.0.s8 %v2676
    %v2678 = vlaneseq
    %v2679 = vshrl.u32 %v2678, 7
    %v2680 = vsub.s32 %v2677, %v2679
    %v2681 = vrot.slane %v2632, %v2680
    %v2683 = vunpack.c.l.s4 1966171168
    %v2684 = vunpack.c.0.s8 %v2683
    %v2685 = vlaneseq
    %v2686 = vshrl.u32 %v2685, 7
    %v2687 = vsub.s32 %v2684, %v2686
    %v2688 = vrot.slane %v2674, %v2687
    %v2689 = vcombine.high %v2681, %v2681
    %v2691 = vunpack.c.l.s4 1966171168
    %v2692 = vunpack.c.0.s8 %v2691
    %v2693 = vlaneseq
    %v2694 = vshrl.u32 %v2693, 7
    %v2695 = vsub.s32 %v2692, %v2694
    %v2696 = vrot.slane %v2681, %v2695
    %v2698 = vunpack.c.l.s4 1966171168
    %v2699 = vunpack.c.0.s8 %v2698
    %v2700 = vlaneseq
    %v2701 = vshrl.u32 %v2700, 7
    %v2702 = vsub.s32 %v2699, %v2701
    %v2703 = vrot.slane %v2688, %v2702
    %v2705 = vunpack.c.l.s4 1966171168
    %v2706 = vunpack.c.0.s8 %v2705
    %v2707 = vlaneseq
    %v2708 = vshrl.u32 %v2707, 7
    %v2709 = vsub.s32 %v2706, %v2708
    %v2710 = vrot.slane %v2689, %v2709
    %v2711 = vcombine.high %v2696, %v2696
    %v2712 = vcombine.high %v2710, %v2710
    %v2713 = vld [vmem:[%s3] sm:$0xff]
    %v2714 = vld [vmem:[%s3 + $0x8] sm:$0xff]
    %v2715 = vld [vmem:[%s3 + $0x10] sm:$0xff]
    %v2716 = vld [vmem:[%s3 + $0x18] sm:$0xff]
    %v2717 = vcombine.low %v2657, %v2671
    %v2718 = vcombine.low %v2672, %v2673
    %v2719 = vcombine.low %v2664, %v2696
    %v2720 = vcombine.low %v2710, %v2711
    %v2722 = vunpack.c.l.s4 1966171168
    %v2723 = vunpack.c.0.s8 %v2722
    %v2724 = vlaneseq
    %v2725 = vshrl.u32 %v2724, 7
    %v2726 = vsub.s32 %v2723, %v2725
    %v2727 = vrot.slane %v2717, %v2726
    %v2729 = vunpack.c.l.s4 1966171168
    %v2730 = vunpack.c.0.s8 %v2729
    %v2731 = vlaneseq
    %v2732 = vshrl.u32 %v2731, 7
    %v2733 = vsub.s32 %v2730, %v2732
    %v2734 = vrot.slane %v2718, %v2733
    %v2736 = vunpack.c.l.s4 1966171168
    %v2737 = vunpack.c.0.s8 %v2736
    %v2738 = vlaneseq
    %v2739 = vshrl.u32 %v2738, 7
    %v2740 = vsub.s32 %v2737, %v2739
    %v2741 = vrot.slane %v2719, %v2740
    %v2743 = vunpack.c.l.s4 1966171168
    %v2744 = vunpack.c.0.s8 %v2743
    %v2745 = vlaneseq
    %v2746 = vshrl.u32 %v2745, 7
    %v2747 = vsub.s32 %v2744, %v2746
    %v2748 = vrot.slane %v2720, %v2747
    %v2749 = vcombine.low %v2727, %v2734
    %v2750 = vcombine.low %v2741, %v2748
    %v2752 = vunpack.c.l.s4 1966171168
    %v2753 = vunpack.c.0.s8 %v2752
    %v2754 = vlaneseq
    %v2755 = vshrl.u32 %v2754, 7
    %v2756 = vsub.s32 %v2753, %v2755
    %v2757 = vrot.slane %v2749, %v2756
    %v2759 = vunpack.c.l.s4 1966171168
    %v2760 = vunpack.c.0.s8 %v2759
    %v2761 = vlaneseq
    %v2762 = vshrl.u32 %v2761, 7
    %v2763 = vsub.s32 %v2760, %v2762
    %v2764 = vrot.slane %v2750, %v2763
    %v2765 = vcombine.low %v2757, %v2764
    %v2766 = vcombine.low %v2712, %v2703
    %v2768 = vunpack.c.l.s4 1966171168
    %v2769 = vunpack.c.0.s8 %v2768
    %v2770 = vlaneseq
    %v2771 = vshrl.u32 %v2770, 7
    %v2772 = vsub.s32 %v2769, %v2771
    %v2773 = vrot.slane %v2766, %v2772
    %v2775 = vunpack.c.l.s4 1966171168
    %v2776 = vunpack.c.0.s8 %v2775
    %v2777 = vlaneseq
    %v2778 = vshrl.u32 %v2777, 7
    %v2779 = vsub.s32 %v2776, %v2778
    %v2780 = vrot.slane %v2773, %v2779
    %v2781 = vsel %vm584, %v2765, 0
    %v2783 = vsel %vm584, %v2780, 0
    %2785 = vmatprep.subr.mxu0 0.0
    %2786 = vmatpush1.msra.mxu0 %v2713
    %2787 = vmatprep.subr.mxu0 0.0
    %2788 = vmatpush1.msra.mxu0 %v2714
    %2789 = vmatprep.subr.mxu0 0.0
    %2790 = vmatpush1.msra.mxu0 %v2715
    %2791 = vmatprep.subr.mxu0 0.0
    %2792 = vmatpush1.msra.mxu0 %v2716
    %2793 = vmatprep.subr.mxu0 0.0
    %2794 = vmatpush1.msra.mxu0 0.0
    %2795 = vmatprep.subr.mxu0 0.0
    %2796 = vmatpush1.msra.mxu0 0.0
    %2797 = vmatprep.subr.mxu0 0.0
    %2798 = vmatpush1.msra.mxu0 0.0
    %2799 = vmatprep.subr.mxu0 0.0
    %2800 = vmatpush1.msra.mxu0 0.0
    %2801 = vmatprep.subr.mxu0 0.0
    %2802 = vmatpush1.msra.mxu0 0.0
    %2803 = vmatprep.subr.mxu0 0.0
    %2804 = vmatpush1.msra.mxu0 0.0
    %2805 = vmatprep.subr.mxu0 0.0
    %2806 = vmatpush1.msra.mxu0 0.0
    %2807 = vmatprep.subr.mxu0 0.0
    %2808 = vmatpush1.msra.mxu0 0.0
    %2809 = vmatprep.subr.mxu0 0.0
    %2810 = vmatpush1.msra.mxu0 0.0
    %2811 = vmatprep.subr.mxu0 0.0
    %2812 = vmatpush1.msra.mxu0 0.0
    %2813 = vmatprep.subr.mxu0 0.0
    %2814 = vmatpush1.msra.mxu0 0.0
    %2815 = vmatprep.subr.mxu0 0.0
    %2816 = vmatpush1.msra.mxu0 0.0
    %2817 = vmatprep.subr.mxu0 0.0
    %2818 = vmatpush1.msra.mxu0 0.0
    %2819 = vmatprep.subr.mxu0 0.0
    %2820 = vmatpush1.msra.mxu0 0.0
    %2821 = vmatprep.subr.mxu0 0.0
    %2822 = vmatpush1.msra.mxu0 0.0
    %2823 = vmatprep.subr.mxu0 0.0
    %2824 = vmatpush1.msra.mxu0 0.0
    %2825 = vmatprep.subr.mxu0 0.0
    %2826 = vmatpush1.msra.mxu0 0.0
    %2827 = vmatprep.subr.mxu0 0.0
    %2828 = vmatpush1.msra.mxu0 0.0
    %2829 = vmatprep.subr.mxu0 0.0
    %2830 = vmatpush1.msra.mxu0 0.0
    %2831 = vmatprep.subr.mxu0 0.0
    %2832 = vmatpush1.msra.mxu0 0.0
    %2833 = vmatprep.subr.mxu0 0.0
    %2834 = vmatpush1.msra.mxu0 0.0
    %2835 = vmatprep.subr.mxu0 0.0
    %2836 = vmatpush1.msra.mxu0 0.0
    %2837 = vmatprep.subr.mxu0 0.0
    %2838 = vmatpush1.msra.mxu0 0.0
    %2839 = vmatprep.subr.mxu0 0.0
    %2840 = vmatpush1.msra.mxu0 0.0
    %2841 = vmatprep.subr.mxu0 0.0
    %2842 = vmatpush1.msra.mxu0 0.0
    %2843 = vmatprep.subr.mxu0 0.0
    %2844 = vmatpush1.msra.mxu0 0.0
    %2845 = vmatprep.subr.mxu0 0.0
    %2846 = vmatpush1.msra.mxu0 0.0
    %2847 = vmatprep.subr.mxu0 0.0
    %2848 = vmatpush1.msra.mxu0 0.0
    %2849 = vmatprep.mubr.f32.mxu0 0.0
    %2850 = vmatmul.mubr.f32.gmra.mrb[0].mxu0 %v2781
    %v2851 = vpop.f32.mrb[0].mxu0
    %v2852 = vadd.f32 0.0, %v2851
    %v2853 = vpop.f32.mrb[0].mxu0
    %2854 = vmatprep.mubr.f32.mxu0 0.0
    %2855 = vmatmul.mubr.f32.gmra.mrb[0].mxu0 %v2783
    %v2856 = vpop.f32.mrb[0].mxu0
    %v2857 = vadd.f32 0.0, %v2856
    %v2858 = vpop.f32.mrb[0].mxu0
    %2859 = vdwg.mxu0
    %v2862 = vcombine.high %v2852, %v2852
    %v2864 = vunpack.c.l.s4 1966171168
    %v2865 = vunpack.c.0.s8 %v2864
    %v2866 = vlaneseq
    %v2867 = vshrl.u32 %v2866, 7
    %v2868 = vsub.s32 %v2865, %v2867
    %v2869 = vrot.slane %v2852, %v2868
    %v2871 = vunpack.c.l.s4 1966171168
    %v2872 = vunpack.c.0.s8 %v2871
    %v2873 = vlaneseq
    %v2874 = vshrl.u32 %v2873, 7
    %v2875 = vsub.s32 %v2872, %v2874
    %v2876 = vrot.slane %v2862, %v2875
    %v2877 = vcombine.high %v2869, %v2869
    %v2878 = vcombine.high %v2876, %v2876
    %v2880 = vunpack.c.l.s4 1966171168
    %v2881 = vunpack.c.0.s8 %v2880
    %v2882 = vlaneseq
    %v2883 = vshrl.u32 %v2882, 7
    %v2884 = vsub.s32 %v2881, %v2883
    %v2885 = vrot.slane %v2869, %v2884
    %v2887 = vunpack.c.l.s4 1966171168
    %v2888 = vunpack.c.0.s8 %v2887
    %v2889 = vlaneseq
    %v2890 = vshrl.u32 %v2889, 7
    %v2891 = vsub.s32 %v2888, %v2890
    %v2892 = vrot.slane %v2876, %v2891
    %v2894 = vunpack.c.l.s4 1966171168
    %v2895 = vunpack.c.0.s8 %v2894
    %v2896 = vlaneseq
    %v2897 = vshrl.u32 %v2896, 7
    %v2898 = vsub.s32 %v2895, %v2897
    %v2899 = vrot.slane %v2877, %v2898
    %v2901 = vunpack.c.l.s4 1966171168
    %v2902 = vunpack.c.0.s8 %v2901
    %v2903 = vlaneseq
    %v2904 = vshrl.u32 %v2903, 7
    %v2905 = vsub.s32 %v2902, %v2904
    %v2906 = vrot.slane %v2878, %v2905
    %v2907 = vcombine.high %v2885, %v2885
    %v2908 = vcombine.high %v2892, %v2892
    %v2909 = vcombine.high %v2899, %v2899
    %v2910 = vcombine.high %v2906, %v2906
    %v2912 = vunpack.c.l.s4 1966171168
    %v2913 = vunpack.c.0.s8 %v2912
    %v2914 = vlaneseq
    %v2915 = vshrl.u32 %v2914, 7
    %v2916 = vsub.s32 %v2913, %v2915
    %v2917 = vrot.slane %v2857, %v2916
    %v2918 = vcombine.high %v2917, %v2917
    %v2920 = vunpack.c.l.s4 1966171168
    %v2921 = vunpack.c.0.s8 %v2920
    %v2922 = vlaneseq
    %v2923 = vshrl.u32 %v2922, 7
    %v2924 = vsub.s32 %v2921, %v2923
    %v2925 = vrot.slane %v2917, %v2924
    %v2927 = vunpack.c.l.s4 1966171168
    %v2928 = vunpack.c.0.s8 %v2927
    %v2929 = vlaneseq
    %v2930 = vshrl.u32 %v2929, 7
    %v2931 = vsub.s32 %v2928, %v2930
    %v2932 = vrot.slane %v2918, %v2931
    %v2943 = vadd.f32 %v498, %v2885
    %v2944 = vadd.f32 %v499, %v2899
    %v2945 = vadd.f32 %v500, %v2907
    %v2946 = vadd.f32 %v501, %v2909
    %v2947 = vadd.f32 %v502, %v2892
    %v2948 = vadd.f32 %v503, %v2906
    %v2949 = vadd.f32 %v504, %v2908
    %v2950 = vadd.f32 %v505, %v2910
    %v2951 = vadd.f32 %v506, %v2925
    %v2952 = vadd.f32 %v507, %v2932
    %v2953 = vlaneseq
    %v2954 = vshrl.u32 %v2953, 7
    %v2955 = vsub.s32 0, %v2954
    %v2956 = vrot.slane %v34, %v2955
    %v2958 = vcombine.high %v2956, %v2956
    %v2960 = vunpack.c.l.s4 1966171168
    %v2961 = vunpack.c.0.s8 %v2960
    %v2962 = vlaneseq
    %v2963 = vshrl.u32 %v2962, 7
    %v2964 = vsub.s32 %v2961, %v2963
    %v2965 = vrot.slane %v2956, %v2964
    %v2967 = vunpack.c.l.s4 1966171168
    %v2968 = vunpack.c.0.s8 %v2967
    %v2969 = vlaneseq
    %v2970 = vshrl.u32 %v2969, 7
    %v2971 = vsub.s32 %v2968, %v2970
    %v2972 = vrot.slane %v2958, %v2971
    %v2973 = vcombine.high %v2965, %v2965
    %v2974 = vcombine.high %v2972, %v2972
    %v2976 = vunpack.c.l.s4 1966171168
    %v2977 = vunpack.c.0.s8 %v2976
    %v2978 = vlaneseq
    %v2979 = vshrl.u32 %v2978, 7
    %v2980 = vsub.s32 %v2977, %v2979
    %v2981 = vrot.slane %v2965, %v2980
    %v2983 = vunpack.c.l.s4 1966171168
    %v2984 = vunpack.c.0.s8 %v2983
    %v2985 = vlaneseq
    %v2986 = vshrl.u32 %v2985, 7
    %v2987 = vsub.s32 %v2984, %v2986
    %v2988 = vrot.slane %v2972, %v2987
    %v2990 = vunpack.c.l.s4 1966171168
    %v2991 = vunpack.c.0.s8 %v2990
    %v2992 = vlaneseq
    %v2993 = vshrl.u32 %v2992, 7
    %v2994 = vsub.s32 %v2991, %v2993
    %v2995 = vrot.slane %v2973, %v2994
    %v2997 = vunpack.c.l.s4 1966171168
    %v2998 = vunpack.c.0.s8 %v2997
    %v2999 = vlaneseq
    %v3000 = vshrl.u32 %v2999, 7
    %v3001 = vsub.s32 %v2998, %v3000
    %v3002 = vrot.slane %v2974, %v3001
    %v3003 = vcombine.high %v2981, %v2981
    %v3004 = vcombine.high %v2988, %v2988
    %v3005 = vcombine.high %v2995, %v2995
    %v3006 = vcombine.high %v3002, %v3002
    %v3015 = vadd.f32 %v2943, %v2981
    %v3016 = vadd.f32 %v2944, %v2995
    %v3017 = vadd.f32 %v2945, %v3003
    %v3018 = vadd.f32 %v2946, %v3005
    %v3019 = vadd.f32 %v2947, %v2988
    %v3020 = vadd.f32 %v2948, %v3002
    %v3021 = vadd.f32 %v2949, %v3004
    %v3022 = vadd.f32 %v2950, %v3006
    %v3023 = vadd.f32 %v2951, %v2981
    %v3024 = vadd.f32 %v2952, %v2995
    %v3035 = vcombine.low %v3015, %v3016
    %v3036 = vcombine.low %v3017, %v3018
    %v3037 = vcombine.low %v3019, %v3020
    %v3038 = vcombine.low %v3021, %v3022
    %v3040 = vunpack.c.l.s4 1966171168
    %v3041 = vunpack.c.0.s8 %v3040
    %v3042 = vlaneseq
    %v3043 = vshrl.u32 %v3042, 7
    %v3044 = vsub.s32 %v3041, %v3043
    %v3045 = vrot.slane %v3035, %v3044
    %v3047 = vunpack.c.l.s4 1966171168
    %v3048 = vunpack.c.0.s8 %v3047
    %v3049 = vlaneseq
    %v3050 = vshrl.u32 %v3049, 7
    %v3051 = vsub.s32 %v3048, %v3050
    %v3052 = vrot.slane %v3036, %v3051
    %v3054 = vunpack.c.l.s4 1966171168
    %v3055 = vunpack.c.0.s8 %v3054
    %v3056 = vlaneseq
    %v3057 = vshrl.u32 %v3056, 7
    %v3058 = vsub.s32 %v3055, %v3057
    %v3059 = vrot.slane %v3037, %v3058
    %v3061 = vunpack.c.l.s4 1966171168
    %v3062 = vunpack.c.0.s8 %v3061
    %v3063 = vlaneseq
    %v3064 = vshrl.u32 %v3063, 7
    %v3065 = vsub.s32 %v3062, %v3064
    %v3066 = vrot.slane %v3038, %v3065
    %v3067 = vcombine.low %v3045, %v3052
    %v3068 = vcombine.low %v3059, %v3066
    %v3070 = vunpack.c.l.s4 1966171168
    %v3071 = vunpack.c.0.s8 %v3070
    %v3072 = vlaneseq
    %v3073 = vshrl.u32 %v3072, 7
    %v3074 = vsub.s32 %v3071, %v3073
    %v3075 = vrot.slane %v3067, %v3074
    %v3077 = vunpack.c.l.s4 1966171168
    %v3078 = vunpack.c.0.s8 %v3077
    %v3079 = vlaneseq
    %v3080 = vshrl.u32 %v3079, 7
    %v3081 = vsub.s32 %v3078, %v3080
    %v3082 = vrot.slane %v3068, %v3081
    %v3083 = vcombine.low %v3075, %v3082
    %v3084 = vcombine.low %v3023, %v3024
    %v3086 = vunpack.c.l.s4 1966171168
    %v3087 = vunpack.c.0.s8 %v3086
    %v3088 = vlaneseq
    %v3089 = vshrl.u32 %v3088, 7
    %v3090 = vsub.s32 %v3087, %v3089
    %v3091 = vrot.slane %v3084, %v3090
    %v3093 = vunpack.c.l.s4 1966171168
    %v3094 = vunpack.c.0.s8 %v3093
    %v3095 = vlaneseq
    %v3096 = vshrl.u32 %v3095, 7
    %v3097 = vsub.s32 %v3094, %v3096
    %v3098 = vrot.slane %v3091, %v3097
    %v3101 = vsel %vm584, %v3083, 0.0
    %3102 = vadd.xlane.f32.xlu0 %v3101
    %v3103 = vpop.xlane.xlu0 %3102
    %v3104 = vsel %vm588, %v3098, 0.0
    %3105 = vadd.xlane.f32.xlu0 %v3104
    %v3106 = vpop.xlane.xlu0 %3105
    %v3107 = vmul.f32 %v3103, %v592
    %v3108 = vmul.f32 %v3106, %v592
    %v3111 = vlaneseq
    %v3112 = vshrl.u32 %v3111, 7
    %v3113 = vsub.s32 0, %v3112
    %v3114 = vrot.slane %v3107, %v3113
    %v3115 = vlaneseq
    %v3116 = vshrl.u32 %v3115, 7
    %v3117 = vsub.s32 1, %v3116
    %v3118 = vrot.slane %v3107, %v3117
    %v3119 = vlaneseq
    %v3120 = vshrl.u32 %v3119, 7
    %v3121 = vsub.s32 2, %v3120
    %v3122 = vrot.slane %v3107, %v3121
    %v3123 = vlaneseq
    %v3124 = vshrl.u32 %v3123, 7
    %v3125 = vsub.s32 3, %v3124
    %v3126 = vrot.slane %v3107, %v3125
    %v3127 = vlaneseq
    %v3128 = vshrl.u32 %v3127, 7
    %v3129 = vsub.s32 4, %v3128
    %v3130 = vrot.slane %v3107, %v3129
    %v3131 = vlaneseq
    %v3132 = vshrl.u32 %v3131, 7
    %v3133 = vsub.s32 5, %v3132
    %v3134 = vrot.slane %v3107, %v3133
    %v3135 = vlaneseq
    %v3136 = vshrl.u32 %v3135, 7
    %v3137 = vsub.s32 6, %v3136
    %v3138 = vrot.slane %v3107, %v3137
    %v3139 = vlaneseq
    %v3140 = vshrl.u32 %v3139, 7
    %v3141 = vsub.s32 7, %v3140
    %v3142 = vrot.slane %v3107, %v3141
    %v3143 = vlaneseq
    %v3144 = vshrl.u32 %v3143, 7
    %v3145 = vsub.s32 0, %v3144
    %v3146 = vrot.slane %v3108, %v3145
    %v3147 = vlaneseq
    %v3148 = vshrl.u32 %v3147, 7
    %v3149 = vsub.s32 1, %v3148
    %v3150 = vrot.slane %v3108, %v3149
    %v3161 = vsub.f32 %v3015, %v3114
    %v3162 = vsub.f32 %v3016, %v3118
    %v3163 = vsub.f32 %v3017, %v3122
    %v3164 = vsub.f32 %v3018, %v3126
    %v3165 = vsub.f32 %v3019, %v3130
    %v3166 = vsub.f32 %v3020, %v3134
    %v3167 = vsub.f32 %v3021, %v3138
    %v3168 = vsub.f32 %v3022, %v3142
    %v3169 = vsub.f32 %v3023, %v3146
    %v3170 = vsub.f32 %v3024, %v3150
    %v3171 = vmul.f32 %v3161, %v3161
    %v3172 = vmul.f32 %v3162, %v3162
    %v3173 = vmul.f32 %v3163, %v3163
    %v3174 = vmul.f32 %v3164, %v3164
    %v3175 = vmul.f32 %v3165, %v3165
    %v3176 = vmul.f32 %v3166, %v3166
    %v3177 = vmul.f32 %v3167, %v3167
    %v3178 = vmul.f32 %v3168, %v3168
    %v3179 = vmul.f32 %v3169, %v3169
    %v3180 = vmul.f32 %v3170, %v3170
    %v3191 = vcombine.low %v3171, %v3172
    %v3192 = vcombine.low %v3173, %v3174
    %v3193 = vcombine.low %v3175, %v3176
    %v3194 = vcombine.low %v3177, %v3178
    %v3196 = vunpack.c.l.s4 1966171168
    %v3197 = vunpack.c.0.s8 %v3196
    %v3198 = vlaneseq
    %v3199 = vshrl.u32 %v3198, 7
    %v3200 = vsub.s32 %v3197, %v3199
    %v3201 = vrot.slane %v3191, %v3200
    %v3203 = vunpack.c.l.s4 1966171168
    %v3204 = vunpack.c.0.s8 %v3203
    %v3205 = vlaneseq
    %v3206 = vshrl.u32 %v3205, 7
    %v3207 = vsub.s32 %v3204, %v3206
    %v3208 = vrot.slane %v3192, %v3207
    %v3210 = vunpack.c.l.s4 1966171168
    %v3211 = vunpack.c.0.s8 %v3210
    %v3212 = vlaneseq
    %v3213 = vshrl.u32 %v3212, 7
    %v3214 = vsub.s32 %v3211, %v3213
    %v3215 = vrot.slane %v3193, %v3214
    %v3217 = vunpack.c.l.s4 1966171168
    %v3218 = vunpack.c.0.s8 %v3217
    %v3219 = vlaneseq
    %v3220 = vshrl.u32 %v3219, 7
    %v3221 = vsub.s32 %v3218, %v3220
    %v3222 = vrot.slane %v3194, %v3221
    %v3223 = vcombine.low %v3201, %v3208
    %v3224 = vcombine.low %v3215, %v3222
    %v3226 = vunpack.c.l.s4 1966171168
    %v3227 = vunpack.c.0.s8 %v3226
    %v3228 = vlaneseq
    %v3229 = vshrl.u32 %v3228, 7
    %v3230 = vsub.s32 %v3227, %v3229
    %v3231 = vrot.slane %v3223, %v3230
    %v3233 = vunpack.c.l.s4 1966171168
    %v3234 = vunpack.c.0.s8 %v3233
    %v3235 = vlaneseq
    %v3236 = vshrl.u32 %v3235, 7
    %v3237 = vsub.s32 %v3234, %v3236
    %v3238 = vrot.slane %v3224, %v3237
    %v3239 = vcombine.low %v3231, %v3238
    %v3240 = vcombine.low %v3179, %v3180
    %v3242 = vunpack.c.l.s4 1966171168
    %v3243 = vunpack.c.0.s8 %v3242
    %v3244 = vlaneseq
    %v3245 = vshrl.u32 %v3244, 7
    %v3246 = vsub.s32 %v3243, %v3245
    %v3247 = vrot.slane %v3240, %v3246
    %v3249 = vunpack.c.l.s4 1966171168
    %v3250 = vunpack.c.0.s8 %v3249
    %v3251 = vlaneseq
    %v3252 = vshrl.u32 %v3251, 7
    %v3253 = vsub.s32 %v3250, %v3252
    %v3254 = vrot.slane %v3247, %v3253
    %v3257 = vsel %vm584, %v3239, 0.0
    %3258 = vadd.xlane.f32.xlu0 %v3257
    %v3259 = vpop.xlane.xlu0 %3258
    %v3260 = vsel %vm588, %v3254, 0.0
    %3261 = vadd.xlane.f32.xlu0 %v3260
    %v3262 = vpop.xlane.xlu0 %3261
    %v3263 = vmul.f32 %v3259, %v592
    %v3264 = vmul.f32 %v3262, %v592
    %v3265 = vadd.f32 %v3263, 1e-06
    %v3266 = vadd.f32 %v3264, 1e-06
    %v3267 = vrsqrt.pop %v3265
    %v3268 = vrsqrt.pop %v3266
    %v3271 = vlaneseq
    %v3272 = vshrl.u32 %v3271, 7
    %v3273 = vsub.s32 0, %v3272
    %v3274 = vrot.slane %v3267, %v3273
    %v3275 = vlaneseq
    %v3276 = vshrl.u32 %v3275, 7
    %v3277 = vsub.s32 1, %v3276
    %v3278 = vrot.slane %v3267, %v3277
    %v3279 = vlaneseq
    %v3280 = vshrl.u32 %v3279, 7
    %v3281 = vsub.s32 2, %v3280
    %v3282 = vrot.slane %v3267, %v3281
    %v3283 = vlaneseq
    %v3284 = vshrl.u32 %v3283, 7
    %v3285 = vsub.s32 3, %v3284
    %v3286 = vrot.slane %v3267, %v3285
    %v3287 = vlaneseq
    %v3288 = vshrl.u32 %v3287, 7
    %v3289 = vsub.s32 4, %v3288
    %v3290 = vrot.slane %v3267, %v3289
    %v3291 = vlaneseq
    %v3292 = vshrl.u32 %v3291, 7
    %v3293 = vsub.s32 5, %v3292
    %v3294 = vrot.slane %v3267, %v3293
    %v3295 = vlaneseq
    %v3296 = vshrl.u32 %v3295, 7
    %v3297 = vsub.s32 6, %v3296
    %v3298 = vrot.slane %v3267, %v3297
    %v3299 = vlaneseq
    %v3300 = vshrl.u32 %v3299, 7
    %v3301 = vsub.s32 7, %v3300
    %v3302 = vrot.slane %v3267, %v3301
    %v3303 = vlaneseq
    %v3304 = vshrl.u32 %v3303, 7
    %v3305 = vsub.s32 0, %v3304
    %v3306 = vrot.slane %v3268, %v3305
    %v3307 = vlaneseq
    %v3308 = vshrl.u32 %v3307, 7
    %v3309 = vsub.s32 1, %v3308
    %v3310 = vrot.slane %v3268, %v3309
    %v3321 = vmul.f32 %v3161, %v3274
    %v3322 = vmul.f32 %v3162, %v3278
    %v3323 = vmul.f32 %v3163, %v3282
    %v3324 = vmul.f32 %v3164, %v3286
    %v3325 = vmul.f32 %v3165, %v3290
    %v3326 = vmul.f32 %v3166, %v3294
    %v3327 = vmul.f32 %v3167, %v3298
    %v3328 = vmul.f32 %v3168, %v3302
    %v3329 = vmul.f32 %v3169, %v3306
    %v3330 = vmul.f32 %v3170, %v3310
    %v3331 = vlaneseq
    %v3332 = vshrl.u32 %v3331, 7
    %v3333 = vsub.s32 1, %v3332
    %v3334 = vrot.slane %v34, %v3333
    %v3336 = vcombine.high %v3334, %v3334
    %v3338 = vunpack.c.l.s4 1966171168
    %v3339 = vunpack.c.0.s8 %v3338
    %v3340 = vlaneseq
    %v3341 = vshrl.u32 %v3340, 7
    %v3342 = vsub.s32 %v3339, %v3341
    %v3343 = vrot.slane %v3334, %v3342
    %v3345 = vunpack.c.l.s4 1966171168
    %v3346 = vunpack.c.0.s8 %v3345
    %v3347 = vlaneseq
    %v3348 = vshrl.u32 %v3347, 7
    %v3349 = vsub.s32 %v3346, %v3348
    %v3350 = vrot.slane %v3336, %v3349
    %v3351 = vcombine.high %v3343, %v3343
    %v3352 = vcombine.high %v3350, %v3350
    %v3354 = vunpack.c.l.s4 1966171168
    %v3355 = vunpack.c.0.s8 %v3354
    %v3356 = vlaneseq
    %v3357 = vshrl.u32 %v3356, 7
    %v3358 = vsub.s32 %v3355, %v3357
    %v3359 = vrot.slane %v3343, %v3358
    %v3361 = vunpack.c.l.s4 1966171168
    %v3362 = vunpack.c.0.s8 %v3361
    %v3363 = vlaneseq
    %v3364 = vshrl.u32 %v3363, 7
    %v3365 = vsub.s32 %v3362, %v3364
    %v3366 = vrot.slane %v3350, %v3365
    %v3368 = vunpack.c.l.s4 1966171168
    %v3369 = vunpack.c.0.s8 %v3368
    %v3370 = vlaneseq
    %v3371 = vshrl.u32 %v3370, 7
    %v3372 = vsub.s32 %v3369, %v3371
    %v3373 = vrot.slane %v3351, %v3372
    %v3375 = vunpack.c.l.s4 1966171168
    %v3376 = vunpack.c.0.s8 %v3375
    %v3377 = vlaneseq
    %v3378 = vshrl.u32 %v3377, 7
    %v3379 = vsub.s32 %v3376, %v3378
    %v3380 = vrot.slane %v3352, %v3379
    %v3381 = vcombine.high %v3359, %v3359
    %v3382 = vcombine.high %v3366, %v3366
    %v3383 = vcombine.high %v3373, %v3373
    %v3384 = vcombine.high %v3380, %v3380
    %v3393 = vmul.f32 %v3321, %v3359
    %v3394 = vmul.f32 %v3322, %v3373
    %v3395 = vmul.f32 %v3323, %v3381
    %v3396 = vmul.f32 %v3324, %v3383
    %v3397 = vmul.f32 %v3325, %v3366
    %v3398 = vmul.f32 %v3326, %v3380
    %v3399 = vmul.f32 %v3327, %v3382
    %v3400 = vmul.f32 %v3328, %v3384
    %v3401 = vmul.f32 %v3329, %v3359
    %v3402 = vmul.f32 %v3330, %v3373
    %v3403 = vlaneseq
    %v3404 = vshrl.u32 %v3403, 7
    %v3405 = vsub.s32 2, %v3404
    %v3406 = vrot.slane %v34, %v3405
    %v3408 = vcombine.high %v3406, %v3406
    %v3410 = vunpack.c.l.s4 1966171168
    %v3411 = vunpack.c.0.s8 %v3410
    %v3412 = vlaneseq
    %v3413 = vshrl.u32 %v3412, 7
    %v3414 = vsub.s32 %v3411, %v3413
    %v3415 = vrot.slane %v3406, %v3414
    %v3417 = vunpack.c.l.s4 1966171168
    %v3418 = vunpack.c.0.s8 %v3417
    %v3419 = vlaneseq
    %v3420 = vshrl.u32 %v3419, 7
    %v3421 = vsub.s32 %v3418, %v3420
    %v3422 = vrot.slane %v3408, %v3421
    %v3423 = vcombine.high %v3415, %v3415
    %v3424 = vcombine.high %v3422, %v3422
    %v3426 = vunpack.c.l.s4 1966171168
    %v3427 = vunpack.c.0.s8 %v3426
    %v3428 = vlaneseq
    %v3429 = vshrl.u32 %v3428, 7
    %v3430 = vsub.s32 %v3427, %v3429
    %v3431 = vrot.slane %v3415, %v3430
    %v3433 = vunpack.c.l.s4 1966171168
    %v3434 = vunpack.c.0.s8 %v3433
    %v3435 = vlaneseq
    %v3436 = vshrl.u32 %v3435, 7
    %v3437 = vsub.s32 %v3434, %v3436
    %v3438 = vrot.slane %v3422, %v3437
    %v3440 = vunpack.c.l.s4 1966171168
    %v3441 = vunpack.c.0.s8 %v3440
    %v3442 = vlaneseq
    %v3443 = vshrl.u32 %v3442, 7
    %v3444 = vsub.s32 %v3441, %v3443
    %v3445 = vrot.slane %v3423, %v3444
    %v3447 = vunpack.c.l.s4 1966171168
    %v3448 = vunpack.c.0.s8 %v3447
    %v3449 = vlaneseq
    %v3450 = vshrl.u32 %v3449, 7
    %v3451 = vsub.s32 %v3448, %v3450
    %v3452 = vrot.slane %v3424, %v3451
    %v3453 = vcombine.high %v3431, %v3431
    %v3454 = vcombine.high %v3438, %v3438
    %v3455 = vcombine.high %v3445, %v3445
    %v3456 = vcombine.high %v3452, %v3452
    %v3465 = vadd.f32 %v3393, %v3431
    %v3466 = vadd.f32 %v3394, %v3445
    %v3467 = vadd.f32 %v3395, %v3453
    %v3468 = vadd.f32 %v3396, %v3455
    %v3469 = vadd.f32 %v3397, %v3438
    %v3470 = vadd.f32 %v3398, %v3452
    %v3471 = vadd.f32 %v3399, %v3454
    %v3472 = vadd.f32 %v3400, %v3456
    %v3473 = vadd.f32 %v3401, %v3431
    %v3474 = vadd.f32 %v3402, %v3445
    %v3475 = vld [vmem:[%s4] sm:$0xff]
    %v3476 = vld [vmem:[%s4 + $0x8] sm:$0xff]
    %v3477 = vld [vmem:[%s4 + $0x10] sm:$0xff]
    %v3478 = vld [vmem:[%s4 + $0x18] sm:$0xff]
    %v3479 = vlaneseq
    %v3480 = vshrl.u32 %v3479, 7
    %v3481 = vsub.s32 3, %v3480
    %v3482 = vrot.slane %v34, %v3481
    %v3493 = vcombine.low %v3465, %v3466
    %v3494 = vcombine.low %v3467, %v3468
    %v3495 = vcombine.low %v3469, %v3470
    %v3496 = vcombine.low %v3471, %v3472
    %v3498 = vunpack.c.l.s4 1966171168
    %v3499 = vunpack.c.0.s8 %v3498
    %v3500 = vlaneseq
    %v3501 = vshrl.u32 %v3500, 7
    %v3502 = vsub.s32 %v3499, %v3501
    %v3503 = vrot.slane %v3493, %v3502
    %v3505 = vunpack.c.l.s4 1966171168
    %v3506 = vunpack.c.0.s8 %v3505
    %v3507 = vlaneseq
    %v3508 = vshrl.u32 %v3507, 7
    %v3509 = vsub.s32 %v3506, %v3508
    %v3510 = vrot.slane %v3494, %v3509
    %v3512 = vunpack.c.l.s4 1966171168
    %v3513 = vunpack.c.0.s8 %v3512
    %v3514 = vlaneseq
    %v3515 = vshrl.u32 %v3514, 7
    %v3516 = vsub.s32 %v3513, %v3515
    %v3517 = vrot.slane %v3495, %v3516
    %v3519 = vunpack.c.l.s4 1966171168
    %v3520 = vunpack.c.0.s8 %v3519
    %v3521 = vlaneseq
    %v3522 = vshrl.u32 %v3521, 7
    %v3523 = vsub.s32 %v3520, %v3522
    %v3524 = vrot.slane %v3496, %v3523
    %v3525 = vcombine.low %v3503, %v3510
    %v3526 = vcombine.low %v3517, %v3524
    %v3528 = vunpack.c.l.s4 1966171168
    %v3529 = vunpack.c.0.s8 %v3528
    %v3530 = vlaneseq
    %v3531 = vshrl.u32 %v3530, 7
    %v3532 = vsub.s32 %v3529, %v3531
    %v3533 = vrot.slane %v3525, %v3532
    %v3535 = vunpack.c.l.s4 1966171168
    %v3536 = vunpack.c.0.s8 %v3535
    %v3537 = vlaneseq
    %v3538 = vshrl.u32 %v3537, 7
    %v3539 = vsub.s32 %v3536, %v3538
    %v3540 = vrot.slane %v3526, %v3539
    %v3541 = vcombine.low %v3533, %v3540
    %v3542 = vcombine.low %v3473, %v3474
    %v3544 = vunpack.c.l.s4 1966171168
    %v3545 = vunpack.c.0.s8 %v3544
    %v3546 = vlaneseq
    %v3547 = vshrl.u32 %v3546, 7
    %v3548 = vsub.s32 %v3545, %v3547
    %v3549 = vrot.slane %v3542, %v3548
    %v3551 = vunpack.c.l.s4 1966171168
    %v3552 = vunpack.c.0.s8 %v3551
    %v3553 = vlaneseq
    %v3554 = vshrl.u32 %v3553, 7
    %v3555 = vsub.s32 %v3552, %v3554
    %v3556 = vrot.slane %v3549, %v3555
    %v3557 = vsel %vm584, %v3541, 0
    %v3559 = vsel %vm584, %v3556, 0
    %3561 = vmatprep.subr.mxu0 0.0
    %3562 = vmatpush1.msra.mxu0 %v3475
    %3563 = vmatprep.subr.mxu0 0.0
    %3564 = vmatpush1.msra.mxu0 %v3476
    %3565 = vmatprep.subr.mxu0 0.0
    %3566 = vmatpush1.msra.mxu0 %v3477
    %3567 = vmatprep.subr.mxu0 0.0
    %3568 = vmatpush1.msra.mxu0 %v3478
    %3569 = vmatprep.subr.mxu0 0.0
    %3570 = vmatpush1.msra.mxu0 0.0
    %3571 = vmatprep.subr.mxu0 0.0
    %3572 = vmatpush1.msra.mxu0 0.0
    %3573 = vmatprep.subr.mxu0 0.0
    %3574 = vmatpush1.msra.mxu0 0.0
    %3575 = vmatprep.subr.mxu0 0.0
    %3576 = vmatpush1.msra.mxu0 0.0
    %3577 = vmatprep.subr.mxu0 0.0
    %3578 = vmatpush1.msra.mxu0 0.0
    %3579 = vmatprep.subr.mxu0 0.0
    %3580 = vmatpush1.msra.mxu0 0.0
    %3581 = vmatprep.subr.mxu0 0.0
    %3582 = vmatpush1.msra.mxu0 0.0
    %3583 = vmatprep.subr.mxu0 0.0
    %3584 = vmatpush1.msra.mxu0 0.0
    %3585 = vmatprep.subr.mxu0 0.0
    %3586 = vmatpush1.msra.mxu0 0.0
    %3587 = vmatprep.subr.mxu0 0.0
    %3588 = vmatpush1.msra.mxu0 0.0
    %3589 = vmatprep.subr.mxu0 0.0
    %3590 = vmatpush1.msra.mxu0 0.0
    %3591 = vmatprep.subr.mxu0 0.0
    %3592 = vmatpush1.msra.mxu0 0.0
    %3593 = vmatprep.subr.mxu0 0.0
    %3594 = vmatpush1.msra.mxu0 0.0
    %3595 = vmatprep.subr.mxu0 0.0
    %3596 = vmatpush1.msra.mxu0 0.0
    %3597 = vmatprep.subr.mxu0 0.0
    %3598 = vmatpush1.msra.mxu0 0.0
    %3599 = vmatprep.subr.mxu0 0.0
    %3600 = vmatpush1.msra.mxu0 0.0
    %3601 = vmatprep.subr.mxu0 0.0
    %3602 = vmatpush1.msra.mxu0 0.0
    %3603 = vmatprep.subr.mxu0 0.0
    %3604 = vmatpush1.msra.mxu0 0.0
    %3605 = vmatprep.subr.mxu0 0.0
    %3606 = vmatpush1.msra.mxu0 0.0
    %3607 = vmatprep.subr.mxu0 0.0
    %3608 = vmatpush1.msra.mxu0 0.0
    %3609 = vmatprep.subr.mxu0 0.0
    %3610 = vmatpush1.msra.mxu0 0.0
    %3611 = vmatprep.subr.mxu0 0.0
    %3612 = vmatpush1.msra.mxu0 0.0
    %3613 = vmatprep.subr.mxu0 0.0
    %3614 = vmatpush1.msra.mxu0 0.0
    %3615 = vmatprep.subr.mxu0 0.0
    %3616 = vmatpush1.msra.mxu0 0.0
    %3617 = vmatprep.subr.mxu0 0.0
    %3618 = vmatpush1.msra.mxu0 0.0
    %3619 = vmatprep.subr.mxu0 0.0
    %3620 = vmatpush1.msra.mxu0 0.0
    %3621 = vmatprep.subr.mxu0 0.0
    %3622 = vmatpush1.msra.mxu0 0.0
    %3623 = vmatprep.subr.mxu0 0.0
    %3624 = vmatpush1.msra.mxu0 0.0
    %3625 = vmatprep.mubr.f32.mxu0 0.0
    %3626 = vmatmul.mubr.f32.gmra.mrb[0].mxu0 %v3557
    %v3627 = vpop.f32.mrb[0].mxu0
    %v3628 = vadd.f32 %v3482, %v3627
    %v3629 = vpop.f32.mrb[0].mxu0
    %3630 = vmatprep.mubr.f32.mxu0 0.0
    %3631 = vmatmul.mubr.f32.gmra.mrb[0].mxu0 %v3559
    %v3632 = vpop.f32.mrb[0].mxu0
    %v3633 = vadd.f32 %v3482, %v3632
    %v3634 = vpop.f32.mrb[0].mxu0
    %3635 = vdwg.mxu0
    %v3636 = vmul.f32 %v3628, 0.5
    %v3637 = vmul.f32 %v3633, 0.5
    %v3638 = vrcp.pop 1.4142135
    %v3639 = vmul.f32 %v3628, %v3638
    %v3640 = vmul.f32 %v3633, %v3638
    %v3641 = verf.f32.pop %v3639
    %v3642 = verf.f32.pop %v3640
    %v3643 = vadd.f32 %v3641, 1.0
    %v3644 = vadd.f32 %v3642, 1.0
    %v3645 = vmul.f32 %v3636, %v3643
    %v3646 = vmul.f32 %v3637, %v3644
    %v3647 = vld [vmem:[%s5] sm:$0xff]
    %v3648 = vld [vmem:[%s5 + $0x8] sm:$0xff]
    %v3649 = vld [vmem:[%s5 + $0x10] sm:$0xff]
    %v3650 = vld [vmem:[%s5 + $0x18] sm:$0xff]
    %v3651 = vld [vmem:[%s5 + $0x20] sm:$0xff]
    %v3652 = vld [vmem:[%s5 + $0x28] sm:$0xff]
    %v3653 = vld [vmem:[%s5 + $0x30] sm:$0xff]
    %v3654 = vld [vmem:[%s5 + $0x38] sm:$0xff]
    %v3655 = vlaneseq
    %v3656 = vshrl.u32 %v3655, 7
    %v3657 = vsub.s32 4, %v3656
    %v3658 = vrot.slane %v34, %v3657
    %vm3659 = vcmask 523264
    %v3661 = vsel %vm3659, %v3645, 0
    %v3664 = vsel %vm3659, %v3646, 0
    %3666 = vmatprep.subr.mxu0 0.0
    %3667 = vmatpush1.msra.mxu0 %v3647
    %3668 = vmatprep.subr.mxu0 0.0
    %3669 = vmatpush1.msra.mxu0 %v3648
    %3670 = vmatprep.subr.mxu0 0.0
    %3671 = vmatpush1.msra.mxu0 %v3649
    %3672 = vmatprep.subr.mxu0 0.0
    %3673 = vmatpush1.msra.mxu0 %v3650
    %3674 = vmatprep.subr.mxu0 0.0
    %3675 = vmatpush1.msra.mxu0 %v3651
    %3676 = vmatprep.subr.mxu0 0.0
    %3677 = vmatpush1.msra.mxu0 %v3652
    %3678 = vmatprep.subr.mxu0 0.0
    %3679 = vmatpush1.msra.mxu0 %v3653
    %3680 = vmatprep.subr.mxu0 0.0
    %3681 = vmatpush1.msra.mxu0 %v3654
    %3682 = vmatprep.subr.mxu0 0.0
    %3683 = vmatpush1.msra.mxu0 0.0
    %3684 = vmatprep.subr.mxu0 0.0
    %3685 = vmatpush1.msra.mxu0 0.0
    %3686 = vmatprep.subr.mxu0 0.0
    %3687 = vmatpush1.msra.mxu0 0.0
    %3688 = vmatprep.subr.mxu0 0.0
    %3689 = vmatpush1.msra.mxu0 0.0
    %3690 = vmatprep.subr.mxu0 0.0
    %3691 = vmatpush1.msra.mxu0 0.0
    %3692 = vmatprep.subr.mxu0 0.0
    %3693 = vmatpush1.msra.mxu0 0.0
    %3694 = vmatprep.subr.mxu0 0.0
    %3695 = vmatpush1.msra.mxu0 0.0
    %3696 = vmatprep.subr.mxu0 0.0
    %3697 = vmatpush1.msra.mxu0 0.0
    %3698 = vmatprep.subr.mxu0 0.0
    %3699 = vmatpush1.msra.mxu0 0.0
    %3700 = vmatprep.subr.mxu0 0.0
    %3701 = vmatpush1.msra.mxu0 0.0
    %3702 = vmatprep.subr.mxu0 0.0
    %3703 = vmatpush1.msra.mxu0 0.0
    %3704 = vmatprep.subr.mxu0 0.0
    %3705 = vmatpush1.msra.mxu0 0.0
    %3706 = vmatprep.subr.mxu0 0.0
    %3707 = vmatpush1.msra.mxu0 0.0
    %3708 = vmatprep.subr.mxu0 0.0
    %3709 = vmatpush1.msra.mxu0 0.0
    %3710 = vmatprep.subr.mxu0 0.0
    %3711 = vmatpush1.msra.mxu0 0.0
    %3712 = vmatprep.subr.mxu0 0.0
    %3713 = vmatpush1.msra.mxu0 0.0
    %3714 = vmatprep.subr.mxu0 0.0
    %3715 = vmatpush1.msra.mxu0 0.0
    %3716 = vmatprep.subr.mxu0 0.0
    %3717 = vmatpush1.msra.mxu0 0.0
    %3718 = vmatprep.subr.mxu0 0.0
    %3719 = vmatpush1.msra.mxu0 0.0
    %3720 = vmatprep.subr.mxu0 0.0
    %3721 = vmatpush1.msra.mxu0 0.0
    %3722 = vmatprep.subr.mxu0 0.0
    %3723 = vmatpush1.msra.mxu0 0.0
    %3724 = vmatprep.subr.mxu0 0.0
    %3725 = vmatpush1.msra.mxu0 0.0
    %3726 = vmatprep.subr.mxu0 0.0
    %3727 = vmatpush1.msra.mxu0 0.0
    %3728 = vmatprep.subr.mxu0 0.0
    %3729 = vmatpush1.msra.mxu0 0.0
    %3730 = vmatprep.mubr.f32.mxu0 0.0
    %3731 = vmatmul.mubr.f32.gmra.mrb[0].mxu0 %v3661
    %v3732 = vpop.f32.mrb[0].mxu0
    %v3733 = vadd.f32 %v3658, %v3732
    %v3734 = vpop.f32.mrb[0].mxu0
    %3735 = vmatprep.mubr.f32.mxu0 0.0
    %3736 = vmatmul.mubr.f32.gmra.mrb[0].mxu0 %v3664
    %v3737 = vpop.f32.mrb[0].mxu0
    %v3738 = vadd.f32 %v3658, %v3737
    %v3739 = vpop.f32.mrb[0].mxu0
    %3740 = vdwg.mxu0
    %v3743 = vcombine.high %v3733, %v3733
    %v3745 = vunpack.c.l.s4 1966171168
    %v3746 = vunpack.c.0.s8 %v3745
    %v3747 = vlaneseq
    %v3748 = vshrl.u32 %v3747, 7
    %v3749 = vsub.s32 %v3746, %v3748
    %v3750 = vrot.slane %v3733, %v3749
    %v3752 = vunpack.c.l.s4 1966171168
    %v3753 = vunpack.c.0.s8 %v3752
    %v3754 = vlaneseq
    %v3755 = vshrl.u32 %v3754, 7
    %v3756 = vsub.s32 %v3753, %v3755
    %v3757 = vrot.slane %v3743, %v3756
    %v3758 = vcombine.high %v3750, %v3750
    %v3759 = vcombine.high %v3757, %v3757
    %v3761 = vunpack.c.l.s4 1966171168
    %v3762 = vunpack.c.0.s8 %v3761
    %v3763 = vlaneseq
    %v3764 = vshrl.u32 %v3763, 7
    %v3765 = vsub.s32 %v3762, %v3764
    %v3766 = vrot.slane %v3750, %v3765
    %v3768 = vunpack.c.l.s4 1966171168
    %v3769 = vunpack.c.0.s8 %v3768
    %v3770 = vlaneseq
    %v3771 = vshrl.u32 %v3770, 7
    %v3772 = vsub.s32 %v3769, %v3771
    %v3773 = vrot.slane %v3757, %v3772
    %v3775 = vunpack.c.l.s4 1966171168
    %v3776 = vunpack.c.0.s8 %v3775
    %v3777 = vlaneseq
    %v3778 = vshrl.u32 %v3777, 7
    %v3779 = vsub.s32 %v3776, %v3778
    %v3780 = vrot.slane %v3758, %v3779
    %v3782 = vunpack.c.l.s4 1966171168
    %v3783 = vunpack.c.0.s8 %v3782
    %v3784 = vlaneseq
    %v3785 = vshrl.u32 %v3784, 7
    %v3786 = vsub.s32 %v3783, %v3785
    %v3787 = vrot.slane %v3759, %v3786
    %v3788 = vcombine.high %v3766, %v3766
    %v3789 = vcombine.high %v3773, %v3773
    %v3790 = vcombine.high %v3780, %v3780
    %v3791 = vcombine.high %v3787, %v3787
    %v3793 = vunpack.c.l.s4 1966171168
    %v3794 = vunpack.c.0.s8 %v3793
    %v3795 = vlaneseq
    %v3796 = vshrl.u32 %v3795, 7
    %v3797 = vsub.s32 %v3794, %v3796
    %v3798 = vrot.slane %v3738, %v3797
    %v3799 = vcombine.high %v3798, %v3798
    %v3801 = vunpack.c.l.s4 1966171168
    %v3802 = vunpack.c.0.s8 %v3801
    %v3803 = vlaneseq
    %v3804 = vshrl.u32 %v3803, 7
    %v3805 = vsub.s32 %v3802, %v3804
    %v3806 = vrot.slane %v3798, %v3805
    %v3808 = vunpack.c.l.s4 1966171168
    %v3809 = vunpack.c.0.s8 %v3808
    %v3810 = vlaneseq
    %v3811 = vshrl.u32 %v3810, 7
    %v3812 = vsub.s32 %v3809, %v3811
    %v3813 = vrot.slane %v3799, %v3812
    %v3824 = vadd.f32 %v3015, %v3766
    %v3825 = vadd.f32 %v3016, %v3780
    %v3826 = vadd.f32 %v3017, %v3788
    %v3827 = vadd.f32 %v3018, %v3790
    %v3828 = vadd.f32 %v3019, %v3773
    %v3829 = vadd.f32 %v3020, %v3787
    %v3830 = vadd.f32 %v3021, %v3789
    %v3831 = vadd.f32 %v3022, %v3791
    %v3832 = vadd.f32 %v3023, %v3806
    %v3833 = vadd.f32 %v3024, %v3813
    %v3844 = vcombine.low %v3824, %v3825
    %v3845 = vcombine.low %v3826, %v3827
    %v3846 = vcombine.low %v3828, %v3829
    %v3847 = vcombine.low %v3830, %v3831
    %v3849 = vunpack.c.l.s4 1966171168
    %v3850 = vunpack.c.0.s8 %v3849
    %v3851 = vlaneseq
    %v3852 = vshrl.u32 %v3851, 7
    %v3853 = vsub.s32 %v3850, %v3852
    %v3854 = vrot.slane %v3844, %v3853
    %v3856 = vunpack.c.l.s4 1966171168
    %v3857 = vunpack.c.0.s8 %v3856
    %v3858 = vlaneseq
    %v3859 = vshrl.u32 %v3858, 7
    %v3860 = vsub.s32 %v3857, %v3859
    %v3861 = vrot.slane %v3845, %v3860
    %v3863 = vunpack.c.l.s4 1966171168
    %v3864 = vunpack.c.0.s8 %v3863
    %v3865 = vlaneseq
    %v3866 = vshrl.u32 %v3865, 7
    %v3867 = vsub.s32 %v3864, %v3866
    %v3868 = vrot.slane %v3846, %v3867
    %v3870 = vunpack.c.l.s4 1966171168
    %v3871 = vunpack.c.0.s8 %v3870
    %v3872 = vlaneseq
    %v3873 = vshrl.u32 %v3872, 7
    %v3874 = vsub.s32 %v3871, %v3873
    %v3875 = vrot.slane %v3847, %v3874
    %v3876 = vcombine.low %v3854, %v3861
    %v3877 = vcombine.low %v3868, %v3875
    %v3879 = vunpack.c.l.s4 1966171168
    %v3880 = vunpack.c.0.s8 %v3879
    %v3881 = vlaneseq
    %v3882 = vshrl.u32 %v3881, 7
    %v3883 = vsub.s32 %v3880, %v3882
    %v3884 = vrot.slane %v3876, %v3883
    %v3886 = vunpack.c.l.s4 1966171168
    %v3887 = vunpack.c.0.s8 %v3886
    %v3888 = vlaneseq
    %v3889 = vshrl.u32 %v3888, 7
    %v3890 = vsub.s32 %v3887, %v3889
    %v3891 = vrot.slane %v3877, %v3890
    %v3892 = vcombine.low %v3884, %v3891
    %v3893 = vcombine.low %v3832, %v3833
    %v3895 = vunpack.c.l.s4 1966171168
    %v3896 = vunpack.c.0.s8 %v3895
    %v3897 = vlaneseq
    %v3898 = vshrl.u32 %v3897, 7
    %v3899 = vsub.s32 %v3896, %v3898
    %v3900 = vrot.slane %v3893, %v3899
    %v3902 = vunpack.c.l.s4 1966171168
    %v3903 = vunpack.c.0.s8 %v3902
    %v3904 = vlaneseq
    %v3905 = vshrl.u32 %v3904, 7
    %v3906 = vsub.s32 %v3903, %v3905
    %v3907 = vrot.slane %v3900, %v3906
    %v3910 = vsel %vm584, %v3892, 0.0
    %3911 = vadd.xlane.f32.xlu0 %v3910
    %v3912 = vpop.xlane.xlu0 %3911
    %v3913 = vsel %vm588, %v3907, 0.0
    %3914 = vadd.xlane.f32.xlu0 %v3913
    %v3915 = vpop.xlane.xlu0 %3914
    %v3916 = vmul.f32 %v3912, %v592
    %v3917 = vmul.f32 %v3915, %v592
    %v3920 = vlaneseq
    %v3921 = vshrl.u32 %v3920, 7
    %v3922 = vsub.s32 0, %v3921
    %v3923 = vrot.slane %v3916, %v3922
    %v3924 = vlaneseq
    %v3925 = vshrl.u32 %v3924, 7
    %v3926 = vsub.s32 1, %v3925
    %v3927 = vrot.slane %v3916, %v3926
    %v3928 = vlaneseq
    %v3929 = vshrl.u32 %v3928, 7
    %v3930 = vsub.s32 2, %v3929
    %v3931 = vrot.slane %v3916, %v3930
    %v3932 = vlaneseq
    %v3933 = vshrl.u32 %v3932, 7
    %v3934 = vsub.s32 3, %v3933
    %v3935 = vrot.slane %v3916, %v3934
    %v3936 = vlaneseq
    %v3937 = vshrl.u32 %v3936, 7
    %v3938 = vsub.s32 4, %v3937
    %v3939 = vrot.slane %v3916, %v3938
    %v3940 = vlaneseq
    %v3941 = vshrl.u32 %v3940, 7
    %v3942 = vsub.s32 5, %v3941
    %v3943 = vrot.slane %v3916, %v3942
    %v3944 = vlaneseq
    %v3945 = vshrl.u32 %v3944, 7
    %v3946 = vsub.s32 6, %v3945
    %v3947 = vrot.slane %v3916, %v3946
    %v3948 = vlaneseq
    %v3949 = vshrl.u32 %v3948, 7
    %v3950 = vsub.s32 7, %v3949
    %v3951 = vrot.slane %v3916, %v3950
    %v3952 = vlaneseq
    %v3953 = vshrl.u32 %v3952, 7
    %v3954 = vsub.s32 0, %v3953
    %v3955 = vrot.slane %v3917, %v3954
    %v3956 = vlaneseq
    %v3957 = vshrl.u32 %v3956, 7
    %v3958 = vsub.s32 1, %v3957
    %v3959 = vrot.slane %v3917, %v3958
    %v3970 = vsub.f32 %v3824, %v3923
    %v3971 = vsub.f32 %v3825, %v3927
    %v3972 = vsub.f32 %v3826, %v3931
    %v3973 = vsub.f32 %v3827, %v3935
    %v3974 = vsub.f32 %v3828, %v3939
    %v3975 = vsub.f32 %v3829, %v3943
    %v3976 = vsub.f32 %v3830, %v3947
    %v3977 = vsub.f32 %v3831, %v3951
    %v3978 = vsub.f32 %v3832, %v3955
    %v3979 = vsub.f32 %v3833, %v3959
    %v3980 = vmul.f32 %v3970, %v3970
    %v3981 = vmul.f32 %v3971, %v3971
    %v3982 = vmul.f32 %v3972, %v3972
    %v3983 = vmul.f32 %v3973, %v3973
    %v3984 = vmul.f32 %v3974, %v3974
    %v3985 = vmul.f32 %v3975, %v3975
    %v3986 = vmul.f32 %v3976, %v3976
    %v3987 = vmul.f32 %v3977, %v3977
    %v3988 = vmul.f32 %v3978, %v3978
    %v3989 = vmul.f32 %v3979, %v3979
    %v4000 = vcombine.low %v3980, %v3981
    %v4001 = vcombine.low %v3982, %v3983
    %v4002 = vcombine.low %v3984, %v3985
    %v4003 = vcombine.low %v3986, %v3987
    %v4005 = vunpack.c.l.s4 1966171168
    %v4006 = vunpack.c.0.s8 %v4005
    %v4007 = vlaneseq
    %v4008 = vshrl.u32 %v4007, 7
    %v4009 = vsub.s32 %v4006, %v4008
    %v4010 = vrot.slane %v4000, %v4009
    %v4012 = vunpack.c.l.s4 1966171168
    %v4013 = vunpack.c.0.s8 %v4012
    %v4014 = vlaneseq
    %v4015 = vshrl.u32 %v4014, 7
    %v4016 = vsub.s32 %v4013, %v4015
    %v4017 = vrot.slane %v4001, %v4016
    %v4019 = vunpack.c.l.s4 1966171168
    %v4020 = vunpack.c.0.s8 %v4019
    %v4021 = vlaneseq
    %v4022 = vshrl.u32 %v4021, 7
    %v4023 = vsub.s32 %v4020, %v4022
    %v4024 = vrot.slane %v4002, %v4023
    %v4026 = vunpack.c.l.s4 1966171168
    %v4027 = vunpack.c.0.s8 %v4026
    %v4028 = vlaneseq
    %v4029 = vshrl.u32 %v4028, 7
    %v4030 = vsub.s32 %v4027, %v4029
    %v4031 = vrot.slane %v4003, %v4030
    %v4032 = vcombine.low %v4010, %v4017
    %v4033 = vcombine.low %v4024, %v4031
    %v4035 = vunpack.c.l.s4 1966171168
    %v4036 = vunpack.c.0.s8 %v4035
    %v4037 = vlaneseq
    %v4038 = vshrl.u32 %v4037, 7
    %v4039 = vsub.s32 %v4036, %v4038
    %v4040 = vrot.slane %v4032, %v4039
    %v4042 = vunpack.c.l.s4 1966171168
    %v4043 = vunpack.c.0.s8 %v4042
    %v4044 = vlaneseq
    %v4045 = vshrl.u32 %v4044, 7
    %v4046 = vsub.s32 %v4043, %v4045
    %v4047 = vrot.slane %v4033, %v4046
    %v4048 = vcombine.low %v4040, %v4047
    %v4049 = vcombine.low %v3988, %v3989
    %v4051 = vunpack.c.l.s4 1966171168
    %v4052 = vunpack.c.0.s8 %v4051
    %v4053 = vlaneseq
    %v4054 = vshrl.u32 %v4053, 7
    %v4055 = vsub.s32 %v4052, %v4054
    %v4056 = vrot.slane %v4049, %v4055
    %v4058 = vunpack.c.l.s4 1966171168
    %v4059 = vunpack.c.0.s8 %v4058
    %v4060 = vlaneseq
    %v4061 = vshrl.u32 %v4060, 7
    %v4062 = vsub.s32 %v4059, %v4061
    %v4063 = vrot.slane %v4056, %v4062
    %v4066 = vsel %vm584, %v4048, 0.0
    %4067 = vadd.xlane.f32.xlu0 %v4066
    %v4068 = vpop.xlane.xlu0 %4067
    %v4069 = vsel %vm588, %v4063, 0.0
    %4070 = vadd.xlane.f32.xlu0 %v4069
    %v4071 = vpop.xlane.xlu0 %4070
    %v4072 = vmul.f32 %v4068, %v592
    %v4073 = vmul.f32 %v4071, %v592
    %v4074 = vadd.f32 %v4072, 1e-06
    %v4075 = vadd.f32 %v4073, 1e-06
    %v4076 = vrsqrt.pop %v4074
    %v4077 = vrsqrt.pop %v4075
    %v4080 = vlaneseq
    %v4081 = vshrl.u32 %v4080, 7
    %v4082 = vsub.s32 0, %v4081
    %v4083 = vrot.slane %v4076, %v4082
    %v4084 = vlaneseq
    %v4085 = vshrl.u32 %v4084, 7
    %v4086 = vsub.s32 1, %v4085
    %v4087 = vrot.slane %v4076, %v4086
    %v4088 = vlaneseq
    %v4089 = vshrl.u32 %v4088, 7
    %v4090 = vsub.s32 2, %v4089
    %v4091 = vrot.slane %v4076, %v4090
    %v4092 = vlaneseq
    %v4093 = vshrl.u32 %v4092, 7
    %v4094 = vsub.s32 3, %v4093
    %v4095 = vrot.slane %v4076, %v4094
    %v4096 = vlaneseq
    %v4097 = vshrl.u32 %v4096, 7
    %v4098 = vsub.s32 4, %v4097
    %v4099 = vrot.slane %v4076, %v4098
    %v4100 = vlaneseq
    %v4101 = vshrl.u32 %v4100, 7
    %v4102 = vsub.s32 5, %v4101
    %v4103 = vrot.slane %v4076, %v4102
    %v4104 = vlaneseq
    %v4105 = vshrl.u32 %v4104, 7
    %v4106 = vsub.s32 6, %v4105
    %v4107 = vrot.slane %v4076, %v4106
    %v4108 = vlaneseq
    %v4109 = vshrl.u32 %v4108, 7
    %v4110 = vsub.s32 7, %v4109
    %v4111 = vrot.slane %v4076, %v4110
    %v4112 = vlaneseq
    %v4113 = vshrl.u32 %v4112, 7
    %v4114 = vsub.s32 0, %v4113
    %v4115 = vrot.slane %v4077, %v4114
    %v4116 = vlaneseq
    %v4117 = vshrl.u32 %v4116, 7
    %v4118 = vsub.s32 1, %v4117
    %v4119 = vrot.slane %v4077, %v4118
    %v4130 = vmul.f32 %v3970, %v4083
    %v4131 = vmul.f32 %v3971, %v4087
    %v4132 = vmul.f32 %v3972, %v4091
    %v4133 = vmul.f32 %v3973, %v4095
    %v4134 = vmul.f32 %v3974, %v4099
    %v4135 = vmul.f32 %v3975, %v4103
    %v4136 = vmul.f32 %v3976, %v4107
    %v4137 = vmul.f32 %v3977, %v4111
    %v4138 = vmul.f32 %v3978, %v4115
    %v4139 = vmul.f32 %v3979, %v4119
    %v4140 = vlaneseq
    %v4141 = vshrl.u32 %v4140, 7
    %v4142 = vsub.s32 5, %v4141
    %v4143 = vrot.slane %v34, %v4142
    %v4145 = vcombine.high %v4143, %v4143
    %v4147 = vunpack.c.l.s4 1966171168
    %v4148 = vunpack.c.0.s8 %v4147
    %v4149 = vlaneseq
    %v4150 = vshrl.u32 %v4149, 7
    %v4151 = vsub.s32 %v4148, %v4150
    %v4152 = vrot.slane %v4143, %v4151
    %v4154 = vunpack.c.l.s4 1966171168
    %v4155 = vunpack.c.0.s8 %v4154
    %v4156 = vlaneseq
    %v4157 = vshrl.u32 %v4156, 7
    %v4158 = vsub.s32 %v4155, %v4157
    %v4159 = vrot.slane %v4145, %v4158
    %v4160 = vcombine.high %v4152, %v4152
    %v4161 = vcombine.high %v4159, %v4159
    %v4163 = vunpack.c.l.s4 1966171168
    %v4164 = vunpack.c.0.s8 %v4163
    %v4165 = vlaneseq
    %v4166 = vshrl.u32 %v4165, 7
    %v4167 = vsub.s32 %v4164, %v4166
    %v4168 = vrot.slane %v4152, %v4167
    %v4170 = vunpack.c.l.s4 1966171168
    %v4171 = vunpack.c.0.s8 %v4170
    %v4172 = vlaneseq
    %v4173 = vshrl.u32 %v4172, 7
    %v4174 = vsub.s32 %v4171, %v4173
    %v4175 = vrot.slane %v4159, %v4174
    %v4177 = vunpack.c.l.s4 1966171168
    %v4178 = vunpack.c.0.s8 %v4177
    %v4179 = vlaneseq
    %v4180 = vshrl.u32 %v4179, 7
    %v4181 = vsub.s32 %v4178, %v4180
    %v4182 = vrot.slane %v4160, %v4181
    %v4184 = vunpack.c.l.s4 1966171168
    %v4185 = vunpack.c.0.s8 %v4184
    %v4186 = vlaneseq
    %v4187 = vshrl.u32 %v4186, 7
    %v4188 = vsub.s32 %v4185, %v4187
    %v4189 = vrot.slane %v4161, %v4188
    %v4190 = vcombine.high %v4168, %v4168
    %v4191 = vcombine.high %v4175, %v4175
    %v4192 = vcombine.high %v4182, %v4182
    %v4193 = vcombine.high %v4189, %v4189
    %v4202 = vmul.f32 %v4130, %v4168
    %v4203 = vmul.f32 %v4131, %v4182
    %v4204 = vmul.f32 %v4132, %v4190
    %v4205 = vmul.f32 %v4133, %v4192
    %v4206 = vmul.f32 %v4134, %v4175
    %v4207 = vmul.f32 %v4135, %v4189
    %v4208 = vmul.f32 %v4136, %v4191
    %v4209 = vmul.f32 %v4137, %v4193
    %v4210 = vmul.f32 %v4138, %v4168
    %v4211 = vmul.f32 %v4139, %v4182
    %v4212 = vlaneseq
    %v4213 = vshrl.u32 %v4212, 7
    %v4214 = vsub.s32 6, %v4213
    %v4215 = vrot.slane %v34, %v4214
    %v4217 = vcombine.high %v4215, %v4215
    %v4219 = vunpack.c.l.s4 1966171168
    %v4220 = vunpack.c.0.s8 %v4219
    %v4221 = vlaneseq
    %v4222 = vshrl.u32 %v4221, 7
    %v4223 = vsub.s32 %v4220, %v4222
    %v4224 = vrot.slane %v4215, %v4223
    %v4226 = vunpack.c.l.s4 1966171168
    %v4227 = vunpack.c.0.s8 %v4226
    %v4228 = vlaneseq
    %v4229 = vshrl.u32 %v4228, 7
    %v4230 = vsub.s32 %v4227, %v4229
    %v4231 = vrot.slane %v4217, %v4230
    %v4232 = vcombine.high %v4224, %v4224
    %v4233 = vcombine.high %v4231, %v4231
    %v4235 = vunpack.c.l.s4 1966171168
    %v4236 = vunpack.c.0.s8 %v4235
    %v4237 = vlaneseq
    %v4238 = vshrl.u32 %v4237, 7
    %v4239 = vsub.s32 %v4236, %v4238
    %v4240 = vrot.slane %v4224, %v4239
    %v4242 = vunpack.c.l.s4 1966171168
    %v4243 = vunpack.c.0.s8 %v4242
    %v4244 = vlaneseq
    %v4245 = vshrl.u32 %v4244, 7
    %v4246 = vsub.s32 %v4243, %v4245
    %v4247 = vrot.slane %v4231, %v4246
    %v4249 = vunpack.c.l.s4 1966171168
    %v4250 = vunpack.c.0.s8 %v4249
    %v4251 = vlaneseq
    %v4252 = vshrl.u32 %v4251, 7
    %v4253 = vsub.s32 %v4250, %v4252
    %v4254 = vrot.slane %v4232, %v4253
    %v4256 = vunpack.c.l.s4 1966171168
    %v4257 = vunpack.c.0.s8 %v4256
    %v4258 = vlaneseq
    %v4259 = vshrl.u32 %v4258, 7
    %v4260 = vsub.s32 %v4257, %v4259
    %v4261 = vrot.slane %v4233, %v4260
    %v4262 = vcombine.high %v4240, %v4240
    %v4263 = vcombine.high %v4247, %v4247
    %v4264 = vcombine.high %v4254, %v4254
    %v4265 = vcombine.high %v4261, %v4261
    %v4274 = vadd.f32 %v4202, %v4240
    %v4275 = vadd.f32 %v4203, %v4254
    %v4276 = vadd.f32 %v4204, %v4262
    %v4277 = vadd.f32 %v4205, %v4264
    %v4278 = vadd.f32 %v4206, %v4247
    %v4279 = vadd.f32 %v4207, %v4261
    %v4280 = vadd.f32 %v4208, %v4263
    %v4281 = vadd.f32 %v4209, %v4265
    %v4282 = vadd.f32 %v4210, %v4240
    %v4283 = vadd.f32 %v4211, %v4254
    %s4284 = scalar_lea.vmem %s2, 32
    %v4285 = vld [vmem:[%s4284] sm:$0xff]
    %v4286 = vld [vmem:[%s4284 + $0x8] sm:$0xff]
    %v4287 = vld [vmem:[%s4284 + $0x10] sm:$0xff]
    %v4288 = vld [vmem:[%s4284 + $0x18] sm:$0xff]
    %v4289 = vlaneseq
    %v4290 = vshrl.u32 %v4289, 7
    %v4291 = vsub.s32 7, %v4290
    %v4292 = vrot.slane %v34, %v4291
    %v4303 = vcombine.low %v4274, %v4275
    %v4304 = vcombine.low %v4276, %v4277
    %v4305 = vcombine.low %v4278, %v4279
    %v4306 = vcombine.low %v4280, %v4281
    %v4308 = vunpack.c.l.s4 1966171168
    %v4309 = vunpack.c.0.s8 %v4308
    %v4310 = vlaneseq
    %v4311 = vshrl.u32 %v4310, 7
    %v4312 = vsub.s32 %v4309, %v4311
    %v4313 = vrot.slane %v4303, %v4312
    %v4315 = vunpack.c.l.s4 1966171168
    %v4316 = vunpack.c.0.s8 %v4315
    %v4317 = vlaneseq
    %v4318 = vshrl.u32 %v4317, 7
    %v4319 = vsub.s32 %v4316, %v4318
    %v4320 = vrot.slane %v4304, %v4319
    %v4322 = vunpack.c.l.s4 1966171168
    %v4323 = vunpack.c.0.s8 %v4322
    %v4324 = vlaneseq
    %v4325 = vshrl.u32 %v4324, 7
    %v4326 = vsub.s32 %v4323, %v4325
    %v4327 = vrot.slane %v4305, %v4326
    %v4329 = vunpack.c.l.s4 1966171168
    %v4330 = vunpack.c.0.s8 %v4329
    %v4331 = vlaneseq
    %v4332 = vshrl.u32 %v4331, 7
    %v4333 = vsub.s32 %v4330, %v4332
    %v4334 = vrot.slane %v4306, %v4333
    %v4335 = vcombine.low %v4313, %v4320
    %v4336 = vcombine.low %v4327, %v4334
    %v4338 = vunpack.c.l.s4 1966171168
    %v4339 = vunpack.c.0.s8 %v4338
    %v4340 = vlaneseq
    %v4341 = vshrl.u32 %v4340, 7
    %v4342 = vsub.s32 %v4339, %v4341
    %v4343 = vrot.slane %v4335, %v4342
    %v4345 = vunpack.c.l.s4 1966171168
    %v4346 = vunpack.c.0.s8 %v4345
    %v4347 = vlaneseq
    %v4348 = vshrl.u32 %v4347, 7
    %v4349 = vsub.s32 %v4346, %v4348
    %v4350 = vrot.slane %v4336, %v4349
    %v4351 = vcombine.low %v4343, %v4350
    %v4352 = vcombine.low %v4282, %v4283
    %v4354 = vunpack.c.l.s4 1966171168
    %v4355 = vunpack.c.0.s8 %v4354
    %v4356 = vlaneseq
    %v4357 = vshrl.u32 %v4356, 7
    %v4358 = vsub.s32 %v4355, %v4357
    %v4359 = vrot.slane %v4352, %v4358
    %v4361 = vunpack.c.l.s4 1966171168
    %v4362 = vunpack.c.0.s8 %v4361
    %v4363 = vlaneseq
    %v4364 = vshrl.u32 %v4363, 7
    %v4365 = vsub.s32 %v4362, %v4364
    %v4366 = vrot.slane %v4359, %v4365
    %v4367 = vsel %vm584, %v4351, 0
    %v4369 = vsel %vm584, %v4366, 0
    %4371 = vmatprep.subr.mxu0 0.0
    %4372 = vmatpush1.msra.mxu0 %v4285
    %4373 = vmatprep.subr.mxu0 0.0
    %4374 = vmatpush1.msra.mxu0 %v4286
    %4375 = vmatprep.subr.mxu0 0.0
    %4376 = vmatpush1.msra.mxu0 %v4287
    %4377 = vmatprep.subr.mxu0 0.0
    %4378 = vmatpush1.msra.mxu0 %v4288
    %4379 = vmatprep.subr.mxu0 0.0
    %4380 = vmatpush1.msra.mxu0 0.0
    %4381 = vmatprep.subr.mxu0 0.0
    %4382 = vmatpush1.msra.mxu0 0.0
    %4383 = vmatprep.subr.mxu0 0.0
    %4384 = vmatpush1.msra.mxu0 0.0
    %4385 = vmatprep.subr.mxu0 0.0
    %4386 = vmatpush1.msra.mxu0 0.0
    %4387 = vmatprep.subr.mxu0 0.0
    %4388 = vmatpush1.msra.mxu0 0.0
    %4389 = vmatprep.subr.mxu0 0.0
    %4390 = vmatpush1.msra.mxu0 0.0
    %4391 = vmatprep.subr.mxu0 0.0
    %4392 = vmatpush1.msra.mxu0 0.0
    %4393 = vmatprep.subr.mxu0 0.0
    %4394 = vmatpush1.msra.mxu0 0.0
    %4395 = vmatprep.subr.mxu0 0.0
    %4396 = vmatpush1.msra.mxu0 0.0
    %4397 = vmatprep.subr.mxu0 0.0
    %4398 = vmatpush1.msra.mxu0 0.0
    %4399 = vmatprep.subr.mxu0 0.0
    %4400 = vmatpush1.msra.mxu0 0.0
    %4401 = vmatprep.subr.mxu0 0.0
    %4402 = vmatpush1.msra.mxu0 0.0
    %4403 = vmatprep.subr.mxu0 0.0
    %4404 = vmatpush1.msra.mxu0 0.0
    %4405 = vmatprep.subr.mxu0 0.0
    %4406 = vmatpush1.msra.mxu0 0.0
    %4407 = vmatprep.subr.mxu0 0.0
    %4408 = vmatpush1.msra.mxu0 0.0
    %4409 = vmatprep.subr.mxu0 0.0
    %4410 = vmatpush1.msra.mxu0 0.0
    %4411 = vmatprep.subr.mxu0 0.0
    %4412 = vmatpush1.msra.mxu0 0.0
    %4413 = vmatprep.subr.mxu0 0.0
    %4414 = vmatpush1.msra.mxu0 0.0
    %4415 = vmatprep.subr.mxu0 0.0
    %4416 = vmatpush1.msra.mxu0 0.0
    %4417 = vmatprep.subr.mxu0 0.0
    %4418 = vmatpush1.msra.mxu0 0.0
    %4419 = vmatprep.subr.mxu0 0.0
    %4420 = vmatpush1.msra.mxu0 0.0
    %4421 = vmatprep.subr.mxu0 0.0
    %4422 = vmatpush1.msra.mxu0 0.0
    %4423 = vmatprep.subr.mxu0 0.0
    %4424 = vmatpush1.msra.mxu0 0.0
    %4425 = vmatprep.subr.mxu0 0.0
    %4426 = vmatpush1.msra.mxu0 0.0
    %4427 = vmatprep.subr.mxu0 0.0
    %4428 = vmatpush1.msra.mxu0 0.0
    %4429 = vmatprep.subr.mxu0 0.0
    %4430 = vmatpush1.msra.mxu0 0.0
    %4431 = vmatprep.subr.mxu0 0.0
    %4432 = vmatpush1.msra.mxu0 0.0
    %4433 = vmatprep.subr.mxu0 0.0
    %4434 = vmatpush1.msra.mxu0 0.0
    %4435 = vmatprep.mubr.f32.mxu0 0.0
    %4436 = vmatmul.mubr.f32.gmra.mrb[0].mxu0 %v4367
    %v4437 = vpop.f32.mrb[0].mxu0
    %v4438 = vadd.f32 %v4292, %v4437
    %v4439 = vpop.f32.mrb[0].mxu0
    %4440 = vmatprep.mubr.f32.mxu0 0.0
    %4441 = vmatmul.mubr.f32.gmra.mrb[0].mxu0 %v4369
    %v4442 = vpop.f32.mrb[0].mxu0
    %v4443 = vadd.f32 %v4292, %v4442
    %v4444 = vpop.f32.mrb[0].mxu0
    %4445 = vdwg.mxu0
    %v4448 = vcombine.high %v4438, %v4438
    %v4450 = vunpack.c.l.s4 1966171168
    %v4451 = vunpack.c.0.s8 %v4450
    %v4452 = vlaneseq
    %v4453 = vshrl.u32 %v4452, 7
    %v4454 = vsub.s32 %v4451, %v4453
    %v4455 = vrot.slane %v4438, %v4454
    %v4457 = vunpack.c.l.s4 1966171168
    %v4458 = vunpack.c.0.s8 %v4457
    %v4459 = vlaneseq
    %v4460 = vshrl.u32 %v4459, 7
    %v4461 = vsub.s32 %v4458, %v4460
    %v4462 = vrot.slane %v4448, %v4461
    %v4463 = vcombine.high %v4455, %v4455
    %v4464 = vcombine.high %v4462, %v4462
    %v4466 = vunpack.c.l.s4 1966171168
    %v4467 = vunpack.c.0.s8 %v4466
    %v4468 = vlaneseq
    %v4469 = vshrl.u32 %v4468, 7
    %v4470 = vsub.s32 %v4467, %v4469
    %v4471 = vrot.slane %v4455, %v4470
    %v4473 = vunpack.c.l.s4 1966171168
    %v4474 = vunpack.c.0.s8 %v4473
    %v4475 = vlaneseq
    %v4476 = vshrl.u32 %v4475, 7
    %v4477 = vsub.s32 %v4474, %v4476
    %v4478 = vrot.slane %v4462, %v4477
    %v4480 = vunpack.c.l.s4 1966171168
    %v4481 = vunpack.c.0.s8 %v4480
    %v4482 = vlaneseq
    %v4483 = vshrl.u32 %v4482, 7
    %v4484 = vsub.s32 %v4481, %v4483
    %v4485 = vrot.slane %v4463, %v4484
    %v4487 = vunpack.c.l.s4 1966171168
    %v4488 = vunpack.c.0.s8 %v4487
    %v4489 = vlaneseq
    %v4490 = vshrl.u32 %v4489, 7
    %v4491 = vsub.s32 %v4488, %v4490
    %v4492 = vrot.slane %v4464, %v4491
    %v4493 = vcombine.high %v4471, %v4471
    %v4494 = vcombine.high %v4478, %v4478
    %v4495 = vcombine.high %v4485, %v4485
    %v4496 = vcombine.high %v4492, %v4492
    %v4498 = vunpack.c.l.s4 1966171168
    %v4499 = vunpack.c.0.s8 %v4498
    %v4500 = vlaneseq
    %v4501 = vshrl.u32 %v4500, 7
    %v4502 = vsub.s32 %v4499, %v4501
    %v4503 = vrot.slane %v4443, %v4502
    %v4504 = vcombine.high %v4503, %v4503
    %v4506 = vunpack.c.l.s4 1966171168
    %v4507 = vunpack.c.0.s8 %v4506
    %v4508 = vlaneseq
    %v4509 = vshrl.u32 %v4508, 7
    %v4510 = vsub.s32 %v4507, %v4509
    %v4511 = vrot.slane %v4503, %v4510
    %v4513 = vunpack.c.l.s4 1966171168
    %v4514 = vunpack.c.0.s8 %v4513
    %v4515 = vlaneseq
    %v4516 = vshrl.u32 %v4515, 7
    %v4517 = vsub.s32 %v4514, %v4516
    %v4518 = vrot.slane %v4504, %v4517
    %v4519 = vcombine.low %v4471, %v4485
    %v4520 = vcombine.low %v4493, %v4495
    %v4522 = vunpack.c.l.s4 1966171168
    %v4523 = vunpack.c.0.s8 %v4522
    %v4524 = vlaneseq
    %v4525 = vshrl.u32 %v4524, 7
    %v4526 = vsub.s32 %v4523, %v4525
    %v4527 = vrot.slane %v4519, %v4526
    %v4529 = vunpack.c.l.s4 1966171168
    %v4530 = vunpack.c.0.s8 %v4529
    %v4531 = vlaneseq
    %v4532 = vshrl.u32 %v4531, 7
    %v4533 = vsub.s32 %v4530, %v4532
    %v4534 = vrot.slane %v4520, %v4533
    %v4536 = vunpack.c.l.s4 1966171168
    %v4537 = vunpack.c.0.s8 %v4536
    %v4538 = vlaneseq
    %v4539 = vshrl.u32 %v4538, 7
    %v4540 = vsub.s32 %v4537, %v4539
    %v4541 = vrot.slane %v4478, %v4540
    %v4542 = vcombine.low %v4527, %v4534
    %v4544 = vunpack.c.l.s4 1966171168
    %v4545 = vunpack.c.0.s8 %v4544
    %v4546 = vlaneseq
    %v4547 = vshrl.u32 %v4546, 7
    %v4548 = vsub.s32 %v4545, %v4547
    %v4549 = vrot.slane %v4542, %v4548
    %v4551 = vunpack.c.l.s4 1966171168
    %v4552 = vunpack.c.0.s8 %v4551
    %v4553 = vlaneseq
    %v4554 = vshrl.u32 %v4553, 7
    %v4555 = vsub.s32 %v4552, %v4554
    %v4556 = vrot.slane %v4541, %v4555
    %v4557 = vcombine.low %v4549, %v4556
    %4558 = vrot.lane.b32.xlu0 %v4557, 96
    %v4559 = vpop.permute.xlu0 %4558
    %v4560 = vsel %vm1236, %v4557, 0
    %v4562 = vsel %vm1236, %v4559, 0
    %4564 = vmatprep.subr.mxu0 0.0
    %4565 = vmatpush1.xpose.msra.mxu0 %v4562
    %4566 = vmatprep.subr.mxu0 0.0
    %4567 = vmatpush1.xpose.msra.mxu0 0.0
    %4568 = vmatprep.subr.mxu0 0.0
    %4569 = vmatpush1.xpose.msra.mxu0 0.0
    %4570 = vmatprep.subr.mxu0 0.0
    %4571 = vmatpush1.xpose.msra.mxu0 0.0
    %4572 = vmatprep.subr.mxu0 0.0
    %4573 = vmatpush1.xpose.msra.mxu0 0.0
    %4574 = vmatprep.subr.mxu0 0.0
    %4575 = vmatpush1.xpose.msra.mxu0 0.0
    %4576 = vmatprep.subr.mxu0 0.0
    %4577 = vmatpush1.xpose.msra.mxu0 0.0
    %4578 = vmatprep.subr.mxu0 0.0
    %4579 = vmatpush1.xpose.msra.mxu0 0.0
    %4580 = vmatprep.subr.mxu0 0.0
    %4581 = vmatpush1.xpose.msra.mxu0 0.0
    %4582 = vmatprep.subr.mxu0 0.0
    %4583 = vmatpush1.xpose.msra.mxu0 0.0
    %4584 = vmatprep.subr.mxu0 0.0
    %4585 = vmatpush1.xpose.msra.mxu0 0.0
    %4586 = vmatprep.subr.mxu0 0.0
    %4587 = vmatpush1.xpose.msra.mxu0 0.0
    %4588 = vmatprep.subr.mxu0 0.0
    %4589 = vmatpush1.xpose.msra.mxu0 0.0
    %4590 = vmatprep.subr.mxu0 0.0
    %4591 = vmatpush1.xpose.msra.mxu0 0.0
    %4592 = vmatprep.subr.mxu0 0.0
    %4593 = vmatpush1.xpose.msra.mxu0 0.0
    %4594 = vmatprep.subr.mxu0 0.0
    %4595 = vmatpush1.xpose.msra.mxu0 0.0
    %4596 = vmatprep.subr.mxu0 0.0
    %4597 = vmatpush1.xpose.msra.mxu0 0.0
    %4598 = vmatprep.subr.mxu0 0.0
    %4599 = vmatpush1.xpose.msra.mxu0 0.0
    %4600 = vmatprep.subr.mxu0 0.0
    %4601 = vmatpush1.xpose.msra.mxu0 0.0
    %4602 = vmatprep.subr.mxu0 0.0
    %4603 = vmatpush1.xpose.msra.mxu0 0.0
    %4604 = vmatprep.subr.mxu0 0.0
    %4605 = vmatpush1.xpose.msra.mxu0 0.0
    %4606 = vmatprep.subr.mxu0 0.0
    %4607 = vmatpush1.xpose.msra.mxu0 0.0
    %4608 = vmatprep.subr.mxu0 0.0
    %4609 = vmatpush1.xpose.msra.mxu0 0.0
    %4610 = vmatprep.subr.mxu0 0.0
    %4611 = vmatpush1.xpose.msra.mxu0 0.0
    %4612 = vmatprep.subr.mxu0 0.0
    %4613 = vmatpush1.xpose.msra.mxu0 0.0
    %4614 = vmatprep.subr.mxu0 0.0
    %4615 = vmatpush1.xpose.msra.mxu0 0.0
    %4616 = vmatprep.subr.mxu0 0.0
    %4617 = vmatpush1.xpose.msra.mxu0 0.0
    %4618 = vmatprep.subr.mxu0 0.0
    %4619 = vmatpush1.xpose.msra.mxu0 0.0
    %4620 = vmatprep.subr.mxu0 0.0
    %4621 = vmatpush1.xpose.msra.mxu0 0.0
    %4622 = vmatprep.subr.mxu0 0.0
    %4623 = vmatpush1.xpose.msra.mxu0 0.0
    %4624 = vmatprep.subr.mxu0 0.0
    %4625 = vmatpush1.xpose.msra.mxu0 0.0
    %4626 = vmatprep.subr.mxu0 0.0
    %4627 = vmatpush1.xpose.msra.mxu0 0.0
    %4628 = vmatprep.mubr.f32.mxu0 0.0
    %4629 = vmatmul.mubr.f32.gmra.mrb[0].mxu0 %v4560
    %v4630 = vpop.f32.mrb[0].mxu0
    %v4631 = vadd.f32 0.0, %v4630
    %v4632 = vpop.f32.mrb[0].mxu0
    %4633 = vdwg.mxu0
    %v4634 = vcombine.low %v4492, %v4494
    %v4635 = vcombine.low %v4496, %v4511
    %v4637 = vunpack.c.l.s4 1966171168
    %v4638 = vunpack.c.0.s8 %v4637
    %v4639 = vlaneseq
    %v4640 = vshrl.u32 %v4639, 7
    %v4641 = vsub.s32 %v4638, %v4640
    %v4642 = vrot.slane %v4634, %v4641
    %v4644 = vunpack.c.l.s4 1966171168
    %v4645 = vunpack.c.0.s8 %v4644
    %v4646 = vlaneseq
    %v4647 = vshrl.u32 %v4646, 7
    %v4648 = vsub.s32 %v4645, %v4647
    %v4649 = vrot.slane %v4635, %v4648
    %v4651 = vunpack.c.l.s4 1966171168
    %v4652 = vunpack.c.0.s8 %v4651
    %v4653 = vlaneseq
    %v4654 = vshrl.u32 %v4653, 7
    %v4655 = vsub.s32 %v4652, %v4654
    %v4656 = vrot.slane %v4518, %v4655
    %v4657 = vcombine.low %v4642, %v4649
    %v4659 = vunpack.c.l.s4 1966171168
    %v4660 = vunpack.c.0.s8 %v4659
    %v4661 = vlaneseq
    %v4662 = vshrl.u32 %v4661, 7
    %v4663 = vsub.s32 %v4660, %v4662
    %v4664 = vrot.slane %v4657, %v4663
    %v4666 = vunpack.c.l.s4 1966171168
    %v4667 = vunpack.c.0.s8 %v4666
    %v4668 = vlaneseq
    %v4669 = vshrl.u32 %v4668, 7
    %v4670 = vsub.s32 %v4667, %v4669
    %v4671 = vrot.slane %v4656, %v4670
    %v4672 = vcombine.low %v4664, %v4671
    %4673 = vrot.lane.b32.xlu0 %v4672, 96
    %v4674 = vpop.permute.xlu0 %4673
    %v4675 = vsel %vm1236, %v4672, 0
    %v4677 = vsel %vm1236, %v4674, 0
    %4679 = vmatprep.subr.mxu0 0.0
    %4680 = vmatpush1.xpose.msra.mxu0 %v4677
    %4681 = vmatprep.subr.mxu0 0.0
    %4682 = vmatpush1.xpose.msra.mxu0 0.0
    %4683 = vmatprep.subr.mxu0 0.0
    %4684 = vmatpush1.xpose.msra.mxu0 0.0
    %4685 = vmatprep.subr.mxu0 0.0
    %4686 = vmatpush1.xpose.msra.mxu0 0.0
    %4687 = vmatprep.subr.mxu0 0.0
    %4688 = vmatpush1.xpose.msra.mxu0 0.0
    %4689 = vmatprep.subr.mxu0 0.0
    %4690 = vmatpush1.xpose.msra.mxu0 0.0
    %4691 = vmatprep.subr.mxu0 0.0
    %4692 = vmatpush1.xpose.msra.mxu0 0.0
    %4693 = vmatprep.subr.mxu0 0.0
    %4694 = vmatpush1.xpose.msra.mxu0 0.0
    %4695 = vmatprep.subr.mxu0 0.0
    %4696 = vmatpush1.xpose.msra.mxu0 0.0
    %4697 = vmatprep.subr.mxu0 0.0
    %4698 = vmatpush1.xpose.msra.mxu0 0.0
    %4699 = vmatprep.subr.mxu0 0.0
    %4700 = vmatpush1.xpose.msra.mxu0 0.0
    %4701 = vmatprep.subr.mxu0 0.0
    %4702 = vmatpush1.xpose.msra.mxu0 0.0
    %4703 = vmatprep.subr.mxu0 0.0
    %4704 = vmatpush1.xpose.msra.mxu0 0.0
    %4705 = vmatprep.subr.mxu0 0.0
    %4706 = vmatpush1.xpose.msra.mxu0 0.0
    %4707 = vmatprep.subr.mxu0 0.0
    %4708 = vmatpush1.xpose.msra.mxu0 0.0
    %4709 = vmatprep.subr.mxu0 0.0
    %4710 = vmatpush1.xpose.msra.mxu0 0.0
    %4711 = vmatprep.subr.mxu0 0.0
    %4712 = vmatpush1.xpose.msra.mxu0 0.0
    %4713 = vmatprep.subr.mxu0 0.0
    %4714 = vmatpush1.xpose.msra.mxu0 0.0
    %4715 = vmatprep.subr.mxu0 0.0
    %4716 = vmatpush1.xpose.msra.mxu0 0.0
    %4717 = vmatprep.subr.mxu0 0.0
    %4718 = vmatpush1.xpose.msra.mxu0 0.0
    %4719 = vmatprep.subr.mxu0 0.0
    %4720 = vmatpush1.xpose.msra.mxu0 0.0
    %4721 = vmatprep.subr.mxu0 0.0
    %4722 = vmatpush1.xpose.msra.mxu0 0.0
    %4723 = vmatprep.subr.mxu0 0.0
    %4724 = vmatpush1.xpose.msra.mxu0 0.0
    %4725 = vmatprep.subr.mxu0 0.0
    %4726 = vmatpush1.xpose.msra.mxu0 0.0
    %4727 = vmatprep.subr.mxu0 0.0
    %4728 = vmatpush1.xpose.msra.mxu0 0.0
    %4729 = vmatprep.subr.mxu0 0.0
    %4730 = vmatpush1.xpose.msra.mxu0 0.0
    %4731 = vmatprep.subr.mxu0 0.0
    %4732 = vmatpush1.xpose.msra.mxu0 0.0
    %4733 = vmatprep.subr.mxu0 0.0
    %4734 = vmatpush1.xpose.msra.mxu0 0.0
    %4735 = vmatprep.subr.mxu0 0.0
    %4736 = vmatpush1.xpose.msra.mxu0 0.0
    %4737 = vmatprep.subr.mxu0 0.0
    %4738 = vmatpush1.xpose.msra.mxu0 0.0
    %4739 = vmatprep.subr.mxu0 0.0
    %4740 = vmatpush1.xpose.msra.mxu0 0.0
    %4741 = vmatprep.subr.mxu0 0.0
    %4742 = vmatpush1.xpose.msra.mxu0 0.0
    %4743 = vmatprep.mubr.f32.mxu0 0.0
    %4744 = vmatmul.mubr.f32.gmra.mrb[0].mxu0 %v4675
    %v4745 = vpop.f32.mrb[0].mxu0
    %v4746 = vadd.f32 0.0, %v4745
    %v4747 = vpop.f32.mrb[0].mxu0
    %4748 = vdwg.mxu0
    %v4749 = vsel %vm1426, %v4631, -inf
    %4750 = vmax.xlane.f32.xlu0 %v4749
    %v4751 = vpop.xlane.xlu0 %4750
    %v4752 = vsel %vm1426, %v4746, -inf
    %4753 = vmax.xlane.f32.xlu0 %v4752
    %v4754 = vpop.xlane.xlu0 %4753
    %v4755 = vsub.f32 %v4631, %v4751
    %v4756 = vsub.f32 %v4746, %v4754
    %v4757 = vmul.f32 %v4755, 1.442695
    %v4758 = vpow.pop %v4757
    %v4759 = vmul.f32 %v4756, 1.442695
    %v4760 = vpow.pop %v4759
    %v4761 = vsel %vm1426, %v4758, 0.0
    %4762 = vadd.xlane.f32.xlu0 %v4761
    %v4763 = vpop.xlane.xlu0 %4762
    %v4764 = vsel %vm1426, %v4760, 0.0
    %4765 = vadd.xlane.f32.xlu0 %v4764
    %v4766 = vpop.xlane.xlu0 %4765
    %v4767 = vrcp.pop %v4763
    %v4768 = vrcp.pop %v4766
    %v4769 = vmul.f32 %v4758, %v4767
    %v4770 = vmul.f32 %v4760, %v4768
    %4771 = vrot.lane.b32.xlu0 %v4557, 64
    %v4772 = vpop.permute.xlu0 %4771
    %v4774 = vsel %vm1451, %v4769, 0
    %v4776 = vsel %vm1455, %v4772, 0
    %4778 = vmatprep.subr.mxu0 0.0
    %4779 = vmatpush1.msra.mxu0 %v4776
    %4780 = vmatprep.subr.mxu0 0.0
    %4781 = vmatpush1.msra.mxu0 0.0
    %4782 = vmatprep.subr.mxu0 0.0
    %4783 = vmatpush1.msra.mxu0 0.0
    %4784 = vmatprep.subr.mxu0 0.0
    %4785 = vmatpush1.msra.mxu0 0.0
    %4786 = vmatprep.subr.mxu0 0.0
    %4787 = vmatpush1.msra.mxu0 0.0
    %4788 = vmatprep.subr.mxu0 0.0
    %4789 = vmatpush1.msra.mxu0 0.0
    %4790 = vmatprep.subr.mxu0 0.0
    %4791 = vmatpush1.msra.mxu0 0.0
    %4792 = vmatprep.subr.mxu0 0.0
    %4793 = vmatpush1.msra.mxu0 0.0
    %4794 = vmatprep.subr.mxu0 0.0
    %4795 = vmatpush1.msra.mxu0 0.0
    %4796 = vmatprep.subr.mxu0 0.0
    %4797 = vmatpush1.msra.mxu0 0.0
    %4798 = vmatprep.subr.mxu0 0.0
    %4799 = vmatpush1.msra.mxu0 0.0
    %4800 = vmatprep.subr.mxu0 0.0
    %4801 = vmatpush1.msra.mxu0 0.0
    %4802 = vmatprep.subr.mxu0 0.0
    %4803 = vmatpush1.msra.mxu0 0.0
    %4804 = vmatprep.subr.mxu0 0.0
    %4805 = vmatpush1.msra.mxu0 0.0
    %4806 = vmatprep.subr.mxu0 0.0
    %4807 = vmatpush1.msra.mxu0 0.0
    %4808 = vmatprep.subr.mxu0 0.0
    %4809 = vmatpush1.msra.mxu0 0.0
    %4810 = vmatprep.subr.mxu0 0.0
    %4811 = vmatpush1.msra.mxu0 0.0
    %4812 = vmatprep.subr.mxu0 0.0
    %4813 = vmatpush1.msra.mxu0 0.0
    %4814 = vmatprep.subr.mxu0 0.0
    %4815 = vmatpush1.msra.mxu0 0.0
    %4816 = vmatprep.subr.mxu0 0.0
    %4817 = vmatpush1.msra.mxu0 0.0
    %4818 = vmatprep.subr.mxu0 0.0
    %4819 = vmatpush1.msra.mxu0 0.0
    %4820 = vmatprep.subr.mxu0 0.0
    %4821 = vmatpush1.msra.mxu0 0.0
    %4822 = vmatprep.subr.mxu0 0.0
    %4823 = vmatpush1.msra.mxu0 0.0
    %4824 = vmatprep.subr.mxu0 0.0
    %4825 = vmatpush1.msra.mxu0 0.0
    %4826 = vmatprep.subr.mxu0 0.0
    %4827 = vmatpush1.msra.mxu0 0.0
    %4828 = vmatprep.subr.mxu0 0.0
    %4829 = vmatpush1.msra.mxu0 0.0
    %4830 = vmatprep.subr.mxu0 0.0
    %4831 = vmatpush1.msra.mxu0 0.0
    %4832 = vmatprep.subr.mxu0 0.0
    %4833 = vmatpush1.msra.mxu0 0.0
    %4834 = vmatprep.subr.mxu0 0.0
    %4835 = vmatpush1.msra.mxu0 0.0
    %4836 = vmatprep.subr.mxu0 0.0
    %4837 = vmatpush1.msra.mxu0 0.0
    %4838 = vmatprep.subr.mxu0 0.0
    %4839 = vmatpush1.msra.mxu0 0.0
    %4840 = vmatprep.subr.mxu0 0.0
    %4841 = vmatpush1.msra.mxu0 0.0
    %4842 = vmatprep.mubr.f32.mxu0 0.0
    %4843 = vmatmul.mubr.f32.gmra.mrb[0].mxu0 %v4774
    %v4844 = vpop.f32.mrb[0].mxu0
    %v4845 = vadd.f32 0.0, %v4844
    %v4846 = vpop.f32.mrb[0].mxu0
    %4847 = vdwg.mxu0
    %4848 = vrot.lane.b32.xlu0 %v4672, 64
    %v4849 = vpop.permute.xlu0 %4848
    %v4851 = vsel %vm1451, %v4770, 0
    %v4853 = vsel %vm1455, %v4849, 0
    %4855 = vmatprep.subr.mxu0 0.0
    %4856 = vmatpush1.msra.mxu0 %v4853
    %4857 = vmatprep.subr.mxu0 0.0
    %4858 = vmatpush1.msra.mxu0 0.0
    %4859 = vmatprep.subr.mxu0 0.0
    %4860 = vmatpush1.msra.mxu0 0.0
    %4861 = vmatprep.subr.mxu0 0.0
    %4862 = vmatpush1.msra.mxu0 0.0
    %4863 = vmatprep.subr.mxu0 0.0
    %4864 = vmatpush1.msra.mxu0 0.0
    %4865 = vmatprep.subr.mxu0 0.0
    %4866 = vmatpush1.msra.mxu0 0.0
    %4867 = vmatprep.subr.mxu0 0.0
    %4868 = vmatpush1.msra.mxu0 0.0
    %4869 = vmatprep.subr.mxu0 0.0
    %4870 = vmatpush1.msra.mxu0 0.0
    %4871 = vmatprep.subr.mxu0 0.0
    %4872 = vmatpush1.msra.mxu0 0.0
    %4873 = vmatprep.subr.mxu0 0.0
    %4874 = vmatpush1.msra.mxu0 0.0
    %4875 = vmatprep.subr.mxu0 0.0
    %4876 = vmatpush1.msra.mxu0 0.0
    %4877 = vmatprep.subr.mxu0 0.0
    %4878 = vmatpush1.msra.mxu0 0.0
    %4879 = vmatprep.subr.mxu0 0.0
    %4880 = vmatpush1.msra.mxu0 0.0
    %4881 = vmatprep.subr.mxu0 0.0
    %4882 = vmatpush1.msra.mxu0 0.0
    %4883 = vmatprep.subr.mxu0 0.0
    %4884 = vmatpush1.msra.mxu0 0.0
    %4885 = vmatprep.subr.mxu0 0.0
    %4886 = vmatpush1.msra.mxu0 0.0
    %4887 = vmatprep.subr.mxu0 0.0
    %4888 = vmatpush1.msra.mxu0 0.0
    %4889 = vmatprep.subr.mxu0 0.0
    %4890 = vmatpush1.msra.mxu0 0.0
    %4891 = vmatprep.subr.mxu0 0.0
    %4892 = vmatpush1.msra.mxu0 0.0
    %4893 = vmatprep.subr.mxu0 0.0
    %4894 = vmatpush1.msra.mxu0 0.0
    %4895 = vmatprep.subr.mxu0 0.0
    %4896 = vmatpush1.msra.mxu0 0.0
    %4897 = vmatprep.subr.mxu0 0.0
    %4898 = vmatpush1.msra.mxu0 0.0
    %4899 = vmatprep.subr.mxu0 0.0
    %4900 = vmatpush1.msra.mxu0 0.0
    %4901 = vmatprep.subr.mxu0 0.0
    %4902 = vmatpush1.msra.mxu0 0.0
    %4903 = vmatprep.subr.mxu0 0.0
    %4904 = vmatpush1.msra.mxu0 0.0
    %4905 = vmatprep.subr.mxu0 0.0
    %4906 = vmatpush1.msra.mxu0 0.0
    %4907 = vmatprep.subr.mxu0 0.0
    %4908 = vmatpush1.msra.mxu0 0.0
    %4909 = vmatprep.subr.mxu0 0.0
    %4910 = vmatpush1.msra.mxu0 0.0
    %4911 = vmatprep.subr.mxu0 0.0
    %4912 = vmatpush1.msra.mxu0 0.0
    %4913 = vmatprep.subr.mxu0 0.0
    %4914 = vmatpush1.msra.mxu0 0.0
    %4915 = vmatprep.subr.mxu0 0.0
    %4916 = vmatpush1.msra.mxu0 0.0
    %4917 = vmatprep.subr.mxu0 0.0
    %4918 = vmatpush1.msra.mxu0 0.0
    %4919 = vmatprep.mubr.f32.mxu0 0.0
    %4920 = vmatmul.mubr.f32.gmra.mrb[0].mxu0 %v4851
    %v4921 = vpop.f32.mrb[0].mxu0
    %v4922 = vadd.f32 0.0, %v4921
    %v4923 = vpop.f32.mrb[0].mxu0
    %4924 = vdwg.mxu0
    %4925 = vrot.lane.b32.xlu0 %v4557, 120
    %v4926 = vpop.permute.xlu0 %4925
    %4927 = vrot.lane.b32.xlu0 %v4557, 88
    %v4928 = vpop.permute.xlu0 %4927
    %v4929 = vsel %vm1236, %v4926, 0
    %v4931 = vsel %vm1236, %v4928, 0
    %4933 = vmatprep.subr.mxu0 0.0
    %4934 = vmatpush1.xpose.msra.mxu0 %v4931
    %4935 = vmatprep.subr.mxu0 0.0
    %4936 = vmatpush1.xpose.msra.mxu0 0.0
    %4937 = vmatprep.subr.mxu0 0.0
    %4938 = vmatpush1.xpose.msra.mxu0 0.0
    %4939 = vmatprep.subr.mxu0 0.0
    %4940 = vmatpush1.xpose.msra.mxu0 0.0
    %4941 = vmatprep.subr.mxu0 0.0
    %4942 = vmatpush1.xpose.msra.mxu0 0.0
    %4943 = vmatprep.subr.mxu0 0.0
    %4944 = vmatpush1.xpose.msra.mxu0 0.0
    %4945 = vmatprep.subr.mxu0 0.0
    %4946 = vmatpush1.xpose.msra.mxu0 0.0
    %4947 = vmatprep.subr.mxu0 0.0
    %4948 = vmatpush1.xpose.msra.mxu0 0.0
    %4949 = vmatprep.subr.mxu0 0.0
    %4950 = vmatpush1.xpose.msra.mxu0 0.0
    %4951 = vmatprep.subr.mxu0 0.0
    %4952 = vmatpush1.xpose.msra.mxu0 0.0
    %4953 = vmatprep.subr.mxu0 0.0
    %4954 = vmatpush1.xpose.msra.mxu0 0.0
    %4955 = vmatprep.subr.mxu0 0.0
    %4956 = vmatpush1.xpose.msra.mxu0 0.0
    %4957 = vmatprep.subr.mxu0 0.0
    %4958 = vmatpush1.xpose.msra.mxu0 0.0
    %4959 = vmatprep.subr.mxu0 0.0
    %4960 = vmatpush1.xpose.msra.mxu0 0.0
    %4961 = vmatprep.subr.mxu0 0.0
    %4962 = vmatpush1.xpose.msra.mxu0 0.0
    %4963 = vmatprep.subr.mxu0 0.0
    %4964 = vmatpush1.xpose.msra.mxu0 0.0
    %4965 = vmatprep.subr.mxu0 0.0
    %4966 = vmatpush1.xpose.msra.mxu0 0.0
    %4967 = vmatprep.subr.mxu0 0.0
    %4968 = vmatpush1.xpose.msra.mxu0 0.0
    %4969 = vmatprep.subr.mxu0 0.0
    %4970 = vmatpush1.xpose.msra.mxu0 0.0
    %4971 = vmatprep.subr.mxu0 0.0
    %4972 = vmatpush1.xpose.msra.mxu0 0.0
    %4973 = vmatprep.subr.mxu0 0.0
    %4974 = vmatpush1.xpose.msra.mxu0 0.0
    %4975 = vmatprep.subr.mxu0 0.0
    %4976 = vmatpush1.xpose.msra.mxu0 0.0
    %4977 = vmatprep.subr.mxu0 0.0
    %4978 = vmatpush1.xpose.msra.mxu0 0.0
    %4979 = vmatprep.subr.mxu0 0.0
    %4980 = vmatpush1.xpose.msra.mxu0 0.0
    %4981 = vmatprep.subr.mxu0 0.0
    %4982 = vmatpush1.xpose.msra.mxu0 0.0
    %4983 = vmatprep.subr.mxu0 0.0
    %4984 = vmatpush1.xpose.msra.mxu0 0.0
    %4985 = vmatprep.subr.mxu0 0.0
    %4986 = vmatpush1.xpose.msra.mxu0 0.0
    %4987 = vmatprep.subr.mxu0 0.0
    %4988 = vmatpush1.xpose.msra.mxu0 0.0
    %4989 = vmatprep.subr.mxu0 0.0
    %4990 = vmatpush1.xpose.msra.mxu0 0.0
    %4991 = vmatprep.subr.mxu0 0.0
    %4992 = vmatpush1.xpose.msra.mxu0 0.0
    %4993 = vmatprep.subr.mxu0 0.0
    %4994 = vmatpush1.xpose.msra.mxu0 0.0
    %4995 = vmatprep.subr.mxu0 0.0
    %4996 = vmatpush1.xpose.msra.mxu0 0.0
    %4997 = vmatprep.mubr.f32.mxu0 0.0
    %4998 = vmatmul.mubr.f32.gmra.mrb[0].mxu0 %v4929
    %v4999 = vpop.f32.mrb[0].mxu0
    %v5000 = vadd.f32 0.0, %v4999
    %v5001 = vpop.f32.mrb[0].mxu0
    %5002 = vdwg.mxu0
    %5003 = vrot.lane.b32.xlu0 %v4672, 120
    %v5004 = vpop.permute.xlu0 %5003
    %5005 = vrot.lane.b32.xlu0 %v4672, 88
    %v5006 = vpop.permute.xlu0 %5005
    %v5007 = vsel %vm1236, %v5004, 0
    %v5009 = vsel %vm1236, %v5006, 0
    %5011 = vmatprep.subr.mxu0 0.0
    %5012 = vmatpush1.xpose.msra.mxu0 %v5009
    %5013 = vmatprep.subr.mxu0 0.0
    %5014 = vmatpush1.xpose.msra.mxu0 0.0
    %5015 = vmatprep.subr.mxu0 0.0
    %5016 = vmatpush1.xpose.msra.mxu0 0.0
    %5017 = vmatprep.subr.mxu0 0.0
    %5018 = vmatpush1.xpose.msra.mxu0 0.0
    %5019 = vmatprep.subr.mxu0 0.0
    %5020 = vmatpush1.xpose.msra.mxu0 0.0
    %5021 = vmatprep.subr.mxu0 0.0
    %5022 = vmatpush1.xpose.msra.mxu0 0.0
    %5023 = vmatprep.subr.mxu0 0.0
    %5024 = vmatpush1.xpose.msra.mxu0 0.0
    %5025 = vmatprep.subr.mxu0 0.0
    %5026 = vmatpush1.xpose.msra.mxu0 0.0
    %5027 = vmatprep.subr.mxu0 0.0
    %5028 = vmatpush1.xpose.msra.mxu0 0.0
    %5029 = vmatprep.subr.mxu0 0.0
    %5030 = vmatpush1.xpose.msra.mxu0 0.0
    %5031 = vmatprep.subr.mxu0 0.0
    %5032 = vmatpush1.xpose.msra.mxu0 0.0
    %5033 = vmatprep.subr.mxu0 0.0
    %5034 = vmatpush1.xpose.msra.mxu0 0.0
    %5035 = vmatprep.subr.mxu0 0.0
    %5036 = vmatpush1.xpose.msra.mxu0 0.0
    %5037 = vmatprep.subr.mxu0 0.0
    %5038 = vmatpush1.xpose.msra.mxu0 0.0
    %5039 = vmatprep.subr.mxu0 0.0
    %5040 = vmatpush1.xpose.msra.mxu0 0.0
    %5041 = vmatprep.subr.mxu0 0.0
    %5042 = vmatpush1.xpose.msra.mxu0 0.0
    %5043 = vmatprep.subr.mxu0 0.0
    %5044 = vmatpush1.xpose.msra.mxu0 0.0
    %5045 = vmatprep.subr.mxu0 0.0
    %5046 = vmatpush1.xpose.msra.mxu0 0.0
    %5047 = vmatprep.subr.mxu0 0.0
    %5048 = vmatpush1.xpose.msra.mxu0 0.0
    %5049 = vmatprep.subr.mxu0 0.0
    %5050 = vmatpush1.xpose.msra.mxu0 0.0
    %5051 = vmatprep.subr.mxu0 0.0
    %5052 = vmatpush1.xpose.msra.mxu0 0.0
    %5053 = vmatprep.subr.mxu0 0.0
    %5054 = vmatpush1.xpose.msra.mxu0 0.0
    %5055 = vmatprep.subr.mxu0 0.0
    %5056 = vmatpush1.xpose.msra.mxu0 0.0
    %5057 = vmatprep.subr.mxu0 0.0
    %5058 = vmatpush1.xpose.msra.mxu0 0.0
    %5059 = vmatprep.subr.mxu0 0.0
    %5060 = vmatpush1.xpose.msra.mxu0 0.0
    %5061 = vmatprep.subr.mxu0 0.0
    %5062 = vmatpush1.xpose.msra.mxu0 0.0
    %5063 = vmatprep.subr.mxu0 0.0
    %5064 = vmatpush1.xpose.msra.mxu0 0.0
    %5065 = vmatprep.subr.mxu0 0.0
    %5066 = vmatpush1.xpose.msra.mxu0 0.0
    %5067 = vmatprep.subr.mxu0 0.0
    %5068 = vmatpush1.xpose.msra.mxu0 0.0
    %5069 = vmatprep.subr.mxu0 0.0
    %5070 = vmatpush1.xpose.msra.mxu0 0.0
    %5071 = vmatprep.subr.mxu0 0.0
    %5072 = vmatpush1.xpose.msra.mxu0 0.0
    %5073 = vmatprep.subr.mxu0 0.0
    %5074 = vmatpush1.xpose.msra.mxu0 0.0
    %5075 = vmatprep.mubr.f32.mxu0 0.0
    %5076 = vmatmul.mubr.f32.gmra.mrb[0].mxu0 %v5007
    %v5077 = vpop.f32.mrb[0].mxu0
    %v5078 = vadd.f32 0.0, %v5077
    %v5079 = vpop.f32.mrb[0].mxu0
    %5080 = vdwg.mxu0
    %v5081 = vsel %vm1426, %v5000, -inf
    %5082 = vmax.xlane.f32.xlu0 %v5081
    %v5083 = vpop.xlane.xlu0 %5082
    %v5084 = vsel %vm1426, %v5078, -inf
    %5085 = vmax.xlane.f32.xlu0 %v5084
    %v5086 = vpop.xlane.xlu0 %5085
    %v5087 = vsub.f32 %v5000, %v5083
    %v5088 = vsub.f32 %v5078, %v5086
    %v5089 = vmul.f32 %v5087, 1.442695
    %v5090 = vpow.pop %v5089
    %v5091 = vmul.f32 %v5088, 1.442695
    %v5092 = vpow.pop %v5091
    %v5093 = vsel %vm1426, %v5090, 0.0
    %5094 = vadd.xlane.f32.xlu0 %v5093
    %v5095 = vpop.xlane.xlu0 %5094
    %v5096 = vsel %vm1426, %v5092, 0.0
    %5097 = vadd.xlane.f32.xlu0 %v5096
    %v5098 = vpop.xlane.xlu0 %5097
    %v5099 = vrcp.pop %v5095
    %v5100 = vrcp.pop %v5098
    %v5101 = vmul.f32 %v5090, %v5099
    %v5102 = vmul.f32 %v5092, %v5100
    %5103 = vrot.lane.b32.xlu0 %v4557, 56
    %v5104 = vpop.permute.xlu0 %5103
    %v5106 = vsel %vm1451, %v5101, 0
    %v5108 = vsel %vm1455, %v5104, 0
    %5110 = vmatprep.subr.mxu0 0.0
    %5111 = vmatpush1.msra.mxu0 %v5108
    %5112 = vmatprep.subr.mxu0 0.0
    %5113 = vmatpush1.msra.mxu0 0.0
    %5114 = vmatprep.subr.mxu0 0.0
    %5115 = vmatpush1.msra.mxu0 0.0
    %5116 = vmatprep.subr.mxu0 0.0
    %5117 = vmatpush1.msra.mxu0 0.0
    %5118 = vmatprep.subr.mxu0 0.0
    %5119 = vmatpush1.msra.mxu0 0.0
    %5120 = vmatprep.subr.mxu0 0.0
    %5121 = vmatpush1.msra.mxu0 0.0
    %5122 = vmatprep.subr.mxu0 0.0
    %5123 = vmatpush1.msra.mxu0 0.0
    %5124 = vmatprep.subr.mxu0 0.0
    %5125 = vmatpush1.msra.mxu0 0.0
    %5126 = vmatprep.subr.mxu0 0.0
    %5127 = vmatpush1.msra.mxu0 0.0
    %5128 = vmatprep.subr.mxu0 0.0
    %5129 = vmatpush1.msra.mxu0 0.0
    %5130 = vmatprep.subr.mxu0 0.0
    %5131 = vmatpush1.msra.mxu0 0.0
    %5132 = vmatprep.subr.mxu0 0.0
    %5133 = vmatpush1.msra.mxu0 0.0
    %5134 = vmatprep.subr.mxu0 0.0
    %5135 = vmatpush1.msra.mxu0 0.0
    %5136 = vmatprep.subr.mxu0 0.0
    %5137 = vmatpush1.msra.mxu0 0.0
    %5138 = vmatprep.subr.mxu0 0.0
    %5139 = vmatpush1.msra.mxu0 0.0
    %5140 = vmatprep.subr.mxu0 0.0
    %5141 = vmatpush1.msra.mxu0 0.0
    %5142 = vmatprep.subr.mxu0 0.0
    %5143 = vmatpush1.msra.mxu0 0.0
    %5144 = vmatprep.subr.mxu0 0.0
    %5145 = vmatpush1.msra.mxu0 0.0
    %5146 = vmatprep.subr.mxu0 0.0
    %5147 = vmatpush1.msra.mxu0 0.0
    %5148 = vmatprep.subr.mxu0 0.0
    %5149 = vmatpush1.msra.mxu0 0.0
    %5150 = vmatprep.subr.mxu0 0.0
    %5151 = vmatpush1.msra.mxu0 0.0
    %5152 = vmatprep.subr.mxu0 0.0
    %5153 = vmatpush1.msra.mxu0 0.0
    %5154 = vmatprep.subr.mxu0 0.0
    %5155 = vmatpush1.msra.mxu0 0.0
    %5156 = vmatprep.subr.mxu0 0.0
    %5157 = vmatpush1.msra.mxu0 0.0
    %5158 = vmatprep.subr.mxu0 0.0
    %5159 = vmatpush1.msra.mxu0 0.0
    %5160 = vmatprep.subr.mxu0 0.0
    %5161 = vmatpush1.msra.mxu0 0.0
    %5162 = vmatprep.subr.mxu0 0.0
    %5163 = vmatpush1.msra.mxu0 0.0
    %5164 = vmatprep.subr.mxu0 0.0
    %5165 = vmatpush1.msra.mxu0 0.0
    %5166 = vmatprep.subr.mxu0 0.0
    %5167 = vmatpush1.msra.mxu0 0.0
    %5168 = vmatprep.subr.mxu0 0.0
    %5169 = vmatpush1.msra.mxu0 0.0
    %5170 = vmatprep.subr.mxu0 0.0
    %5171 = vmatpush1.msra.mxu0 0.0
    %5172 = vmatprep.subr.mxu0 0.0
    %5173 = vmatpush1.msra.mxu0 0.0
    %5174 = vmatprep.mubr.f32.mxu0 0.0
    %5175 = vmatmul.mubr.f32.gmra.mrb[0].mxu0 %v5106
    %v5176 = vpop.f32.mrb[0].mxu0
    %v5177 = vadd.f32 0.0, %v5176
    %v5178 = vpop.f32.mrb[0].mxu0
    %5179 = vdwg.mxu0
    %5180 = vrot.lane.b32.xlu0 %v4672, 56
    %v5181 = vpop.permute.xlu0 %5180
    %v5183 = vsel %vm1451, %v5102, 0
    %v5185 = vsel %vm1455, %v5181, 0
    %5187 = vmatprep.subr.mxu0 0.0
    %5188 = vmatpush1.msra.mxu0 %v5185
    %5189 = vmatprep.subr.mxu0 0.0
    %5190 = vmatpush1.msra.mxu0 0.0
    %5191 = vmatprep.subr.mxu0 0.0
    %5192 = vmatpush1.msra.mxu0 0.0
    %5193 = vmatprep.subr.mxu0 0.0
    %5194 = vmatpush1.msra.mxu0 0.0
    %5195 = vmatprep.subr.mxu0 0.0
    %5196 = vmatpush1.msra.mxu0 0.0
    %5197 = vmatprep.subr.mxu0 0.0
    %5198 = vmatpush1.msra.mxu0 0.0
    %5199 = vmatprep.subr.mxu0 0.0
    %5200 = vmatpush1.msra.mxu0 0.0
    %5201 = vmatprep.subr.mxu0 0.0
    %5202 = vmatpush1.msra.mxu0 0.0
    %5203 = vmatprep.subr.mxu0 0.0
    %5204 = vmatpush1.msra.mxu0 0.0
    %5205 = vmatprep.subr.mxu0 0.0
    %5206 = vmatpush1.msra.mxu0 0.0
    %5207 = vmatprep.subr.mxu0 0.0
    %5208 = vmatpush1.msra.mxu0 0.0
    %5209 = vmatprep.subr.mxu0 0.0
    %5210 = vmatpush1.msra.mxu0 0.0
    %5211 = vmatprep.subr.mxu0 0.0
    %5212 = vmatpush1.msra.mxu0 0.0
    %5213 = vmatprep.subr.mxu0 0.0
    %5214 = vmatpush1.msra.mxu0 0.0
    %5215 = vmatprep.subr.mxu0 0.0
    %5216 = vmatpush1.msra.mxu0 0.0
    %5217 = vmatprep.subr.mxu0 0.0
    %5218 = vmatpush1.msra.mxu0 0.0
    %5219 = vmatprep.subr.mxu0 0.0
    %5220 = vmatpush1.msra.mxu0 0.0
    %5221 = vmatprep.subr.mxu0 0.0
    %5222 = vmatpush1.msra.mxu0 0.0
    %5223 = vmatprep.subr.mxu0 0.0
    %5224 = vmatpush1.msra.mxu0 0.0
    %5225 = vmatprep.subr.mxu0 0.0
    %5226 = vmatpush1.msra.mxu0 0.0
    %5227 = vmatprep.subr.mxu0 0.0
    %5228 = vmatpush1.msra.mxu0 0.0
    %5229 = vmatprep.subr.mxu0 0.0
    %5230 = vmatpush1.msra.mxu0 0.0
    %5231 = vmatprep.subr.mxu0 0.0
    %5232 = vmatpush1.msra.mxu0 0.0
    %5233 = vmatprep.subr.mxu0 0.0
    %5234 = vmatpush1.msra.mxu0 0.0
    %5235 = vmatprep.subr.mxu0 0.0
    %5236 = vmatpush1.msra.mxu0 0.0
    %5237 = vmatprep.subr.mxu0 0.0
    %5238 = vmatpush1.msra.mxu0 0.0
    %5239 = vmatprep.subr.mxu0 0.0
    %5240 = vmatpush1.msra.mxu0 0.0
    %5241 = vmatprep.subr.mxu0 0.0
    %5242 = vmatpush1.msra.mxu0 0.0
    %5243 = vmatprep.subr.mxu0 0.0
    %5244 = vmatpush1.msra.mxu0 0.0
    %5245 = vmatprep.subr.mxu0 0.0
    %5246 = vmatpush1.msra.mxu0 0.0
    %5247 = vmatprep.subr.mxu0 0.0
    %5248 = vmatpush1.msra.mxu0 0.0
    %5249 = vmatprep.subr.mxu0 0.0
    %5250 = vmatpush1.msra.mxu0 0.0
    %5251 = vmatprep.mubr.f32.mxu0 0.0
    %5252 = vmatmul.mubr.f32.gmra.mrb[0].mxu0 %v5183
    %v5253 = vpop.f32.mrb[0].mxu0
    %v5254 = vadd.f32 0.0, %v5253
    %v5255 = vpop.f32.mrb[0].mxu0
    %5256 = vdwg.mxu0
    %5257 = vrot.lane.b32.xlu0 %v4557, 112
    %v5258 = vpop.permute.xlu0 %5257
    %5259 = vrot.lane.b32.xlu0 %v4557, 80
    %v5260 = vpop.permute.xlu0 %5259
    %v5261 = vsel %vm1236, %v5258, 0
    %v5263 = vsel %vm1236, %v5260, 0
    %5265 = vmatprep.subr.mxu0 0.0
    %5266 = vmatpush1.xpose.msra.mxu0 %v5263
    %5267 = vmatprep.subr.mxu0 0.0
    %5268 = vmatpush1.xpose.msra.mxu0 0.0
    %5269 = vmatprep.subr.mxu0 0.0
    %5270 = vmatpush1.xpose.msra.mxu0 0.0
    %5271 = vmatprep.subr.mxu0 0.0
    %5272 = vmatpush1.xpose.msra.mxu0 0.0
    %5273 = vmatprep.subr.mxu0 0.0
    %5274 = vmatpush1.xpose.msra.mxu0 0.0
    %5275 = vmatprep.subr.mxu0 0.0
    %5276 = vmatpush1.xpose.msra.mxu0 0.0
    %5277 = vmatprep.subr.mxu0 0.0
    %5278 = vmatpush1.xpose.msra.mxu0 0.0
    %5279 = vmatprep.subr.mxu0 0.0
    %5280 = vmatpush1.xpose.msra.mxu0 0.0
    %5281 = vmatprep.subr.mxu0 0.0
    %5282 = vmatpush1.xpose.msra.mxu0 0.0
    %5283 = vmatprep.subr.mxu0 0.0
    %5284 = vmatpush1.xpose.msra.mxu0 0.0
    %5285 = vmatprep.subr.mxu0 0.0
    %5286 = vmatpush1.xpose.msra.mxu0 0.0
    %5287 = vmatprep.subr.mxu0 0.0
    %5288 = vmatpush1.xpose.msra.mxu0 0.0
    %5289 = vmatprep.subr.mxu0 0.0
    %5290 = vmatpush1.xpose.msra.mxu0 0.0
    %5291 = vmatprep.subr.mxu0 0.0
    %5292 = vmatpush1.xpose.msra.mxu0 0.0
    %5293 = vmatprep.subr.mxu0 0.0
    %5294 = vmatpush1.xpose.msra.mxu0 0.0
    %5295 = vmatprep.subr.mxu0 0.0
    %5296 = vmatpush1.xpose.msra.mxu0 0.0
    %5297 = vmatprep.subr.mxu0 0.0
    %5298 = vmatpush1.xpose.msra.mxu0 0.0
    %5299 = vmatprep.subr.mxu0 0.0
    %5300 = vmatpush1.xpose.msra.mxu0 0.0
    %5301 = vmatprep.subr.mxu0 0.0
    %5302 = vmatpush1.xpose.msra.mxu0 0.0
    %5303 = vmatprep.subr.mxu0 0.0
    %5304 = vmatpush1.xpose.msra.mxu0 0.0
    %5305 = vmatprep.subr.mxu0 0.0
    %5306 = vmatpush1.xpose.msra.mxu0 0.0
    %5307 = vmatprep.subr.mxu0 0.0
    %5308 = vmatpush1.xpose.msra.mxu0 0.0
    %5309 = vmatprep.subr.mxu0 0.0
    %5310 = vmatpush1.xpose.msra.mxu0 0.0
    %5311 = vmatprep.subr.mxu0 0.0
    %5312 = vmatpush1.xpose.msra.mxu0 0.0
    %5313 = vmatprep.subr.mxu0 0.0
    %5314 = vmatpush1.xpose.msra.mxu0 0.0
    %5315 = vmatprep.subr.mxu0 0.0
    %5316 = vmatpush1.xpose.msra.mxu0 0.0
    %5317 = vmatprep.subr.mxu0 0.0
    %5318 = vmatpush1.xpose.msra.mxu0 0.0
    %5319 = vmatprep.subr.mxu0 0.0
    %5320 = vmatpush1.xpose.msra.mxu0 0.0
    %5321 = vmatprep.subr.mxu0 0.0
    %5322 = vmatpush1.xpose.msra.mxu0 0.0
    %5323 = vmatprep.subr.mxu0 0.0
    %5324 = vmatpush1.xpose.msra.mxu0 0.0
    %5325 = vmatprep.subr.mxu0 0.0
    %5326 = vmatpush1.xpose.msra.mxu0 0.0
    %5327 = vmatprep.subr.mxu0 0.0
    %5328 = vmatpush1.xpose.msra.mxu0 0.0
    %5329 = vmatprep.mubr.f32.mxu0 0.0
    %5330 = vmatmul.mubr.f32.gmra.mrb[0].mxu0 %v5261
    %v5331 = vpop.f32.mrb[0].mxu0
    %v5332 = vadd.f32 0.0, %v5331
    %v5333 = vpop.f32.mrb[0].mxu0
    %5334 = vdwg.mxu0
    %5335 = vrot.lane.b32.xlu0 %v4672, 112
    %v5336 = vpop.permute.xlu0 %5335
    %5337 = vrot.lane.b32.xlu0 %v4672, 80
    %v5338 = vpop.permute.xlu0 %5337
    %v5339 = vsel %vm1236, %v5336, 0
    %v5341 = vsel %vm1236, %v5338, 0
    %5343 = vmatprep.subr.mxu0 0.0
    %5344 = vmatpush1.xpose.msra.mxu0 %v5341
    %5345 = vmatprep.subr.mxu0 0.0
    %5346 = vmatpush1.xpose.msra.mxu0 0.0
    %5347 = vmatprep.subr.mxu0 0.0
    %5348 = vmatpush1.xpose.msra.mxu0 0.0
    %5349 = vmatprep.subr.mxu0 0.0
    %5350 = vmatpush1.xpose.msra.mxu0 0.0
    %5351 = vmatprep.subr.mxu0 0.0
    %5352 = vmatpush1.xpose.msra.mxu0 0.0
    %5353 = vmatprep.subr.mxu0 0.0
    %5354 = vmatpush1.xpose.msra.mxu0 0.0
    %5355 = vmatprep.subr.mxu0 0.0
    %5356 = vmatpush1.xpose.msra.mxu0 0.0
    %5357 = vmatprep.subr.mxu0 0.0
    %5358 = vmatpush1.xpose.msra.mxu0 0.0
    %5359 = vmatprep.subr.mxu0 0.0
    %5360 = vmatpush1.xpose.msra.mxu0 0.0
    %5361 = vmatprep.subr.mxu0 0.0
    %5362 = vmatpush1.xpose.msra.mxu0 0.0
    %5363 = vmatprep.subr.mxu0 0.0
    %5364 = vmatpush1.xpose.msra.mxu0 0.0
    %5365 = vmatprep.subr.mxu0 0.0
    %5366 = vmatpush1.xpose.msra.mxu0 0.0
    %5367 = vmatprep.subr.mxu0 0.0
    %5368 = vmatpush1.xpose.msra.mxu0 0.0
    %5369 = vmatprep.subr.mxu0 0.0
    %5370 = vmatpush1.xpose.msra.mxu0 0.0
    %5371 = vmatprep.subr.mxu0 0.0
    %5372 = vmatpush1.xpose.msra.mxu0 0.0
    %5373 = vmatprep.subr.mxu0 0.0
    %5374 = vmatpush1.xpose.msra.mxu0 0.0
    %5375 = vmatprep.subr.mxu0 0.0
    %5376 = vmatpush1.xpose.msra.mxu0 0.0
    %5377 = vmatprep.subr.mxu0 0.0
    %5378 = vmatpush1.xpose.msra.mxu0 0.0
    %5379 = vmatprep.subr.mxu0 0.0
    %5380 = vmatpush1.xpose.msra.mxu0 0.0
    %5381 = vmatprep.subr.mxu0 0.0
    %5382 = vmatpush1.xpose.msra.mxu0 0.0
    %5383 = vmatprep.subr.mxu0 0.0
    %5384 = vmatpush1.xpose.msra.mxu0 0.0
    %5385 = vmatprep.subr.mxu0 0.0
    %5386 = vmatpush1.xpose.msra.mxu0 0.0
    %5387 = vmatprep.subr.mxu0 0.0
    %5388 = vmatpush1.xpose.msra.mxu0 0.0
    %5389 = vmatprep.subr.mxu0 0.0
    %5390 = vmatpush1.xpose.msra.mxu0 0.0
    %5391 = vmatprep.subr.mxu0 0.0
    %5392 = vmatpush1.xpose.msra.mxu0 0.0
    %5393 = vmatprep.subr.mxu0 0.0
    %5394 = vmatpush1.xpose.msra.mxu0 0.0
    %5395 = vmatprep.subr.mxu0 0.0
    %5396 = vmatpush1.xpose.msra.mxu0 0.0
    %5397 = vmatprep.subr.mxu0 0.0
    %5398 = vmatpush1.xpose.msra.mxu0 0.0
    %5399 = vmatprep.subr.mxu0 0.0
    %5400 = vmatpush1.xpose.msra.mxu0 0.0
    %5401 = vmatprep.subr.mxu0 0.0
    %5402 = vmatpush1.xpose.msra.mxu0 0.0
    %5403 = vmatprep.subr.mxu0 0.0
    %5404 = vmatpush1.xpose.msra.mxu0 0.0
    %5405 = vmatprep.subr.mxu0 0.0
    %5406 = vmatpush1.xpose.msra.mxu0 0.0
    %5407 = vmatprep.mubr.f32.mxu0 0.0
    %5408 = vmatmul.mubr.f32.gmra.mrb[0].mxu0 %v5339
    %v5409 = vpop.f32.mrb[0].mxu0
    %v5410 = vadd.f32 0.0, %v5409
    %v5411 = vpop.f32.mrb[0].mxu0
    %5412 = vdwg.mxu0
    %v5413 = vsel %vm1426, %v5332, -inf
    %5414 = vmax.xlane.f32.xlu0 %v5413
    %v5415 = vpop.xlane.xlu0 %5414
    %v5416 = vsel %vm1426, %v5410, -inf
    %5417 = vmax.xlane.f32.xlu0 %v5416
    %v5418 = vpop.xlane.xlu0 %5417
    %v5419 = vsub.f32 %v5332, %v5415
    %v5420 = vsub.f32 %v5410, %v5418
    %v5421 = vmul.f32 %v5419, 1.442695
    %v5422 = vpow.pop %v5421
    %v5423 = vmul.f32 %v5420, 1.442695
    %v5424 = vpow.pop %v5423
    %v5425 = vsel %vm1426, %v5422, 0.0
    %5426 = vadd.xlane.f32.xlu0 %v5425
    %v5427 = vpop.xlane.xlu0 %5426
    %v5428 = vsel %vm1426, %v5424, 0.0
    %5429 = vadd.xlane.f32.xlu0 %v5428
    %v5430 = vpop.xlane.xlu0 %5429
    %v5431 = vrcp.pop %v5427
    %v5432 = vrcp.pop %v5430
    %v5433 = vmul.f32 %v5422, %v5431
    %v5434 = vmul.f32 %v5424, %v5432
    %5435 = vrot.lane.b32.xlu0 %v4557, 48
    %v5436 = vpop.permute.xlu0 %5435
    %v5438 = vsel %vm1451, %v5433, 0
    %v5440 = vsel %vm1455, %v5436, 0
    %5442 = vmatprep.subr.mxu0 0.0
    %5443 = vmatpush1.msra.mxu0 %v5440
    %5444 = vmatprep.subr.mxu0 0.0
    %5445 = vmatpush1.msra.mxu0 0.0
    %5446 = vmatprep.subr.mxu0 0.0
    %5447 = vmatpush1.msra.mxu0 0.0
    %5448 = vmatprep.subr.mxu0 0.0
    %5449 = vmatpush1.msra.mxu0 0.0
    %5450 = vmatprep.subr.mxu0 0.0
    %5451 = vmatpush1.msra.mxu0 0.0
    %5452 = vmatprep.subr.mxu0 0.0
    %5453 = vmatpush1.msra.mxu0 0.0
    %5454 = vmatprep.subr.mxu0 0.0
    %5455 = vmatpush1.msra.mxu0 0.0
    %5456 = vmatprep.subr.mxu0 0.0
    %5457 = vmatpush1.msra.mxu0 0.0
    %5458 = vmatprep.subr.mxu0 0.0
    %5459 = vmatpush1.msra.mxu0 0.0
    %5460 = vmatprep.subr.mxu0 0.0
    %5461 = vmatpush1.msra.mxu0 0.0
    %5462 = vmatprep.subr.mxu0 0.0
    %5463 = vmatpush1.msra.mxu0 0.0
    %5464 = vmatprep.subr.mxu0 0.0
    %5465 = vmatpush1.msra.mxu0 0.0
    %5466 = vmatprep.subr.mxu0 0.0
    %5467 = vmatpush1.msra.mxu0 0.0
    %5468 = vmatprep.subr.mxu0 0.0
    %5469 = vmatpush1.msra.mxu0 0.0
    %5470 = vmatprep.subr.mxu0 0.0
    %5471 = vmatpush1.msra.mxu0 0.0
    %5472 = vmatprep.subr.mxu0 0.0
    %5473 = vmatpush1.msra.mxu0 0.0
    %5474 = vmatprep.subr.mxu0 0.0
    %5475 = vmatpush1.msra.mxu0 0.0
    %5476 = vmatprep.subr.mxu0 0.0
    %5477 = vmatpush1.msra.mxu0 0.0
    %5478 = vmatprep.subr.mxu0 0.0
    %5479 = vmatpush1.msra.mxu0 0.0
    %5480 = vmatprep.subr.mxu0 0.0
    %5481 = vmatpush1.msra.mxu0 0.0
    %5482 = vmatprep.subr.mxu0 0.0
    %5483 = vmatpush1.msra.mxu0 0.0
    %5484 = vmatprep.subr.mxu0 0.0
    %5485 = vmatpush1.msra.mxu0 0.0
    %5486 = vmatprep.subr.mxu0 0.0
    %5487 = vmatpush1.msra.mxu0 0.0
    %5488 = vmatprep.subr.mxu0 0.0
    %5489 = vmatpush1.msra.mxu0 0.0
    %5490 = vmatprep.subr.mxu0 0.0
    %5491 = vmatpush1.msra.mxu0 0.0
    %5492 = vmatprep.subr.mxu0 0.0
    %5493 = vmatpush1.msra.mxu0 0.0
    %5494 = vmatprep.subr.mxu0 0.0
    %5495 = vmatpush1.msra.mxu0 0.0
    %5496 = vmatprep.subr.mxu0 0.0
    %5497 = vmatpush1.msra.mxu0 0.0
    %5498 = vmatprep.subr.mxu0 0.0
    %5499 = vmatpush1.msra.mxu0 0.0
    %5500 = vmatprep.subr.mxu0 0.0
    %5501 = vmatpush1.msra.mxu0 0.0
    %5502 = vmatprep.subr.mxu0 0.0
    %5503 = vmatpush1.msra.mxu0 0.0
    %5504 = vmatprep.subr.mxu0 0.0
    %5505 = vmatpush1.msra.mxu0 0.0
    %5506 = vmatprep.mubr.f32.mxu0 0.0
    %5507 = vmatmul.mubr.f32.gmra.mrb[0].mxu0 %v5438
    %v5508 = vpop.f32.mrb[0].mxu0
    %v5509 = vadd.f32 0.0, %v5508
    %v5510 = vpop.f32.mrb[0].mxu0
    %5511 = vdwg.mxu0
    %5512 = vrot.lane.b32.xlu0 %v4672, 48
    %v5513 = vpop.permute.xlu0 %5512
    %v5515 = vsel %vm1451, %v5434, 0
    %v5517 = vsel %vm1455, %v5513, 0
    %5519 = vmatprep.subr.mxu0 0.0
    %5520 = vmatpush1.msra.mxu0 %v5517
    %5521 = vmatprep.subr.mxu0 0.0
    %5522 = vmatpush1.msra.mxu0 0.0
    %5523 = vmatprep.subr.mxu0 0.0
    %5524 = vmatpush1.msra.mxu0 0.0
    %5525 = vmatprep.subr.mxu0 0.0
    %5526 = vmatpush1.msra.mxu0 0.0
    %5527 = vmatprep.subr.mxu0 0.0
    %5528 = vmatpush1.msra.mxu0 0.0
    %5529 = vmatprep.subr.mxu0 0.0
    %5530 = vmatpush1.msra.mxu0 0.0
    %5531 = vmatprep.subr.mxu0 0.0
    %5532 = vmatpush1.msra.mxu0 0.0
    %5533 = vmatprep.subr.mxu0 0.0
    %5534 = vmatpush1.msra.mxu0 0.0
    %5535 = vmatprep.subr.mxu0 0.0
    %5536 = vmatpush1.msra.mxu0 0.0
    %5537 = vmatprep.subr.mxu0 0.0
    %5538 = vmatpush1.msra.mxu0 0.0
    %5539 = vmatprep.subr.mxu0 0.0
    %5540 = vmatpush1.msra.mxu0 0.0
    %5541 = vmatprep.subr.mxu0 0.0
    %5542 = vmatpush1.msra.mxu0 0.0
    %5543 = vmatprep.subr.mxu0 0.0
    %5544 = vmatpush1.msra.mxu0 0.0
    %5545 = vmatprep.subr.mxu0 0.0
    %5546 = vmatpush1.msra.mxu0 0.0
    %5547 = vmatprep.subr.mxu0 0.0
    %5548 = vmatpush1.msra.mxu0 0.0
    %5549 = vmatprep.subr.mxu0 0.0
    %5550 = vmatpush1.msra.mxu0 0.0
    %5551 = vmatprep.subr.mxu0 0.0
    %5552 = vmatpush1.msra.mxu0 0.0
    %5553 = vmatprep.subr.mxu0 0.0
    %5554 = vmatpush1.msra.mxu0 0.0
    %5555 = vmatprep.subr.mxu0 0.0
    %5556 = vmatpush1.msra.mxu0 0.0
    %5557 = vmatprep.subr.mxu0 0.0
    %5558 = vmatpush1.msra.mxu0 0.0
    %5559 = vmatprep.subr.mxu0 0.0
    %5560 = vmatpush1.msra.mxu0 0.0
    %5561 = vmatprep.subr.mxu0 0.0
    %5562 = vmatpush1.msra.mxu0 0.0
    %5563 = vmatprep.subr.mxu0 0.0
    %5564 = vmatpush1.msra.mxu0 0.0
    %5565 = vmatprep.subr.mxu0 0.0
    %5566 = vmatpush1.msra.mxu0 0.0
    %5567 = vmatprep.subr.mxu0 0.0
    %5568 = vmatpush1.msra.mxu0 0.0
    %5569 = vmatprep.subr.mxu0 0.0
    %5570 = vmatpush1.msra.mxu0 0.0
    %5571 = vmatprep.subr.mxu0 0.0
    %5572 = vmatpush1.msra.mxu0 0.0
    %5573 = vmatprep.subr.mxu0 0.0
    %5574 = vmatpush1.msra.mxu0 0.0
    %5575 = vmatprep.subr.mxu0 0.0
    %5576 = vmatpush1.msra.mxu0 0.0
    %5577 = vmatprep.subr.mxu0 0.0
    %5578 = vmatpush1.msra.mxu0 0.0
    %5579 = vmatprep.subr.mxu0 0.0
    %5580 = vmatpush1.msra.mxu0 0.0
    %5581 = vmatprep.subr.mxu0 0.0
    %5582 = vmatpush1.msra.mxu0 0.0
    %5583 = vmatprep.mubr.f32.mxu0 0.0
    %5584 = vmatmul.mubr.f32.gmra.mrb[0].mxu0 %v5515
    %v5585 = vpop.f32.mrb[0].mxu0
    %v5586 = vadd.f32 0.0, %v5585
    %v5587 = vpop.f32.mrb[0].mxu0
    %5588 = vdwg.mxu0
    %5589 = vrot.lane.b32.xlu0 %v4557, 104
    %v5590 = vpop.permute.xlu0 %5589
    %5591 = vrot.lane.b32.xlu0 %v4557, 72
    %v5592 = vpop.permute.xlu0 %5591
    %v5593 = vsel %vm1236, %v5590, 0
    %v5595 = vsel %vm1236, %v5592, 0
    %5597 = vmatprep.subr.mxu0 0.0
    %5598 = vmatpush1.xpose.msra.mxu0 %v5595
    %5599 = vmatprep.subr.mxu0 0.0
    %5600 = vmatpush1.xpose.msra.mxu0 0.0
    %5601 = vmatprep.subr.mxu0 0.0
    %5602 = vmatpush1.xpose.msra.mxu0 0.0
    %5603 = vmatprep.subr.mxu0 0.0
    %5604 = vmatpush1.xpose.msra.mxu0 0.0
    %5605 = vmatprep.subr.mxu0 0.0
    %5606 = vmatpush1.xpose.msra.mxu0 0.0
    %5607 = vmatprep.subr.mxu0 0.0
    %5608 = vmatpush1.xpose.msra.mxu0 0.0
    %5609 = vmatprep.subr.mxu0 0.0
    %5610 = vmatpush1.xpose.msra.mxu0 0.0
    %5611 = vmatprep.subr.mxu0 0.0
    %5612 = vmatpush1.xpose.msra.mxu0 0.0
    %5613 = vmatprep.subr.mxu0 0.0
    %5614 = vmatpush1.xpose.msra.mxu0 0.0
    %5615 = vmatprep.subr.mxu0 0.0
    %5616 = vmatpush1.xpose.msra.mxu0 0.0
    %5617 = vmatprep.subr.mxu0 0.0
    %5618 = vmatpush1.xpose.msra.mxu0 0.0
    %5619 = vmatprep.subr.mxu0 0.0
    %5620 = vmatpush1.xpose.msra.mxu0 0.0
    %5621 = vmatprep.subr.mxu0 0.0
    %5622 = vmatpush1.xpose.msra.mxu0 0.0
    %5623 = vmatprep.subr.mxu0 0.0
    %5624 = vmatpush1.xpose.msra.mxu0 0.0
    %5625 = vmatprep.subr.mxu0 0.0
    %5626 = vmatpush1.xpose.msra.mxu0 0.0
    %5627 = vmatprep.subr.mxu0 0.0
    %5628 = vmatpush1.xpose.msra.mxu0 0.0
    %5629 = vmatprep.subr.mxu0 0.0
    %5630 = vmatpush1.xpose.msra.mxu0 0.0
    %5631 = vmatprep.subr.mxu0 0.0
    %5632 = vmatpush1.xpose.msra.mxu0 0.0
    %5633 = vmatprep.subr.mxu0 0.0
    %5634 = vmatpush1.xpose.msra.mxu0 0.0
    %5635 = vmatprep.subr.mxu0 0.0
    %5636 = vmatpush1.xpose.msra.mxu0 0.0
    %5637 = vmatprep.subr.mxu0 0.0
    %5638 = vmatpush1.xpose.msra.mxu0 0.0
    %5639 = vmatprep.subr.mxu0 0.0
    %5640 = vmatpush1.xpose.msra.mxu0 0.0
    %5641 = vmatprep.subr.mxu0 0.0
    %5642 = vmatpush1.xpose.msra.mxu0 0.0
    %5643 = vmatprep.subr.mxu0 0.0
    %5644 = vmatpush1.xpose.msra.mxu0 0.0
    %5645 = vmatprep.subr.mxu0 0.0
    %5646 = vmatpush1.xpose.msra.mxu0 0.0
    %5647 = vmatprep.subr.mxu0 0.0
    %5648 = vmatpush1.xpose.msra.mxu0 0.0
    %5649 = vmatprep.subr.mxu0 0.0
    %5650 = vmatpush1.xpose.msra.mxu0 0.0
    %5651 = vmatprep.subr.mxu0 0.0
    %5652 = vmatpush1.xpose.msra.mxu0 0.0
    %5653 = vmatprep.subr.mxu0 0.0
    %5654 = vmatpush1.xpose.msra.mxu0 0.0
    %5655 = vmatprep.subr.mxu0 0.0
    %5656 = vmatpush1.xpose.msra.mxu0 0.0
    %5657 = vmatprep.subr.mxu0 0.0
    %5658 = vmatpush1.xpose.msra.mxu0 0.0
    %5659 = vmatprep.subr.mxu0 0.0
    %5660 = vmatpush1.xpose.msra.mxu0 0.0
    %5661 = vmatprep.mubr.f32.mxu0 0.0
    %5662 = vmatmul.mubr.f32.gmra.mrb[0].mxu0 %v5593
    %v5663 = vpop.f32.mrb[0].mxu0
    %v5664 = vadd.f32 0.0, %v5663
    %v5665 = vpop.f32.mrb[0].mxu0
    %5666 = vdwg.mxu0
    %5667 = vrot.lane.b32.xlu0 %v4672, 104
    %v5668 = vpop.permute.xlu0 %5667
    %5669 = vrot.lane.b32.xlu0 %v4672, 72
    %v5670 = vpop.permute.xlu0 %5669
    %v5671 = vsel %vm1236, %v5668, 0
    %v5673 = vsel %vm1236, %v5670, 0
    %5675 = vmatprep.subr.mxu0 0.0
    %5676 = vmatpush1.xpose.msra.mxu0 %v5673
    %5677 = vmatprep.subr.mxu0 0.0
    %5678 = vmatpush1.xpose.msra.mxu0 0.0
    %5679 = vmatprep.subr.mxu0 0.0
    %5680 = vmatpush1.xpose.msra.mxu0 0.0
    %5681 = vmatprep.subr.mxu0 0.0
    %5682 = vmatpush1.xpose.msra.mxu0 0.0
    %5683 = vmatprep.subr.mxu0 0.0
    %5684 = vmatpush1.xpose.msra.mxu0 0.0
    %5685 = vmatprep.subr.mxu0 0.0
    %5686 = vmatpush1.xpose.msra.mxu0 0.0
    %5687 = vmatprep.subr.mxu0 0.0
    %5688 = vmatpush1.xpose.msra.mxu0 0.0
    %5689 = vmatprep.subr.mxu0 0.0
    %5690 = vmatpush1.xpose.msra.mxu0 0.0
    %5691 = vmatprep.subr.mxu0 0.0
    %5692 = vmatpush1.xpose.msra.mxu0 0.0
    %5693 = vmatprep.subr.mxu0 0.0
    %5694 = vmatpush1.xpose.msra.mxu0 0.0
    %5695 = vmatprep.subr.mxu0 0.0
    %5696 = vmatpush1.xpose.msra.mxu0 0.0
    %5697 = vmatprep.subr.mxu0 0.0
    %5698 = vmatpush1.xpose.msra.mxu0 0.0
    %5699 = vmatprep.subr.mxu0 0.0
    %5700 = vmatpush1.xpose.msra.mxu0 0.0
    %5701 = vmatprep.subr.mxu0 0.0
    %5702 = vmatpush1.xpose.msra.mxu0 0.0
    %5703 = vmatprep.subr.mxu0 0.0
    %5704 = vmatpush1.xpose.msra.mxu0 0.0
    %5705 = vmatprep.subr.mxu0 0.0
    %5706 = vmatpush1.xpose.msra.mxu0 0.0
    %5707 = vmatprep.subr.mxu0 0.0
    %5708 = vmatpush1.xpose.msra.mxu0 0.0
    %5709 = vmatprep.subr.mxu0 0.0
    %5710 = vmatpush1.xpose.msra.mxu0 0.0
    %5711 = vmatprep.subr.mxu0 0.0
    %5712 = vmatpush1.xpose.msra.mxu0 0.0
    %5713 = vmatprep.subr.mxu0 0.0
    %5714 = vmatpush1.xpose.msra.mxu0 0.0
    %5715 = vmatprep.subr.mxu0 0.0
    %5716 = vmatpush1.xpose.msra.mxu0 0.0
    %5717 = vmatprep.subr.mxu0 0.0
    %5718 = vmatpush1.xpose.msra.mxu0 0.0
    %5719 = vmatprep.subr.mxu0 0.0
    %5720 = vmatpush1.xpose.msra.mxu0 0.0
    %5721 = vmatprep.subr.mxu0 0.0
    %5722 = vmatpush1.xpose.msra.mxu0 0.0
    %5723 = vmatprep.subr.mxu0 0.0
    %5724 = vmatpush1.xpose.msra.mxu0 0.0
    %5725 = vmatprep.subr.mxu0 0.0
    %5726 = vmatpush1.xpose.msra.mxu0 0.0
    %5727 = vmatprep.subr.mxu0 0.0
    %5728 = vmatpush1.xpose.msra.mxu0 0.0
    %5729 = vmatprep.subr.mxu0 0.0
    %5730 = vmatpush1.xpose.msra.mxu0 0.0
    %5731 = vmatprep.subr.mxu0 0.0
    %5732 = vmatpush1.xpose.msra.mxu0 0.0
    %5733 = vmatprep.subr.mxu0 0.0
    %5734 = vmatpush1.xpose.msra.mxu0 0.0
    %5735 = vmatprep.subr.mxu0 0.0
    %5736 = vmatpush1.xpose.msra.mxu0 0.0
    %5737 = vmatprep.subr.mxu0 0.0
    %5738 = vmatpush1.xpose.msra.mxu0 0.0
    %5739 = vmatprep.mubr.f32.mxu0 0.0
    %5740 = vmatmul.mubr.f32.gmra.mrb[0].mxu0 %v5671
    %v5741 = vpop.f32.mrb[0].mxu0
    %v5742 = vadd.f32 0.0, %v5741
    %v5743 = vpop.f32.mrb[0].mxu0
    %5744 = vdwg.mxu0
    %v5745 = vsel %vm1426, %v5664, -inf
    %5746 = vmax.xlane.f32.xlu0 %v5745
    %v5747 = vpop.xlane.xlu0 %5746
    %v5748 = vsel %vm1426, %v5742, -inf
    %5749 = vmax.xlane.f32.xlu0 %v5748
    %v5750 = vpop.xlane.xlu0 %5749
    %v5751 = vsub.f32 %v5664, %v5747
    %v5752 = vsub.f32 %v5742, %v5750
    %v5753 = vmul.f32 %v5751, 1.442695
    %v5754 = vpow.pop %v5753
    %v5755 = vmul.f32 %v5752, 1.442695
    %v5756 = vpow.pop %v5755
    %v5757 = vsel %vm1426, %v5754, 0.0
    %5758 = vadd.xlane.f32.xlu0 %v5757
    %v5759 = vpop.xlane.xlu0 %5758
    %v5760 = vsel %vm1426, %v5756, 0.0
    %5761 = vadd.xlane.f32.xlu0 %v5760
    %v5762 = vpop.xlane.xlu0 %5761
    %v5763 = vrcp.pop %v5759
    %v5764 = vrcp.pop %v5762
    %v5765 = vmul.f32 %v5754, %v5763
    %v5766 = vmul.f32 %v5756, %v5764
    %5767 = vrot.lane.b32.xlu0 %v4557, 40
    %v5768 = vpop.permute.xlu0 %5767
    %v5770 = vsel %vm1451, %v5765, 0
    %v5772 = vsel %vm1455, %v5768, 0
    %5774 = vmatprep.subr.mxu0 0.0
    %5775 = vmatpush1.msra.mxu0 %v5772
    %5776 = vmatprep.subr.mxu0 0.0
    %5777 = vmatpush1.msra.mxu0 0.0
    %5778 = vmatprep.subr.mxu0 0.0
    %5779 = vmatpush1.msra.mxu0 0.0
    %5780 = vmatprep.subr.mxu0 0.0
    %5781 = vmatpush1.msra.mxu0 0.0
    %5782 = vmatprep.subr.mxu0 0.0
    %5783 = vmatpush1.msra.mxu0 0.0
    %5784 = vmatprep.subr.mxu0 0.0
    %5785 = vmatpush1.msra.mxu0 0.0
    %5786 = vmatprep.subr.mxu0 0.0
    %5787 = vmatpush1.msra.mxu0 0.0
    %5788 = vmatprep.subr.mxu0 0.0
    %5789 = vmatpush1.msra.mxu0 0.0
    %5790 = vmatprep.subr.mxu0 0.0
    %5791 = vmatpush1.msra.mxu0 0.0
    %5792 = vmatprep.subr.mxu0 0.0
    %5793 = vmatpush1.msra.mxu0 0.0
    %5794 = vmatprep.subr.mxu0 0.0
    %5795 = vmatpush1.msra.mxu0 0.0
    %5796 = vmatprep.subr.mxu0 0.0
    %5797 = vmatpush1.msra.mxu0 0.0
    %5798 = vmatprep.subr.mxu0 0.0
    %5799 = vmatpush1.msra.mxu0 0.0
    %5800 = vmatprep.subr.mxu0 0.0
    %5801 = vmatpush1.msra.mxu0 0.0
    %5802 = vmatprep.subr.mxu0 0.0
    %5803 = vmatpush1.msra.mxu0 0.0
    %5804 = vmatprep.subr.mxu0 0.0
    %5805 = vmatpush1.msra.mxu0 0.0
    %5806 = vmatprep.subr.mxu0 0.0
    %5807 = vmatpush1.msra.mxu0 0.0
    %5808 = vmatprep.subr.mxu0 0.0
    %5809 = vmatpush1.msra.mxu0 0.0
    %5810 = vmatprep.subr.mxu0 0.0
    %5811 = vmatpush1.msra.mxu0 0.0
    %5812 = vmatprep.subr.mxu0 0.0
    %5813 = vmatpush1.msra.mxu0 0.0
    %5814 = vmatprep.subr.mxu0 0.0
    %5815 = vmatpush1.msra.mxu0 0.0
    %5816 = vmatprep.subr.mxu0 0.0
    %5817 = vmatpush1.msra.mxu0 0.0
    %5818 = vmatprep.subr.mxu0 0.0
    %5819 = vmatpush1.msra.mxu0 0.0
    %5820 = vmatprep.subr.mxu0 0.0
    %5821 = vmatpush1.msra.mxu0 0.0
    %5822 = vmatprep.subr.mxu0 0.0
    %5823 = vmatpush1.msra.mxu0 0.0
    %5824 = vmatprep.subr.mxu0 0.0
    %5825 = vmatpush1.msra.mxu0 0.0
    %5826 = vmatprep.subr.mxu0 0.0
    %5827 = vmatpush1.msra.mxu0 0.0
    %5828 = vmatprep.subr.mxu0 0.0
    %5829 = vmatpush1.msra.mxu0 0.0
    %5830 = vmatprep.subr.mxu0 0.0
    %5831 = vmatpush1.msra.mxu0 0.0
    %5832 = vmatprep.subr.mxu0 0.0
    %5833 = vmatpush1.msra.mxu0 0.0
    %5834 = vmatprep.subr.mxu0 0.0
    %5835 = vmatpush1.msra.mxu0 0.0
    %5836 = vmatprep.subr.mxu0 0.0
    %5837 = vmatpush1.msra.mxu0 0.0
    %5838 = vmatprep.mubr.f32.mxu0 0.0
    %5839 = vmatmul.mubr.f32.gmra.mrb[0].mxu0 %v5770
    %v5840 = vpop.f32.mrb[0].mxu0
    %v5841 = vadd.f32 0.0, %v5840
    %v5842 = vpop.f32.mrb[0].mxu0
    %5843 = vdwg.mxu0
    %5844 = vrot.lane.b32.xlu0 %v4672, 40
    %v5845 = vpop.permute.xlu0 %5844
    %v5847 = vsel %vm1451, %v5766, 0
    %v5849 = vsel %vm1455, %v5845, 0
    %5851 = vmatprep.subr.mxu0 0.0
    %5852 = vmatpush1.msra.mxu0 %v5849
    %5853 = vmatprep.subr.mxu0 0.0
    %5854 = vmatpush1.msra.mxu0 0.0
    %5855 = vmatprep.subr.mxu0 0.0
    %5856 = vmatpush1.msra.mxu0 0.0
    %5857 = vmatprep.subr.mxu0 0.0
    %5858 = vmatpush1.msra.mxu0 0.0
    %5859 = vmatprep.subr.mxu0 0.0
    %5860 = vmatpush1.msra.mxu0 0.0
    %5861 = vmatprep.subr.mxu0 0.0
    %5862 = vmatpush1.msra.mxu0 0.0
    %5863 = vmatprep.subr.mxu0 0.0
    %5864 = vmatpush1.msra.mxu0 0.0
    %5865 = vmatprep.subr.mxu0 0.0
    %5866 = vmatpush1.msra.mxu0 0.0
    %5867 = vmatprep.subr.mxu0 0.0
    %5868 = vmatpush1.msra.mxu0 0.0
    %5869 = vmatprep.subr.mxu0 0.0
    %5870 = vmatpush1.msra.mxu0 0.0
    %5871 = vmatprep.subr.mxu0 0.0
    %5872 = vmatpush1.msra.mxu0 0.0
    %5873 = vmatprep.subr.mxu0 0.0
    %5874 = vmatpush1.msra.mxu0 0.0
    %5875 = vmatprep.subr.mxu0 0.0
    %5876 = vmatpush1.msra.mxu0 0.0
    %5877 = vmatprep.subr.mxu0 0.0
    %5878 = vmatpush1.msra.mxu0 0.0
    %5879 = vmatprep.subr.mxu0 0.0
    %5880 = vmatpush1.msra.mxu0 0.0
    %5881 = vmatprep.subr.mxu0 0.0
    %5882 = vmatpush1.msra.mxu0 0.0
    %5883 = vmatprep.subr.mxu0 0.0
    %5884 = vmatpush1.msra.mxu0 0.0
    %5885 = vmatprep.subr.mxu0 0.0
    %5886 = vmatpush1.msra.mxu0 0.0
    %5887 = vmatprep.subr.mxu0 0.0
    %5888 = vmatpush1.msra.mxu0 0.0
    %5889 = vmatprep.subr.mxu0 0.0
    %5890 = vmatpush1.msra.mxu0 0.0
    %5891 = vmatprep.subr.mxu0 0.0
    %5892 = vmatpush1.msra.mxu0 0.0
    %5893 = vmatprep.subr.mxu0 0.0
    %5894 = vmatpush1.msra.mxu0 0.0
    %5895 = vmatprep.subr.mxu0 0.0
    %5896 = vmatpush1.msra.mxu0 0.0
    %5897 = vmatprep.subr.mxu0 0.0
    %5898 = vmatpush1.msra.mxu0 0.0
    %5899 = vmatprep.subr.mxu0 0.0
    %5900 = vmatpush1.msra.mxu0 0.0
    %5901 = vmatprep.subr.mxu0 0.0
    %5902 = vmatpush1.msra.mxu0 0.0
    %5903 = vmatprep.subr.mxu0 0.0
    %5904 = vmatpush1.msra.mxu0 0.0
    %5905 = vmatprep.subr.mxu0 0.0
    %5906 = vmatpush1.msra.mxu0 0.0
    %5907 = vmatprep.subr.mxu0 0.0
    %5908 = vmatpush1.msra.mxu0 0.0
    %5909 = vmatprep.subr.mxu0 0.0
    %5910 = vmatpush1.msra.mxu0 0.0
    %5911 = vmatprep.subr.mxu0 0.0
    %5912 = vmatpush1.msra.mxu0 0.0
    %5913 = vmatprep.subr.mxu0 0.0
    %5914 = vmatpush1.msra.mxu0 0.0
    %5915 = vmatprep.mubr.f32.mxu0 0.0
    %5916 = vmatmul.mubr.f32.gmra.mrb[0].mxu0 %v5847
    %v5917 = vpop.f32.mrb[0].mxu0
    %v5918 = vadd.f32 0.0, %v5917
    %v5919 = vpop.f32.mrb[0].mxu0
    %5920 = vdwg.mxu0
    %5923 = vrot.lane.b32.xlu0 %v5177, 8
    %v5924 = vpop.permute.xlu0 %5923
    %5925 = vrot.lane.b32.xlu0 %v5254, 8
    %v5926 = vpop.permute.xlu0 %5925
    %5931 = vrot.lane.b32.xlu0 %v5509, 16
    %v5932 = vpop.permute.xlu0 %5931
    %5933 = vrot.lane.b32.xlu0 %v5586, 16
    %v5934 = vpop.permute.xlu0 %5933
    %5939 = vrot.lane.b32.xlu0 %v5841, 24
    %v5940 = vpop.permute.xlu0 %5939
    %5941 = vrot.lane.b32.xlu0 %v5918, 24
    %v5942 = vpop.permute.xlu0 %5941
    %v5945 = vsel %vm1236, %v4845, %v5924
    %v5946 = vsel %vm1236, %v4922, %v5926
    %v5947 = vsel %vm2627, %v5945, %v5932
    %v5948 = vsel %vm2627, %v5946, %v5934
    %v5949 = vsel %vm2630, %v5947, %v5940
    %v5950 = vsel %vm2630, %v5948, %v5942
    %v5953 = vcombine.high %v5949, %v5949
    %v5955 = vunpack.c.l.s4 1966171168
    %v5956 = vunpack.c.0.s8 %v5955
    %v5957 = vlaneseq
    %v5958 = vshrl.u32 %v5957, 7
    %v5959 = vsub.s32 %v5956, %v5958
    %v5960 = vrot.slane %v5949, %v5959
    %v5962 = vunpack.c.l.s4 1966171168
    %v5963 = vunpack.c.0.s8 %v5962
    %v5964 = vlaneseq
    %v5965 = vshrl.u32 %v5964, 7
    %v5966 = vsub.s32 %v5963, %v5965
    %v5967 = vrot.slane %v5953, %v5966
    %v5968 = vcombine.high %v5960, %v5960
    %v5970 = vunpack.c.l.s4 1966171168
    %v5971 = vunpack.c.0.s8 %v5970
    %v5972 = vlaneseq
    %v5973 = vshrl.u32 %v5972, 7
    %v5974 = vsub.s32 %v5971, %v5973
    %v5975 = vrot.slane %v5960, %v5974
    %v5977 = vunpack.c.l.s4 1966171168
    %v5978 = vunpack.c.0.s8 %v5977
    %v5979 = vlaneseq
    %v5980 = vshrl.u32 %v5979, 7
    %v5981 = vsub.s32 %v5978, %v5980
    %v5982 = vrot.slane %v5967, %v5981
    %v5984 = vunpack.c.l.s4 1966171168
    %v5985 = vunpack.c.0.s8 %v5984
    %v5986 = vlaneseq
    %v5987 = vshrl.u32 %v5986, 7
    %v5988 = vsub.s32 %v5985, %v5987
    %v5989 = vrot.slane %v5968, %v5988
    %v5990 = vcombine.high %v5975, %v5975
    %v5991 = vcombine.high %v5989, %v5989
    %v5992 = vcombine.high %v5950, %v5950
    %v5994 = vunpack.c.l.s4 1966171168
    %v5995 = vunpack.c.0.s8 %v5994
    %v5996 = vlaneseq
    %v5997 = vshrl.u32 %v5996, 7
    %v5998 = vsub.s32 %v5995, %v5997
    %v5999 = vrot.slane %v5950, %v5998
    %v6001 = vunpack.c.l.s4 1966171168
    %v6002 = vunpack.c.0.s8 %v6001
    %v6003 = vlaneseq
    %v6004 = vshrl.u32 %v6003, 7
    %v6005 = vsub.s32 %v6002, %v6004
    %v6006 = vrot.slane %v5992, %v6005
    %v6007 = vcombine.high %v5999, %v5999
    %v6009 = vunpack.c.l.s4 1966171168
    %v6010 = vunpack.c.0.s8 %v6009
    %v6011 = vlaneseq
    %v6012 = vshrl.u32 %v6011, 7
    %v6013 = vsub.s32 %v6010, %v6012
    %v6014 = vrot.slane %v5999, %v6013
    %v6016 = vunpack.c.l.s4 1966171168
    %v6017 = vunpack.c.0.s8 %v6016
    %v6018 = vlaneseq
    %v6019 = vshrl.u32 %v6018, 7
    %v6020 = vsub.s32 %v6017, %v6019
    %v6021 = vrot.slane %v6006, %v6020
    %v6023 = vunpack.c.l.s4 1966171168
    %v6024 = vunpack.c.0.s8 %v6023
    %v6025 = vlaneseq
    %v6026 = vshrl.u32 %v6025, 7
    %v6027 = vsub.s32 %v6024, %v6026
    %v6028 = vrot.slane %v6007, %v6027
    %v6029 = vcombine.high %v6014, %v6014
    %v6030 = vcombine.high %v6028, %v6028
    %s6031 = scalar_lea.vmem %s3, 32
    %v6032 = vld [vmem:[%s6031] sm:$0xff]
    %v6033 = vld [vmem:[%s6031 + $0x8] sm:$0xff]
    %v6034 = vld [vmem:[%s6031 + $0x10] sm:$0xff]
    %v6035 = vld [vmem:[%s6031 + $0x18] sm:$0xff]
    %v6036 = vcombine.low %v5975, %v5989
    %v6037 = vcombine.low %v5990, %v5991
    %v6038 = vcombine.low %v5982, %v6014
    %v6039 = vcombine.low %v6028, %v6029
    %v6041 = vunpack.c.l.s4 1966171168
    %v6042 = vunpack.c.0.s8 %v6041
    %v6043 = vlaneseq
    %v6044 = vshrl.u32 %v6043, 7
    %v6045 = vsub.s32 %v6042, %v6044
    %v6046 = vrot.slane %v6036, %v6045
    %v6048 = vunpack.c.l.s4 1966171168
    %v6049 = vunpack.c.0.s8 %v6048
    %v6050 = vlaneseq
    %v6051 = vshrl.u32 %v6050, 7
    %v6052 = vsub.s32 %v6049, %v6051
    %v6053 = vrot.slane %v6037, %v6052
    %v6055 = vunpack.c.l.s4 1966171168
    %v6056 = vunpack.c.0.s8 %v6055
    %v6057 = vlaneseq
    %v6058 = vshrl.u32 %v6057, 7
    %v6059 = vsub.s32 %v6056, %v6058
    %v6060 = vrot.slane %v6038, %v6059
    %v6062 = vunpack.c.l.s4 1966171168
    %v6063 = vunpack.c.0.s8 %v6062
    %v6064 = vlaneseq
    %v6065 = vshrl.u32 %v6064, 7
    %v6066 = vsub.s32 %v6063, %v6065
    %v6067 = vrot.slane %v6039, %v6066
    %v6068 = vcombine.low %v6046, %v6053
    %v6069 = vcombine.low %v6060, %v6067
    %v6071 = vunpack.c.l.s4 1966171168
    %v6072 = vunpack.c.0.s8 %v6071
    %v6073 = vlaneseq
    %v6074 = vshrl.u32 %v6073, 7
    %v6075 = vsub.s32 %v6072, %v6074
    %v6076 = vrot.slane %v6068, %v6075
    %v6078 = vunpack.c.l.s4 1966171168
    %v6079 = vunpack.c.0.s8 %v6078
    %v6080 = vlaneseq
    %v6081 = vshrl.u32 %v6080, 7
    %v6082 = vsub.s32 %v6079, %v6081
    %v6083 = vrot.slane %v6069, %v6082
    %v6084 = vcombine.low %v6076, %v6083
    %v6085 = vcombine.low %v6030, %v6021
    %v6087 = vunpack.c.l.s4 1966171168
    %v6088 = vunpack.c.0.s8 %v6087
    %v6089 = vlaneseq
    %v6090 = vshrl.u32 %v6089, 7
    %v6091 = vsub.s32 %v6088, %v6090
    %v6092 = vrot.slane %v6085, %v6091
    %v6094 = vunpack.c.l.s4 1966171168
    %v6095 = vunpack.c.0.s8 %v6094
    %v6096 = vlaneseq
    %v6097 = vshrl.u32 %v6096, 7
    %v6098 = vsub.s32 %v6095, %v6097
    %v6099 = vrot.slane %v6092, %v6098
    %v6100 = vsel %vm584, %v6084, 0
    %v6102 = vsel %vm584, %v6099, 0
    %6104 = vmatprep.subr.mxu0 0.0
    %6105 = vmatpush1.msra.mxu0 %v6032
    %6106 = vmatprep.subr.mxu0 0.0
    %6107 = vmatpush1.msra.mxu0 %v6033
    %6108 = vmatprep.subr.mxu0 0.0
    %6109 = vmatpush1.msra.mxu0 %v6034
    %6110 = vmatprep.subr.mxu0 0.0
    %6111 = vmatpush1.msra.mxu0 %v6035
    %6112 = vmatprep.subr.mxu0 0.0
    %6113 = vmatpush1.msra.mxu0 0.0
    %6114 = vmatprep.subr.mxu0 0.0
    %6115 = vmatpush1.msra.mxu0 0.0
    %6116 = vmatprep.subr.mxu0 0.0
    %6117 = vmatpush1.msra.mxu0 0.0
    %6118 = vmatprep.subr.mxu0 0.0
    %6119 = vmatpush1.msra.mxu0 0.0
    %6120 = vmatprep.subr.mxu0 0.0
    %6121 = vmatpush1.msra.mxu0 0.0
    %6122 = vmatprep.subr.mxu0 0.0
    %6123 = vmatpush1.msra.mxu0 0.0
    %6124 = vmatprep.subr.mxu0 0.0
    %6125 = vmatpush1.msra.mxu0 0.0
    %6126 = vmatprep.subr.mxu0 0.0
    %6127 = vmatpush1.msra.mxu0 0.0
    %6128 = vmatprep.subr.mxu0 0.0
    %6129 = vmatpush1.msra.mxu0 0.0
    %6130 = vmatprep.subr.mxu0 0.0
    %6131 = vmatpush1.msra.mxu0 0.0
    %6132 = vmatprep.subr.mxu0 0.0
    %6133 = vmatpush1.msra.mxu0 0.0
    %6134 = vmatprep.subr.mxu0 0.0
    %6135 = vmatpush1.msra.mxu0 0.0
    %6136 = vmatprep.subr.mxu0 0.0
    %6137 = vmatpush1.msra.mxu0 0.0
    %6138 = vmatprep.subr.mxu0 0.0
    %6139 = vmatpush1.msra.mxu0 0.0
    %6140 = vmatprep.subr.mxu0 0.0
    %6141 = vmatpush1.msra.mxu0 0.0
    %6142 = vmatprep.subr.mxu0 0.0
    %6143 = vmatpush1.msra.mxu0 0.0
    %6144 = vmatprep.subr.mxu0 0.0
    %6145 = vmatpush1.msra.mxu0 0.0
    %6146 = vmatprep.subr.mxu0 0.0
    %6147 = vmatpush1.msra.mxu0 0.0
    %6148 = vmatprep.subr.mxu0 0.0
    %6149 = vmatpush1.msra.mxu0 0.0
    %6150 = vmatprep.subr.mxu0 0.0
    %6151 = vmatpush1.msra.mxu0 0.0
    %6152 = vmatprep.subr.mxu0 0.0
    %6153 = vmatpush1.msra.mxu0 0.0
    %6154 = vmatprep.subr.mxu0 0.0
    %6155 = vmatpush1.msra.mxu0 0.0
    %6156 = vmatprep.subr.mxu0 0.0
    %6157 = vmatpush1.msra.mxu0 0.0
    %6158 = vmatprep.subr.mxu0 0.0
    %6159 = vmatpush1.msra.mxu0 0.0
    %6160 = vmatprep.subr.mxu0 0.0
    %6161 = vmatpush1.msra.mxu0 0.0
    %6162 = vmatprep.subr.mxu0 0.0
    %6163 = vmatpush1.msra.mxu0 0.0
    %6164 = vmatprep.subr.mxu0 0.0
    %6165 = vmatpush1.msra.mxu0 0.0
    %6166 = vmatprep.subr.mxu0 0.0
    %6167 = vmatpush1.msra.mxu0 0.0
    %6168 = vmatprep.mubr.f32.mxu0 0.0
    %6169 = vmatmul.mubr.f32.gmra.mrb[0].mxu0 %v6100
    %v6170 = vpop.f32.mrb[0].mxu0
    %v6171 = vadd.f32 0.0, %v6170
    %v6172 = vpop.f32.mrb[0].mxu0
    %6173 = vmatprep.mubr.f32.mxu0 0.0
    %6174 = vmatmul.mubr.f32.gmra.mrb[0].mxu0 %v6102
    %v6175 = vpop.f32.mrb[0].mxu0
    %v6176 = vadd.f32 0.0, %v6175
    %v6177 = vpop.f32.mrb[0].mxu0
    %6178 = vdwg.mxu0
    %v6181 = vcombine.high %v6171, %v6171
    %v6183 = vunpack.c.l.s4 1966171168
    %v6184 = vunpack.c.0.s8 %v6183
    %v6185 = vlaneseq
    %v6186 = vshrl.u32 %v6185, 7
    %v6187 = vsub.s32 %v6184, %v6186
    %v6188 = vrot.slane %v6171, %v6187
    %v6190 = vunpack.c.l.s4 1966171168
    %v6191 = vunpack.c.0.s8 %v6190
    %v6192 = vlaneseq
    %v6193 = vshrl.u32 %v6192, 7
    %v6194 = vsub.s32 %v6191, %v6193
    %v6195 = vrot.slane %v6181, %v6194
    %v6196 = vcombine.high %v6188, %v6188
    %v6197 = vcombine.high %v6195, %v6195
    %v6199 = vunpack.c.l.s4 1966171168
    %v6200 = vunpack.c.0.s8 %v6199
    %v6201 = vlaneseq
    %v6202 = vshrl.u32 %v6201, 7
    %v6203 = vsub.s32 %v6200, %v6202
    %v6204 = vrot.slane %v6188, %v6203
    %v6206 = vunpack.c.l.s4 1966171168
    %v6207 = vunpack.c.0.s8 %v6206
    %v6208 = vlaneseq
    %v6209 = vshrl.u32 %v6208, 7
    %v6210 = vsub.s32 %v6207, %v6209
    %v6211 = vrot.slane %v6195, %v6210
    %v6213 = vunpack.c.l.s4 1966171168
    %v6214 = vunpack.c.0.s8 %v6213
    %v6215 = vlaneseq
    %v6216 = vshrl.u32 %v6215, 7
    %v6217 = vsub.s32 %v6214, %v6216
    %v6218 = vrot.slane %v6196, %v6217
    %v6220 = vunpack.c.l.s4 1966171168
    %v6221 = vunpack.c.0.s8 %v6220
    %v6222 = vlaneseq
    %v6223 = vshrl.u32 %v6222, 7
    %v6224 = vsub.s32 %v6221, %v6223
    %v6225 = vrot.slane %v6197, %v6224
    %v6226 = vcombine.high %v6204, %v6204
    %v6227 = vcombine.high %v6211, %v6211
    %v6228 = vcombine.high %v6218, %v6218
    %v6229 = vcombine.high %v6225, %v6225
    %v6231 = vunpack.c.l.s4 1966171168
    %v6232 = vunpack.c.0.s8 %v6231
    %v6233 = vlaneseq
    %v6234 = vshrl.u32 %v6233, 7
    %v6235 = vsub.s32 %v6232, %v6234
    %v6236 = vrot.slane %v6176, %v6235
    %v6237 = vcombine.high %v6236, %v6236
    %v6239 = vunpack.c.l.s4 1966171168
    %v6240 = vunpack.c.0.s8 %v6239
    %v6241 = vlaneseq
    %v6242 = vshrl.u32 %v6241, 7
    %v6243 = vsub.s32 %v6240, %v6242
    %v6244 = vrot.slane %v6236, %v6243
    %v6246 = vunpack.c.l.s4 1966171168
    %v6247 = vunpack.c.0.s8 %v6246
    %v6248 = vlaneseq
    %v6249 = vshrl.u32 %v6248, 7
    %v6250 = vsub.s32 %v6247, %v6249
    %v6251 = vrot.slane %v6237, %v6250
    %v6262 = vadd.f32 %v3824, %v6204
    %v6263 = vadd.f32 %v3825, %v6218
    %v6264 = vadd.f32 %v3826, %v6226
    %v6265 = vadd.f32 %v3827, %v6228
    %v6266 = vadd.f32 %v3828, %v6211
    %v6267 = vadd.f32 %v3829, %v6225
    %v6268 = vadd.f32 %v3830, %v6227
    %v6269 = vadd.f32 %v3831, %v6229
    %v6270 = vadd.f32 %v3832, %v6244
    %v6271 = vadd.f32 %v3833, %v6251
    %v6272 = vlaneseq
    %v6273 = vshrl.u32 %v6272, 7
    %v6274 = vsub.s32 0, %v6273
    %v6275 = vrot.slane %v35, %v6274
    %v6277 = vcombine.high %v6275, %v6275
    %v6279 = vunpack.c.l.s4 1966171168
    %v6280 = vunpack.c.0.s8 %v6279
    %v6281 = vlaneseq
    %v6282 = vshrl.u32 %v6281, 7
    %v6283 = vsub.s32 %v6280, %v6282
    %v6284 = vrot.slane %v6275, %v6283
    %v6286 = vunpack.c.l.s4 1966171168
    %v6287 = vunpack.c.0.s8 %v6286
    %v6288 = vlaneseq
    %v6289 = vshrl.u32 %v6288, 7
    %v6290 = vsub.s32 %v6287, %v6289
    %v6291 = vrot.slane %v6277, %v6290
    %v6292 = vcombine.high %v6284, %v6284
    %v6293 = vcombine.high %v6291, %v6291
    %v6295 = vunpack.c.l.s4 1966171168
    %v6296 = vunpack.c.0.s8 %v6295
    %v6297 = vlaneseq
    %v6298 = vshrl.u32 %v6297, 7
    %v6299 = vsub.s32 %v6296, %v6298
    %v6300 = vrot.slane %v6284, %v6299
    %v6302 = vunpack.c.l.s4 1966171168
    %v6303 = vunpack.c.0.s8 %v6302
    %v6304 = vlaneseq
    %v6305 = vshrl.u32 %v6304, 7
    %v6306 = vsub.s32 %v6303, %v6305
    %v6307 = vrot.slane %v6291, %v6306
    %v6309 = vunpack.c.l.s4 1966171168
    %v6310 = vunpack.c.0.s8 %v6309
    %v6311 = vlaneseq
    %v6312 = vshrl.u32 %v6311, 7
    %v6313 = vsub.s32 %v6310, %v6312
    %v6314 = vrot.slane %v6292, %v6313
    %v6316 = vunpack.c.l.s4 1966171168
    %v6317 = vunpack.c.0.s8 %v6316
    %v6318 = vlaneseq
    %v6319 = vshrl.u32 %v6318, 7
    %v6320 = vsub.s32 %v6317, %v6319
    %v6321 = vrot.slane %v6293, %v6320
    %v6322 = vcombine.high %v6300, %v6300
    %v6323 = vcombine.high %v6307, %v6307
    %v6324 = vcombine.high %v6314, %v6314
    %v6325 = vcombine.high %v6321, %v6321
    %v6334 = vadd.f32 %v6262, %v6300
    %v6335 = vadd.f32 %v6263, %v6314
    %v6336 = vadd.f32 %v6264, %v6322
    %v6337 = vadd.f32 %v6265, %v6324
    %v6338 = vadd.f32 %v6266, %v6307
    %v6339 = vadd.f32 %v6267, %v6321
    %v6340 = vadd.f32 %v6268, %v6323
    %v6341 = vadd.f32 %v6269, %v6325
    %v6342 = vadd.f32 %v6270, %v6300
    %v6343 = vadd.f32 %v6271, %v6314
    %v6354 = vcombine.low %v6334, %v6335
    %v6355 = vcombine.low %v6336, %v6337
    %v6356 = vcombine.low %v6338, %v6339
    %v6357 = vcombine.low %v6340, %v6341
    %v6359 = vunpack.c.l.s4 1966171168
    %v6360 = vunpack.c.0.s8 %v6359
    %v6361 = vlaneseq
    %v6362 = vshrl.u32 %v6361, 7
    %v6363 = vsub.s32 %v6360, %v6362
    %v6364 = vrot.slane %v6354, %v6363
    %v6366 = vunpack.c.l.s4 1966171168
    %v6367 = vunpack.c.0.s8 %v6366
    %v6368 = vlaneseq
    %v6369 = vshrl.u32 %v6368, 7
    %v6370 = vsub.s32 %v6367, %v6369
    %v6371 = vrot.slane %v6355, %v6370
    %v6373 = vunpack.c.l.s4 1966171168
    %v6374 = vunpack.c.0.s8 %v6373
    %v6375 = vlaneseq
    %v6376 = vshrl.u32 %v6375, 7
    %v6377 = vsub.s32 %v6374, %v6376
    %v6378 = vrot.slane %v6356, %v6377
    %v6380 = vunpack.c.l.s4 1966171168
    %v6381 = vunpack.c.0.s8 %v6380
    %v6382 = vlaneseq
    %v6383 = vshrl.u32 %v6382, 7
    %v6384 = vsub.s32 %v6381, %v6383
    %v6385 = vrot.slane %v6357, %v6384
    %v6386 = vcombine.low %v6364, %v6371
    %v6387 = vcombine.low %v6378, %v6385
    %v6389 = vunpack.c.l.s4 1966171168
    %v6390 = vunpack.c.0.s8 %v6389
    %v6391 = vlaneseq
    %v6392 = vshrl.u32 %v6391, 7
    %v6393 = vsub.s32 %v6390, %v6392
    %v6394 = vrot.slane %v6386, %v6393
    %v6396 = vunpack.c.l.s4 1966171168
    %v6397 = vunpack.c.0.s8 %v6396
    %v6398 = vlaneseq
    %v6399 = vshrl.u32 %v6398, 7
    %v6400 = vsub.s32 %v6397, %v6399
    %v6401 = vrot.slane %v6387, %v6400
    %v6402 = vcombine.low %v6394, %v6401
    %v6403 = vcombine.low %v6342, %v6343
    %v6405 = vunpack.c.l.s4 1966171168
    %v6406 = vunpack.c.0.s8 %v6405
    %v6407 = vlaneseq
    %v6408 = vshrl.u32 %v6407, 7
    %v6409 = vsub.s32 %v6406, %v6408
    %v6410 = vrot.slane %v6403, %v6409
    %v6412 = vunpack.c.l.s4 1966171168
    %v6413 = vunpack.c.0.s8 %v6412
    %v6414 = vlaneseq
    %v6415 = vshrl.u32 %v6414, 7
    %v6416 = vsub.s32 %v6413, %v6415
    %v6417 = vrot.slane %v6410, %v6416
    %v6420 = vsel %vm584, %v6402, 0.0
    %6421 = vadd.xlane.f32.xlu0 %v6420
    %v6422 = vpop.xlane.xlu0 %6421
    %v6423 = vsel %vm588, %v6417, 0.0
    %6424 = vadd.xlane.f32.xlu0 %v6423
    %v6425 = vpop.xlane.xlu0 %6424
    %v6426 = vmul.f32 %v6422, %v592
    %v6427 = vmul.f32 %v6425, %v592
    %v6430 = vlaneseq
    %v6431 = vshrl.u32 %v6430, 7
    %v6432 = vsub.s32 0, %v6431
    %v6433 = vrot.slane %v6426, %v6432
    %v6434 = vlaneseq
    %v6435 = vshrl.u32 %v6434, 7
    %v6436 = vsub.s32 1, %v6435
    %v6437 = vrot.slane %v6426, %v6436
    %v6438 = vlaneseq
    %v6439 = vshrl.u32 %v6438, 7
    %v6440 = vsub.s32 2, %v6439
    %v6441 = vrot.slane %v6426, %v6440
    %v6442 = vlaneseq
    %v6443 = vshrl.u32 %v6442, 7
    %v6444 = vsub.s32 3, %v6443
    %v6445 = vrot.slane %v6426, %v6444
    %v6446 = vlaneseq
    %v6447 = vshrl.u32 %v6446, 7
    %v6448 = vsub.s32 4, %v6447
    %v6449 = vrot.slane %v6426, %v6448
    %v6450 = vlaneseq
    %v6451 = vshrl.u32 %v6450, 7
    %v6452 = vsub.s32 5, %v6451
    %v6453 = vrot.slane %v6426, %v6452
    %v6454 = vlaneseq
    %v6455 = vshrl.u32 %v6454, 7
    %v6456 = vsub.s32 6, %v6455
    %v6457 = vrot.slane %v6426, %v6456
    %v6458 = vlaneseq
    %v6459 = vshrl.u32 %v6458, 7
    %v6460 = vsub.s32 7, %v6459
    %v6461 = vrot.slane %v6426, %v6460
    %v6462 = vlaneseq
    %v6463 = vshrl.u32 %v6462, 7
    %v6464 = vsub.s32 0, %v6463
    %v6465 = vrot.slane %v6427, %v6464
    %v6466 = vlaneseq
    %v6467 = vshrl.u32 %v6466, 7
    %v6468 = vsub.s32 1, %v6467
    %v6469 = vrot.slane %v6427, %v6468
    %v6480 = vsub.f32 %v6334, %v6433
    %v6481 = vsub.f32 %v6335, %v6437
    %v6482 = vsub.f32 %v6336, %v6441
    %v6483 = vsub.f32 %v6337, %v6445
    %v6484 = vsub.f32 %v6338, %v6449
    %v6485 = vsub.f32 %v6339, %v6453
    %v6486 = vsub.f32 %v6340, %v6457
    %v6487 = vsub.f32 %v6341, %v6461
    %v6488 = vsub.f32 %v6342, %v6465
    %v6489 = vsub.f32 %v6343, %v6469
    %v6490 = vmul.f32 %v6480, %v6480
    %v6491 = vmul.f32 %v6481, %v6481
    %v6492 = vmul.f32 %v6482, %v6482
    %v6493 = vmul.f32 %v6483, %v6483
    %v6494 = vmul.f32 %v6484, %v6484
    %v6495 = vmul.f32 %v6485, %v6485
    %v6496 = vmul.f32 %v6486, %v6486
    %v6497 = vmul.f32 %v6487, %v6487
    %v6498 = vmul.f32 %v6488, %v6488
    %v6499 = vmul.f32 %v6489, %v6489
    %v6510 = vcombine.low %v6490, %v6491
    %v6511 = vcombine.low %v6492, %v6493
    %v6512 = vcombine.low %v6494, %v6495
    %v6513 = vcombine.low %v6496, %v6497
    %v6515 = vunpack.c.l.s4 1966171168
    %v6516 = vunpack.c.0.s8 %v6515
    %v6517 = vlaneseq
    %v6518 = vshrl.u32 %v6517, 7
    %v6519 = vsub.s32 %v6516, %v6518
    %v6520 = vrot.slane %v6510, %v6519
    %v6522 = vunpack.c.l.s4 1966171168
    %v6523 = vunpack.c.0.s8 %v6522
    %v6524 = vlaneseq
    %v6525 = vshrl.u32 %v6524, 7
    %v6526 = vsub.s32 %v6523, %v6525
    %v6527 = vrot.slane %v6511, %v6526
    %v6529 = vunpack.c.l.s4 1966171168
    %v6530 = vunpack.c.0.s8 %v6529
    %v6531 = vlaneseq
    %v6532 = vshrl.u32 %v6531, 7
    %v6533 = vsub.s32 %v6530, %v6532
    %v6534 = vrot.slane %v6512, %v6533
    %v6536 = vunpack.c.l.s4 1966171168
    %v6537 = vunpack.c.0.s8 %v6536
    %v6538 = vlaneseq
    %v6539 = vshrl.u32 %v6538, 7
    %v6540 = vsub.s32 %v6537, %v6539
    %v6541 = vrot.slane %v6513, %v6540
    %v6542 = vcombine.low %v6520, %v6527
    %v6543 = vcombine.low %v6534, %v6541
    %v6545 = vunpack.c.l.s4 1966171168
    %v6546 = vunpack.c.0.s8 %v6545
    %v6547 = vlaneseq
    %v6548 = vshrl.u32 %v6547, 7
    %v6549 = vsub.s32 %v6546, %v6548
    %v6550 = vrot.slane %v6542, %v6549
    %v6552 = vunpack.c.l.s4 1966171168
    %v6553 = vunpack.c.0.s8 %v6552
    %v6554 = vlaneseq
    %v6555 = vshrl.u32 %v6554, 7
    %v6556 = vsub.s32 %v6553, %v6555
    %v6557 = vrot.slane %v6543, %v6556
    %v6558 = vcombine.low %v6550, %v6557
    %v6559 = vcombine.low %v6498, %v6499
    %v6561 = vunpack.c.l.s4 1966171168
    %v6562 = vunpack.c.0.s8 %v6561
    %v6563 = vlaneseq
    %v6564 = vshrl.u32 %v6563, 7
    %v6565 = vsub.s32 %v6562, %v6564
    %v6566 = vrot.slane %v6559, %v6565
    %v6568 = vunpack.c.l.s4 1966171168
    %v6569 = vunpack.c.0.s8 %v6568
    %v6570 = vlaneseq
    %v6571 = vshrl.u32 %v6570, 7
    %v6572 = vsub.s32 %v6569, %v6571
    %v6573 = vrot.slane %v6566, %v6572
    %v6576 = vsel %vm584, %v6558, 0.0
    %6577 = vadd.xlane.f32.xlu0 %v6576
    %v6578 = vpop.xlane.xlu0 %6577
    %v6579 = vsel %vm588, %v6573, 0.0
    %6580 = vadd.xlane.f32.xlu0 %v6579
    %v6581 = vpop.xlane.xlu0 %6580
    %v6582 = vmul.f32 %v6578, %v592
    %v6583 = vmul.f32 %v6581, %v592
    %v6584 = vadd.f32 %v6582, 1e-06
    %v6585 = vadd.f32 %v6583, 1e-06
    %v6586 = vrsqrt.pop %v6584
    %v6587 = vrsqrt.pop %v6585
    %v6590 = vlaneseq
    %v6591 = vshrl.u32 %v6590, 7
    %v6592 = vsub.s32 0, %v6591
    %v6593 = vrot.slane %v6586, %v6592
    %v6594 = vlaneseq
    %v6595 = vshrl.u32 %v6594, 7
    %v6596 = vsub.s32 1, %v6595
    %v6597 = vrot.slane %v6586, %v6596
    %v6598 = vlaneseq
    %v6599 = vshrl.u32 %v6598, 7
    %v6600 = vsub.s32 2, %v6599
    %v6601 = vrot.slane %v6586, %v6600
    %v6602 = vlaneseq
    %v6603 = vshrl.u32 %v6602, 7
    %v6604 = vsub.s32 3, %v6603
    %v6605 = vrot.slane %v6586, %v6604
    %v6606 = vlaneseq
    %v6607 = vshrl.u32 %v6606, 7
    %v6608 = vsub.s32 4, %v6607
    %v6609 = vrot.slane %v6586, %v6608
    %v6610 = vlaneseq
    %v6611 = vshrl.u32 %v6610, 7
    %v6612 = vsub.s32 5, %v6611
    %v6613 = vrot.slane %v6586, %v6612
    %v6614 = vlaneseq
    %v6615 = vshrl.u32 %v6614, 7
    %v6616 = vsub.s32 6, %v6615
    %v6617 = vrot.slane %v6586, %v6616
    %v6618 = vlaneseq
    %v6619 = vshrl.u32 %v6618, 7
    %v6620 = vsub.s32 7, %v6619
    %v6621 = vrot.slane %v6586, %v6620
    %v6622 = vlaneseq
    %v6623 = vshrl.u32 %v6622, 7
    %v6624 = vsub.s32 0, %v6623
    %v6625 = vrot.slane %v6587, %v6624
    %v6626 = vlaneseq
    %v6627 = vshrl.u32 %v6626, 7
    %v6628 = vsub.s32 1, %v6627
    %v6629 = vrot.slane %v6587, %v6628
    %v6640 = vmul.f32 %v6480, %v6593
    %v6641 = vmul.f32 %v6481, %v6597
    %v6642 = vmul.f32 %v6482, %v6601
    %v6643 = vmul.f32 %v6483, %v6605
    %v6644 = vmul.f32 %v6484, %v6609
    %v6645 = vmul.f32 %v6485, %v6613
    %v6646 = vmul.f32 %v6486, %v6617
    %v6647 = vmul.f32 %v6487, %v6621
    %v6648 = vmul.f32 %v6488, %v6625
    %v6649 = vmul.f32 %v6489, %v6629
    %v6650 = vlaneseq
    %v6651 = vshrl.u32 %v6650, 7
    %v6652 = vsub.s32 1, %v6651
    %v6653 = vrot.slane %v35, %v6652
    %v6655 = vcombine.high %v6653, %v6653
    %v6657 = vunpack.c.l.s4 1966171168
    %v6658 = vunpack.c.0.s8 %v6657
    %v6659 = vlaneseq
    %v6660 = vshrl.u32 %v6659, 7
    %v6661 = vsub.s32 %v6658, %v6660
    %v6662 = vrot.slane %v6653, %v6661
    %v6664 = vunpack.c.l.s4 1966171168
    %v6665 = vunpack.c.0.s8 %v6664
    %v6666 = vlaneseq
    %v6667 = vshrl.u32 %v6666, 7
    %v6668 = vsub.s32 %v6665, %v6667
    %v6669 = vrot.slane %v6655, %v6668
    %v6670 = vcombine.high %v6662, %v6662
    %v6671 = vcombine.high %v6669, %v6669
    %v6673 = vunpack.c.l.s4 1966171168
    %v6674 = vunpack.c.0.s8 %v6673
    %v6675 = vlaneseq
    %v6676 = vshrl.u32 %v6675, 7
    %v6677 = vsub.s32 %v6674, %v6676
    %v6678 = vrot.slane %v6662, %v6677
    %v6680 = vunpack.c.l.s4 1966171168
    %v6681 = vunpack.c.0.s8 %v6680
    %v6682 = vlaneseq
    %v6683 = vshrl.u32 %v6682, 7
    %v6684 = vsub.s32 %v6681, %v6683
    %v6685 = vrot.slane %v6669, %v6684
    %v6687 = vunpack.c.l.s4 1966171168
    %v6688 = vunpack.c.0.s8 %v6687
    %v6689 = vlaneseq
    %v6690 = vshrl.u32 %v6689, 7
    %v6691 = vsub.s32 %v6688, %v6690
    %v6692 = vrot.slane %v6670, %v6691
    %v6694 = vunpack.c.l.s4 1966171168
    %v6695 = vunpack.c.0.s8 %v6694
    %v6696 = vlaneseq
    %v6697 = vshrl.u32 %v6696, 7
    %v6698 = vsub.s32 %v6695, %v6697
    %v6699 = vrot.slane %v6671, %v6698
    %v6700 = vcombine.high %v6678, %v6678
    %v6701 = vcombine.high %v6685, %v6685
    %v6702 = vcombine.high %v6692, %v6692
    %v6703 = vcombine.high %v6699, %v6699
    %v6712 = vmul.f32 %v6640, %v6678
    %v6713 = vmul.f32 %v6641, %v6692
    %v6714 = vmul.f32 %v6642, %v6700
    %v6715 = vmul.f32 %v6643, %v6702
    %v6716 = vmul.f32 %v6644, %v6685
    %v6717 = vmul.f32 %v6645, %v6699
    %v6718 = vmul.f32 %v6646, %v6701
    %v6719 = vmul.f32 %v6647, %v6703
    %v6720 = vmul.f32 %v6648, %v6678
    %v6721 = vmul.f32 %v6649, %v6692
    %v6722 = vlaneseq
    %v6723 = vshrl.u32 %v6722, 7
    %v6724 = vsub.s32 2, %v6723
    %v6725 = vrot.slane %v35, %v6724
    %v6727 = vcombine.high %v6725, %v6725
    %v6729 = vunpack.c.l.s4 1966171168
    %v6730 = vunpack.c.0.s8 %v6729
    %v6731 = vlaneseq
    %v6732 = vshrl.u32 %v6731, 7
    %v6733 = vsub.s32 %v6730, %v6732
    %v6734 = vrot.slane %v6725, %v6733
    %v6736 = vunpack.c.l.s4 1966171168
    %v6737 = vunpack.c.0.s8 %v6736
    %v6738 = vlaneseq
    %v6739 = vshrl.u32 %v6738, 7
    %v6740 = vsub.s32 %v6737, %v6739
    %v6741 = vrot.slane %v6727, %v6740
    %v6742 = vcombine.high %v6734, %v6734
    %v6743 = vcombine.high %v6741, %v6741
    %v6745 = vunpack.c.l.s4 1966171168
    %v6746 = vunpack.c.0.s8 %v6745
    %v6747 = vlaneseq
    %v6748 = vshrl.u32 %v6747, 7
    %v6749 = vsub.s32 %v6746, %v6748
    %v6750 = vrot.slane %v6734, %v6749
    %v6752 = vunpack.c.l.s4 1966171168
    %v6753 = vunpack.c.0.s8 %v6752
    %v6754 = vlaneseq
    %v6755 = vshrl.u32 %v6754, 7
    %v6756 = vsub.s32 %v6753, %v6755
    %v6757 = vrot.slane %v6741, %v6756
    %v6759 = vunpack.c.l.s4 1966171168
    %v6760 = vunpack.c.0.s8 %v6759
    %v6761 = vlaneseq
    %v6762 = vshrl.u32 %v6761, 7
    %v6763 = vsub.s32 %v6760, %v6762
    %v6764 = vrot.slane %v6742, %v6763
    %v6766 = vunpack.c.l.s4 1966171168
    %v6767 = vunpack.c.0.s8 %v6766
    %v6768 = vlaneseq
    %v6769 = vshrl.u32 %v6768, 7
    %v6770 = vsub.s32 %v6767, %v6769
    %v6771 = vrot.slane %v6743, %v6770
    %v6772 = vcombine.high %v6750, %v6750
    %v6773 = vcombine.high %v6757, %v6757
    %v6774 = vcombine.high %v6764, %v6764
    %v6775 = vcombine.high %v6771, %v6771
    %v6784 = vadd.f32 %v6712, %v6750
    %v6785 = vadd.f32 %v6713, %v6764
    %v6786 = vadd.f32 %v6714, %v6772
    %v6787 = vadd.f32 %v6715, %v6774
    %v6788 = vadd.f32 %v6716, %v6757
    %v6789 = vadd.f32 %v6717, %v6771
    %v6790 = vadd.f32 %v6718, %v6773
    %v6791 = vadd.f32 %v6719, %v6775
    %v6792 = vadd.f32 %v6720, %v6750
    %v6793 = vadd.f32 %v6721, %v6764
    %s6794 = scalar_lea.vmem %s4, 32
    %v6795 = vld [vmem:[%s6794] sm:$0xff]
    %v6796 = vld [vmem:[%s6794 + $0x8] sm:$0xff]
    %v6797 = vld [vmem:[%s6794 + $0x10] sm:$0xff]
    %v6798 = vld [vmem:[%s6794 + $0x18] sm:$0xff]
    %v6799 = vlaneseq
    %v6800 = vshrl.u32 %v6799, 7
    %v6801 = vsub.s32 3, %v6800
    %v6802 = vrot.slane %v35, %v6801
    %v6813 = vcombine.low %v6784, %v6785
    %v6814 = vcombine.low %v6786, %v6787
    %v6815 = vcombine.low %v6788, %v6789
    %v6816 = vcombine.low %v6790, %v6791
    %v6818 = vunpack.c.l.s4 1966171168
    %v6819 = vunpack.c.0.s8 %v6818
    %v6820 = vlaneseq
    %v6821 = vshrl.u32 %v6820, 7
    %v6822 = vsub.s32 %v6819, %v6821
    %v6823 = vrot.slane %v6813, %v6822
    %v6825 = vunpack.c.l.s4 1966171168
    %v6826 = vunpack.c.0.s8 %v6825
    %v6827 = vlaneseq
    %v6828 = vshrl.u32 %v6827, 7
    %v6829 = vsub.s32 %v6826, %v6828
    %v6830 = vrot.slane %v6814, %v6829
    %v6832 = vunpack.c.l.s4 1966171168
    %v6833 = vunpack.c.0.s8 %v6832
    %v6834 = vlaneseq
    %v6835 = vshrl.u32 %v6834, 7
    %v6836 = vsub.s32 %v6833, %v6835
    %v6837 = vrot.slane %v6815, %v6836
    %v6839 = vunpack.c.l.s4 1966171168
    %v6840 = vunpack.c.0.s8 %v6839
    %v6841 = vlaneseq
    %v6842 = vshrl.u32 %v6841, 7
    %v6843 = vsub.s32 %v6840, %v6842
    %v6844 = vrot.slane %v6816, %v6843
    %v6845 = vcombine.low %v6823, %v6830
    %v6846 = vcombine.low %v6837, %v6844
    %v6848 = vunpack.c.l.s4 1966171168
    %v6849 = vunpack.c.0.s8 %v6848
    %v6850 = vlaneseq
    %v6851 = vshrl.u32 %v6850, 7
    %v6852 = vsub.s32 %v6849, %v6851
    %v6853 = vrot.slane %v6845, %v6852
    %v6855 = vunpack.c.l.s4 1966171168
    %v6856 = vunpack.c.0.s8 %v6855
    %v6857 = vlaneseq
    %v6858 = vshrl.u32 %v6857, 7
    %v6859 = vsub.s32 %v6856, %v6858
    %v6860 = vrot.slane %v6846, %v6859
    %v6861 = vcombine.low %v6853, %v6860
    %v6862 = vcombine.low %v6792, %v6793
    %v6864 = vunpack.c.l.s4 1966171168
    %v6865 = vunpack.c.0.s8 %v6864
    %v6866 = vlaneseq
    %v6867 = vshrl.u32 %v6866, 7
    %v6868 = vsub.s32 %v6865, %v6867
    %v6869 = vrot.slane %v6862, %v6868
    %v6871 = vunpack.c.l.s4 1966171168
    %v6872 = vunpack.c.0.s8 %v6871
    %v6873 = vlaneseq
    %v6874 = vshrl.u32 %v6873, 7
    %v6875 = vsub.s32 %v6872, %v6874
    %v6876 = vrot.slane %v6869, %v6875
    %v6877 = vsel %vm584, %v6861, 0
    %v6879 = vsel %vm584, %v6876, 0
    %6881 = vmatprep.subr.mxu0 0.0
    %6882 = vmatpush1.msra.mxu0 %v6795
    %6883 = vmatprep.subr.mxu0 0.0
    %6884 = vmatpush1.msra.mxu0 %v6796
    %6885 = vmatprep.subr.mxu0 0.0
    %6886 = vmatpush1.msra.mxu0 %v6797
    %6887 = vmatprep.subr.mxu0 0.0
    %6888 = vmatpush1.msra.mxu0 %v6798
    %6889 = vmatprep.subr.mxu0 0.0
    %6890 = vmatpush1.msra.mxu0 0.0
    %6891 = vmatprep.subr.mxu0 0.0
    %6892 = vmatpush1.msra.mxu0 0.0
    %6893 = vmatprep.subr.mxu0 0.0
    %6894 = vmatpush1.msra.mxu0 0.0
    %6895 = vmatprep.subr.mxu0 0.0
    %6896 = vmatpush1.msra.mxu0 0.0
    %6897 = vmatprep.subr.mxu0 0.0
    %6898 = vmatpush1.msra.mxu0 0.0
    %6899 = vmatprep.subr.mxu0 0.0
    %6900 = vmatpush1.msra.mxu0 0.0
    %6901 = vmatprep.subr.mxu0 0.0
    %6902 = vmatpush1.msra.mxu0 0.0
    %6903 = vmatprep.subr.mxu0 0.0
    %6904 = vmatpush1.msra.mxu0 0.0
    %6905 = vmatprep.subr.mxu0 0.0
    %6906 = vmatpush1.msra.mxu0 0.0
    %6907 = vmatprep.subr.mxu0 0.0
    %6908 = vmatpush1.msra.mxu0 0.0
    %6909 = vmatprep.subr.mxu0 0.0
    %6910 = vmatpush1.msra.mxu0 0.0
    %6911 = vmatprep.subr.mxu0 0.0
    %6912 = vmatpush1.msra.mxu0 0.0
    %6913 = vmatprep.subr.mxu0 0.0
    %6914 = vmatpush1.msra.mxu0 0.0
    %6915 = vmatprep.subr.mxu0 0.0
    %6916 = vmatpush1.msra.mxu0 0.0
    %6917 = vmatprep.subr.mxu0 0.0
    %6918 = vmatpush1.msra.mxu0 0.0
    %6919 = vmatprep.subr.mxu0 0.0
    %6920 = vmatpush1.msra.mxu0 0.0
    %6921 = vmatprep.subr.mxu0 0.0
    %6922 = vmatpush1.msra.mxu0 0.0
    %6923 = vmatprep.subr.mxu0 0.0
    %6924 = vmatpush1.msra.mxu0 0.0
    %6925 = vmatprep.subr.mxu0 0.0
    %6926 = vmatpush1.msra.mxu0 0.0
    %6927 = vmatprep.subr.mxu0 0.0
    %6928 = vmatpush1.msra.mxu0 0.0
    %6929 = vmatprep.subr.mxu0 0.0
    %6930 = vmatpush1.msra.mxu0 0.0
    %6931 = vmatprep.subr.mxu0 0.0
    %6932 = vmatpush1.msra.mxu0 0.0
    %6933 = vmatprep.subr.mxu0 0.0
    %6934 = vmatpush1.msra.mxu0 0.0
    %6935 = vmatprep.subr.mxu0 0.0
    %6936 = vmatpush1.msra.mxu0 0.0
    %6937 = vmatprep.subr.mxu0 0.0
    %6938 = vmatpush1.msra.mxu0 0.0
    %6939 = vmatprep.subr.mxu0 0.0
    %6940 = vmatpush1.msra.mxu0 0.0
    %6941 = vmatprep.subr.mxu0 0.0
    %6942 = vmatpush1.msra.mxu0 0.0
    %6943 = vmatprep.subr.mxu0 0.0
    %6944 = vmatpush1.msra.mxu0 0.0
    %6945 = vmatprep.mubr.f32.mxu0 0.0
    %6946 = vmatmul.mubr.f32.gmra.mrb[0].mxu0 %v6877
    %v6947 = vpop.f32.mrb[0].mxu0
    %v6948 = vadd.f32 %v6802, %v6947
    %v6949 = vpop.f32.mrb[0].mxu0
    %6950 = vmatprep.mubr.f32.mxu0 0.0
    %6951 = vmatmul.mubr.f32.gmra.mrb[0].mxu0 %v6879
    %v6952 = vpop.f32.mrb[0].mxu0
    %v6953 = vadd.f32 %v6802, %v6952
    %v6954 = vpop.f32.mrb[0].mxu0
    %6955 = vdwg.mxu0
    %v6956 = vmul.f32 %v6948, 0.5
    %v6957 = vmul.f32 %v6953, 0.5
    %v6958 = vmul.f32 %v6948, %v3638
    %v6959 = vmul.f32 %v6953, %v3638
    %v6960 = verf.f32.pop %v6958
    %v6961 = verf.f32.pop %v6959
    %v6962 = vadd.f32 %v6960, 1.0
    %v6963 = vadd.f32 %v6961, 1.0
    %v6964 = vmul.f32 %v6956, %v6962
    %v6965 = vmul.f32 %v6957, %v6963
    %s6966 = scalar_lea.vmem %s5, 64
    %v6967 = vld [vmem:[%s6966] sm:$0xff]
    %v6968 = vld [vmem:[%s6966 + $0x8] sm:$0xff]
    %v6969 = vld [vmem:[%s6966 + $0x10] sm:$0xff]
    %v6970 = vld [vmem:[%s6966 + $0x18] sm:$0xff]
    %v6971 = vld [vmem:[%s6966 + $0x20] sm:$0xff]
    %v6972 = vld [vmem:[%s6966 + $0x28] sm:$0xff]
    %v6973 = vld [vmem:[%s6966 + $0x30] sm:$0xff]
    %v6974 = vld [vmem:[%s6966 + $0x38] sm:$0xff]
    %v6975 = vlaneseq
    %v6976 = vshrl.u32 %v6975, 7
    %v6977 = vsub.s32 4, %v6976
    %v6978 = vrot.slane %v35, %v6977
    %v6980 = vsel %vm3659, %v6964, 0
    %v6983 = vsel %vm3659, %v6965, 0
    %6985 = vmatprep.subr.mxu0 0.0
    %6986 = vmatpush1.msra.mxu0 %v6967
    %6987 = vmatprep.subr.mxu0 0.0
    %6988 = vmatpush1.msra.mxu0 %v6968
    %6989 = vmatprep.subr.mxu0 0.0
    %6990 = vmatpush1.msra.mxu0 %v6969
    %6991 = vmatprep.subr.mxu0 0.0
    %6992 = vmatpush1.msra.mxu0 %v6970
    %6993 = vmatprep.subr.mxu0 0.0
    %6994 = vmatpush1.msra.mxu0 %v6971
    %6995 = vmatprep.subr.mxu0 0.0
    %6996 = vmatpush1.msra.mxu0 %v6972
    %6997 = vmatprep.subr.mxu0 0.0
    %6998 = vmatpush1.msra.mxu0 %v6973
    %6999 = vmatprep.subr.mxu0 0.0
    %7000 = vmatpush1.msra.mxu0 %v6974
    %7001 = vmatprep.subr.mxu0 0.0
    %7002 = vmatpush1.msra.mxu0 0.0
    %7003 = vmatprep.subr.mxu0 0.0
    %7004 = vmatpush1.msra.mxu0 0.0
    %7005 = vmatprep.subr.mxu0 0.0
    %7006 = vmatpush1.msra.mxu0 0.0
    %7007 = vmatprep.subr.mxu0 0.0
    %7008 = vmatpush1.msra.mxu0 0.0
    %7009 = vmatprep.subr.mxu0 0.0
    %7010 = vmatpush1.msra.mxu0 0.0
    %7011 = vmatprep.subr.mxu0 0.0
    %7012 = vmatpush1.msra.mxu0 0.0
    %7013 = vmatprep.subr.mxu0 0.0
    %7014 = vmatpush1.msra.mxu0 0.0
    %7015 = vmatprep.subr.mxu0 0.0
    %7016 = vmatpush1.msra.mxu0 0.0
    %7017 = vmatprep.subr.mxu0 0.0
    %7018 = vmatpush1.msra.mxu0 0.0
    %7019 = vmatprep.subr.mxu0 0.0
    %7020 = vmatpush1.msra.mxu0 0.0
    %7021 = vmatprep.subr.mxu0 0.0
    %7022 = vmatpush1.msra.mxu0 0.0
    %7023 = vmatprep.subr.mxu0 0.0
    %7024 = vmatpush1.msra.mxu0 0.0
    %7025 = vmatprep.subr.mxu0 0.0
    %7026 = vmatpush1.msra.mxu0 0.0
    %7027 = vmatprep.subr.mxu0 0.0
    %7028 = vmatpush1.msra.mxu0 0.0
    %7029 = vmatprep.subr.mxu0 0.0
    %7030 = vmatpush1.msra.mxu0 0.0
    %7031 = vmatprep.subr.mxu0 0.0
    %7032 = vmatpush1.msra.mxu0 0.0
    %7033 = vmatprep.subr.mxu0 0.0
    %7034 = vmatpush1.msra.mxu0 0.0
    %7035 = vmatprep.subr.mxu0 0.0
    %7036 = vmatpush1.msra.mxu0 0.0
    %7037 = vmatprep.subr.mxu0 0.0
    %7038 = vmatpush1.msra.mxu0 0.0
    %7039 = vmatprep.subr.mxu0 0.0
    %7040 = vmatpush1.msra.mxu0 0.0
    %7041 = vmatprep.subr.mxu0 0.0
    %7042 = vmatpush1.msra.mxu0 0.0
    %7043 = vmatprep.subr.mxu0 0.0
    %7044 = vmatpush1.msra.mxu0 0.0
    %7045 = vmatprep.subr.mxu0 0.0
    %7046 = vmatpush1.msra.mxu0 0.0
    %7047 = vmatprep.subr.mxu0 0.0
    %7048 = vmatpush1.msra.mxu0 0.0
    %7049 = vmatprep.mubr.f32.mxu0 0.0
    %7050 = vmatmul.mubr.f32.gmra.mrb[0].mxu0 %v6980
    %v7051 = vpop.f32.mrb[0].mxu0
    %v7052 = vadd.f32 %v6978, %v7051
    %v7053 = vpop.f32.mrb[0].mxu0
    %7054 = vmatprep.mubr.f32.mxu0 0.0
    %7055 = vmatmul.mubr.f32.gmra.mrb[0].mxu0 %v6983
    %v7056 = vpop.f32.mrb[0].mxu0
    %v7057 = vpop.f32.mrb[0].mxu0
    %7058 = vdwg.mxu0
    %v7060 = vcombine.high %v7052, %v7052
    %v7062 = vunpack.c.l.s4 1966171168
    %v7063 = vunpack.c.0.s8 %v7062
    %v7064 = vlaneseq
    %v7065 = vshrl.u32 %v7064, 7
    %v7066 = vsub.s32 %v7063, %v7065
    %v7067 = vrot.slane %v7052, %v7066
    %v7069 = vunpack.c.l.s4 1966171168
    %v7070 = vunpack.c.0.s8 %v7069
    %v7071 = vlaneseq
    %v7072 = vshrl.u32 %v7071, 7
    %v7073 = vsub.s32 %v7070, %v7072
    %v7074 = vrot.slane %v7060, %v7073
    %v7075 = vcombine.high %v7074, %v7074
    %v7077 = vunpack.c.l.s4 1966171168
    %v7078 = vunpack.c.0.s8 %v7077
    %v7079 = vlaneseq
    %v7080 = vshrl.u32 %v7079, 7
    %v7081 = vsub.s32 %v7078, %v7080
    %v7082 = vrot.slane %v7067, %v7081
    %v7084 = vunpack.c.l.s4 1966171168
    %v7085 = vunpack.c.0.s8 %v7084
    %v7086 = vlaneseq
    %v7087 = vshrl.u32 %v7086, 7
    %v7088 = vsub.s32 %v7085, %v7087
    %v7089 = vrot.slane %v7075, %v7088
    %v7092 = vadd.f32 %v6334, %v7082
    %v7093 = vadd.f32 %v6339, %v7089
    %v7096 = vcombine.low %v7092, %v7093
    %v7098 = vunpack.c.l.s4 1966171168
    %v7099 = vunpack.c.0.s8 %v7098
    %v7100 = vlaneseq
    %v7101 = vshrl.u32 %v7100, 7
    %v7102 = vsub.s32 %v7099, %v7101
    %v7103 = vrot.slane %v7096, %v7102
    %v7105 = vunpack.c.l.s4 1966171168
    %v7106 = vunpack.c.0.s8 %v7105
    %v7107 = vlaneseq
    %v7108 = vshrl.u32 %v7107, 7
    %v7109 = vsub.s32 %v7106, %v7108
    %v7110 = vrot.slane %v7103, %v7109
    %v7112 = vsel %vm588, %v7110, 0.0
    %7113 = vadd.xlane.f32.xlu0 %v7112
    %v7114 = vpop.xlane.xlu0 %7113
    %v7115 = vmul.f32 %v7114, %v592
    %v7117 = vlaneseq
    %v7118 = vshrl.u32 %v7117, 7
    %v7119 = vsub.s32 0, %v7118
    %v7120 = vrot.slane %v7115, %v7119
    %v7121 = vlaneseq
    %v7122 = vshrl.u32 %v7121, 7
    %v7123 = vsub.s32 1, %v7122
    %v7124 = vrot.slane %v7115, %v7123
    %v7127 = vsub.f32 %v7092, %v7120
    %v7128 = vsub.f32 %v7093, %v7124
    %v7129 = vmul.f32 %v7127, %v7127
    %v7130 = vmul.f32 %v7128, %v7128
    %v7133 = vcombine.low %v7129, %v7130
    %v7135 = vunpack.c.l.s4 1966171168
    %v7136 = vunpack.c.0.s8 %v7135
    %v7137 = vlaneseq
    %v7138 = vshrl.u32 %v7137, 7
    %v7139 = vsub.s32 %v7136, %v7138
    %v7140 = vrot.slane %v7133, %v7139
    %v7142 = vunpack.c.l.s4 1966171168
    %v7143 = vunpack.c.0.s8 %v7142
    %v7144 = vlaneseq
    %v7145 = vshrl.u32 %v7144, 7
    %v7146 = vsub.s32 %v7143, %v7145
    %v7147 = vrot.slane %v7140, %v7146
    %v7149 = vsel %vm588, %v7147, 0.0
    %7150 = vadd.xlane.f32.xlu0 %v7149
    %v7151 = vpop.xlane.xlu0 %7150
    %v7152 = vmul.f32 %v7151, %v592
    %v7153 = vadd.f32 %v7152, 1e-06
    %v7154 = vrsqrt.pop %v7153
    %v7156 = vlaneseq
    %v7157 = vshrl.u32 %v7156, 7
    %v7158 = vsub.s32 0, %v7157
    %v7159 = vrot.slane %v7154, %v7158
    %v7160 = vlaneseq
    %v7161 = vshrl.u32 %v7160, 7
    %v7162 = vsub.s32 1, %v7161
    %v7163 = vrot.slane %v7154, %v7162
    %v7166 = vmul.f32 %v7127, %v7159
    %v7167 = vmul.f32 %v7128, %v7163
    %v7168 = vlaneseq
    %v7169 = vshrl.u32 %v7168, 7
    %v7170 = vsub.s32 5, %v7169
    %v7171 = vrot.slane %v35, %v7170
    %v7174 = vunpack.c.l.s4 1966171168
    %v7175 = vunpack.c.0.s8 %v7174
    %v7176 = vlaneseq
    %v7177 = vshrl.u32 %v7176, 7
    %v7178 = vsub.s32 %v7175, %v7177
    %v7179 = vrot.slane %v7171, %v7178
    %v7180 = vcombine.high %v7179, %v7179
    %v7182 = vunpack.c.l.s4 1966171168
    %v7183 = vunpack.c.0.s8 %v7182
    %v7184 = vlaneseq
    %v7185 = vshrl.u32 %v7184, 7
    %v7186 = vsub.s32 %v7183, %v7185
    %v7187 = vrot.slane %v7179, %v7186
    %v7189 = vunpack.c.l.s4 1966171168
    %v7190 = vunpack.c.0.s8 %v7189
    %v7191 = vlaneseq
    %v7192 = vshrl.u32 %v7191, 7
    %v7193 = vsub.s32 %v7190, %v7192
    %v7194 = vrot.slane %v7180, %v7193
    %v7197 = vmul.f32 %v7166, %v7187
    %v7198 = vmul.f32 %v7167, %v7194
    %v7199 = vlaneseq
    %v7200 = vshrl.u32 %v7199, 7
    %v7201 = vsub.s32 6, %v7200
    %v7202 = vrot.slane %v35, %v7201
    %v7205 = vunpack.c.l.s4 1966171168
    %v7206 = vunpack.c.0.s8 %v7205
    %v7207 = vlaneseq
    %v7208 = vshrl.u32 %v7207, 7
    %v7209 = vsub.s32 %v7206, %v7208
    %v7210 = vrot.slane %v7202, %v7209
    %v7211 = vcombine.high %v7210, %v7210
    %v7213 = vunpack.c.l.s4 1966171168
    %v7214 = vunpack.c.0.s8 %v7213
    %v7215 = vlaneseq
    %v7216 = vshrl.u32 %v7215, 7
    %v7217 = vsub.s32 %v7214, %v7216
    %v7218 = vrot.slane %v7210, %v7217
    %v7220 = vunpack.c.l.s4 1966171168
    %v7221 = vunpack.c.0.s8 %v7220
    %v7222 = vlaneseq
    %v7223 = vshrl.u32 %v7222, 7
    %v7224 = vsub.s32 %v7221, %v7223
    %v7225 = vrot.slane %v7211, %v7224
    %v7228 = vadd.f32 %v7197, %v7218
    %v7229 = vadd.f32 %v7198, %v7225
    %v7230 = vld [vmem:[%s6] sm:$0xff]
    %v7231 = vld [vmem:[%s6 + $0x8] sm:$0xff]
    %v7232 = vld [vmem:[%s6 + $0x10] sm:$0xff]
    %v7233 = vld [vmem:[%s6 + $0x18] sm:$0xff]
    %v7234 = vlaneseq
    %v7235 = vshrl.u32 %v7234, 7
    %v7236 = vsub.s32 7, %v7235
    %v7237 = vrot.slane %v35, %v7236
    %v7240 = vcombine.low %v7228, %v7229
    %v7242 = vunpack.c.l.s4 1966171168
    %v7243 = vunpack.c.0.s8 %v7242
    %v7244 = vlaneseq
    %v7245 = vshrl.u32 %v7244, 7
    %v7246 = vsub.s32 %v7243, %v7245
    %v7247 = vrot.slane %v7240, %v7246
    %v7249 = vunpack.c.l.s4 1966171168
    %v7250 = vunpack.c.0.s8 %v7249
    %v7251 = vlaneseq
    %v7252 = vshrl.u32 %v7251, 7
    %v7253 = vsub.s32 %v7250, %v7252
    %v7254 = vrot.slane %v7247, %v7253
    %v7255 = vsel %vm584, %v7254, 0
    %7257 = vmatprep.subr.mxu0 0.0
    %7258 = vmatpush1.msra.mxu0 %v7230
    %7259 = vmatprep.subr.mxu0 0.0
    %7260 = vmatpush1.msra.mxu0 %v7231
    %7261 = vmatprep.subr.mxu0 0.0
    %7262 = vmatpush1.msra.mxu0 %v7232
    %7263 = vmatprep.subr.mxu0 0.0
    %7264 = vmatpush1.msra.mxu0 %v7233
    %7265 = vmatprep.subr.mxu0 0.0
    %7266 = vmatpush1.msra.mxu0 0.0
    %7267 = vmatprep.subr.mxu0 0.0
    %7268 = vmatpush1.msra.mxu0 0.0
    %7269 = vmatprep.subr.mxu0 0.0
    %7270 = vmatpush1.msra.mxu0 0.0
    %7271 = vmatprep.subr.mxu0 0.0
    %7272 = vmatpush1.msra.mxu0 0.0
    %7273 = vmatprep.subr.mxu0 0.0
    %7274 = vmatpush1.msra.mxu0 0.0
    %7275 = vmatprep.subr.mxu0 0.0
    %7276 = vmatpush1.msra.mxu0 0.0
    %7277 = vmatprep.subr.mxu0 0.0
    %7278 = vmatpush1.msra.mxu0 0.0
    %7279 = vmatprep.subr.mxu0 0.0
    %7280 = vmatpush1.msra.mxu0 0.0
    %7281 = vmatprep.subr.mxu0 0.0
    %7282 = vmatpush1.msra.mxu0 0.0
    %7283 = vmatprep.subr.mxu0 0.0
    %7284 = vmatpush1.msra.mxu0 0.0
    %7285 = vmatprep.subr.mxu0 0.0
    %7286 = vmatpush1.msra.mxu0 0.0
    %7287 = vmatprep.subr.mxu0 0.0
    %7288 = vmatpush1.msra.mxu0 0.0
    %7289 = vmatprep.subr.mxu0 0.0
    %7290 = vmatpush1.msra.mxu0 0.0
    %7291 = vmatprep.subr.mxu0 0.0
    %7292 = vmatpush1.msra.mxu0 0.0
    %7293 = vmatprep.subr.mxu0 0.0
    %7294 = vmatpush1.msra.mxu0 0.0
    %7295 = vmatprep.subr.mxu0 0.0
    %7296 = vmatpush1.msra.mxu0 0.0
    %7297 = vmatprep.subr.mxu0 0.0
    %7298 = vmatpush1.msra.mxu0 0.0
    %7299 = vmatprep.subr.mxu0 0.0
    %7300 = vmatpush1.msra.mxu0 0.0
    %7301 = vmatprep.subr.mxu0 0.0
    %7302 = vmatpush1.msra.mxu0 0.0
    %7303 = vmatprep.subr.mxu0 0.0
    %7304 = vmatpush1.msra.mxu0 0.0
    %7305 = vmatprep.subr.mxu0 0.0
    %7306 = vmatpush1.msra.mxu0 0.0
    %7307 = vmatprep.subr.mxu0 0.0
    %7308 = vmatpush1.msra.mxu0 0.0
    %7309 = vmatprep.subr.mxu0 0.0
    %7310 = vmatpush1.msra.mxu0 0.0
    %7311 = vmatprep.subr.mxu0 0.0
    %7312 = vmatpush1.msra.mxu0 0.0
    %7313 = vmatprep.subr.mxu0 0.0
    %7314 = vmatpush1.msra.mxu0 0.0
    %7315 = vmatprep.subr.mxu0 0.0
    %7316 = vmatpush1.msra.mxu0 0.0
    %7317 = vmatprep.subr.mxu0 0.0
    %7318 = vmatpush1.msra.mxu0 0.0
    %7319 = vmatprep.subr.mxu0 0.0
    %7320 = vmatpush1.msra.mxu0 0.0
    %7321 = vmatprep.mubr.f32.mxu0 0.0
    %7322 = vmatmul.mubr.f32.gmra.mrb[0].mxu0 %v7255
    %v7323 = vpop.f32.mrb[0].mxu0
    %v7324 = vadd.f32 %v7237, %v7323
    %v7325 = vpop.f32.mrb[0].mxu0
    %7326 = vdwg.mxu0
    %v7327 = vld [vmem:[%s7] sm:$0xff]
    %v7328 = vld [vmem:[%s7 + $0x8] sm:$0xff]
    %v7329 = vld [vmem:[%s7 + $0x10] sm:$0xff]
    %v7330 = vld [vmem:[%s7 + $0x18] sm:$0xff]
    %v7331 = vld [vmem:[%s7 + $0x20] sm:$0xff]
    %v7332 = vld [vmem:[%s7 + $0x28] sm:$0xff]
    %v7333 = vld [vmem:[%s7 + $0x30] sm:$0xff]
    %v7334 = vld [vmem:[%s7 + $0x38] sm:$0xff]
    %v7335 = vld [vmem:[%s7 + $0x40] sm:$0xff]
    %v7336 = vld [vmem:[%s7 + $0x48] sm:$0xff]
    %v7337 = vld [vmem:[%s7 + $0x50] sm:$0xff]
    %v7338 = vld [vmem:[%s7 + $0x58] sm:$0xff]
    %v7339 = vld [vmem:[%s7 + $0x60] sm:$0xff]
    %v7340 = vld [vmem:[%s7 + $0x68] sm:$0xff]
    %v7341 = vld [vmem:[%s7 + $0x70] sm:$0xff]
    %v7342 = vld [vmem:[%s7 + $0x78] sm:$0xff]
    %v7343 = vlaneseq
    %v7344 = vshrl.u32 %v7343, 7
    %v7345 = vsub.s32 0, %v7344
    %v7346 = vrot.slane %v36, %v7345
    %7347 = vmatprep.subr.mxu0 0.0
    %7348 = vmatpush1.msra.mxu0 %v7327
    %7349 = vmatprep.subr.mxu0 0.0
    %7350 = vmatpush1.msra.mxu0 %v7328
    %7351 = vmatprep.subr.mxu0 0.0
    %7352 = vmatpush1.msra.mxu0 %v7329
    %7353 = vmatprep.subr.mxu0 0.0
    %7354 = vmatpush1.msra.mxu0 %v7330
    %7355 = vmatprep.subr.mxu0 0.0
    %7356 = vmatpush1.msra.mxu0 %v7331
    %7357 = vmatprep.subr.mxu0 0.0
    %7358 = vmatpush1.msra.mxu0 %v7332
    %7359 = vmatprep.subr.mxu0 0.0
    %7360 = vmatpush1.msra.mxu0 %v7333
    %7361 = vmatprep.subr.mxu0 0.0
    %7362 = vmatpush1.msra.mxu0 %v7334
    %7363 = vmatprep.subr.mxu0 0.0
    %7364 = vmatpush1.msra.mxu0 %v7335
    %7365 = vmatprep.subr.mxu0 0.0
    %7366 = vmatpush1.msra.mxu0 %v7336
    %7367 = vmatprep.subr.mxu0 0.0
    %7368 = vmatpush1.msra.mxu0 %v7337
    %7369 = vmatprep.subr.mxu0 0.0
    %7370 = vmatpush1.msra.mxu0 %v7338
    %7371 = vmatprep.subr.mxu0 0.0
    %7372 = vmatpush1.msra.mxu0 %v7339
    %7373 = vmatprep.subr.mxu0 0.0
    %7374 = vmatpush1.msra.mxu0 %v7340
    %7375 = vmatprep.subr.mxu0 0.0
    %7376 = vmatpush1.msra.mxu0 %v7341
    %7377 = vmatprep.subr.mxu0 0.0
    %7378 = vmatpush1.msra.mxu0 %v7342
    %7379 = vmatprep.subr.mxu0 0.0
    %7380 = vmatpush1.msra.mxu0 0.0
    %7381 = vmatprep.subr.mxu0 0.0
    %7382 = vmatpush1.msra.mxu0 0.0
    %7383 = vmatprep.subr.mxu0 0.0
    %7384 = vmatpush1.msra.mxu0 0.0
    %7385 = vmatprep.subr.mxu0 0.0
    %7386 = vmatpush1.msra.mxu0 0.0
    %7387 = vmatprep.subr.mxu0 0.0
    %7388 = vmatpush1.msra.mxu0 0.0
    %7389 = vmatprep.subr.mxu0 0.0
    %7390 = vmatpush1.msra.mxu0 0.0
    %7391 = vmatprep.subr.mxu0 0.0
    %7392 = vmatpush1.msra.mxu0 0.0
    %7393 = vmatprep.subr.mxu0 0.0
    %7394 = vmatpush1.msra.mxu0 0.0
    %7395 = vmatprep.subr.mxu0 0.0
    %7396 = vmatpush1.msra.mxu0 0.0
    %7397 = vmatprep.subr.mxu0 0.0
    %7398 = vmatpush1.msra.mxu0 0.0
    %7399 = vmatprep.subr.mxu0 0.0
    %7400 = vmatpush1.msra.mxu0 0.0
    %7401 = vmatprep.subr.mxu0 0.0
    %7402 = vmatpush1.msra.mxu0 0.0
    %7403 = vmatprep.subr.mxu0 0.0
    %7404 = vmatpush1.msra.mxu0 0.0
    %7405 = vmatprep.subr.mxu0 0.0
    %7406 = vmatpush1.msra.mxu0 0.0
    %7407 = vmatprep.subr.mxu0 0.0
    %7408 = vmatpush1.msra.mxu0 0.0
    %7409 = vmatprep.subr.mxu0 0.0
    %7410 = vmatpush1.msra.mxu0 0.0
    %7411 = vmatprep.mubr.f32.mxu0 0.0
    %7412 = vmatmul.mubr.f32.gmra.mrb[0].mxu0 %v7324
    %v7413 = vpop.f32.mrb[0].mxu0
    %v7414 = vadd.f32 %v7346, %v7413
    %v7415 = vpop.f32.mrb[0].mxu0
    %7416 = vdwg.mxu0
    %v7417 = vmax.f32 %v7414, 0.0
    %7418 = vst [vmem:[#allocation2] sm:$0x3] %v7417
    // Predicated region
    $region38: #{vitnet_forward.1} parent=1 // pred_check
      _
    $region39: #{vitnet_forward.1} parent=1 // pred_check_branch
      %7420 = sbr.rel (0) target = $region41
    $region40: #{vitnet_forward.1} parent=1 // pred_region
      %s7422 = ssub.s32 32, 32
      %7423 = vsyncadd [#allocation3], %s7422
      %s7425 = sshll.u32 [#allocation2], 4
      %s7426 = int_to_ptr.vmem [resolvable:$true] %s7425
      %7428 = dma.vmem_to_hbm [thread:$0]  %s7426, 32, %s9, [#allocation3]
    $region41: #{vitnet_forward.1} parent=1 // pred_fallthru
      _
    // Predicated region
    $region42: #{vitnet_forward.1} parent=1 // pred_check
      _
    $region43: #{vitnet_forward.1} parent=1 // pred_check_branch
      %7430 = sbr.rel (0) target = $region45
    $region44: #{vitnet_forward.1} parent=1 // pred_region
      %7431 = dma.done [#allocation3], 32
    $region45: #{vitnet_forward.1} parent=1 // pred_fallthru
      _
    %7432 = vsyncpa [#allocation3], 1

</llo_original>
